<compile_context>
chip_gen: v5e
topology: v5e:2x2
jax: 0.10.0
libtpu: 0.0.40
codegen_flags: <defaults>
</compile_context>

<pallas_src>
import functools

import jax
import jax.numpy as jnp
from jax.experimental import pallas as pl
from jax.experimental.pallas import tpu as pltpu


def _round_up(x, m):
    return (x + m - 1) // m * m


# ---------------------------------------------------------------------------
# Kernel A: per-tap MXU accumulation (both dilated convs fused) + BN partials.
#   x_ref    : (Cin, Hp*Wp)      bf16   flattened padded image (one batch elem)
#   w_ref    : (n_taps, CP, Cin) bf16   per-tap weights, CP = Cout padded to 8
#   mask_ref : (1, H*Wp)         f32    1.0 on valid output columns
#   y_ref    : (CP, H*Wp)        f32    raw conv output (channels on sublanes)
#   stat_ref : (CP, 2)           f32    per-image [sum, sumsq] per channel
# ---------------------------------------------------------------------------
def _conv_stats_kernel(x_ref, w_ref, mask_ref, y_ref, stat_ref, *, taps):
    cp, lout = y_ref.shape
    acc = jnp.zeros((cp, lout), jnp.float32)
    for t, start in enumerate(taps):          # static offsets -> static slices
        xs = x_ref[:, start:start + lout]     # (Cin, Lout) contiguous lane slice
        acc = acc + jnp.dot(w_ref[t], xs, preferred_element_type=jnp.float32)
    y_ref[...] = acc
    m = mask_ref[...]                         # exclude halo/garbage columns
    stat_ref[:, 0:1] = jnp.sum(acc * m, axis=1, keepdims=True)
    stat_ref[:, 1:2] = jnp.sum(acc * acc * m, axis=1, keepdims=True)


# ---------------------------------------------------------------------------
# Kernel B: BatchNorm apply + ReLU6 as a pure FMA + clip (scale/shift precomputed).
# ---------------------------------------------------------------------------
def _bn_relu6_kernel(scale_ref, shift_ref, y_ref, o_ref):
    o_ref[...] = jnp.clip(y_ref[...] * scale_ref[...] + shift_ref[...], 0.0, 6.0)


def dilated_conv_block(x_nchw, w1_oihw, w2_oihw, gamma, beta, eps=1e-5):
    N, Cin, H, W = x_nchw.shape
    Cb = w1_oihw.shape[0]
    Cout = 2 * Cb
    CP = _round_up(Cout, 8)              # channels sit on sublanes -> pad to 8
    PAD = 9                              # max of the two conv paddings
    Hp = H + 2 * PAD + 1                 # +1 bottom row keeps flat tap slices in-bounds
    Wp = W + 2 * PAD
    Lflat = Hp * Wp
    Lout = H * Wp                        # lanes per image; valid cols are (j % Wp) < W

    # ---- glue (~1x input traffic): cast to bf16 BEFORE padding, pad once,
    #      flatten spatial so every tap window is a contiguous lane slice.
    xpad = jnp.pad(x_nchw.astype(jnp.bfloat16),
                   ((0, 0), (0, 0), (PAD, PAD + 1), (PAD, PAD)))
    xflat = xpad.reshape(N, Cin, Lflat)

    # ---- per-tap weights: conv1 -> output rows [0,Cb), conv2 -> [Cb,Cout).
    tap_offsets, tap_weights = [], []
    for kh in range(3):                  # conv1: 3x3, dilation 2, padding 2
        for kw in range(3):
            tap_offsets.append((PAD - 2 + 2 * kh) * Wp + (PAD - 2 + 2 * kw))
            tap_weights.append(jnp.zeros((CP, Cin), jnp.float32)
                               .at[:Cb].set(w1_oihw[:, :, kh, kw]))
    for kh in range(7):                  # conv2: 7x7, dilation 3, padding 9
        for kw in range(7):
            tap_offsets.append((PAD - 9 + 3 * kh) * Wp + (PAD - 9 + 3 * kw))
            tap_weights.append(jnp.zeros((CP, Cin), jnp.float32)
                               .at[Cb:Cout].set(w2_oihw[:, :, kh, kw]))
    n_taps = len(tap_offsets)
    wtaps = jnp.stack(tap_weights, axis=0).astype(jnp.bfloat16)   # (58, CP, Cin)

    # Validity mask over the H*Wp output lanes (halo columns excluded from BN stats).
    mask = (jnp.arange(Lout, dtype=jnp.int32) % Wp < W).astype(jnp.float32)
    mask = mask.reshape(1, Lout)

    # ---- explicit VMEM budget: 2x double-buffered in/out tiles + resident consts.
    step_bytes = (2 * Cin * Lflat * 2 + 2 * CP * Lout * 4
                  + n_taps * CP * Cin * 2 + Lout * 4 + 2 * CP * 4)
    vmem_limit = int(min(max(4 * step_bytes, 16 * 2**20), 32 * 2**20))
    cparams = pltpu.CompilerParams(dimension_semantics=("parallel",),
                                   vmem_limit_bytes=vmem_limit)

    # ---- kernel A: fused dilated convs + per-image BN partial statistics ------
    y_raw, stats = pl.pallas_call(
        functools.partial(_conv_stats_kernel, taps=tuple(tap_offsets)),
        out_shape=(jax.ShapeDtypeStruct((N, CP, Lout), jnp.float32),
                   jax.ShapeDtypeStruct((N, CP, 2), jnp.float32)),
        grid=(N,),
        in_specs=[pl.BlockSpec((None, Cin, Lflat), lambda n: (n, 0, 0)),
                  pl.BlockSpec((n_taps, CP, Cin), lambda n: (0, 0, 0)),  # resident
                  pl.BlockSpec((1, Lout), lambda n: (0, 0))],            # resident
        out_specs=(pl.BlockSpec((None, CP, Lout), lambda n: (n, 0, 0)),
                   pl.BlockSpec((None, CP, 2), lambda n: (n, 0, 0))),
        compiler_params=cparams,
    )(xflat, wtaps, mask)

    # ---- tiny stats reduction + BN scale/shift precompute (plain JAX, O(N*CP)) --
    tot = jnp.sum(stats, axis=0)                             # (CP, 2)
    cnt = float(N * H * W)
    mean = tot[:, 0] / cnt
    # NOTE: E[x^2]-E[x]^2 in f32; fine at these sizes (clamped at 0 for safety).
    var = jnp.maximum(tot[:, 1] / cnt - mean * mean, 0.0)    # biased batch var
    inv = jax.lax.rsqrt(var + eps)
    gpad = jnp.zeros((CP,), jnp.float32).at[:Cout].set(gamma.astype(jnp.float32))
    bpad = jnp.zeros((CP,), jnp.float32).at[:Cout].set(beta.astype(jnp.float32))
    scale = (gpad * inv).reshape(CP, 1)
    shift = (bpad - mean * gpad * inv).reshape(CP, 1)

    # ---- kernel B: normalize + affine + ReLU6, written in place over y_raw -----
    y_act = pl.pallas_call(
        _bn_relu6_kernel,
        out_shape=jax.ShapeDtypeStruct((N, CP, Lout), jnp.float32),
        grid=(N,),
        in_specs=[pl.BlockSpec((CP, 1), lambda n: (0, 0)),
                  pl.BlockSpec((CP, 1), lambda n: (0, 0)),
                  pl.BlockSpec((None, CP, Lout), lambda n: (n, 0, 0))],
        out_specs=pl.BlockSpec((None, CP, Lout), lambda n: (n, 0, 0)),
        input_output_aliases={2: 0},
        compiler_params=cparams,
    )(scale, shift, y_raw)

    # ---- unpack: lane j = y*Wp + x  ->  (H, Wp), keep x < W, drop padded channels
    return y_act.reshape(N, CP, H, Wp)[:, :Cout, :, :W]


def reference(x_nchw, w1, w2, gamma, beta, eps=1e-5):
    """Plain-JAX reference matching the PyTorch forward (training-mode BN)."""
    dn = ('NCHW', 'OIHW', 'NCHW')
    o1 = jax.lax.conv_general_dilated(x_nchw, w1, (1, 1), ((2, 2), (2, 2)),
                                      rhs_dilation=(2, 2), dimension_numbers=dn,
                                      precision=jax.lax.Precision.HIGHEST)
    o2 = jax.lax.conv_general_dilated(x_nchw, w2, (1, 1), ((9, 9), (9, 9)),
                                      rhs_dilation=(3, 3), dimension_numbers=dn,
                                      precision=jax.lax.Precision.HIGHEST)
    y = jnp.concatenate([o1, o2], axis=1)
    mean = jnp.mean(y, axis=(0, 2, 3), keepdims=True)
    var = jnp.mean((y - mean) ** 2, axis=(0, 2, 3), keepdims=True)
    yn = (y - mean) * jax.lax.rsqrt(var + eps)
    yn = yn * gamma.reshape(1, -1, 1, 1) + beta.reshape(1, -1, 1, 1)
    return jnp.clip(yn, 0.0, 6.0)


if __name__ == "__main__":
    key = jax.random.PRNGKey(0)
    kx, k1, k2, kg, kb = jax.random.split(key, 5)
    N, Cin, H, W = 2, 4, 16, 16
    Cout = 8
    Cb = Cout // 2   # base_channels = out_channels // 2

    x = jax.random.normal(kx, (N, Cin, H, W), jnp.float32)
    # Conv2d weights, PyTorch OIHW layout, bias=False.
    w1 = jax.random.normal(k1, (Cb, Cin, 3, 3), jnp.float32) / (Cin * 9) ** 0.5
    w2 = jax.random.normal(k2, (Cb, Cin, 7, 7), jnp.float32) / (Cin * 49) ** 0.5
    # BatchNorm affine params (perturbed from PyTorch defaults gamma=1, beta=0).
    gamma = 1.0 + 0.1 * jax.random.normal(kg, (Cout,), jnp.float32)
    beta = 0.1 * jax.random.normal(kb, (Cout,), jnp.float32)

    fwd = jax.jit(dilated_conv_block)
    out = jax.block_until_ready(fwd(x, w1, w2, gamma, beta))

    ref = reference(x, w1, w2, gamma, beta)
    assert out.shape == (N, Cout, H, W)
    err = float(jnp.max(jnp.abs(out - ref)))
    assert bool(jnp.allclose(out, ref, atol=3e-2, rtol=3e-2)), err
    print("KERNEL_OK")
</pallas_src>

<mosaic_0001>
module attributes {stable_mosaic.version = 11 : i64} {
  func.func @_bn_relu6_kernel(%arg0: i32, %arg1: memref<8x1xf32, #tpu.memory_space<vmem>>, %arg2: memref<8x1xf32, #tpu.memory_space<vmem>>, %arg3: memref<1x8x544xf32, #tpu.memory_space<vmem>>, %arg4: memref<1x8x544xf32, #tpu.memory_space<vmem>>) attributes {dimension_semantics = [#tpu.dimension_semantics<parallel>], iteration_bounds = array<i64: 2>, scalar_prefetch = 0 : i64, scratch_operands = 0 : i64, tpu.core_type = #tpu.core_type<tc>, window_params = [{pipeline_mode = #tpu.pipeline_mode<synchronous>, transform_indices = @transform_0, window_bounds = array<i64: 8, 1>}, {pipeline_mode = #tpu.pipeline_mode<synchronous>, transform_indices = @transform_1, window_bounds = array<i64: 8, 1>}, {transform_indices = @transform_2, window_bounds = array<i64: 1, 8, 544>}, {transform_indices = @transform_3, window_bounds = array<i64: 1, 8, 544>}]} {
    %c0 = arith.constant 0 : index
    %c0_0 = arith.constant 0 : index
    %c0_1 = arith.constant 0 : index
    %0 = vector.load %arg3[%c0, %c0_0, %c0_1] : memref<1x8x544xf32, #tpu.memory_space<vmem>>, vector<1x8x544xf32>
    %1 = vector.shape_cast %0 : vector<1x8x544xf32> to vector<8x544xf32>
    %c0_2 = arith.constant 0 : index
    %c0_3 = arith.constant 0 : index
    %2 = vector.load %arg1[%c0_2, %c0_3] : memref<8x1xf32, #tpu.memory_space<vmem>>, vector<8x1xf32>
    %3 = vector.broadcast %2 : vector<8x1xf32> to vector<8x544xf32>
    %4 = arith.mulf %1, %3 : vector<8x544xf32>
    %c0_4 = arith.constant 0 : index
    %c0_5 = arith.constant 0 : index
    %5 = vector.load %arg2[%c0_4, %c0_5] : memref<8x1xf32, #tpu.memory_space<vmem>>, vector<8x1xf32>
    %6 = vector.broadcast %5 : vector<8x1xf32> to vector<8x544xf32>
    %7 = arith.addf %4, %6 : vector<8x544xf32>
    %cst = arith.constant 0.000000e+00 : f32
    %cst_6 = arith.constant 6.000000e+00 : f32
    %8 = vector.broadcast %cst : f32 to vector<8x544xf32>
    %9 = arith.maximumf %8, %7 : vector<8x544xf32>
    %10 = vector.broadcast %cst_6 : f32 to vector<8x544xf32>
    %11 = arith.minimumf %10, %9 : vector<8x544xf32>
    %c0_7 = arith.constant 0 : index
    %c0_8 = arith.constant 0 : index
    %c0_9 = arith.constant 0 : index
    %12 = vector.load %arg4[%c0_7, %c0_8, %c0_9] : memref<1x8x544xf32, #tpu.memory_space<vmem>>, vector<1x8x544xf32>
    %13 = vector.shape_cast %12 : vector<1x8x544xf32> to vector<8x544xf32>
    %14 = vector.shape_cast %11 : vector<8x544xf32> to vector<1x8x544xf32>
    tpu.vector_store %arg4[%c0_7, %c0_8, %c0_9], %14 {strides = array<i32>} : memref<1x8x544xf32, #tpu.memory_space<vmem>>, vector<1x8x544xf32>,
    return
  }
  func.func @transform_0(%arg0: i32) -> (i32, i32) {
    %c0_i32 = arith.constant 0 : i32
    %c0_i32_0 = arith.constant 0 : i32
    %c0_i32_1 = arith.constant 0 : i32
    return %c0_i32, %c0_i32_0 : i32, i32
  }
  func.func @transform_1(%arg0: i32) -> (i32, i32) {
    %c0_i32 = arith.constant 0 : i32
    %c0_i32_0 = arith.constant 0 : i32
    %c0_i32_1 = arith.constant 0 : i32
    return %c0_i32, %c0_i32_0 : i32, i32
  }
  func.func @transform_2(%arg0: i32) -> (i32, i32, i32) {
    %c0_i32 = arith.constant 0 : i32
    %c0_i32_0 = arith.constant 0 : i32
    %c0_i32_1 = arith.constant 0 : i32
    return %arg0, %c0_i32, %c0_i32_0 : i32, i32, i32
  }
  func.func @transform_3(%arg0: i32) -> (i32, i32, i32) {
    %c0_i32 = arith.constant 0 : i32
    %c0_i32_0 = arith.constant 0 : i32
    %c0_i32_1 = arith.constant 0 : i32
    return %arg0, %c0_i32, %c0_i32_0 : i32, i32, i32
  }
}

module attributes {stable_mosaic.version = 11 : i64} {
  func.func @_conv_stats_kernel(%arg0: i32, %arg1: memref<1x4x1190xbf16, #tpu.memory_space<vmem>>, %arg2: memref<58x8x4xbf16, #tpu.memory_space<vmem>>, %arg3: memref<1x544xf32, #tpu.memory_space<vmem>>, %arg4: memref<1x8x544xf32, #tpu.memory_space<vmem>>, %arg5: memref<1x8x2xf32, #tpu.memory_space<vmem>>) attributes {dimension_semantics = [#tpu.dimension_semantics<parallel>], iteration_bounds = array<i64: 2>, scalar_prefetch = 0 : i64, scratch_operands = 0 : i64, tpu.core_type = #tpu.core_type<tc>, window_params = [{transform_indices = @transform_0, window_bounds = array<i64: 1, 4, 1190>}, {pipeline_mode = #tpu.pipeline_mode<synchronous>, transform_indices = @transform_1, window_bounds = array<i64: 58, 8, 4>}, {pipeline_mode = #tpu.pipeline_mode<synchronous>, transform_indices = @transform_2, window_bounds = array<i64: 1, 544>}, {transform_indices = @transform_3, window_bounds = array<i64: 1, 8, 544>}, {transform_indices = @transform_4, window_bounds = array<i64: 1, 8, 2>}]} {
    %cst = arith.constant 0.000000e+00 : f32
    %0 = vector.broadcast %cst : f32 to vector<8x544xf32>
    %c0 = arith.constant 0 : index
    %c0_0 = arith.constant 0 : index
    %c245 = arith.constant 245 : index
    %1 = vector.load %arg1[%c0, %c0_0, %c245] : memref<1x4x1190xbf16, #tpu.memory_space<vmem>>, vector<1x4x544xbf16>
    %2 = vector.shape_cast %1 : vector<1x4x544xbf16> to vector<4x544xbf16>
    %c0_1 = arith.constant 0 : index
    %c0_2 = arith.constant 0 : index
    %c0_3 = arith.constant 0 : index
    %3 = vector.load %arg2[%c0_1, %c0_2, %c0_3] : memref<58x8x4xbf16, #tpu.memory_space<vmem>>, vector<1x8x4xbf16>
    %4 = vector.shape_cast %3 : vector<1x8x4xbf16> to vector<8x4xbf16>
    %cst_4 = arith.constant dense<0.000000e+00> : vector<8x544xf32>
    %5 = tpu.matmul %4, %2, %cst_4 {dimension_numbers = #tpu.dot_dimension_numbers<[1], [0], [0], [1], [0, 0, 1, 1], [], []>} : vector<8x4xbf16>, vector<4x544xbf16>, vector<8x544xf32> -> vector<8x544xf32>
    %6 = arith.addf %0, %5 : vector<8x544xf32>
    %c0_5 = arith.constant 0 : index
    %c0_6 = arith.constant 0 : index
    %c247 = arith.constant 247 : index
    %7 = vector.load %arg1[%c0_5, %c0_6, %c247] : memref<1x4x1190xbf16, #tpu.memory_space<vmem>>, vector<1x4x544xbf16>
    %8 = vector.shape_cast %7 : vector<1x4x544xbf16> to vector<4x544xbf16>
    %c1 = arith.constant 1 : index
    %c0_7 = arith.constant 0 : index
    %c0_8 = arith.constant 0 : index
    %9 = vector.load %arg2[%c1, %c0_7, %c0_8] : memref<58x8x4xbf16, #tpu.memory_space<vmem>>, vector<1x8x4xbf16>
    %10 = vector.shape_cast %9 : vector<1x8x4xbf16> to vector<8x4xbf16>
    %cst_9 = arith.constant dense<0.000000e+00> : vector<8x544xf32>
    %11 = tpu.matmul %10, %8, %cst_9 {dimension_numbers = #tpu.dot_dimension_numbers<[1], [0], [0], [1], [0, 0, 1, 1], [], []>} : vector<8x4xbf16>, vector<4x544xbf16>, vector<8x544xf32> -> vector<8x544xf32>
    %12 = arith.addf %6, %11 : vector<8x544xf32>
    %c0_10 = arith.constant 0 : index
    %c0_11 = arith.constant 0 : index
    %c249 = arith.constant 249 : index
    %13 = vector.load %arg1[%c0_10, %c0_11, %c249] : memref<1x4x1190xbf16, #tpu.memory_space<vmem>>, vector<1x4x544xbf16>
    %14 = vector.shape_cast %13 : vector<1x4x544xbf16> to vector<4x544xbf16>
    %c2 = arith.constant 2 : index
    %c0_12 = arith.constant 0 : index
    %c0_13 = arith.constant 0 : index
    %15 = vector.load %arg2[%c2, %c0_12, %c0_13] : memref<58x8x4xbf16, #tpu.memory_space<vmem>>, vector<1x8x4xbf16>
    %16 = vector.shape_cast %15 : vector<1x8x4xbf16> to vector<8x4xbf16>
    %cst_14 = arith.constant dense<0.000000e+00> : vector<8x544xf32>
    %17 = tpu.matmul %16, %14, %cst_14 {dimension_numbers = #tpu.dot_dimension_numbers<[1], [0], [0], [1], [0, 0, 1, 1], [], []>} : vector<8x4xbf16>, vector<4x544xbf16>, vector<8x544xf32> -> vector<8x544xf32>
    %18 = arith.addf %12, %17 : vector<8x544xf32>
    %c0_15 = arith.constant 0 : index
    %c0_16 = arith.constant 0 : index
    %c313 = arith.constant 313 : index
    %19 = vector.load %arg1[%c0_15, %c0_16, %c313] : memref<1x4x1190xbf16, #tpu.memory_space<vmem>>, vector<1x4x544xbf16>
    %20 = vector.shape_cast %19 : vector<1x4x544xbf16> to vector<4x544xbf16>
    %c3 = arith.constant 3 : index
    %c0_17 = arith.constant 0 : index
    %c0_18 = arith.constant 0 : index
    %21 = vector.load %arg2[%c3, %c0_17, %c0_18] : memref<58x8x4xbf16, #tpu.memory_space<vmem>>, vector<1x8x4xbf16>
    %22 = vector.shape_cast %21 : vector<1x8x4xbf16> to vector<8x4xbf16>
    %cst_19 = arith.constant dense<0.000000e+00> : vector<8x544xf32>
    %23 = tpu.matmul %22, %20, %cst_19 {dimension_numbers = #tpu.dot_dimension_numbers<[1], [0], [0], [1], [0, 0, 1, 1], [], []>} : vector<8x4xbf16>, vector<4x544xbf16>, vector<8x544xf32> -> vector<8x544xf32>
    %24 = arith.addf %18, %23 : vector<8x544xf32>
    %c0_20 = arith.constant 0 : index
    %c0_21 = arith.constant 0 : index
    %c315 = arith.constant 315 : index
    %25 = vector.load %arg1[%c0_20, %c0_21, %c315] : memref<1x4x1190xbf16, #tpu.memory_space<vmem>>, vector<1x4x544xbf16>
    %26 = vector.shape_cast %25 : vector<1x4x544xbf16> to vector<4x544xbf16>
    %c4 = arith.constant 4 : index
    %c0_22 = arith.constant 0 : index
    %c0_23 = arith.constant 0 : index
    %27 = vector.load %arg2[%c4, %c0_22, %c0_23] : memref<58x8x4xbf16, #tpu.memory_space<vmem>>, vector<1x8x4xbf16>
    %28 = vector.shape_cast %27 : vector<1x8x4xbf16> to vector<8x4xbf16>
    %cst_24 = arith.constant dense<0.000000e+00> : vector<8x544xf32>
    %29 = tpu.matmul %28, %26, %cst_24 {dimension_numbers = #tpu.dot_dimension_numbers<[1], [0], [0], [1], [0, 0, 1, 1], [], []>} : vector<8x4xbf16>, vector<4x544xbf16>, vector<8x544xf32> -> vector<8x544xf32>
    %30 = arith.addf %24, %29 : vector<8x544xf32>
    %c0_25 = arith.constant 0 : index
    %c0_26 = arith.constant 0 : index
    %c317 = arith.constant 317 : index
    %31 = vector.load %arg1[%c0_25, %c0_26, %c317] : memref<1x4x1190xbf16, #tpu.memory_space<vmem>>, vector<1x4x544xbf16>
    %32 = vector.shape_cast %31 : vector<1x4x544xbf16> to vector<4x544xbf16>
    %c5 = arith.constant 5 : index
    %c0_27 = arith.constant 0 : index
    %c0_28 = arith.constant 0 : index
    %33 = vector.load %arg2[%c5, %c0_27, %c0_28] : memref<58x8x4xbf16, #tpu.memory_space<vmem>>, vector<1x8x4xbf16>
    %34 = vector.shape_cast %33 : vector<1x8x4xbf16> to vector<8x4xbf16>
    %cst_29 = arith.constant dense<0.000000e+00> : vector<8x544xf32>
    %35 = tpu.matmul %34, %32, %cst_29 {dimension_numbers = #tpu.dot_dimension_numbers<[1], [0], [0], [1], [0, 0, 1, 1], [], []>} : vector<8x4xbf16>, vector<4x544xbf16>, vector<8x544xf32> -> vector<8x544xf32>
    %36 = arith.addf %30, %35 : vector<8x544xf32>
    %c0_30 = arith.constant 0 : index
    %c0_31 = arith.constant 0 : index
    %c381 = arith.constant 381 : index
    %37 = vector.load %arg1[%c0_30, %c0_31, %c381] : memref<1x4x1190xbf16, #tpu.memory_space<vmem>>, vector<1x4x544xbf16>
    %38 = vector.shape_cast %37 : vector<1x4x544xbf16> to vector<4x544xbf16>
    %c6 = arith.constant 6 : index
    %c0_32 = arith.constant 0 : index
    %c0_33 = arith.constant 0 : index
    %39 = vector.load %arg2[%c6, %c0_32, %c0_33] : memref<58x8x4xbf16, #tpu.memory_space<vmem>>, vector<1x8x4xbf16>
    %40 = vector.shape_cast %39 : vector<1x8x4xbf16> to vector<8x4xbf16>
    %cst_34 = arith.constant dense<0.000000e+00> : vector<8x544xf32>
    %41 = tpu.matmul %40, %38, %cst_34 {dimension_numbers = #tpu.dot_dimension_numbers<[1], [0], [0], [1], [0, 0, 1, 1], [], []>} : vector<8x4xbf16>, vector<4x544xbf16>, vector<8x544xf32> -> vector<8x544xf32>
    %42 = arith.addf %36, %41 : vector<8x544xf32>
    %c0_35 = arith.constant 0 : index
    %c0_36 = arith.constant 0 : index
    %c383 = arith.constant 383 : index
    %43 = vector.load %arg1[%c0_35, %c0_36, %c383] : memref<1x4x1190xbf16, #tpu.memory_space<vmem>>, vector<1x4x544xbf16>
    %44 = vector.shape_cast %43 : vector<1x4x544xbf16> to vector<4x544xbf16>
    %c7 = arith.constant 7 : index
    %c0_37 = arith.constant 0 : index
    %c0_38 = arith.constant 0 : index
    %45 = vector.load %arg2[%c7, %c0_37, %c0_38] : memref<58x8x4xbf16, #tpu.memory_space<vmem>>, vector<1x8x4xbf16>
    %46 = vector.shape_cast %45 : vector<1x8x4xbf16> to vector<8x4xbf16>
    %cst_39 = arith.constant dense<0.000000e+00> : vector<8x544xf32>
    %47 = tpu.matmul %46, %44, %cst_39 {dimension_numbers = #tpu.dot_dimension_numbers<[1], [0], [0], [1], [0, 0, 1, 1], [], []>} : vector<8x4xbf16>, vector<4x544xbf16>, vector<8x544xf32> -> vector<8x544xf32>
    %48 = arith.addf %42, %47 : vector<8x544xf32>
    %c0_40 = arith.constant 0 : index
    %c0_41 = arith.constant 0 : index
    %c385 = arith.constant 385 : index
    %49 = vector.load %arg1[%c0_40, %c0_41, %c385] : memref<1x4x1190xbf16, #tpu.memory_space<vmem>>, vector<1x4x544xbf16>
    %50 = vector.shape_cast %49 : vector<1x4x544xbf16> to vector<4x544xbf16>
    %c8 = arith.constant 8 : index
    %c0_42 = arith.constant 0 : index
    %c0_43 = arith.constant 0 : index
    %51 = vector.load %arg2[%c8, %c0_42, %c0_43] : memref<58x8x4xbf16, #tpu.memory_space<vmem>>, vector<1x8x4xbf16>
    %52 = vector.shape_cast %51 : vector<1x8x4xbf16> to vector<8x4xbf16>
    %cst_44 = arith.constant dense<0.000000e+00> : vector<8x544xf32>
    %53 = tpu.matmul %52, %50, %cst_44 {dimension_numbers = #tpu.dot_dimension_numbers<[1], [0], [0], [1], [0, 0, 1, 1], [], []>} : vector<8x4xbf16>, vector<4x544xbf16>, vector<8x544xf32> -> vector<8x544xf32>
    %54 = arith.addf %48, %53 : vector<8x544xf32>
    %c0_45 = arith.constant 0 : index
    %c0_46 = arith.constant 0 : index
    %c0_47 = arith.constant 0 : index
    %55 = vector.load %arg1[%c0_45, %c0_46, %c0_47] : memref<1x4x1190xbf16, #tpu.memory_space<vmem>>, vector<1x4x544xbf16>
    %56 = vector.shape_cast %55 : vector<1x4x544xbf16> to vector<4x544xbf16>
    %c9 = arith.constant 9 : index
    %c0_48 = arith.constant 0 : index
    %c0_49 = arith.constant 0 : index
    %57 = vector.load %arg2[%c9, %c0_48, %c0_49] : memref<58x8x4xbf16, #tpu.memory_space<vmem>>, vector<1x8x4xbf16>
    %58 = vector.shape_cast %57 : vector<1x8x4xbf16> to vector<8x4xbf16>
    %cst_50 = arith.constant dense<0.000000e+00> : vector<8x544xf32>
    %59 = tpu.matmul %58, %56, %cst_50 {dimension_numbers = #tpu.dot_dimension_numbers<[1], [0], [0], [1], [0, 0, 1, 1], [], []>} : vector<8x4xbf16>, vector<4x544xbf16>, vector<8x544xf32> -> vector<8x544xf32>
    %60 = arith.addf %54, %59 : vector<8x544xf32>
    %c0_51 = arith.constant 0 : index
    %c0_52 = arith.constant 0 : index
    %c3_53 = arith.constant 3 : index
    %61 = vector.load %arg1[%c0_51, %c0_52, %c3_53] : memref<1x4x1190xbf16, #tpu.memory_space<vmem>>, vector<1x4x544xbf16>
    %62 = vector.shape_cast %61 : vector<1x4x544xbf16> to vector<4x544xbf16>
    %c10 = arith.constant 10 : index
    %c0_54 = arith.constant 0 : index
    %c0_55 = arith.constant 0 : index
    %63 = vector.load %arg2[%c10, %c0_54, %c0_55] : memref<58x8x4xbf16, #tpu.memory_space<vmem>>, vector<1x8x4xbf16>
    %64 = vector.shape_cast %63 : vector<1x8x4xbf16> to vector<8x4xbf16>
    %cst_56 = arith.constant dense<0.000000e+00> : vector<8x544xf32>
    %65 = tpu.matmul %64, %62, %cst_56 {dimension_numbers = #tpu.dot_dimension_numbers<[1], [0], [0], [1], [0, 0, 1, 1], [], []>} : vector<8x4xbf16>, vector<4x544xbf16>, vector<8x544xf32> -> vector<8x544xf32>
    %66 = arith.addf %60, %65 : vector<8x544xf32>
    %c0_57 = arith.constant 0 : index
    %c0_58 = arith.constant 0 : index
    %c6_59 = arith.constant 6 : index
    %67 = vector.load %arg1[%c0_57, %c0_58, %c6_59] : memref<1x4x1190xbf16, #tpu.memory_space<vmem>>, vector<1x4x544xbf16>
    %68 = vector.shape_cast %67 : vector<1x4x544xbf16> to vector<4x544xbf16>
    %c11 = arith.constant 11 : index
    %c0_60 = arith.constant 0 : index
    %c0_61 = arith.constant 0 : index
    %69 = vector.load %arg2[%c11, %c0_60, %c0_61] : memref<58x8x4xbf16, #tpu.memory_space<vmem>>, vector<1x8x4xbf16>
    %70 = vector.shape_cast %69 : vector<1x8x4xbf16> to vector<8x4xbf16>
    %cst_62 = arith.constant dense<0.000000e+00> : vector<8x544xf32>
    %71 = tpu.matmul %70, %68, %cst_62 {dimension_numbers = #tpu.dot_dimension_numbers<[1], [0], [0], [1], [0, 0, 1, 1], [], []>} : vector<8x4xbf16>, vector<4x544xbf16>, vector<8x544xf32> -> vector<8x544xf32>
    %72 = arith.addf %66, %71 : vector<8x544xf32>
    %c0_63 = arith.constant 0 : index
    %c0_64 = arith.constant 0 : index
    %c9_65 = arith.constant 9 : index
    %73 = vector.load %arg1[%c0_63, %c0_64, %c9_65] : memref<1x4x1190xbf16, #tpu.memory_space<vmem>>, vector<1x4x544xbf16>
    %74 = vector.shape_cast %73 : vector<1x4x544xbf16> to vector<4x544xbf16>
    %c12 = arith.constant 12 : index
    %c0_66 = arith.constant 0 : index
    %c0_67 = arith.constant 0 : index
    %75 = vector.load %arg2[%c12, %c0_66, %c0_67] : memref<58x8x4xbf16, #tpu.memory_space<vmem>>, vector<1x8x4xbf16>
    %76 = vector.shape_cast %75 : vector<1x8x4xbf16> to vector<8x4xbf16>
    %cst_68 = arith.constant dense<0.000000e+00> : vector<8x544xf32>
    %77 = tpu.matmul %76, %74, %cst_68 {dimension_numbers = #tpu.dot_dimension_numbers<[1], [0], [0], [1], [0, 0, 1, 1], [], []>} : vector<8x4xbf16>, vector<4x544xbf16>, vector<8x544xf32> -> vector<8x544xf32>
    %78 = arith.addf %72, %77 : vector<8x544xf32>
    %c0_69 = arith.constant 0 : index
    %c0_70 = arith.constant 0 : index
    %c12_71 = arith.constant 12 : index
    %79 = vector.load %arg1[%c0_69, %c0_70, %c12_71] : memref<1x4x1190xbf16, #tpu.memory_space<vmem>>, vector<1x4x544xbf16>
    %80 = vector.shape_cast %79 : vector<1x4x544xbf16> to vector<4x544xbf16>
    %c13 = arith.constant 13 : index
    %c0_72 = arith.constant 0 : index
    %c0_73 = arith.constant 0 : index
    %81 = vector.load %arg2[%c13, %c0_72, %c0_73] : memref<58x8x4xbf16, #tpu.memory_space<vmem>>, vector<1x8x4xbf16>
    %82 = vector.shape_cast %81 : vector<1x8x4xbf16> to vector<8x4xbf16>
    %cst_74 = arith.constant dense<0.000000e+00> : vector<8x544xf32>
    %83 = tpu.matmul %82, %80, %cst_74 {dimension_numbers = #tpu.dot_dimension_numbers<[1], [0], [0], [1], [0, 0, 1, 1], [], []>} : vector<8x4xbf16>, vector<4x544xbf16>, vector<8x544xf32> -> vector<8x544xf32>
    %84 = arith.addf %78, %83 : vector<8x544xf32>
    %c0_75 = arith.constant 0 : index
    %c0_76 = arith.constant 0 : index
    %c15 = arith.constant 15 : index
    %85 = vector.load %arg1[%c0_75, %c0_76, %c15] : memref<1x4x1190xbf16, #tpu.memory_space<vmem>>, vector<1x4x544xbf16>
    %86 = vector.shape_cast %85 : vector<1x4x544xbf16> to vector<4x544xbf16>
    %c14 = arith.constant 14 : index
    %c0_77 = arith.constant 0 : index
    %c0_78 = arith.constant 0 : index
    %87 = vector.load %arg2[%c14, %c0_77, %c0_78] : memref<58x8x4xbf16, #tpu.memory_space<vmem>>, vector<1x8x4xbf16>
    %88 = vector.shape_cast %87 : vector<1x8x4xbf16> to vector<8x4xbf16>
    %cst_79 = arith.constant dense<0.000000e+00> : vector<8x544xf32>
    %89 = tpu.matmul %88, %86, %cst_79 {dimension_numbers = #tpu.dot_dimension_numbers<[1], [0], [0], [1], [0, 0, 1, 1], [], []>} : vector<8x4xbf16>, vector<4x544xbf16>, vector<8x544xf32> -> vector<8x544xf32>
    %90 = arith.addf %84, %89 : vector<8x544xf32>
    %c0_80 = arith.constant 0 : index
    %c0_81 = arith.constant 0 : index
    %c18 = arith.constant 18 : index
    %91 = vector.load %arg1[%c0_80, %c0_81, %c18] : memref<1x4x1190xbf16, #tpu.memory_space<vmem>>, vector<1x4x544xbf16>
    %92 = vector.shape_cast %91 : vector<1x4x544xbf16> to vector<4x544xbf16>
    %c15_82 = arith.constant 15 : index
    %c0_83 = arith.constant 0 : index
    %c0_84 = arith.constant 0 : index
    %93 = vector.load %arg2[%c15_82, %c0_83, %c0_84] : memref<58x8x4xbf16, #tpu.memory_space<vmem>>, vector<1x8x4xbf16>
    %94 = vector.shape_cast %93 : vector<1x8x4xbf16> to vector<8x4xbf16>
    %cst_85 = arith.constant dense<0.000000e+00> : vector<8x544xf32>
    %95 = tpu.matmul %94, %92, %cst_85 {dimension_numbers = #tpu.dot_dimension_numbers<[1], [0], [0], [1], [0, 0, 1, 1], [], []>} : vector<8x4xbf16>, vector<4x544xbf16>, vector<8x544xf32> -> vector<8x544xf32>
    %96 = arith.addf %90, %95 : vector<8x544xf32>
    %c0_86 = arith.constant 0 : index
    %c0_87 = arith.constant 0 : index
    %c102 = arith.constant 102 : index
    %97 = vector.load %arg1[%c0_86, %c0_87, %c102] : memref<1x4x1190xbf16, #tpu.memory_space<vmem>>, vector<1x4x544xbf16>
    %98 = vector.shape_cast %97 : vector<1x4x544xbf16> to vector<4x544xbf16>
    %c16 = arith.constant 16 : index
    %c0_88 = arith.constant 0 : index
    %c0_89 = arith.constant 0 : index
    %99 = vector.load %arg2[%c16, %c0_88, %c0_89] : memref<58x8x4xbf16, #tpu.memory_space<vmem>>, vector<1x8x4xbf16>
    %100 = vector.shape_cast %99 : vector<1x8x4xbf16> to vector<8x4xbf16>
    %cst_90 = arith.constant dense<0.000000e+00> : vector<8x544xf32>
    %101 = tpu.matmul %100, %98, %cst_90 {dimension_numbers = #tpu.dot_dimension_numbers<[1], [0], [0], [1], [0, 0, 1, 1], [], []>} : vector<8x4xbf16>, vector<4x544xbf16>, vector<8x544xf32> -> vector<8x544xf32>
    %102 = arith.addf %96, %101 : vector<8x544xf32>
    %c0_91 = arith.constant 0 : index
    %c0_92 = arith.constant 0 : index
    %c105 = arith.constant 105 : index
    %103 = vector.load %arg1[%c0_91, %c0_92, %c105] : memref<1x4x1190xbf16, #tpu.memory_space<vmem>>, vector<1x4x544xbf16>
    %104 = vector.shape_cast %103 : vector<1x4x544xbf16> to vector<4x544xbf16>
    %c17 = arith.constant 17 : index
    %c0_93 = arith.constant 0 : index
    %c0_94 = arith.constant 0 : index
    %105 = vector.load %arg2[%c17, %c0_93, %c0_94] : memref<58x8x4xbf16, #tpu.memory_space<vmem>>, vector<1x8x4xbf16>
    %106 = vector.shape_cast %105 : vector<1x8x4xbf16> to vector<8x4xbf16>
    %cst_95 = arith.constant dense<0.000000e+00> : vector<8x544xf32>
    %107 = tpu.matmul %106, %104, %cst_95 {dimension_numbers = #tpu.dot_dimension_numbers<[1], [0], [0], [1], [0, 0, 1, 1], [], []>} : vector<8x4xbf16>, vector<4x544xbf16>, vector<8x544xf32> -> vector<8x544xf32>
    %108 = arith.addf %102, %107 : vector<8x544xf32>
    %c0_96 = arith.constant 0 : index
    %c0_97 = arith.constant 0 : index
    %c108 = arith.constant 108 : index
    %109 = vector.load %arg1[%c0_96, %c0_97, %c108] : memref<1x4x1190xbf16, #tpu.memory_space<vmem>>, vector<1x4x544xbf16>
    %110 = vector.shape_cast %109 : vector<1x4x544xbf16> to vector<4x544xbf16>
    %c18_98 = arith.constant 18 : index
    %c0_99 = arith.constant 0 : index
    %c0_100 = arith.constant 0 : index
    %111 = vector.load %arg2[%c18_98, %c0_99, %c0_100] : memref<58x8x4xbf16, #tpu.memory_space<vmem>>, vector<1x8x4xbf16>
    %112 = vector.shape_cast %111 : vector<1x8x4xbf16> to vector<8x4xbf16>
    %cst_101 = arith.constant dense<0.000000e+00> : vector<8x544xf32>
    %113 = tpu.matmul %112, %110, %cst_101 {dimension_numbers = #tpu.dot_dimension_numbers<[1], [0], [0], [1], [0, 0, 1, 1], [], []>} : vector<8x4xbf16>, vector<4x544xbf16>, vector<8x544xf32> -> vector<8x544xf32>
    %114 = arith.addf %108, %113 : vector<8x544xf32>
    %c0_102 = arith.constant 0 : index
    %c0_103 = arith.constant 0 : index
    %c111 = arith.constant 111 : index
    %115 = vector.load %arg1[%c0_102, %c0_103, %c111] : memref<1x4x1190xbf16, #tpu.memory_space<vmem>>, vector<1x4x544xbf16>
    %116 = vector.shape_cast %115 : vector<1x4x544xbf16> to vector<4x544xbf16>
    %c19 = arith.constant 19 : index
    %c0_104 = arith.constant 0 : index
    %c0_105 = arith.constant 0 : index
    %117 = vector.load %arg2[%c19, %c0_104, %c0_105] : memref<58x8x4xbf16, #tpu.memory_space<vmem>>, vector<1x8x4xbf16>
    %118 = vector.shape_cast %117 : vector<1x8x4xbf16> to vector<8x4xbf16>
    %cst_106 = arith.constant dense<0.000000e+00> : vector<8x544xf32>
    %119 = tpu.matmul %118, %116, %cst_106 {dimension_numbers = #tpu.dot_dimension_numbers<[1], [0], [0], [1], [0, 0, 1, 1], [], []>} : vector<8x4xbf16>, vector<4x544xbf16>, vector<8x544xf32> -> vector<8x544xf32>
    %120 = arith.addf %114, %119 : vector<8x544xf32>
    %c0_107 = arith.constant 0 : index
    %c0_108 = arith.constant 0 : index
    %c114 = arith.constant 114 : index
    %121 = vector.load %arg1[%c0_107, %c0_108, %c114] : memref<1x4x1190xbf16, #tpu.memory_space<vmem>>, vector<1x4x544xbf16>
    %122 = vector.shape_cast %121 : vector<1x4x544xbf16> to vector<4x544xbf16>
    %c20 = arith.constant 20 : index
    %c0_109 = arith.constant 0 : index
    %c0_110 = arith.constant 0 : index
    %123 = vector.load %arg2[%c20, %c0_109, %c0_110] : memref<58x8x4xbf16, #tpu.memory_space<vmem>>, vector<1x8x4xbf16>
    %124 = vector.shape_cast %123 : vector<1x8x4xbf16> to vector<8x4xbf16>
    %cst_111 = arith.constant dense<0.000000e+00> : vector<8x544xf32>
    %125 = tpu.matmul %124, %122, %cst_111 {dimension_numbers = #tpu.dot_dimension_numbers<[1], [0], [0], [1], [0, 0, 1, 1], [], []>} : vector<8x4xbf16>, vector<4x544xbf16>, vector<8x544xf32> -> vector<8x544xf32>
    %126 = arith.addf %120, %125 : vector<8x544xf32>
    %c0_112 = arith.constant 0 : index
    %c0_113 = arith.constant 0 : index
    %c117 = arith.constant 117 : index
    %127 = vector.load %arg1[%c0_112, %c0_113, %c117] : memref<1x4x1190xbf16, #tpu.memory_space<vmem>>, vector<1x4x544xbf16>
    %128 = vector.shape_cast %127 : vector<1x4x544xbf16> to vector<4x544xbf16>
    %c21 = arith.constant 21 : index
    %c0_114 = arith.constant 0 : index
    %c0_115 = arith.constant 0 : index
    %129 = vector.load %arg2[%c21, %c0_114, %c0_115] : memref<58x8x4xbf16, #tpu.memory_space<vmem>>, vector<1x8x4xbf16>
    %130 = vector.shape_cast %129 : vector<1x8x4xbf16> to vector<8x4xbf16>
    %cst_116 = arith.constant dense<0.000000e+00> : vector<8x544xf32>
    %131 = tpu.matmul %130, %128, %cst_116 {dimension_numbers = #tpu.dot_dimension_numbers<[1], [0], [0], [1], [0, 0, 1, 1], [], []>} : vector<8x4xbf16>, vector<4x544xbf16>, vector<8x544xf32> -> vector<8x544xf32>
    %132 = arith.addf %126, %131 : vector<8x544xf32>
    %c0_117 = arith.constant 0 : index
    %c0_118 = arith.constant 0 : index
    %c120 = arith.constant 120 : index
    %133 = vector.load %arg1[%c0_117, %c0_118, %c120] : memref<1x4x1190xbf16, #tpu.memory_space<vmem>>, vector<1x4x544xbf16>
    %134 = vector.shape_cast %133 : vector<1x4x544xbf16> to vector<4x544xbf16>
    %c22 = arith.constant 22 : index
    %c0_119 = arith.constant 0 : index
    %c0_120 = arith.constant 0 : index
    %135 = vector.load %arg2[%c22, %c0_119, %c0_120] : memref<58x8x4xbf16, #tpu.memory_space<vmem>>, vector<1x8x4xbf16>
    %136 = vector.shape_cast %135 : vector<1x8x4xbf16> to vector<8x4xbf16>
    %cst_121 = arith.constant dense<0.000000e+00> : vector<8x544xf32>
    %137 = tpu.matmul %136, %134, %cst_121 {dimension_numbers = #tpu.dot_dimension_numbers<[1], [0], [0], [1], [0, 0, 1, 1], [], []>} : vector<8x4xbf16>, vector<4x544xbf16>, vector<8x544xf32> -> vector<8x544xf32>
    %138 = arith.addf %132, %137 : vector<8x544xf32>
    %c0_122 = arith.constant 0 : index
    %c0_123 = arith.constant 0 : index
    %c204 = arith.constant 204 : index
    %139 = vector.load %arg1[%c0_122, %c0_123, %c204] : memref<1x4x1190xbf16, #tpu.memory_space<vmem>>, vector<1x4x544xbf16>
    %140 = vector.shape_cast %139 : vector<1x4x544xbf16> to vector<4x544xbf16>
    %c23 = arith.constant 23 : index
    %c0_124 = arith.constant 0 : index
    %c0_125 = arith.constant 0 : index
    %141 = vector.load %arg2[%c23, %c0_124, %c0_125] : memref<58x8x4xbf16, #tpu.memory_space<vmem>>, vector<1x8x4xbf16>
    %142 = vector.shape_cast %141 : vector<1x8x4xbf16> to vector<8x4xbf16>
    %cst_126 = arith.constant dense<0.000000e+00> : vector<8x544xf32>
    %143 = tpu.matmul %142, %140, %cst_126 {dimension_numbers = #tpu.dot_dimension_numbers<[1], [0], [0], [1], [0, 0, 1, 1], [], []>} : vector<8x4xbf16>, vector<4x544xbf16>, vector<8x544xf32> -> vector<8x544xf32>
    %144 = arith.addf %138, %143 : vector<8x544xf32>
    %c0_127 = arith.constant 0 : index
    %c0_128 = arith.constant 0 : index
    %c207 = arith.constant 207 : index
    %145 = vector.load %arg1[%c0_127, %c0_128, %c207] : memref<1x4x1190xbf16, #tpu.memory_space<vmem>>, vector<1x4x544xbf16>
    %146 = vector.shape_cast %145 : vector<1x4x544xbf16> to vector<4x544xbf16>
    %c24 = arith.constant 24 : index
    %c0_129 = arith.constant 0 : index
    %c0_130 = arith.constant 0 : index
    %147 = vector.load %arg2[%c24, %c0_129, %c0_130] : memref<58x8x4xbf16, #tpu.memory_space<vmem>>, vector<1x8x4xbf16>
    %148 = vector.shape_cast %147 : vector<1x8x4xbf16> to vector<8x4xbf16>
    %cst_131 = arith.constant dense<0.000000e+00> : vector<8x544xf32>
    %149 = tpu.matmul %148, %146, %cst_131 {dimension_numbers = #tpu.dot_dimension_numbers<[1], [0], [0], [1], [0, 0, 1, 1], [], []>} : vector<8x4xbf16>, vector<4x544xbf16>, vector<8x544xf32> -> vector<8x544xf32>
    %150 = arith.addf %144, %149 : vector<8x544xf32>
    %c0_132 = arith.constant 0 : index
    %c0_133 = arith.constant 0 : index
    %c210 = arith.constant 210 : index
    %151 = vector.load %arg1[%c0_132, %c0_133, %c210] : memref<1x4x1190xbf16, #tpu.memory_space<vmem>>, vector<1x4x544xbf16>
    %152 = vector.shape_cast %151 : vector<1x4x544xbf16> to vector<4x544xbf16>
    %c25 = arith.constant 25 : index
    %c0_134 = arith.constant 0 : index
    %c0_135 = arith.constant 0 : index
    %153 = vector.load %arg2[%c25, %c0_134, %c0_135] : memref<58x8x4xbf16, #tpu.memory_space<vmem>>, vector<1x8x4xbf16>
    %154 = vector.shape_cast %153 : vector<1x8x4xbf16> to vector<8x4xbf16>
    %cst_136 = arith.constant dense<0.000000e+00> : vector<8x544xf32>
    %155 = tpu.matmul %154, %152, %cst_136 {dimension_numbers = #tpu.dot_dimension_numbers<[1], [0], [0], [1], [0, 0, 1, 1], [], []>} : vector<8x4xbf16>, vector<4x544xbf16>, vector<8x544xf32> -> vector<8x544xf32>
    %156 = arith.addf %150, %155 : vector<8x544xf32>
    %c0_137 = arith.constant 0 : index
    %c0_138 = arith.constant 0 : index
    %c213 = arith.constant 213 : index
    %157 = vector.load %arg1[%c0_137, %c0_138, %c213] : memref<1x4x1190xbf16, #tpu.memory_space<vmem>>, vector<1x4x544xbf16>
    %158 = vector.shape_cast %157 : vector<1x4x544xbf16> to vector<4x544xbf16>
    %c26 = arith.constant 26 : index
    %c0_139 = arith.constant 0 : index
    %c0_140 = arith.constant 0 : index
    %159 = vector.load %arg2[%c26, %c0_139, %c0_140] : memref<58x8x4xbf16, #tpu.memory_space<vmem>>, vector<1x8x4xbf16>
    %160 = vector.shape_cast %159 : vector<1x8x4xbf16> to vector<8x4xbf16>
    %cst_141 = arith.constant dense<0.000000e+00> : vector<8x544xf32>
    %161 = tpu.matmul %160, %158, %cst_141 {dimension_numbers = #tpu.dot_dimension_numbers<[1], [0], [0], [1], [0, 0, 1, 1], [], []>} : vector<8x4xbf16>, vector<4x544xbf16>, vector<8x544xf32> -> vector<8x544xf32>
    %162 = arith.addf %156, %161 : vector<8x544xf32>
    %c0_142 = arith.constant 0 : index
    %c0_143 = arith.constant 0 : index
    %c216 = arith.constant 216 : index
    %163 = vector.load %arg1[%c0_142, %c0_143, %c216] : memref<1x4x1190xbf16, #tpu.memory_space<vmem>>, vector<1x4x544xbf16>
    %164 = vector.shape_cast %163 : vector<1x4x544xbf16> to vector<4x544xbf16>
    %c27 = arith.constant 27 : index
    %c0_144 = arith.constant 0 : index
    %c0_145 = arith.constant 0 : index
    %165 = vector.load %arg2[%c27, %c0_144, %c0_145] : memref<58x8x4xbf16, #tpu.memory_space<vmem>>, vector<1x8x4xbf16>
    %166 = vector.shape_cast %165 : vector<1x8x4xbf16> to vector<8x4xbf16>
    %cst_146 = arith.constant dense<0.000000e+00> : vector<8x544xf32>
    %167 = tpu.matmul %166, %164, %cst_146 {dimension_numbers = #tpu.dot_dimension_numbers<[1], [0], [0], [1], [0, 0, 1, 1], [], []>} : vector<8x4xbf16>, vector<4x544xbf16>, vector<8x544xf32> -> vector<8x544xf32>
    %168 = arith.addf %162, %167 : vector<8x544xf32>
    %c0_147 = arith.constant 0 : index
    %c0_148 = arith.constant 0 : index
    %c219 = arith.constant 219 : index
    %169 = vector.load %arg1[%c0_147, %c0_148, %c219] : memref<1x4x1190xbf16, #tpu.memory_space<vmem>>, vector<1x4x544xbf16>
    %170 = vector.shape_cast %169 : vector<1x4x544xbf16> to vector<4x544xbf16>
    %c28 = arith.constant 28 : index
    %c0_149 = arith.constant 0 : index
    %c0_150 = arith.constant 0 : index
    %171 = vector.load %arg2[%c28, %c0_149, %c0_150] : memref<58x8x4xbf16, #tpu.memory_space<vmem>>, vector<1x8x4xbf16>
    %172 = vector.shape_cast %171 : vector<1x8x4xbf16> to vector<8x4xbf16>
    %cst_151 = arith.constant dense<0.000000e+00> : vector<8x544xf32>
    %173 = tpu.matmul %172, %170, %cst_151 {dimension_numbers = #tpu.dot_dimension_numbers<[1], [0], [0], [1], [0, 0, 1, 1], [], []>} : vector<8x4xbf16>, vector<4x544xbf16>, vector<8x544xf32> -> vector<8x544xf32>
    %174 = arith.addf %168, %173 : vector<8x544xf32>
    %c0_152 = arith.constant 0 : index
    %c0_153 = arith.constant 0 : index
    %c222 = arith.constant 222 : index
    %175 = vector.load %arg1[%c0_152, %c0_153, %c222] : memref<1x4x1190xbf16, #tpu.memory_space<vmem>>, vector<1x4x544xbf16>
    %176 = vector.shape_cast %175 : vector<1x4x544xbf16> to vector<4x544xbf16>
    %c29 = arith.constant 29 : index
    %c0_154 = arith.constant 0 : index
    %c0_155 = arith.constant 0 : index
    %177 = vector.load %arg2[%c29, %c0_154, %c0_155] : memref<58x8x4xbf16, #tpu.memory_space<vmem>>, vector<1x8x4xbf16>
    %178 = vector.shape_cast %177 : vector<1x8x4xbf16> to vector<8x4xbf16>
    %cst_156 = arith.constant dense<0.000000e+00> : vector<8x544xf32>
    %179 = tpu.matmul %178, %176, %cst_156 {dimension_numbers = #tpu.dot_dimension_numbers<[1], [0], [0], [1], [0, 0, 1, 1], [], []>} : vector<8x4xbf16>, vector<4x544xbf16>, vector<8x544xf32> -> vector<8x544xf32>
    %180 = arith.addf %174, %179 : vector<8x544xf32>
    %c0_157 = arith.constant 0 : index
    %c0_158 = arith.constant 0 : index
    %c306 = arith.constant 306 : index
    %181 = vector.load %arg1[%c0_157, %c0_158, %c306] : memref<1x4x1190xbf16, #tpu.memory_space<vmem>>, vector<1x4x544xbf16>
    %182 = vector.shape_cast %181 : vector<1x4x544xbf16> to vector<4x544xbf16>
    %c30 = arith.constant 30 : index
    %c0_159 = arith.constant 0 : index
    %c0_160 = arith.constant 0 : index
    %183 = vector.load %arg2[%c30, %c0_159, %c0_160] : memref<58x8x4xbf16, #tpu.memory_space<vmem>>, vector<1x8x4xbf16>
    %184 = vector.shape_cast %183 : vector<1x8x4xbf16> to vector<8x4xbf16>
    %cst_161 = arith.constant dense<0.000000e+00> : vector<8x544xf32>
    %185 = tpu.matmul %184, %182, %cst_161 {dimension_numbers = #tpu.dot_dimension_numbers<[1], [0], [0], [1], [0, 0, 1, 1], [], []>} : vector<8x4xbf16>, vector<4x544xbf16>, vector<8x544xf32> -> vector<8x544xf32>
    %186 = arith.addf %180, %185 : vector<8x544xf32>
    %c0_162 = arith.constant 0 : index
    %c0_163 = arith.constant 0 : index
    %c309 = arith.constant 309 : index
    %187 = vector.load %arg1[%c0_162, %c0_163, %c309] : memref<1x4x1190xbf16, #tpu.memory_space<vmem>>, vector<1x4x544xbf16>
    %188 = vector.shape_cast %187 : vector<1x4x544xbf16> to vector<4x544xbf16>
    %c31 = arith.constant 31 : index
    %c0_164 = arith.constant 0 : index
    %c0_165 = arith.constant 0 : index
    %189 = vector.load %arg2[%c31, %c0_164, %c0_165] : memref<58x8x4xbf16, #tpu.memory_space<vmem>>, vector<1x8x4xbf16>
    %190 = vector.shape_cast %189 : vector<1x8x4xbf16> to vector<8x4xbf16>
    %cst_166 = arith.constant dense<0.000000e+00> : vector<8x544xf32>
    %191 = tpu.matmul %190, %188, %cst_166 {dimension_numbers = #tpu.dot_dimension_numbers<[1], [0], [0], [1], [0, 0, 1, 1], [], []>} : vector<8x4xbf16>, vector<4x544xbf16>, vector<8x544xf32> -> vector<8x544xf32>
    %192 = arith.addf %186, %191 : vector<8x544xf32>
    %c0_167 = arith.constant 0 : index
    %c0_168 = arith.constant 0 : index
    %c312 = arith.constant 312 : index
    %193 = vector.load %arg1[%c0_167, %c0_168, %c312] : memref<1x4x1190xbf16, #tpu.memory_space<vmem>>, vector<1x4x544xbf16>
    %194 = vector.shape_cast %193 : vector<1x4x544xbf16> to vector<4x544xbf16>
    %c32 = arith.constant 32 : index
    %c0_169 = arith.constant 0 : index
    %c0_170 = arith.constant 0 : index
    %195 = vector.load %arg2[%c32, %c0_169, %c0_170] : memref<58x8x4xbf16, #tpu.memory_space<vmem>>, vector<1x8x4xbf16>
    %196 = vector.shape_cast %195 : vector<1x8x4xbf16> to vector<8x4xbf16>
    %cst_171 = arith.constant dense<0.000000e+00> : vector<8x544xf32>
    %197 = tpu.matmul %196, %194, %cst_171 {dimension_numbers = #tpu.dot_dimension_numbers<[1], [0], [0], [1], [0, 0, 1, 1], [], []>} : vector<8x4xbf16>, vector<4x544xbf16>, vector<8x544xf32> -> vector<8x544xf32>
    %198 = arith.addf %192, %197 : vector<8x544xf32>
    %c0_172 = arith.constant 0 : index
    %c0_173 = arith.constant 0 : index
    %c315_174 = arith.constant 315 : index
    %199 = vector.load %arg1[%c0_172, %c0_173, %c315_174] : memref<1x4x1190xbf16, #tpu.memory_space<vmem>>, vector<1x4x544xbf16>
    %200 = vector.shape_cast %199 : vector<1x4x544xbf16> to vector<4x544xbf16>
    %c33 = arith.constant 33 : index
    %c0_175 = arith.constant 0 : index
    %c0_176 = arith.constant 0 : index
    %201 = vector.load %arg2[%c33, %c0_175, %c0_176] : memref<58x8x4xbf16, #tpu.memory_space<vmem>>, vector<1x8x4xbf16>
    %202 = vector.shape_cast %201 : vector<1x8x4xbf16> to vector<8x4xbf16>
    %cst_177 = arith.constant dense<0.000000e+00> : vector<8x544xf32>
    %203 = tpu.matmul %202, %200, %cst_177 {dimension_numbers = #tpu.dot_dimension_numbers<[1], [0], [0], [1], [0, 0, 1, 1], [], []>} : vector<8x4xbf16>, vector<4x544xbf16>, vector<8x544xf32> -> vector<8x544xf32>
    %204 = arith.addf %198, %203 : vector<8x544xf32>
    %c0_178 = arith.constant 0 : index
    %c0_179 = arith.constant 0 : index
    %c318 = arith.constant 318 : index
    %205 = vector.load %arg1[%c0_178, %c0_179, %c318] : memref<1x4x1190xbf16, #tpu.memory_space<vmem>>, vector<1x4x544xbf16>
    %206 = vector.shape_cast %205 : vector<1x4x544xbf16> to vector<4x544xbf16>
    %c34 = arith.constant 34 : index
    %c0_180 = arith.constant 0 : index
    %c0_181 = arith.constant 0 : index
    %207 = vector.load %arg2[%c34, %c0_180, %c0_181] : memref<58x8x4xbf16, #tpu.memory_space<vmem>>, vector<1x8x4xbf16>
    %208 = vector.shape_cast %207 : vector<1x8x4xbf16> to vector<8x4xbf16>
    %cst_182 = arith.constant dense<0.000000e+00> : vector<8x544xf32>
    %209 = tpu.matmul %208, %206, %cst_182 {dimension_numbers = #tpu.dot_dimension_numbers<[1], [0], [0], [1], [0, 0, 1, 1], [], []>} : vector<8x4xbf16>, vector<4x544xbf16>, vector<8x544xf32> -> vector<8x544xf32>
    %210 = arith.addf %204, %209 : vector<8x544xf32>
    %c0_183 = arith.constant 0 : index
    %c0_184 = arith.constant 0 : index
    %c321 = arith.constant 321 : index
    %211 = vector.load %arg1[%c0_183, %c0_184, %c321] : memref<1x4x1190xbf16, #tpu.memory_space<vmem>>, vector<1x4x544xbf16>
    %212 = vector.shape_cast %211 : vector<1x4x544xbf16> to vector<4x544xbf16>
    %c35 = arith.constant 35 : index
    %c0_185 = arith.constant 0 : index
    %c0_186 = arith.constant 0 : index
    %213 = vector.load %arg2[%c35, %c0_185, %c0_186] : memref<58x8x4xbf16, #tpu.memory_space<vmem>>, vector<1x8x4xbf16>
    %214 = vector.shape_cast %213 : vector<1x8x4xbf16> to vector<8x4xbf16>
    %cst_187 = arith.constant dense<0.000000e+00> : vector<8x544xf32>
    %215 = tpu.matmul %214, %212, %cst_187 {dimension_numbers = #tpu.dot_dimension_numbers<[1], [0], [0], [1], [0, 0, 1, 1], [], []>} : vector<8x4xbf16>, vector<4x544xbf16>, vector<8x544xf32> -> vector<8x544xf32>
    %216 = arith.addf %210, %215 : vector<8x544xf32>
    %c0_188 = arith.constant 0 : index
    %c0_189 = arith.constant 0 : index
    %c324 = arith.constant 324 : index
    %217 = vector.load %arg1[%c0_188, %c0_189, %c324] : memref<1x4x1190xbf16, #tpu.memory_space<vmem>>, vector<1x4x544xbf16>
    %218 = vector.shape_cast %217 : vector<1x4x544xbf16> to vector<4x544xbf16>
    %c36 = arith.constant 36 : index
    %c0_190 = arith.constant 0 : index
    %c0_191 = arith.constant 0 : index
    %219 = vector.load %arg2[%c36, %c0_190, %c0_191] : memref<58x8x4xbf16, #tpu.memory_space<vmem>>, vector<1x8x4xbf16>
    %220 = vector.shape_cast %219 : vector<1x8x4xbf16> to vector<8x4xbf16>
    %cst_192 = arith.constant dense<0.000000e+00> : vector<8x544xf32>
    %221 = tpu.matmul %220, %218, %cst_192 {dimension_numbers = #tpu.dot_dimension_numbers<[1], [0], [0], [1], [0, 0, 1, 1], [], []>} : vector<8x4xbf16>, vector<4x544xbf16>, vector<8x544xf32> -> vector<8x544xf32>
    %222 = arith.addf %216, %221 : vector<8x544xf32>
    %c0_193 = arith.constant 0 : index
    %c0_194 = arith.constant 0 : index
    %c408 = arith.constant 408 : index
    %223 = vector.load %arg1[%c0_193, %c0_194, %c408] : memref<1x4x1190xbf16, #tpu.memory_space<vmem>>, vector<1x4x544xbf16>
    %224 = vector.shape_cast %223 : vector<1x4x544xbf16> to vector<4x544xbf16>
    %c37 = arith.constant 37 : index
    %c0_195 = arith.constant 0 : index
    %c0_196 = arith.constant 0 : index
    %225 = vector.load %arg2[%c37, %c0_195, %c0_196] : memref<58x8x4xbf16, #tpu.memory_space<vmem>>, vector<1x8x4xbf16>
    %226 = vector.shape_cast %225 : vector<1x8x4xbf16> to vector<8x4xbf16>
    %cst_197 = arith.constant dense<0.000000e+00> : vector<8x544xf32>
    %227 = tpu.matmul %226, %224, %cst_197 {dimension_numbers = #tpu.dot_dimension_numbers<[1], [0], [0], [1], [0, 0, 1, 1], [], []>} : vector<8x4xbf16>, vector<4x544xbf16>, vector<8x544xf32> -> vector<8x544xf32>
    %228 = arith.addf %222, %227 : vector<8x544xf32>
    %c0_198 = arith.constant 0 : index
    %c0_199 = arith.constant 0 : index
    %c411 = arith.constant 411 : index
    %229 = vector.load %arg1[%c0_198, %c0_199, %c411] : memref<1x4x1190xbf16, #tpu.memory_space<vmem>>, vector<1x4x544xbf16>
    %230 = vector.shape_cast %229 : vector<1x4x544xbf16> to vector<4x544xbf16>
    %c38 = arith.constant 38 : index
    %c0_200 = arith.constant 0 : index
    %c0_201 = arith.constant 0 : index
    %231 = vector.load %arg2[%c38, %c0_200, %c0_201] : memref<58x8x4xbf16, #tpu.memory_space<vmem>>, vector<1x8x4xbf16>
    %232 = vector.shape_cast %231 : vector<1x8x4xbf16> to vector<8x4xbf16>
    %cst_202 = arith.constant dense<0.000000e+00> : vector<8x544xf32>
    %233 = tpu.matmul %232, %230, %cst_202 {dimension_numbers = #tpu.dot_dimension_numbers<[1], [0], [0], [1], [0, 0, 1, 1], [], []>} : vector<8x4xbf16>, vector<4x544xbf16>, vector<8x544xf32> -> vector<8x544xf32>
    %234 = arith.addf %228, %233 : vector<8x544xf32>
    %c0_203 = arith.constant 0 : index
    %c0_204 = arith.constant 0 : index
    %c414 = arith.constant 414 : index
    %235 = vector.load %arg1[%c0_203, %c0_204, %c414] : memref<1x4x1190xbf16, #tpu.memory_space<vmem>>, vector<1x4x544xbf16>
    %236 = vector.shape_cast %235 : vector<1x4x544xbf16> to vector<4x544xbf16>
    %c39 = arith.constant 39 : index
    %c0_205 = arith.constant 0 : index
    %c0_206 = arith.constant 0 : index
    %237 = vector.load %arg2[%c39, %c0_205, %c0_206] : memref<58x8x4xbf16, #tpu.memory_space<vmem>>, vector<1x8x4xbf16>
    %238 = vector.shape_cast %237 : vector<1x8x4xbf16> to vector<8x4xbf16>
    %cst_207 = arith.constant dense<0.000000e+00> : vector<8x544xf32>
    %239 = tpu.matmul %238, %236, %cst_207 {dimension_numbers = #tpu.dot_dimension_numbers<[1], [0], [0], [1], [0, 0, 1, 1], [], []>} : vector<8x4xbf16>, vector<4x544xbf16>, vector<8x544xf32> -> vector<8x544xf32>
    %240 = arith.addf %234, %239 : vector<8x544xf32>
    %c0_208 = arith.constant 0 : index
    %c0_209 = arith.constant 0 : index
    %c417 = arith.constant 417 : index
    %241 = vector.load %arg1[%c0_208, %c0_209, %c417] : memref<1x4x1190xbf16, #tpu.memory_space<vmem>>, vector<1x4x544xbf16>
    %242 = vector.shape_cast %241 : vector<1x4x544xbf16> to vector<4x544xbf16>
    %c40 = arith.constant 40 : index
    %c0_210 = arith.constant 0 : index
    %c0_211 = arith.constant 0 : index
    %243 = vector.load %arg2[%c40, %c0_210, %c0_211] : memref<58x8x4xbf16, #tpu.memory_space<vmem>>, vector<1x8x4xbf16>
    %244 = vector.shape_cast %243 : vector<1x8x4xbf16> to vector<8x4xbf16>
    %cst_212 = arith.constant dense<0.000000e+00> : vector<8x544xf32>
    %245 = tpu.matmul %244, %242, %cst_212 {dimension_numbers = #tpu.dot_dimension_numbers<[1], [0], [0], [1], [0, 0, 1, 1], [], []>} : vector<8x4xbf16>, vector<4x544xbf16>, vector<8x544xf32> -> vector<8x544xf32>
    %246 = arith.addf %240, %245 : vector<8x544xf32>
    %c0_213 = arith.constant 0 : index
    %c0_214 = arith.constant 0 : index
    %c420 = arith.constant 420 : index
    %247 = vector.load %arg1[%c0_213, %c0_214, %c420] : memref<1x4x1190xbf16, #tpu.memory_space<vmem>>, vector<1x4x544xbf16>
    %248 = vector.shape_cast %247 : vector<1x4x544xbf16> to vector<4x544xbf16>
    %c41 = arith.constant 41 : index
    %c0_215 = arith.constant 0 : index
    %c0_216 = arith.constant 0 : index
    %249 = vector.load %arg2[%c41, %c0_215, %c0_216] : memref<58x8x4xbf16, #tpu.memory_space<vmem>>, vector<1x8x4xbf16>
    %250 = vector.shape_cast %249 : vector<1x8x4xbf16> to vector<8x4xbf16>
    %cst_217 = arith.constant dense<0.000000e+00> : vector<8x544xf32>
    %251 = tpu.matmul %250, %248, %cst_217 {dimension_numbers = #tpu.dot_dimension_numbers<[1], [0], [0], [1], [0, 0, 1, 1], [], []>} : vector<8x4xbf16>, vector<4x544xbf16>, vector<8x544xf32> -> vector<8x544xf32>
    %252 = arith.addf %246, %251 : vector<8x544xf32>
    %c0_218 = arith.constant 0 : index
    %c0_219 = arith.constant 0 : index
    %c423 = arith.constant 423 : index
    %253 = vector.load %arg1[%c0_218, %c0_219, %c423] : memref<1x4x1190xbf16, #tpu.memory_space<vmem>>, vector<1x4x544xbf16>
    %254 = vector.shape_cast %253 : vector<1x4x544xbf16> to vector<4x544xbf16>
    %c42 = arith.constant 42 : index
    %c0_220 = arith.constant 0 : index
    %c0_221 = arith.constant 0 : index
    %255 = vector.load %arg2[%c42, %c0_220, %c0_221] : memref<58x8x4xbf16, #tpu.memory_space<vmem>>, vector<1x8x4xbf16>
    %256 = vector.shape_cast %255 : vector<1x8x4xbf16> to vector<8x4xbf16>
    %cst_222 = arith.constant dense<0.000000e+00> : vector<8x544xf32>
    %257 = tpu.matmul %256, %254, %cst_222 {dimension_numbers = #tpu.dot_dimension_numbers<[1], [0], [0], [1], [0, 0, 1, 1], [], []>} : vector<8x4xbf16>, vector<4x544xbf16>, vector<8x544xf32> -> vector<8x544xf32>
    %258 = arith.addf %252, %257 : vector<8x544xf32>
    %c0_223 = arith.constant 0 : index
    %c0_224 = arith.constant 0 : index
    %c426 = arith.constant 426 : index
    %259 = vector.load %arg1[%c0_223, %c0_224, %c426] : memref<1x4x1190xbf16, #tpu.memory_space<vmem>>, vector<1x4x544xbf16>
    %260 = vector.shape_cast %259 : vector<1x4x544xbf16> to vector<4x544xbf16>
    %c43 = arith.constant 43 : index
    %c0_225 = arith.constant 0 : index
    %c0_226 = arith.constant 0 : index
    %261 = vector.load %arg2[%c43, %c0_225, %c0_226] : memref<58x8x4xbf16, #tpu.memory_space<vmem>>, vector<1x8x4xbf16>
    %262 = vector.shape_cast %261 : vector<1x8x4xbf16> to vector<8x4xbf16>
    %cst_227 = arith.constant dense<0.000000e+00> : vector<8x544xf32>
    %263 = tpu.matmul %262, %260, %cst_227 {dimension_numbers = #tpu.dot_dimension_numbers<[1], [0], [0], [1], [0, 0, 1, 1], [], []>} : vector<8x4xbf16>, vector<4x544xbf16>, vector<8x544xf32> -> vector<8x544xf32>
    %264 = arith.addf %258, %263 : vector<8x544xf32>
    %c0_228 = arith.constant 0 : index
    %c0_229 = arith.constant 0 : index
    %c510 = arith.constant 510 : index
    %265 = vector.load %arg1[%c0_228, %c0_229, %c510] : memref<1x4x1190xbf16, #tpu.memory_space<vmem>>, vector<1x4x544xbf16>
    %266 = vector.shape_cast %265 : vector<1x4x544xbf16> to vector<4x544xbf16>
    %c44 = arith.constant 44 : index
    %c0_230 = arith.constant 0 : index
    %c0_231 = arith.constant 0 : index
    %267 = vector.load %arg2[%c44, %c0_230, %c0_231] : memref<58x8x4xbf16, #tpu.memory_space<vmem>>, vector<1x8x4xbf16>
    %268 = vector.shape_cast %267 : vector<1x8x4xbf16> to vector<8x4xbf16>
    %cst_232 = arith.constant dense<0.000000e+00> : vector<8x544xf32>
    %269 = tpu.matmul %268, %266, %cst_232 {dimension_numbers = #tpu.dot_dimension_numbers<[1], [0], [0], [1], [0, 0, 1, 1], [], []>} : vector<8x4xbf16>, vector<4x544xbf16>, vector<8x544xf32> -> vector<8x544xf32>
    %270 = arith.addf %264, %269 : vector<8x544xf32>
    %c0_233 = arith.constant 0 : index
    %c0_234 = arith.constant 0 : index
    %c513 = arith.constant 513 : index
    %271 = vector.load %arg1[%c0_233, %c0_234, %c513] : memref<1x4x1190xbf16, #tpu.memory_space<vmem>>, vector<1x4x544xbf16>
    %272 = vector.shape_cast %271 : vector<1x4x544xbf16> to vector<4x544xbf16>
    %c45 = arith.constant 45 : index
    %c0_235 = arith.constant 0 : index
    %c0_236 = arith.constant 0 : index
    %273 = vector.load %arg2[%c45, %c0_235, %c0_236] : memref<58x8x4xbf16, #tpu.memory_space<vmem>>, vector<1x8x4xbf16>
    %274 = vector.shape_cast %273 : vector<1x8x4xbf16> to vector<8x4xbf16>
    %cst_237 = arith.constant dense<0.000000e+00> : vector<8x544xf32>
    %275 = tpu.matmul %274, %272, %cst_237 {dimension_numbers = #tpu.dot_dimension_numbers<[1], [0], [0], [1], [0, 0, 1, 1], [], []>} : vector<8x4xbf16>, vector<4x544xbf16>, vector<8x544xf32> -> vector<8x544xf32>
    %276 = arith.addf %270, %275 : vector<8x544xf32>
    %c0_238 = arith.constant 0 : index
    %c0_239 = arith.constant 0 : index
    %c516 = arith.constant 516 : index
    %277 = vector.load %arg1[%c0_238, %c0_239, %c516] : memref<1x4x1190xbf16, #tpu.memory_space<vmem>>, vector<1x4x544xbf16>
    %278 = vector.shape_cast %277 : vector<1x4x544xbf16> to vector<4x544xbf16>
    %c46 = arith.constant 46 : index
    %c0_240 = arith.constant 0 : index
    %c0_241 = arith.constant 0 : index
    %279 = vector.load %arg2[%c46, %c0_240, %c0_241] : memref<58x8x4xbf16, #tpu.memory_space<vmem>>, vector<1x8x4xbf16>
    %280 = vector.shape_cast %279 : vector<1x8x4xbf16> to vector<8x4xbf16>
    %cst_242 = arith.constant dense<0.000000e+00> : vector<8x544xf32>
    %281 = tpu.matmul %280, %278, %cst_242 {dimension_numbers = #tpu.dot_dimension_numbers<[1], [0], [0], [1], [0, 0, 1, 1], [], []>} : vector<8x4xbf16>, vector<4x544xbf16>, vector<8x544xf32> -> vector<8x544xf32>
    %282 = arith.addf %276, %281 : vector<8x544xf32>
    %c0_243 = arith.constant 0 : index
    %c0_244 = arith.constant 0 : index
    %c519 = arith.constant 519 : index
    %283 = vector.load %arg1[%c0_243, %c0_244, %c519] : memref<1x4x1190xbf16, #tpu.memory_space<vmem>>, vector<1x4x544xbf16>
    %284 = vector.shape_cast %283 : vector<1x4x544xbf16> to vector<4x544xbf16>
    %c47 = arith.constant 47 : index
    %c0_245 = arith.constant 0 : index
    %c0_246 = arith.constant 0 : index
    %285 = vector.load %arg2[%c47, %c0_245, %c0_246] : memref<58x8x4xbf16, #tpu.memory_space<vmem>>, vector<1x8x4xbf16>
    %286 = vector.shape_cast %285 : vector<1x8x4xbf16> to vector<8x4xbf16>
    %cst_247 = arith.constant dense<0.000000e+00> : vector<8x544xf32>
    %287 = tpu.matmul %286, %284, %cst_247 {dimension_numbers = #tpu.dot_dimension_numbers<[1], [0], [0], [1], [0, 0, 1, 1], [], []>} : vector<8x4xbf16>, vector<4x544xbf16>, vector<8x544xf32> -> vector<8x544xf32>
    %288 = arith.addf %282, %287 : vector<8x544xf32>
    %c0_248 = arith.constant 0 : index
    %c0_249 = arith.constant 0 : index
    %c522 = arith.constant 522 : index
    %289 = vector.load %arg1[%c0_248, %c0_249, %c522] : memref<1x4x1190xbf16, #tpu.memory_space<vmem>>, vector<1x4x544xbf16>
    %290 = vector.shape_cast %289 : vector<1x4x544xbf16> to vector<4x544xbf16>
    %c48 = arith.constant 48 : index
    %c0_250 = arith.constant 0 : index
    %c0_251 = arith.constant 0 : index
    %291 = vector.load %arg2[%c48, %c0_250, %c0_251] : memref<58x8x4xbf16, #tpu.memory_space<vmem>>, vector<1x8x4xbf16>
    %292 = vector.shape_cast %291 : vector<1x8x4xbf16> to vector<8x4xbf16>
    %cst_252 = arith.constant dense<0.000000e+00> : vector<8x544xf32>
    %293 = tpu.matmul %292, %290, %cst_252 {dimension_numbers = #tpu.dot_dimension_numbers<[1], [0], [0], [1], [0, 0, 1, 1], [], []>} : vector<8x4xbf16>, vector<4x544xbf16>, vector<8x544xf32> -> vector<8x544xf32>
    %294 = arith.addf %288, %293 : vector<8x544xf32>
    %c0_253 = arith.constant 0 : index
    %c0_254 = arith.constant 0 : index
    %c525 = arith.constant 525 : index
    %295 = vector.load %arg1[%c0_253, %c0_254, %c525] : memref<1x4x1190xbf16, #tpu.memory_space<vmem>>, vector<1x4x544xbf16>
    %296 = vector.shape_cast %295 : vector<1x4x544xbf16> to vector<4x544xbf16>
    %c49 = arith.constant 49 : index
    %c0_255 = arith.constant 0 : index
    %c0_256 = arith.constant 0 : index
    %297 = vector.load %arg2[%c49, %c0_255, %c0_256] : memref<58x8x4xbf16, #tpu.memory_space<vmem>>, vector<1x8x4xbf16>
    %298 = vector.shape_cast %297 : vector<1x8x4xbf16> to vector<8x4xbf16>
    %cst_257 = arith.constant dense<0.000000e+00> : vector<8x544xf32>
    %299 = tpu.matmul %298, %296, %cst_257 {dimension_numbers = #tpu.dot_dimension_numbers<[1], [0], [0], [1], [0, 0, 1, 1], [], []>} : vector<8x4xbf16>, vector<4x544xbf16>, vector<8x544xf32> -> vector<8x544xf32>
    %300 = arith.addf %294, %299 : vector<8x544xf32>
    %c0_258 = arith.constant 0 : index
    %c0_259 = arith.constant 0 : index
    %c528 = arith.constant 528 : index
    %301 = vector.load %arg1[%c0_258, %c0_259, %c528] : memref<1x4x1190xbf16, #tpu.memory_space<vmem>>, vector<1x4x544xbf16>
    %302 = vector.shape_cast %301 : vector<1x4x544xbf16> to vector<4x544xbf16>
    %c50 = arith.constant 50 : index
    %c0_260 = arith.constant 0 : index
    %c0_261 = arith.constant 0 : index
    %303 = vector.load %arg2[%c50, %c0_260, %c0_261] : memref<58x8x4xbf16, #tpu.memory_space<vmem>>, vector<1x8x4xbf16>
    %304 = vector.shape_cast %303 : vector<1x8x4xbf16> to vector<8x4xbf16>
    %cst_262 = arith.constant dense<0.000000e+00> : vector<8x544xf32>
    %305 = tpu.matmul %304, %302, %cst_262 {dimension_numbers = #tpu.dot_dimension_numbers<[1], [0], [0], [1], [0, 0, 1, 1], [], []>} : vector<8x4xbf16>, vector<4x544xbf16>, vector<8x544xf32> -> vector<8x544xf32>
    %306 = arith.addf %300, %305 : vector<8x544xf32>
    %c0_263 = arith.constant 0 : index
    %c0_264 = arith.constant 0 : index
    %c612 = arith.constant 612 : index
    %307 = vector.load %arg1[%c0_263, %c0_264, %c612] : memref<1x4x1190xbf16, #tpu.memory_space<vmem>>, vector<1x4x544xbf16>
    %308 = vector.shape_cast %307 : vector<1x4x544xbf16> to vector<4x544xbf16>
    %c51 = arith.constant 51 : index
    %c0_265 = arith.constant 0 : index
    %c0_266 = arith.constant 0 : index
    %309 = vector.load %arg2[%c51, %c0_265, %c0_266] : memref<58x8x4xbf16, #tpu.memory_space<vmem>>, vector<1x8x4xbf16>
    %310 = vector.shape_cast %309 : vector<1x8x4xbf16> to vector<8x4xbf16>
    %cst_267 = arith.constant dense<0.000000e+00> : vector<8x544xf32>
    %311 = tpu.matmul %310, %308, %cst_267 {dimension_numbers = #tpu.dot_dimension_numbers<[1], [0], [0], [1], [0, 0, 1, 1], [], []>} : vector<8x4xbf16>, vector<4x544xbf16>, vector<8x544xf32> -> vector<8x544xf32>
    %312 = arith.addf %306, %311 : vector<8x544xf32>
    %c0_268 = arith.constant 0 : index
    %c0_269 = arith.constant 0 : index
    %c615 = arith.constant 615 : index
    %313 = vector.load %arg1[%c0_268, %c0_269, %c615] : memref<1x4x1190xbf16, #tpu.memory_space<vmem>>, vector<1x4x544xbf16>
    %314 = vector.shape_cast %313 : vector<1x4x544xbf16> to vector<4x544xbf16>
    %c52 = arith.constant 52 : index
    %c0_270 = arith.constant 0 : index
    %c0_271 = arith.constant 0 : index
    %315 = vector.load %arg2[%c52, %c0_270, %c0_271] : memref<58x8x4xbf16, #tpu.memory_space<vmem>>, vector<1x8x4xbf16>
    %316 = vector.shape_cast %315 : vector<1x8x4xbf16> to vector<8x4xbf16>
    %cst_272 = arith.constant dense<0.000000e+00> : vector<8x544xf32>
    %317 = tpu.matmul %316, %314, %cst_272 {dimension_numbers = #tpu.dot_dimension_numbers<[1], [0], [0], [1], [0, 0, 1, 1], [], []>} : vector<8x4xbf16>, vector<4x544xbf16>, vector<8x544xf32> -> vector<8x544xf32>
    %318 = arith.addf %312, %317 : vector<8x544xf32>
    %c0_273 = arith.constant 0 : index
    %c0_274 = arith.constant 0 : index
    %c618 = arith.constant 618 : index
    %319 = vector.load %arg1[%c0_273, %c0_274, %c618] : memref<1x4x1190xbf16, #tpu.memory_space<vmem>>, vector<1x4x544xbf16>
    %320 = vector.shape_cast %319 : vector<1x4x544xbf16> to vector<4x544xbf16>
    %c53 = arith.constant 53 : index
    %c0_275 = arith.constant 0 : index
    %c0_276 = arith.constant 0 : index
    %321 = vector.load %arg2[%c53, %c0_275, %c0_276] : memref<58x8x4xbf16, #tpu.memory_space<vmem>>, vector<1x8x4xbf16>
    %322 = vector.shape_cast %321 : vector<1x8x4xbf16> to vector<8x4xbf16>
    %cst_277 = arith.constant dense<0.000000e+00> : vector<8x544xf32>
    %323 = tpu.matmul %322, %320, %cst_277 {dimension_numbers = #tpu.dot_dimension_numbers<[1], [0], [0], [1], [0, 0, 1, 1], [], []>} : vector<8x4xbf16>, vector<4x544xbf16>, vector<8x544xf32> -> vector<8x544xf32>
    %324 = arith.addf %318, %323 : vector<8x544xf32>
    %c0_278 = arith.constant 0 : index
    %c0_279 = arith.constant 0 : index
    %c621 = arith.constant 621 : index
    %325 = vector.load %arg1[%c0_278, %c0_279, %c621] : memref<1x4x1190xbf16, #tpu.memory_space<vmem>>, vector<1x4x544xbf16>
    %326 = vector.shape_cast %325 : vector<1x4x544xbf16> to vector<4x544xbf16>
    %c54 = arith.constant 54 : index
    %c0_280 = arith.constant 0 : index
    %c0_281 = arith.constant 0 : index
    %327 = vector.load %arg2[%c54, %c0_280, %c0_281] : memref<58x8x4xbf16, #tpu.memory_space<vmem>>, vector<1x8x4xbf16>
    %328 = vector.shape_cast %327 : vector<1x8x4xbf16> to vector<8x4xbf16>
    %cst_282 = arith.constant dense<0.000000e+00> : vector<8x544xf32>
    %329 = tpu.matmul %328, %326, %cst_282 {dimension_numbers = #tpu.dot_dimension_numbers<[1], [0], [0], [1], [0, 0, 1, 1], [], []>} : vector<8x4xbf16>, vector<4x544xbf16>, vector<8x544xf32> -> vector<8x544xf32>
    %330 = arith.addf %324, %329 : vector<8x544xf32>
    %c0_283 = arith.constant 0 : index
    %c0_284 = arith.constant 0 : index
    %c624 = arith.constant 624 : index
    %331 = vector.load %arg1[%c0_283, %c0_284, %c624] : memref<1x4x1190xbf16, #tpu.memory_space<vmem>>, vector<1x4x544xbf16>
    %332 = vector.shape_cast %331 : vector<1x4x544xbf16> to vector<4x544xbf16>
    %c55 = arith.constant 55 : index
    %c0_285 = arith.constant 0 : index
    %c0_286 = arith.constant 0 : index
    %333 = vector.load %arg2[%c55, %c0_285, %c0_286] : memref<58x8x4xbf16, #tpu.memory_space<vmem>>, vector<1x8x4xbf16>
    %334 = vector.shape_cast %333 : vector<1x8x4xbf16> to vector<8x4xbf16>
    %cst_287 = arith.constant dense<0.000000e+00> : vector<8x544xf32>
    %335 = tpu.matmul %334, %332, %cst_287 {dimension_numbers = #tpu.dot_dimension_numbers<[1], [0], [0], [1], [0, 0, 1, 1], [], []>} : vector<8x4xbf16>, vector<4x544xbf16>, vector<8x544xf32> -> vector<8x544xf32>
    %336 = arith.addf %330, %335 : vector<8x544xf32>
    %c0_288 = arith.constant 0 : index
    %c0_289 = arith.constant 0 : index
    %c627 = arith.constant 627 : index
    %337 = vector.load %arg1[%c0_288, %c0_289, %c627] : memref<1x4x1190xbf16, #tpu.memory_space<vmem>>, vector<1x4x544xbf16>
    %338 = vector.shape_cast %337 : vector<1x4x544xbf16> to vector<4x544xbf16>
    %c56 = arith.constant 56 : index
    %c0_290 = arith.constant 0 : index
    %c0_291 = arith.constant 0 : index
    %339 = vector.load %arg2[%c56, %c0_290, %c0_291] : memref<58x8x4xbf16, #tpu.memory_space<vmem>>, vector<1x8x4xbf16>
    %340 = vector.shape_cast %339 : vector<1x8x4xbf16> to vector<8x4xbf16>
    %cst_292 = arith.constant dense<0.000000e+00> : vector<8x544xf32>
    %341 = tpu.matmul %340, %338, %cst_292 {dimension_numbers = #tpu.dot_dimension_numbers<[1], [0], [0], [1], [0, 0, 1, 1], [], []>} : vector<8x4xbf16>, vector<4x544xbf16>, vector<8x544xf32> -> vector<8x544xf32>
    %342 = arith.addf %336, %341 : vector<8x544xf32>
    %c0_293 = arith.constant 0 : index
    %c0_294 = arith.constant 0 : index
    %c630 = arith.constant 630 : index
    %343 = vector.load %arg1[%c0_293, %c0_294, %c630] : memref<1x4x1190xbf16, #tpu.memory_space<vmem>>, vector<1x4x544xbf16>
    %344 = vector.shape_cast %343 : vector<1x4x544xbf16> to vector<4x544xbf16>
    %c57 = arith.constant 57 : index
    %c0_295 = arith.constant 0 : index
    %c0_296 = arith.constant 0 : index
    %345 = vector.load %arg2[%c57, %c0_295, %c0_296] : memref<58x8x4xbf16, #tpu.memory_space<vmem>>, vector<1x8x4xbf16>
    %346 = vector.shape_cast %345 : vector<1x8x4xbf16> to vector<8x4xbf16>
    %cst_297 = arith.constant dense<0.000000e+00> : vector<8x544xf32>
    %347 = tpu.matmul %346, %344, %cst_297 {dimension_numbers = #tpu.dot_dimension_numbers<[1], [0], [0], [1], [0, 0, 1, 1], [], []>} : vector<8x4xbf16>, vector<4x544xbf16>, vector<8x544xf32> -> vector<8x544xf32>
    %348 = arith.addf %342, %347 : vector<8x544xf32>
    %c0_298 = arith.constant 0 : index
    %c0_299 = arith.constant 0 : index
    %c0_300 = arith.constant 0 : index
    %349 = vector.load %arg4[%c0_298, %c0_299, %c0_300] : memref<1x8x544xf32, #tpu.memory_space<vmem>>, vector<1x8x544xf32>
    %350 = vector.shape_cast %349 : vector<1x8x544xf32> to vector<8x544xf32>
    %351 = vector.shape_cast %348 : vector<8x544xf32> to vector<1x8x544xf32>
    tpu.vector_store %arg4[%c0_298, %c0_299, %c0_300], %351 {strides = array<i32>} : memref<1x8x544xf32, #tpu.memory_space<vmem>>, vector<1x8x544xf32>,
    %c0_301 = arith.constant 0 : index
    %c0_302 = arith.constant 0 : index
    %352 = vector.load %arg3[%c0_301, %c0_302] : memref<1x544xf32, #tpu.memory_space<vmem>>, vector<1x544xf32>
    %353 = vector.broadcast %352 : vector<1x544xf32> to vector<8x544xf32>
    %354 = arith.mulf %348, %353 : vector<8x544xf32>
    %cst_303 = arith.constant dense<0.000000e+00> : vector<8xf32>
    %355 = vector.multi_reduction <add>, %354, %cst_303 [1] : vector<8x544xf32> to vector<8xf32>
    %356 = vector.shape_cast %355 : vector<8xf32> to vector<8x1xf32>
    %c0_304 = arith.constant 0 : index
    %c0_305 = arith.constant 0 : index
    %c0_306 = arith.constant 0 : index
    %357 = vector.load %arg5[%c0_304, %c0_305, %c0_306] : memref<1x8x2xf32, #tpu.memory_space<vmem>>, vector<1x8x1xf32>
    %358 = vector.shape_cast %357 : vector<1x8x1xf32> to vector<8x1xf32>
    %359 = vector.shape_cast %356 : vector<8x1xf32> to vector<1x8x1xf32>
    tpu.vector_store %arg5[%c0_304, %c0_305, %c0_306], %359 {strides = array<i32>} : memref<1x8x2xf32, #tpu.memory_space<vmem>>, vector<1x8x1xf32>,
    %360 = arith.mulf %348, %348 : vector<8x544xf32>
    %361 = vector.broadcast %352 : vector<1x544xf32> to vector<8x544xf32>
    %362 = arith.mulf %360, %361 : vector<8x544xf32>
    %cst_307 = arith.constant dense<0.000000e+00> : vector<8xf32>
    %363 = vector.multi_reduction <add>, %362, %cst_307 [1] : vector<8x544xf32> to vector<8xf32>
    %364 = vector.shape_cast %363 : vector<8xf32> to vector<8x1xf32>
    %c0_308 = arith.constant 0 : index
    %c0_309 = arith.constant 0 : index
    %c1_310 = arith.constant 1 : index
    %365 = vector.load %arg5[%c0_308, %c0_309, %c1_310] : memref<1x8x2xf32, #tpu.memory_space<vmem>>, vector<1x8x1xf32>
    %366 = vector.shape_cast %365 : vector<1x8x1xf32> to vector<8x1xf32>
    %367 = vector.shape_cast %364 : vector<8x1xf32> to vector<1x8x1xf32>
    tpu.vector_store %arg5[%c0_308, %c0_309, %c1_310], %367 {strides = array<i32>} : memref<1x8x2xf32, #tpu.memory_space<vmem>>, vector<1x8x1xf32>,
    return
  }
  func.func @transform_0(%arg0: i32) -> (i32, i32, i32) {
    %c0_i32 = arith.constant 0 : i32
    %c0_i32_0 = arith.constant 0 : i32
    %c0_i32_1 = arith.constant 0 : i32
    return %arg0, %c0_i32, %c0_i32_0 : i32, i32, i32
  }
  func.func @transform_1(%arg0: i32) -> (i32, i32, i32) {
    %c0_i32 = arith.constant 0 : i32
    %c0_i32_0 = arith.constant 0 : i32
    %c0_i32_1 = arith.constant 0 : i32
    %c0_i32_2 = arith.constant 0 : i32
    return %c0_i32, %c0_i32_0, %c0_i32_1 : i32, i32, i32
  }
  func.func @transform_2(%arg0: i32) -> (i32, i32) {
    %c0_i32 = arith.constant 0 : i32
    %c0_i32_0 = arith.constant 0 : i32
    %c0_i32_1 = arith.constant 0 : i32
    return %c0_i32, %c0_i32_0 : i32, i32
  }
  func.func @transform_3(%arg0: i32) -> (i32, i32, i32) {
    %c0_i32 = arith.constant 0 : i32
    %c0_i32_0 = arith.constant 0 : i32
    %c0_i32_1 = arith.constant 0 : i32
    return %arg0, %c0_i32, %c0_i32_0 : i32, i32, i32
  }
  func.func @transform_4(%arg0: i32) -> (i32, i32, i32) {
    %c0_i32 = arith.constant 0 : i32
    %c0_i32_0 = arith.constant 0 : i32
    %c0_i32_1 = arith.constant 0 : i32
    return %arg0, %c0_i32, %c0_i32_0 : i32, i32, i32
  }
}

</mosaic_0001>

<llo_original>
// kernel: dilated_conv_block.3
$region0: #{dilated_conv_block.3}
  #allocation0 [shape = 'u32[]', space=smem, size = 0x4, offset = 0x4, fixed_abs, tag = 'smem constant byte address 0x4 - core index']
  #allocation1 [shape = 'u32[72,128]{1,0:T(1,128)}', space=vmem, size = 0x9000, scoped, tag = 'internal scratch']
  %s0 = inlined_call_operand.vmem [shape: f32[8,1], index: 0, kind: input, shape index: {}]
  %s1 = inlined_call_operand.vmem [shape: f32[8,1], index: 1, kind: input, shape index: {}]
  %s2 = inlined_call_operand.vmem [shape: f32[2,8,544], index: 2, kind: input, shape index: {}, may-alias: {2,3}]
  %s3 = inlined_call_operand.vmem [shape: f32[2,8,544], index: 3, kind: output, shape index: {}, may-alias: {2,3}]
  %s4 = sld [smem:[#allocation0]]
  $region45: #{dilated_conv_block.3} parent=0
    _
  %s6 = ssub.s32 1, %s4
  %s7 = scalar_select 0, %s6, %s4
  loop: start=0, step=1, limit=4
  $region2: #{dilated_conv_block.3} parent=0 // loop_pre_header
    _
  $region3: #{dilated_conv_block.3} parent=0 // loop_header
    %s9 = sphi 0, %s13
    %p10 = scmp.ge.s32.totalorder %s9, 4
    %s17 = sphi 0, %s17
    %s19 = sphi 0, %s17
    %s20 = sphi 0, %s19
    %s34 = sphi 0, %s20
    %s38 = sphi 0, %s38
    %s40 = sphi 0, %s38
    %s41 = sphi 0, %s40
    %s55 = sphi 0, %s41
    %s61 = sphi 0, %s63
    %s64 = sphi 0, %s61
    %s65 = sphi 0, %s64
    %s81 = sphi 0, %s65
    %s87 = sphi 0, %s89
    %s90 = sphi 0, %s87
    %s91 = sphi 0, %s90
    %s107 = sphi 0, %s91
  $region4: #{dilated_conv_block.3} parent=0 // loop_header_branch
    %12 = sbr.rel (%p10) target = $region8
  $region5: #{dilated_conv_block.3} parent=0 // loop_body
    %s14 = ssub.s32 %s9, 1
    %s15 = ssub.s32 %s9, 2
    %s16 = sadd.s32 %s9, 1
    %s18 = sadd.s32 %s17, 1
    %p21 = scmp.eq.s32.totalorder %s9, 1
    %p22 = scmp.ne.s32.totalorder %s17, %s19
    %p23 = scmp.eq.s32.totalorder %s9, 0
    %p24 = por %p22, %p23
    %p25 = scmp.ne.s32.totalorder %s17, %s19
    %p26 = scmp.eq.s32.totalorder %s14, 1
    %p27 = por %p25, %p26
    %p28 = scmp.ne.s32.totalorder %s19, %s20
    %p29 = scmp.eq.s32.totalorder %s14, 0
    %p30 = por %p28, %p29
    %p31 = scmp.ne.s32.totalorder %s19, %s20
    %p32 = scmp.eq.s32.totalorder %s15, 1
    %p33 = por %p31, %p32
    %p35 = scmp.ne.s32.totalorder %s20, %s34
    %p36 = scmp.eq.s32.totalorder %s15, 0
    %p37 = por %p35, %p36
    %s39 = sadd.s32 %s38, 1
    %p42 = scmp.eq.s32.totalorder %s9, 1
    %p43 = scmp.ne.s32.totalorder %s38, %s40
    %p44 = scmp.eq.s32.totalorder %s9, 0
    %p45 = por %p43, %p44
    %p46 = scmp.ne.s32.totalorder %s38, %s40
    %p47 = scmp.eq.s32.totalorder %s14, 1
    %p48 = por %p46, %p47
    %p49 = scmp.ne.s32.totalorder %s40, %s41
    %p50 = scmp.eq.s32.totalorder %s14, 0
    %p51 = por %p49, %p50
    %p52 = scmp.ne.s32.totalorder %s40, %s41
    %p53 = scmp.eq.s32.totalorder %s15, 1
    %p54 = por %p52, %p53
    %p56 = scmp.ne.s32.totalorder %s41, %s55
    %p57 = scmp.eq.s32.totalorder %s15, 0
    %p58 = por %p56, %p57
    %s59 = ssub.s32 %s9, %s16
    %p60 = scmp.eq.s32.totalorder %s59, 0
    %s62 = sadd.s32 %s61, 1
    %s63 = scalar_select %p60, %s61, %s62
    %p66 = pneg %p60
    %p67 = scmp.eq.s32.totalorder %s9, 1
    %p68 = por %p66, %p67
    %p69 = scmp.ne.s32.totalorder %s61, %s64
    %p70 = scmp.eq.s32.totalorder %s9, 0
    %p71 = por %p69, %p70
    %p72 = scmp.ne.s32.totalorder %s61, %s64
    %p73 = scmp.eq.s32.totalorder %s14, 1
    %p74 = por %p72, %p73
    %p75 = scmp.ne.s32.totalorder %s64, %s65
    %p76 = scmp.eq.s32.totalorder %s14, 0
    %p77 = por %p75, %p76
    %p78 = scmp.ne.s32.totalorder %s64, %s65
    %p79 = scmp.eq.s32.totalorder %s15, 1
    %p80 = por %p78, %p79
    %p82 = scmp.ne.s32.totalorder %s65, %s81
    %p83 = scmp.eq.s32.totalorder %s15, 0
    %p84 = por %p82, %p83
    %s85 = ssub.s32 %s9, %s16
    %p86 = scmp.eq.s32.totalorder %s85, 0
    %s88 = sadd.s32 %s87, 1
    %s89 = scalar_select %p86, %s87, %s88
    %p92 = pneg %p86
    %p93 = scmp.eq.s32.totalorder %s9, 1
    %p94 = por %p92, %p93
    %p95 = scmp.ne.s32.totalorder %s87, %s90
    %p96 = scmp.eq.s32.totalorder %s9, 0
    %p97 = por %p95, %p96
    %p98 = scmp.ne.s32.totalorder %s87, %s90
    %p99 = scmp.eq.s32.totalorder %s14, 1
    %p100 = por %p98, %p99
    %p101 = scmp.ne.s32.totalorder %s90, %s91
    %p102 = scmp.eq.s32.totalorder %s14, 0
    %p103 = por %p101, %p102
    %p104 = scmp.ne.s32.totalorder %s90, %s91
    %p105 = scmp.eq.s32.totalorder %s15, 1
    %p106 = por %p104, %p105
    %p108 = scmp.ne.s32.totalorder %s91, %s107
    %p109 = scmp.eq.s32.totalorder %s15, 0
    %p110 = por %p108, %p109
    %p111 = scmp.le.s32.totalorder 1, %s9
    %p112 = scmp.lt.s32.totalorder %s9, 3
    %p113 = pnand %p111, %p112
    %p114 = pneg %p113
    // Predicated region
    $region9: #{dilated_conv_block.3} parent=5 // pred_check
      _
    $region10: #{dilated_conv_block.3} parent=5 // pred_check_branch
      %116 = sbr.rel (%p113) target = $region12
    $region11: #{dilated_conv_block.3} parent=5 // pred_region
      %s117 = ssub.s32 %s9, 1
      // Predicated region
      $region13: #{dilated_conv_block.3} parent=11 // pred_check
        %p118 = pneg %p30
      $region14: #{dilated_conv_block.3} parent=11 // pred_check_branch
        %120 = sbr.rel (%p118) target = $region16
      $region15: #{dilated_conv_block.3} parent=11 // pred_region
        _
      $region16: #{dilated_conv_block.3} parent=11 // pred_fallthru
        _
      // Predicated region
      $region17: #{dilated_conv_block.3} parent=11 // pred_check
        %p121 = pneg %p51
      $region18: #{dilated_conv_block.3} parent=11 // pred_check_branch
        %123 = sbr.rel (%p121) target = $region20
      $region19: #{dilated_conv_block.3} parent=11 // pred_region
        _
      $region20: #{dilated_conv_block.3} parent=11 // pred_fallthru
        _
    $region12: #{dilated_conv_block.3} parent=5 // pred_fallthru
      _
    %p124 = scmp.lt.s32.totalorder %s9, 2
    // Predicated region
    $region21: #{dilated_conv_block.3} parent=5 // pred_check
      %p125 = pneg %p124
    $region22: #{dilated_conv_block.3} parent=5 // pred_check_branch
      %127 = sbr.rel (%p125) target = $region24
    $region23: #{dilated_conv_block.3} parent=5 // pred_region
      // Predicated region
      $region25: #{dilated_conv_block.3} parent=23 // pred_check
        %p128 = pneg %p71
      $region26: #{dilated_conv_block.3} parent=23 // pred_check_branch
        %130 = sbr.rel (%p128) target = $region28
      $region27: #{dilated_conv_block.3} parent=23 // pred_region
        %p131 = scmp.lt.s32.totalorder %s9, 1
        %s132 = scalar_select %p131, %s9, 1
        %s133 = smul.addr %s132, 5
        %s134 = smul.addr %s133, 8
        %s135 = scalar_lea.vmem %s2, %s134
      $region28: #{dilated_conv_block.3} parent=23 // pred_fallthru
        _
    $region24: #{dilated_conv_block.3} parent=5 // pred_fallthru
      _
    %p136 = scmp.le.s32.totalorder 1, %s9
    %p137 = scmp.lt.s32.totalorder %s9, 3
    %p138 = pnand %p136, %p137
    %p139 = pneg %p138
    // Predicated region
    $region29: #{dilated_conv_block.3} parent=5 // pred_check
      _
    $region30: #{dilated_conv_block.3} parent=5 // pred_check_branch
      %141 = sbr.rel (%p138) target = $region32
    $region31: #{dilated_conv_block.3} parent=5 // pred_region
      %s142 = ssub.s32 %s9, 1
      %p143 = pneg %p30
      %p144 = pneg %p27
      %p145 = pneg %p51
      %p146 = pneg %p48
      %p147 = scmp.lt.s32.totalorder %s14, 1
      %s148 = scalar_select %p147, %s14, 1
      %s149 = smul.addr %s148, 5
      %s150 = smul.addr %s149, 8
      %s151 = scalar_lea.vmem %s2, %s150
      %p152 = pneg %p77
      %p153 = pneg %p74
      %p154 = pneg %p103
      %p155 = pneg %p100
      %p156 = scmp.lt.s32.totalorder %s14, 1
      %s157 = scalar_select %p156, %s14, 1
      %s158 = smul.addr %s157, 5
      %s159 = smul.addr %s158, 8
      %s160 = scalar_lea.vmem %s3, %s159
      %p161 = scmp.lt.s32.totalorder %s14, 1
      %s162 = scalar_select %p161, %s14, 1
      %s163 = smul.addr %s162, 5
      %s164 = smul.addr %s163, 8
      %s165 = scalar_lea.vmem %s2, %s164
      %p166 = scmp.lt.s32.totalorder %s14, 1
      %s167 = scalar_select %p166, %s14, 1
      %s168 = smul.addr %s167, 5
      %s169 = smul.addr %s168, 8
      %s170 = scalar_lea.vmem %s3, %s169
      %v171 = vld [vmem:[%s165] sm:$0xff]
      %v172 = vld [vmem:[%s165 + $0x8] sm:$0xff]
      %v173 = vld [vmem:[%s165 + $0x10] sm:$0xff]
      %v174 = vld [vmem:[%s165 + $0x18] sm:$0xff]
      %v175 = vld [vmem:[%s165 + $0x20] sm:$0xff]
      %v176 = vld [vmem:[%s0] sm:$0xff]
      %178 = vset.pattern.permute.xlu0 0
      %179 = vperm.xlu0 %178, %v176
      %v180 = vpop.permute.xlu0 %179
      %v182 = vmul.f32 %v171, %v180
      %v183 = vmul.f32 %v172, %v180
      %v184 = vmul.f32 %v173, %v180
      %v185 = vmul.f32 %v174, %v180
      %v186 = vmul.f32 %v175, %v180
      %v187 = vld [vmem:[%s1] sm:$0xff]
      %189 = vset.pattern.permute.xlu0 0
      %190 = vperm.xlu0 %189, %v187
      %v191 = vpop.permute.xlu0 %190
      %v193 = vadd.f32 %v182, %v191
      %v194 = vadd.f32 %v183, %v191
      %v195 = vadd.f32 %v184, %v191
      %v196 = vadd.f32 %v185, %v191
      %v197 = vadd.f32 %v186, %v191
      %v198 = vmax.f32 %v193, 0.0
      %v199 = vmax.f32 %v194, 0.0
      %v200 = vmax.f32 %v195, 0.0
      %v201 = vmax.f32 %v196, 0.0
      %v202 = vmax.f32 %v197, 0.0
      %v203 = vmin.f32 %v198, 6.0
      %v204 = vmin.f32 %v199, 6.0
      %v205 = vmin.f32 %v200, 6.0
      %v206 = vmin.f32 %v201, 6.0
      %v207 = vmin.f32 %v202, 6.0
      %208 = vst [vmem:[%s170] sm:$0xff] %v203
      %209 = vst [vmem:[%s170 + $0x8] sm:$0xff] %v204
      %210 = vst [vmem:[%s170 + $0x10] sm:$0xff] %v205
      %211 = vst [vmem:[%s170 + $0x18] sm:$0xff] %v206
      %vm212 = vcmask 261120
      %213 = vst.msk [vmem:[%s170 + $0x20] sm:$0xff] %vm212, %v207
      %p214 = scmp.lt.s32.totalorder %s14, 1
      %s215 = scalar_select %p214, %s14, 1
      %s216 = smul.addr %s215, 5
      %s217 = smul.addr %s216, 8
      %s218 = scalar_lea.vmem %s3, %s217
      // Predicated region
      $region33: #{dilated_conv_block.3} parent=31 // pred_check
        %p219 = pneg %p100
      $region34: #{dilated_conv_block.3} parent=31 // pred_check_branch
        %221 = sbr.rel (%p219) target = $region36
      $region35: #{dilated_conv_block.3} parent=31 // pred_region
        _
      $region36: #{dilated_conv_block.3} parent=31 // pred_fallthru
        _
    $region32: #{dilated_conv_block.3} parent=5 // pred_fallthru
      _
    %p222 = scmp.le.s32.totalorder 2, %s9
    // Predicated region
    $region37: #{dilated_conv_block.3} parent=5 // pred_check
      %p223 = pneg %p222
    $region38: #{dilated_conv_block.3} parent=5 // pred_check_branch
      %225 = sbr.rel (%p223) target = $region40
    $region39: #{dilated_conv_block.3} parent=5 // pred_region
      %s226 = ssub.s32 %s9, 2
      // Predicated region
      $region41: #{dilated_conv_block.3} parent=39 // pred_check
        %p227 = pneg %p106
      $region42: #{dilated_conv_block.3} parent=39 // pred_check_branch
        %229 = sbr.rel (%p227) target = $region44
      $region43: #{dilated_conv_block.3} parent=39 // pred_region
        %p230 = scmp.lt.s32.totalorder %s15, 1
        %s231 = scalar_select %p230, %s15, 1
        %s232 = smul.addr %s231, 5
        %s233 = smul.addr %s232, 8
        %s234 = scalar_lea.vmem %s3, %s233
      $region44: #{dilated_conv_block.3} parent=39 // pred_fallthru
        _
    $region40: #{dilated_conv_block.3} parent=5 // pred_fallthru
      _
  $region6: #{dilated_conv_block.3} parent=0 // loop_footer
    %s13 = sadd.s32 1, %s9
  $region7: #{dilated_conv_block.3} parent=0 // loop_footer_branch
    %8 = sbr.rel target = $region3
  $region8: #{dilated_conv_block.3} parent=0 // loop_exit
    _

// kernel: dilated_conv_block.2
$region0: #{dilated_conv_block.2}
  #allocation0 [shape = 'u32[]', space=smem, size = 0x4, offset = 0x4, fixed_abs, tag = 'smem constant byte address 0x4 - core index']
  #allocation1 [shape = 'u32[72,128]{1,0:T(1,128)}', space=vmem, size = 0x9000, scoped, tag = 'internal scratch']
  %s0 = inlined_call_operand.vmem [shape: bf16[2,4,1190], index: 0, kind: input, shape index: {}]
  %s1 = inlined_call_operand.vmem [shape: bf16[58,8,4], index: 1, kind: input, shape index: {}]
  %s2 = inlined_call_operand.vmem [shape: f32[1,544], index: 2, kind: input, shape index: {}]
  %s3 = inlined_call_operand.vmem [shape: f32[2,8,544], index: 3, kind: output, shape index: {0}]
  %s4 = inlined_call_operand.vmem [shape: f32[2,8,2], index: 4, kind: output, shape index: {1}]
  %5 = xla_tuple %s3, %s4
  %s6 = sld [smem:[#allocation0]]
  $region53: #{dilated_conv_block.2} parent=0
    _
  %s8 = ssub.s32 1, %s6
  %s9 = scalar_select 0, %s8, %s6
  loop: start=0, step=1, limit=4
  $region2: #{dilated_conv_block.2} parent=0 // loop_pre_header
    _
  $region3: #{dilated_conv_block.2} parent=0 // loop_header
    %s11 = sphi 0, %s15
    %p12 = scmp.ge.s32.totalorder %s11, 4
    %s21 = sphi 0, %s23
    %s24 = sphi 0, %s21
    %s25 = sphi 0, %s24
    %s41 = sphi 0, %s25
    %s45 = sphi 0, %s45
    %s47 = sphi 0, %s45
    %s48 = sphi 0, %s47
    %s62 = sphi 0, %s48
    %s66 = sphi 0, %s66
    %s68 = sphi 0, %s66
    %s69 = sphi 0, %s68
    %s83 = sphi 0, %s69
    %s89 = sphi 0, %s91
    %s92 = sphi 0, %s89
    %s93 = sphi 0, %s92
    %s109 = sphi 0, %s93
    %s115 = sphi 0, %s117
    %s118 = sphi 0, %s115
    %s119 = sphi 0, %s118
    %s135 = sphi 0, %s119
  $region4: #{dilated_conv_block.2} parent=0 // loop_header_branch
    %14 = sbr.rel (%p12) target = $region8
  $region5: #{dilated_conv_block.2} parent=0 // loop_body
    %s16 = ssub.s32 %s11, 1
    %s17 = ssub.s32 %s11, 2
    %s18 = sadd.s32 %s11, 1
    %s19 = ssub.s32 %s11, %s18
    %p20 = scmp.eq.s32.totalorder %s19, 0
    %s22 = sadd.s32 %s21, 1
    %s23 = scalar_select %p20, %s21, %s22
    %p26 = pneg %p20
    %p27 = scmp.eq.s32.totalorder %s11, 1
    %p28 = por %p26, %p27
    %p29 = scmp.ne.s32.totalorder %s21, %s24
    %p30 = scmp.eq.s32.totalorder %s11, 0
    %p31 = por %p29, %p30
    %p32 = scmp.ne.s32.totalorder %s21, %s24
    %p33 = scmp.eq.s32.totalorder %s16, 1
    %p34 = por %p32, %p33
    %p35 = scmp.ne.s32.totalorder %s24, %s25
    %p36 = scmp.eq.s32.totalorder %s16, 0
    %p37 = por %p35, %p36
    %p38 = scmp.ne.s32.totalorder %s24, %s25
    %p39 = scmp.eq.s32.totalorder %s17, 1
    %p40 = por %p38, %p39
    %p42 = scmp.ne.s32.totalorder %s25, %s41
    %p43 = scmp.eq.s32.totalorder %s17, 0
    %p44 = por %p42, %p43
    %s46 = sadd.s32 %s45, 1
    %p49 = scmp.eq.s32.totalorder %s11, 1
    %p50 = scmp.ne.s32.totalorder %s45, %s47
    %p51 = scmp.eq.s32.totalorder %s11, 0
    %p52 = por %p50, %p51
    %p53 = scmp.ne.s32.totalorder %s45, %s47
    %p54 = scmp.eq.s32.totalorder %s16, 1
    %p55 = por %p53, %p54
    %p56 = scmp.ne.s32.totalorder %s47, %s48
    %p57 = scmp.eq.s32.totalorder %s16, 0
    %p58 = por %p56, %p57
    %p59 = scmp.ne.s32.totalorder %s47, %s48
    %p60 = scmp.eq.s32.totalorder %s17, 1
    %p61 = por %p59, %p60
    %p63 = scmp.ne.s32.totalorder %s48, %s62
    %p64 = scmp.eq.s32.totalorder %s17, 0
    %p65 = por %p63, %p64
    %s67 = sadd.s32 %s66, 1
    %p70 = scmp.eq.s32.totalorder %s11, 1
    %p71 = scmp.ne.s32.totalorder %s66, %s68
    %p72 = scmp.eq.s32.totalorder %s11, 0
    %p73 = por %p71, %p72
    %p74 = scmp.ne.s32.totalorder %s66, %s68
    %p75 = scmp.eq.s32.totalorder %s16, 1
    %p76 = por %p74, %p75
    %p77 = scmp.ne.s32.totalorder %s68, %s69
    %p78 = scmp.eq.s32.totalorder %s16, 0
    %p79 = por %p77, %p78
    %p80 = scmp.ne.s32.totalorder %s68, %s69
    %p81 = scmp.eq.s32.totalorder %s17, 1
    %p82 = por %p80, %p81
    %p84 = scmp.ne.s32.totalorder %s69, %s83
    %p85 = scmp.eq.s32.totalorder %s17, 0
    %p86 = por %p84, %p85
    %s87 = ssub.s32 %s11, %s18
    %p88 = scmp.eq.s32.totalorder %s87, 0
    %s90 = sadd.s32 %s89, 1
    %s91 = scalar_select %p88, %s89, %s90
    %p94 = pneg %p88
    %p95 = scmp.eq.s32.totalorder %s11, 1
    %p96 = por %p94, %p95
    %p97 = scmp.ne.s32.totalorder %s89, %s92
    %p98 = scmp.eq.s32.totalorder %s11, 0
    %p99 = por %p97, %p98
    %p100 = scmp.ne.s32.totalorder %s89, %s92
    %p101 = scmp.eq.s32.totalorder %s16, 1
    %p102 = por %p100, %p101
    %p103 = scmp.ne.s32.totalorder %s92, %s93
    %p104 = scmp.eq.s32.totalorder %s16, 0
    %p105 = por %p103, %p104
    %p106 = scmp.ne.s32.totalorder %s92, %s93
    %p107 = scmp.eq.s32.totalorder %s17, 1
    %p108 = por %p106, %p107
    %p110 = scmp.ne.s32.totalorder %s93, %s109
    %p111 = scmp.eq.s32.totalorder %s17, 0
    %p112 = por %p110, %p111
    %s113 = ssub.s32 %s11, %s18
    %p114 = scmp.eq.s32.totalorder %s113, 0
    %s116 = sadd.s32 %s115, 1
    %s117 = scalar_select %p114, %s115, %s116
    %p120 = pneg %p114
    %p121 = scmp.eq.s32.totalorder %s11, 1
    %p122 = por %p120, %p121
    %p123 = scmp.ne.s32.totalorder %s115, %s118
    %p124 = scmp.eq.s32.totalorder %s11, 0
    %p125 = por %p123, %p124
    %p126 = scmp.ne.s32.totalorder %s115, %s118
    %p127 = scmp.eq.s32.totalorder %s16, 1
    %p128 = por %p126, %p127
    %p129 = scmp.ne.s32.totalorder %s118, %s119
    %p130 = scmp.eq.s32.totalorder %s16, 0
    %p131 = por %p129, %p130
    %p132 = scmp.ne.s32.totalorder %s118, %s119
    %p133 = scmp.eq.s32.totalorder %s17, 1
    %p134 = por %p132, %p133
    %p136 = scmp.ne.s32.totalorder %s119, %s135
    %p137 = scmp.eq.s32.totalorder %s17, 0
    %p138 = por %p136, %p137
    %p139 = scmp.le.s32.totalorder 1, %s11
    %p140 = scmp.lt.s32.totalorder %s11, 3
    %p141 = pnand %p139, %p140
    %p142 = pneg %p141
    // Predicated region
    $region9: #{dilated_conv_block.2} parent=5 // pred_check
      _
    $region10: #{dilated_conv_block.2} parent=5 // pred_check_branch
      %144 = sbr.rel (%p141) target = $region12
    $region11: #{dilated_conv_block.2} parent=5 // pred_region
      %s145 = ssub.s32 %s11, 1
      // Predicated region
      $region13: #{dilated_conv_block.2} parent=11 // pred_check
        %p146 = pneg %p58
      $region14: #{dilated_conv_block.2} parent=11 // pred_check_branch
        %148 = sbr.rel (%p146) target = $region16
      $region15: #{dilated_conv_block.2} parent=11 // pred_region
        _
      $region16: #{dilated_conv_block.2} parent=11 // pred_fallthru
        _
      // Predicated region
      $region17: #{dilated_conv_block.2} parent=11 // pred_check
        %p149 = pneg %p79
      $region18: #{dilated_conv_block.2} parent=11 // pred_check_branch
        %151 = sbr.rel (%p149) target = $region20
      $region19: #{dilated_conv_block.2} parent=11 // pred_region
        _
      $region20: #{dilated_conv_block.2} parent=11 // pred_fallthru
        _
    $region12: #{dilated_conv_block.2} parent=5 // pred_fallthru
      _
    %p152 = scmp.lt.s32.totalorder %s11, 2
    // Predicated region
    $region21: #{dilated_conv_block.2} parent=5 // pred_check
      %p153 = pneg %p152
    $region22: #{dilated_conv_block.2} parent=5 // pred_check_branch
      %155 = sbr.rel (%p153) target = $region24
    $region23: #{dilated_conv_block.2} parent=5 // pred_region
      // Predicated region
      $region25: #{dilated_conv_block.2} parent=23 // pred_check
        %p156 = pneg %p31
      $region26: #{dilated_conv_block.2} parent=23 // pred_check_branch
        %158 = sbr.rel (%p156) target = $region28
      $region27: #{dilated_conv_block.2} parent=23 // pred_region
        %p159 = scmp.lt.s32.totalorder %s11, 1
        %s160 = scalar_select %p159, %s11, 1
        %s161 = smul.addr %s160, 10
        %s162 = smul.addr %s161, 2
        %s163 = scalar_lea.vmem %s0, %s162
      $region28: #{dilated_conv_block.2} parent=23 // pred_fallthru
        _
    $region24: #{dilated_conv_block.2} parent=5 // pred_fallthru
      _
    %p164 = scmp.le.s32.totalorder 1, %s11
    %p165 = scmp.lt.s32.totalorder %s11, 3
    %p166 = pnand %p164, %p165
    %p167 = pneg %p166
    // Predicated region
    $region29: #{dilated_conv_block.2} parent=5 // pred_check
      _
    $region30: #{dilated_conv_block.2} parent=5 // pred_check_branch
      %169 = sbr.rel (%p166) target = $region32
    $region31: #{dilated_conv_block.2} parent=5 // pred_region
      %s170 = ssub.s32 %s11, 1
      %p171 = scmp.lt.s32.totalorder %s16, 1
      %s172 = scalar_select %p171, %s16, 1
      %s173 = smul.addr %s172, 10
      %s174 = smul.addr %s173, 2
      %s175 = scalar_lea.vmem %s0, %s174
      %p176 = pneg %p37
      %p177 = pneg %p34
      %p178 = pneg %p58
      %p179 = pneg %p55
      %p180 = pneg %p79
      %p181 = pneg %p76
      %p182 = pneg %p105
      %p183 = pneg %p102
      %p184 = scmp.lt.s32.totalorder %s16, 1
      %s185 = scalar_select %p184, %s16, 1
      %s186 = smul.addr %s185, 5
      %s187 = smul.addr %s186, 8
      %s188 = scalar_lea.vmem %s3, %s187
      %p189 = pneg %p131
      %p190 = pneg %p128
      %p191 = scmp.lt.s32.totalorder %s16, 1
      %s192 = scalar_select %p191, %s16, 1
      %s193 = smul.addr %s192, 8
      %s194 = scalar_lea.vmem %s4, %s193
      %p195 = scmp.lt.s32.totalorder %s16, 1
      %s196 = scalar_select %p195, %s16, 1
      %s197 = smul.addr %s196, 10
      %s198 = smul.addr %s197, 2
      %s199 = scalar_lea.vmem %s0, %s198
      %p200 = scmp.lt.s32.totalorder %s16, 1
      %s201 = scalar_select %p200, %s16, 1
      %s202 = smul.addr %s201, 5
      %s203 = smul.addr %s202, 8
      %s204 = scalar_lea.vmem %s3, %s203
      %p205 = scmp.lt.s32.totalorder %s16, 1
      %s206 = scalar_select %p205, %s16, 1
      %s207 = smul.addr %s206, 8
      %s208 = scalar_lea.vmem %s4, %s207
      %v210 = vld [vmem:[%s199 + $0x2] sm:$0xff]
      %v211 = vld [vmem:[%s199 + $0xa] sm:$0xf]
      %v212 = vld [vmem:[%s1] sm:$0xf]
      %s213 = scalar_lea.vmem %s1, 4
      %v214 = vld [vmem:[%s213] sm:$0xf]
      %216 = vst [vmem:[#allocation1] ss:$4 sm:$0xff] %v210
      %s218 = scalar_lea.vmem [#allocation1], 32
      %219 = vst [vmem:[%s218] ss:$4 sm:$0xff] %v211
      %v220 = vld.sshfl [vmem:[#allocation1] sm:$0xff pattern:$0x73625140]
      %v222 = vld.sshfl [vmem:[#allocation1 + $0x8] sm:$0xff pattern:$0x73625140]
      %v224 = vld.sshfl [vmem:[#allocation1 + $0x10] sm:$0xff pattern:$0x73625140]
      %v226 = vld.sshfl [vmem:[#allocation1 + $0x18] sm:$0xff pattern:$0x73625140]
      %v228 = vld.sshfl [vmem:[#allocation1 + $0x20] sm:$0xff pattern:$0x73625140]
      %v230 = vld.sshfl [vmem:[#allocation1 + $0x28] sm:$0xff pattern:$0x73625140]
      %232 = vrot.lane.b32.xlu0 %v220, 9
      %v233 = vpop.permute.xlu0 %232
      %234 = vrot.lane.b32.xlu0 %v222, 9
      %v235 = vpop.permute.xlu0 %234
      %236 = vrot.lane.b32.xlu0 %v224, 9
      %v237 = vpop.permute.xlu0 %236
      %238 = vrot.lane.b32.xlu0 %v226, 9
      %v239 = vpop.permute.xlu0 %238
      %240 = vrot.lane.b32.xlu0 %v228, 9
      %v241 = vpop.permute.xlu0 %240
      %242 = vrot.lane.b32.xlu0 %v230, 9
      %v243 = vpop.permute.xlu0 %242
      %vm244 = vcmask 72704
      %v245 = vsel %vm244, %v233, %v235
      %v246 = vsel %vm244, %v235, %v237
      %v247 = vsel %vm244, %v237, %v239
      %v248 = vsel %vm244, %v239, %v241
      %v249 = vsel %vm244, %v241, %v243
      %vm250 = vcmask 31744
      %v252 = vsel %vm250, %v214, 0
      %vm254 = vcmask 1041408
      %v256 = vsel %vm254, %v245, 0
      %v259 = vsel %vm254, %v246, 0
      %v262 = vsel %vm254, %v247, 0
      %v265 = vsel %vm254, %v248, 0
      %v268 = vsel %vm254, %v249, 0
      %270 = vmatpush.bf16.msra.mxu0 0
      %271 = vmatpush.bf16.msra.mxu0 0
      %272 = vmatpush.bf16.msra.mxu0 0
      %273 = vmatpush.bf16.msra.mxu0 0
      %274 = vmatpush.bf16.msra.mxu0 0
      %275 = vmatpush.bf16.msra.mxu0 0
      %276 = vmatpush.bf16.msra.mxu0 0
      %277 = vmatpush.bf16.msra.mxu0 %v256
      %278 = vmatmul.bf16.gmra.mxu0 %v252
      %v279 = vpop.f32.mrf.mxu0
      %v280 = vadd.f32 0.0, %v279
      %v281 = vpop.f32.mrf.mxu0
      %282 = vdwg.mxu0
      %283 = vmatpush.bf16.msra.mxu0 0
      %284 = vmatpush.bf16.msra.mxu0 0
      %285 = vmatpush.bf16.msra.mxu0 0
      %286 = vmatpush.bf16.msra.mxu0 0
      %287 = vmatpush.bf16.msra.mxu0 0
      %288 = vmatpush.bf16.msra.mxu0 0
      %289 = vmatpush.bf16.msra.mxu0 0
      %290 = vmatpush.bf16.msra.mxu0 %v259
      %291 = vmatmul.bf16.gmra.mxu0 %v252
      %v292 = vpop.f32.mrf.mxu0
      %v293 = vadd.f32 0.0, %v292
      %v294 = vpop.f32.mrf.mxu0
      %295 = vdwg.mxu0
      %296 = vmatpush.bf16.msra.mxu0 0
      %297 = vmatpush.bf16.msra.mxu0 0
      %298 = vmatpush.bf16.msra.mxu0 0
      %299 = vmatpush.bf16.msra.mxu0 0
      %300 = vmatpush.bf16.msra.mxu0 0
      %301 = vmatpush.bf16.msra.mxu0 0
      %302 = vmatpush.bf16.msra.mxu0 0
      %303 = vmatpush.bf16.msra.mxu0 %v262
      %304 = vmatmul.bf16.gmra.mxu0 %v252
      %v305 = vpop.f32.mrf.mxu0
      %v306 = vadd.f32 0.0, %v305
      %v307 = vpop.f32.mrf.mxu0
      %308 = vdwg.mxu0
      %309 = vmatpush.bf16.msra.mxu0 0
      %310 = vmatpush.bf16.msra.mxu0 0
      %311 = vmatpush.bf16.msra.mxu0 0
      %312 = vmatpush.bf16.msra.mxu0 0
      %313 = vmatpush.bf16.msra.mxu0 0
      %314 = vmatpush.bf16.msra.mxu0 0
      %315 = vmatpush.bf16.msra.mxu0 0
      %316 = vmatpush.bf16.msra.mxu0 %v265
      %317 = vmatmul.bf16.gmra.mxu0 %v252
      %v318 = vpop.f32.mrf.mxu0
      %v319 = vadd.f32 0.0, %v318
      %v320 = vpop.f32.mrf.mxu0
      %321 = vdwg.mxu0
      %322 = vmatpush.bf16.msra.mxu0 0
      %323 = vmatpush.bf16.msra.mxu0 0
      %324 = vmatpush.bf16.msra.mxu0 0
      %325 = vmatpush.bf16.msra.mxu0 0
      %326 = vmatpush.bf16.msra.mxu0 0
      %327 = vmatpush.bf16.msra.mxu0 0
      %328 = vmatpush.bf16.msra.mxu0 0
      %329 = vmatpush.bf16.msra.mxu0 %v268
      %330 = vmatmul.bf16.gmra.mxu0 %v252
      %v331 = vpop.f32.mrf.mxu0
      %v332 = vadd.f32 0.0, %v331
      %v333 = vpop.f32.mrf.mxu0
      %334 = vdwg.mxu0
      %335 = vst [vmem:[#allocation1] ss:$4 sm:$0xff] %v210
      %s336 = scalar_lea.vmem [#allocation1], 32
      %337 = vst [vmem:[%s336] ss:$4 sm:$0xff] %v211
      %v338 = vld.sshfl [vmem:[#allocation1] sm:$0xff pattern:$0x73625140]
      %v340 = vld.sshfl [vmem:[#allocation1 + $0x8] sm:$0xff pattern:$0x73625140]
      %v342 = vld.sshfl [vmem:[#allocation1 + $0x10] sm:$0xff pattern:$0x73625140]
      %v344 = vld.sshfl [vmem:[#allocation1 + $0x18] sm:$0xff pattern:$0x73625140]
      %v346 = vld.sshfl [vmem:[#allocation1 + $0x20] sm:$0xff pattern:$0x73625140]
      %v348 = vld.sshfl [vmem:[#allocation1 + $0x28] sm:$0xff pattern:$0x73625140]
      %350 = vrot.lane.b32.xlu0 %v338, 11
      %v351 = vpop.permute.xlu0 %350
      %352 = vrot.lane.b32.xlu0 %v340, 11
      %v353 = vpop.permute.xlu0 %352
      %354 = vrot.lane.b32.xlu0 %v342, 11
      %v355 = vpop.permute.xlu0 %354
      %356 = vrot.lane.b32.xlu0 %v344, 11
      %v357 = vpop.permute.xlu0 %356
      %358 = vrot.lane.b32.xlu0 %v346, 11
      %v359 = vpop.permute.xlu0 %358
      %360 = vrot.lane.b32.xlu0 %v348, 11
      %v361 = vpop.permute.xlu0 %360
      %vm362 = vcmask 89088
      %v363 = vsel %vm362, %v351, %v353
      %v364 = vsel %vm362, %v353, %v355
      %v365 = vsel %vm362, %v355, %v357
      %v366 = vsel %vm362, %v357, %v359
      %v367 = vsel %vm362, %v359, %v361
      %v369 = vsel %vm250, %v212, 0
      %v372 = vsel %vm254, %v363, 0
      %v375 = vsel %vm254, %v364, 0
      %v378 = vsel %vm254, %v365, 0
      %v381 = vsel %vm254, %v366, 0
      %v384 = vsel %vm254, %v367, 0
      %386 = vmatpush.bf16.msra.mxu0 0
      %387 = vmatpush.bf16.msra.mxu0 0
      %388 = vmatpush.bf16.msra.mxu0 0
      %389 = vmatpush.bf16.msra.mxu0 0
      %390 = vmatpush.bf16.msra.mxu0 0
      %391 = vmatpush.bf16.msra.mxu0 0
      %392 = vmatpush.bf16.msra.mxu0 0
      %393 = vmatpush.bf16.msra.mxu0 %v372
      %394 = vmatmul.bf16.gmra.mxu0 %v369
      %v395 = vpop.f32.mrf.mxu0
      %v396 = vadd.f32 %v280, %v395
      %v397 = vpop.f32.mrf.mxu0
      %398 = vdwg.mxu0
      %399 = vmatpush.bf16.msra.mxu0 0
      %400 = vmatpush.bf16.msra.mxu0 0
      %401 = vmatpush.bf16.msra.mxu0 0
      %402 = vmatpush.bf16.msra.mxu0 0
      %403 = vmatpush.bf16.msra.mxu0 0
      %404 = vmatpush.bf16.msra.mxu0 0
      %405 = vmatpush.bf16.msra.mxu0 0
      %406 = vmatpush.bf16.msra.mxu0 %v375
      %407 = vmatmul.bf16.gmra.mxu0 %v369
      %v408 = vpop.f32.mrf.mxu0
      %v409 = vadd.f32 %v293, %v408
      %v410 = vpop.f32.mrf.mxu0
      %411 = vdwg.mxu0
      %412 = vmatpush.bf16.msra.mxu0 0
      %413 = vmatpush.bf16.msra.mxu0 0
      %414 = vmatpush.bf16.msra.mxu0 0
      %415 = vmatpush.bf16.msra.mxu0 0
      %416 = vmatpush.bf16.msra.mxu0 0
      %417 = vmatpush.bf16.msra.mxu0 0
      %418 = vmatpush.bf16.msra.mxu0 0
      %419 = vmatpush.bf16.msra.mxu0 %v378
      %420 = vmatmul.bf16.gmra.mxu0 %v369
      %v421 = vpop.f32.mrf.mxu0
      %v422 = vadd.f32 %v306, %v421
      %v423 = vpop.f32.mrf.mxu0
      %424 = vdwg.mxu0
      %425 = vmatpush.bf16.msra.mxu0 0
      %426 = vmatpush.bf16.msra.mxu0 0
      %427 = vmatpush.bf16.msra.mxu0 0
      %428 = vmatpush.bf16.msra.mxu0 0
      %429 = vmatpush.bf16.msra.mxu0 0
      %430 = vmatpush.bf16.msra.mxu0 0
      %431 = vmatpush.bf16.msra.mxu0 0
      %432 = vmatpush.bf16.msra.mxu0 %v381
      %433 = vmatmul.bf16.gmra.mxu0 %v369
      %v434 = vpop.f32.mrf.mxu0
      %v435 = vadd.f32 %v319, %v434
      %v436 = vpop.f32.mrf.mxu0
      %437 = vdwg.mxu0
      %438 = vmatpush.bf16.msra.mxu0 0
      %439 = vmatpush.bf16.msra.mxu0 0
      %440 = vmatpush.bf16.msra.mxu0 0
      %441 = vmatpush.bf16.msra.mxu0 0
      %442 = vmatpush.bf16.msra.mxu0 0
      %443 = vmatpush.bf16.msra.mxu0 0
      %444 = vmatpush.bf16.msra.mxu0 0
      %445 = vmatpush.bf16.msra.mxu0 %v384
      %446 = vmatmul.bf16.gmra.mxu0 %v369
      %v447 = vpop.f32.mrf.mxu0
      %v448 = vadd.f32 %v332, %v447
      %v449 = vpop.f32.mrf.mxu0
      %450 = vdwg.mxu0
      %v451 = vld [vmem:[%s199 + $0x2] sm:$0xff]
      %v452 = vld [vmem:[%s199 + $0xa] sm:$0xf]
      %s453 = scalar_lea.vmem %s1, 8
      %v454 = vld [vmem:[%s453] sm:$0xf]
      %456 = vst [vmem:[#allocation1] ss:$4 sm:$0xff] %v451
      %s458 = scalar_lea.vmem [#allocation1], 32
      %459 = vst [vmem:[%s458] ss:$4 sm:$0xff] %v452
      %v460 = vld.sshfl [vmem:[#allocation1] sm:$0xff pattern:$0x73625140]
      %v462 = vld.sshfl [vmem:[#allocation1 + $0x8] sm:$0xff pattern:$0x73625140]
      %v464 = vld.sshfl [vmem:[#allocation1 + $0x10] sm:$0xff pattern:$0x73625140]
      %v466 = vld.sshfl [vmem:[#allocation1 + $0x18] sm:$0xff pattern:$0x73625140]
      %v468 = vld.sshfl [vmem:[#allocation1 + $0x20] sm:$0xff pattern:$0x73625140]
      %v470 = vld.sshfl [vmem:[#allocation1 + $0x28] sm:$0xff pattern:$0x73625140]
      %472 = vrot.lane.b32.xlu0 %v460, 7
      %v473 = vpop.permute.xlu0 %472
      %474 = vrot.lane.b32.xlu0 %v462, 7
      %v475 = vpop.permute.xlu0 %474
      %476 = vrot.lane.b32.xlu0 %v464, 7
      %v477 = vpop.permute.xlu0 %476
      %478 = vrot.lane.b32.xlu0 %v466, 7
      %v479 = vpop.permute.xlu0 %478
      %480 = vrot.lane.b32.xlu0 %v468, 7
      %v481 = vpop.permute.xlu0 %480
      %482 = vrot.lane.b32.xlu0 %v470, 7
      %v483 = vpop.permute.xlu0 %482
      %vm484 = vcmask 56320
      %v485 = vsel %vm484, %v473, %v475
      %v486 = vsel %vm484, %v475, %v477
      %v487 = vsel %vm484, %v477, %v479
      %v488 = vsel %vm484, %v479, %v481
      %v489 = vsel %vm484, %v481, %v483
      %v491 = vsel %vm250, %v454, 0
      %v494 = vsel %vm254, %v485, 0
      %v497 = vsel %vm254, %v486, 0
      %v500 = vsel %vm254, %v487, 0
      %v503 = vsel %vm254, %v488, 0
      %v506 = vsel %vm254, %v489, 0
      %508 = vmatpush.bf16.msra.mxu0 0
      %509 = vmatpush.bf16.msra.mxu0 0
      %510 = vmatpush.bf16.msra.mxu0 0
      %511 = vmatpush.bf16.msra.mxu0 0
      %512 = vmatpush.bf16.msra.mxu0 0
      %513 = vmatpush.bf16.msra.mxu0 0
      %514 = vmatpush.bf16.msra.mxu0 0
      %515 = vmatpush.bf16.msra.mxu0 %v494
      %516 = vmatmul.bf16.gmra.mxu0 %v491
      %v517 = vpop.f32.mrf.mxu0
      %v518 = vadd.f32 0.0, %v517
      %v519 = vpop.f32.mrf.mxu0
      %520 = vdwg.mxu0
      %521 = vmatpush.bf16.msra.mxu0 0
      %522 = vmatpush.bf16.msra.mxu0 0
      %523 = vmatpush.bf16.msra.mxu0 0
      %524 = vmatpush.bf16.msra.mxu0 0
      %525 = vmatpush.bf16.msra.mxu0 0
      %526 = vmatpush.bf16.msra.mxu0 0
      %527 = vmatpush.bf16.msra.mxu0 0
      %528 = vmatpush.bf16.msra.mxu0 %v497
      %529 = vmatmul.bf16.gmra.mxu0 %v491
      %v530 = vpop.f32.mrf.mxu0
      %v531 = vadd.f32 0.0, %v530
      %v532 = vpop.f32.mrf.mxu0
      %533 = vdwg.mxu0
      %534 = vmatpush.bf16.msra.mxu0 0
      %535 = vmatpush.bf16.msra.mxu0 0
      %536 = vmatpush.bf16.msra.mxu0 0
      %537 = vmatpush.bf16.msra.mxu0 0
      %538 = vmatpush.bf16.msra.mxu0 0
      %539 = vmatpush.bf16.msra.mxu0 0
      %540 = vmatpush.bf16.msra.mxu0 0
      %541 = vmatpush.bf16.msra.mxu0 %v500
      %542 = vmatmul.bf16.gmra.mxu0 %v491
      %v543 = vpop.f32.mrf.mxu0
      %v544 = vadd.f32 0.0, %v543
      %v545 = vpop.f32.mrf.mxu0
      %546 = vdwg.mxu0
      %547 = vmatpush.bf16.msra.mxu0 0
      %548 = vmatpush.bf16.msra.mxu0 0
      %549 = vmatpush.bf16.msra.mxu0 0
      %550 = vmatpush.bf16.msra.mxu0 0
      %551 = vmatpush.bf16.msra.mxu0 0
      %552 = vmatpush.bf16.msra.mxu0 0
      %553 = vmatpush.bf16.msra.mxu0 0
      %554 = vmatpush.bf16.msra.mxu0 %v503
      %555 = vmatmul.bf16.gmra.mxu0 %v491
      %v556 = vpop.f32.mrf.mxu0
      %v557 = vadd.f32 0.0, %v556
      %v558 = vpop.f32.mrf.mxu0
      %559 = vdwg.mxu0
      %560 = vmatpush.bf16.msra.mxu0 0
      %561 = vmatpush.bf16.msra.mxu0 0
      %562 = vmatpush.bf16.msra.mxu0 0
      %563 = vmatpush.bf16.msra.mxu0 0
      %564 = vmatpush.bf16.msra.mxu0 0
      %565 = vmatpush.bf16.msra.mxu0 0
      %566 = vmatpush.bf16.msra.mxu0 0
      %567 = vmatpush.bf16.msra.mxu0 %v506
      %568 = vmatmul.bf16.gmra.mxu0 %v491
      %v569 = vpop.f32.mrf.mxu0
      %v570 = vadd.f32 0.0, %v569
      %v571 = vpop.f32.mrf.mxu0
      %572 = vdwg.mxu0
      %v573 = vadd.f32 %v396, %v518
      %v574 = vadd.f32 %v409, %v531
      %v575 = vadd.f32 %v422, %v544
      %v576 = vadd.f32 %v435, %v557
      %v577 = vadd.f32 %v448, %v570
      %v578 = vld [vmem:[%s199 + $0x4] sm:$0xff]
      %v579 = vld [vmem:[%s199 + $0xc] sm:$0x3]
      %s580 = scalar_lea.vmem %s1, 12
      %v581 = vld [vmem:[%s580] sm:$0xf]
      %583 = vst [vmem:[#allocation1] ss:$4 sm:$0xff] %v578
      %s585 = scalar_lea.vmem [#allocation1], 32
      %586 = vst [vmem:[%s585] ss:$4 sm:$0xff] %v579
      %v587 = vld.sshfl [vmem:[#allocation1] sm:$0xff pattern:$0x73625140]
      %v589 = vld.sshfl [vmem:[#allocation1 + $0x8] sm:$0xff pattern:$0x73625140]
      %v591 = vld.sshfl [vmem:[#allocation1 + $0x10] sm:$0xff pattern:$0x73625140]
      %v593 = vld.sshfl [vmem:[#allocation1 + $0x18] sm:$0xff pattern:$0x73625140]
      %v595 = vld.sshfl [vmem:[#allocation1 + $0x20] sm:$0xff pattern:$0x73625140]
      %597 = vrot.lane.b32.xlu0 %v587, 71
      %v598 = vpop.permute.xlu0 %597
      %599 = vrot.lane.b32.xlu0 %v589, 71
      %v600 = vpop.permute.xlu0 %599
      %601 = vrot.lane.b32.xlu0 %v591, 71
      %v602 = vpop.permute.xlu0 %601
      %603 = vrot.lane.b32.xlu0 %v593, 71
      %v604 = vpop.permute.xlu0 %603
      %605 = vrot.lane.b32.xlu0 %v595, 71
      %v606 = vpop.permute.xlu0 %605
      %vm607 = vcmask 580608
      %v608 = vsel %vm607, %v598, %v600
      %v609 = vsel %vm607, %v600, %v602
      %v610 = vsel %vm607, %v602, %v604
      %v611 = vsel %vm607, %v604, %v606
      %v613 = vsel %vm250, %v581, 0
      %v616 = vsel %vm254, %v608, 0
      %v619 = vsel %vm254, %v609, 0
      %v622 = vsel %vm254, %v610, 0
      %v625 = vsel %vm254, %v611, 0
      %v628 = vsel %vm254, %v606, 0
      %630 = vmatpush.bf16.msra.mxu0 0
      %631 = vmatpush.bf16.msra.mxu0 0
      %632 = vmatpush.bf16.msra.mxu0 0
      %633 = vmatpush.bf16.msra.mxu0 0
      %634 = vmatpush.bf16.msra.mxu0 0
      %635 = vmatpush.bf16.msra.mxu0 0
      %636 = vmatpush.bf16.msra.mxu0 0
      %637 = vmatpush.bf16.msra.mxu0 %v616
      %638 = vmatmul.bf16.gmra.mxu0 %v613
      %v639 = vpop.f32.mrf.mxu0
      %v640 = vadd.f32 0.0, %v639
      %v641 = vpop.f32.mrf.mxu0
      %642 = vdwg.mxu0
      %643 = vmatpush.bf16.msra.mxu0 0
      %644 = vmatpush.bf16.msra.mxu0 0
      %645 = vmatpush.bf16.msra.mxu0 0
      %646 = vmatpush.bf16.msra.mxu0 0
      %647 = vmatpush.bf16.msra.mxu0 0
      %648 = vmatpush.bf16.msra.mxu0 0
      %649 = vmatpush.bf16.msra.mxu0 0
      %650 = vmatpush.bf16.msra.mxu0 %v619
      %651 = vmatmul.bf16.gmra.mxu0 %v613
      %v652 = vpop.f32.mrf.mxu0
      %v653 = vadd.f32 0.0, %v652
      %v654 = vpop.f32.mrf.mxu0
      %655 = vdwg.mxu0
      %656 = vmatpush.bf16.msra.mxu0 0
      %657 = vmatpush.bf16.msra.mxu0 0
      %658 = vmatpush.bf16.msra.mxu0 0
      %659 = vmatpush.bf16.msra.mxu0 0
      %660 = vmatpush.bf16.msra.mxu0 0
      %661 = vmatpush.bf16.msra.mxu0 0
      %662 = vmatpush.bf16.msra.mxu0 0
      %663 = vmatpush.bf16.msra.mxu0 %v622
      %664 = vmatmul.bf16.gmra.mxu0 %v613
      %v665 = vpop.f32.mrf.mxu0
      %v666 = vadd.f32 0.0, %v665
      %v667 = vpop.f32.mrf.mxu0
      %668 = vdwg.mxu0
      %669 = vmatpush.bf16.msra.mxu0 0
      %670 = vmatpush.bf16.msra.mxu0 0
      %671 = vmatpush.bf16.msra.mxu0 0
      %672 = vmatpush.bf16.msra.mxu0 0
      %673 = vmatpush.bf16.msra.mxu0 0
      %674 = vmatpush.bf16.msra.mxu0 0
      %675 = vmatpush.bf16.msra.mxu0 0
      %676 = vmatpush.bf16.msra.mxu0 %v625
      %677 = vmatmul.bf16.gmra.mxu0 %v613
      %v678 = vpop.f32.mrf.mxu0
      %v679 = vadd.f32 0.0, %v678
      %v680 = vpop.f32.mrf.mxu0
      %681 = vdwg.mxu0
      %682 = vmatpush.bf16.msra.mxu0 0
      %683 = vmatpush.bf16.msra.mxu0 0
      %684 = vmatpush.bf16.msra.mxu0 0
      %685 = vmatpush.bf16.msra.mxu0 0
      %686 = vmatpush.bf16.msra.mxu0 0
      %687 = vmatpush.bf16.msra.mxu0 0
      %688 = vmatpush.bf16.msra.mxu0 0
      %689 = vmatpush.bf16.msra.mxu0 %v628
      %690 = vmatmul.bf16.gmra.mxu0 %v613
      %v691 = vpop.f32.mrf.mxu0
      %v692 = vadd.f32 0.0, %v691
      %v693 = vpop.f32.mrf.mxu0
      %694 = vdwg.mxu0
      %v695 = vadd.f32 %v573, %v640
      %v696 = vadd.f32 %v574, %v653
      %v697 = vadd.f32 %v575, %v666
      %v698 = vadd.f32 %v576, %v679
      %v699 = vadd.f32 %v577, %v692
      %v700 = vld [vmem:[%s199 + $0x4] sm:$0xff]
      %v701 = vld [vmem:[%s199 + $0xc] sm:$0x3]
      %s702 = scalar_lea.vmem %s1, 16
      %v703 = vld [vmem:[%s702] sm:$0xf]
      %705 = vst [vmem:[#allocation1] ss:$4 sm:$0xff] %v700
      %s707 = scalar_lea.vmem [#allocation1], 32
      %708 = vst [vmem:[%s707] ss:$4 sm:$0xff] %v701
      %v709 = vld.sshfl [vmem:[#allocation1] sm:$0xff pattern:$0x73625140]
      %v711 = vld.sshfl [vmem:[#allocation1 + $0x8] sm:$0xff pattern:$0x73625140]
      %v713 = vld.sshfl [vmem:[#allocation1 + $0x10] sm:$0xff pattern:$0x73625140]
      %v715 = vld.sshfl [vmem:[#allocation1 + $0x18] sm:$0xff pattern:$0x73625140]
      %v717 = vld.sshfl [vmem:[#allocation1 + $0x20] sm:$0xff pattern:$0x73625140]
      %719 = vrot.lane.b32.xlu0 %v709, 69
      %v720 = vpop.permute.xlu0 %719
      %721 = vrot.lane.b32.xlu0 %v711, 69
      %v722 = vpop.permute.xlu0 %721
      %723 = vrot.lane.b32.xlu0 %v713, 69
      %v724 = vpop.permute.xlu0 %723
      %725 = vrot.lane.b32.xlu0 %v715, 69
      %v726 = vpop.permute.xlu0 %725
      %727 = vrot.lane.b32.xlu0 %v717, 69
      %v728 = vpop.permute.xlu0 %727
      %vm729 = vcmask 564224
      %v730 = vsel %vm729, %v720, %v722
      %v731 = vsel %vm729, %v722, %v724
      %v732 = vsel %vm729, %v724, %v726
      %v733 = vsel %vm729, %v726, %v728
      %v735 = vsel %vm250, %v703, 0
      %v738 = vsel %vm254, %v730, 0
      %v741 = vsel %vm254, %v731, 0
      %v744 = vsel %vm254, %v732, 0
      %v747 = vsel %vm254, %v733, 0
      %v750 = vsel %vm254, %v728, 0
      %752 = vmatpush.bf16.msra.mxu0 0
      %753 = vmatpush.bf16.msra.mxu0 0
      %754 = vmatpush.bf16.msra.mxu0 0
      %755 = vmatpush.bf16.msra.mxu0 0
      %756 = vmatpush.bf16.msra.mxu0 0
      %757 = vmatpush.bf16.msra.mxu0 0
      %758 = vmatpush.bf16.msra.mxu0 0
      %759 = vmatpush.bf16.msra.mxu0 %v738
      %760 = vmatmul.bf16.gmra.mxu0 %v735
      %v761 = vpop.f32.mrf.mxu0
      %v762 = vadd.f32 0.0, %v761
      %v763 = vpop.f32.mrf.mxu0
      %764 = vdwg.mxu0
      %765 = vmatpush.bf16.msra.mxu0 0
      %766 = vmatpush.bf16.msra.mxu0 0
      %767 = vmatpush.bf16.msra.mxu0 0
      %768 = vmatpush.bf16.msra.mxu0 0
      %769 = vmatpush.bf16.msra.mxu0 0
      %770 = vmatpush.bf16.msra.mxu0 0
      %771 = vmatpush.bf16.msra.mxu0 0
      %772 = vmatpush.bf16.msra.mxu0 %v741
      %773 = vmatmul.bf16.gmra.mxu0 %v735
      %v774 = vpop.f32.mrf.mxu0
      %v775 = vadd.f32 0.0, %v774
      %v776 = vpop.f32.mrf.mxu0
      %777 = vdwg.mxu0
      %778 = vmatpush.bf16.msra.mxu0 0
      %779 = vmatpush.bf16.msra.mxu0 0
      %780 = vmatpush.bf16.msra.mxu0 0
      %781 = vmatpush.bf16.msra.mxu0 0
      %782 = vmatpush.bf16.msra.mxu0 0
      %783 = vmatpush.bf16.msra.mxu0 0
      %784 = vmatpush.bf16.msra.mxu0 0
      %785 = vmatpush.bf16.msra.mxu0 %v744
      %786 = vmatmul.bf16.gmra.mxu0 %v735
      %v787 = vpop.f32.mrf.mxu0
      %v788 = vadd.f32 0.0, %v787
      %v789 = vpop.f32.mrf.mxu0
      %790 = vdwg.mxu0
      %791 = vmatpush.bf16.msra.mxu0 0
      %792 = vmatpush.bf16.msra.mxu0 0
      %793 = vmatpush.bf16.msra.mxu0 0
      %794 = vmatpush.bf16.msra.mxu0 0
      %795 = vmatpush.bf16.msra.mxu0 0
      %796 = vmatpush.bf16.msra.mxu0 0
      %797 = vmatpush.bf16.msra.mxu0 0
      %798 = vmatpush.bf16.msra.mxu0 %v747
      %799 = vmatmul.bf16.gmra.mxu0 %v735
      %v800 = vpop.f32.mrf.mxu0
      %v801 = vadd.f32 0.0, %v800
      %v802 = vpop.f32.mrf.mxu0
      %803 = vdwg.mxu0
      %804 = vmatpush.bf16.msra.mxu0 0
      %805 = vmatpush.bf16.msra.mxu0 0
      %806 = vmatpush.bf16.msra.mxu0 0
      %807 = vmatpush.bf16.msra.mxu0 0
      %808 = vmatpush.bf16.msra.mxu0 0
      %809 = vmatpush.bf16.msra.mxu0 0
      %810 = vmatpush.bf16.msra.mxu0 0
      %811 = vmatpush.bf16.msra.mxu0 %v750
      %812 = vmatmul.bf16.gmra.mxu0 %v735
      %v813 = vpop.f32.mrf.mxu0
      %v814 = vadd.f32 0.0, %v813
      %v815 = vpop.f32.mrf.mxu0
      %816 = vdwg.mxu0
      %v817 = vadd.f32 %v695, %v762
      %v818 = vadd.f32 %v696, %v775
      %v819 = vadd.f32 %v697, %v788
      %v820 = vadd.f32 %v698, %v801
      %v821 = vadd.f32 %v699, %v814
      %v822 = vld [vmem:[%s199 + $0x4] sm:$0xff]
      %v823 = vld [vmem:[%s199 + $0xc] sm:$0x3]
      %s824 = scalar_lea.vmem %s1, 20
      %v825 = vld [vmem:[%s824] sm:$0xf]
      %827 = vst [vmem:[#allocation1] ss:$4 sm:$0xff] %v822
      %s829 = scalar_lea.vmem [#allocation1], 32
      %830 = vst [vmem:[%s829] ss:$4 sm:$0xff] %v823
      %v831 = vld.sshfl [vmem:[#allocation1] sm:$0xff pattern:$0x73625140]
      %v833 = vld.sshfl [vmem:[#allocation1 + $0x8] sm:$0xff pattern:$0x73625140]
      %v835 = vld.sshfl [vmem:[#allocation1 + $0x10] sm:$0xff pattern:$0x73625140]
      %v837 = vld.sshfl [vmem:[#allocation1 + $0x18] sm:$0xff pattern:$0x73625140]
      %v839 = vld.sshfl [vmem:[#allocation1 + $0x20] sm:$0xff pattern:$0x73625140]
      %841 = vrot.lane.b32.xlu0 %v831, 67
      %v842 = vpop.permute.xlu0 %841
      %843 = vrot.lane.b32.xlu0 %v833, 67
      %v844 = vpop.permute.xlu0 %843
      %845 = vrot.lane.b32.xlu0 %v835, 67
      %v846 = vpop.permute.xlu0 %845
      %847 = vrot.lane.b32.xlu0 %v837, 67
      %v848 = vpop.permute.xlu0 %847
      %849 = vrot.lane.b32.xlu0 %v839, 67
      %v850 = vpop.permute.xlu0 %849
      %vm851 = vcmask 547840
      %v852 = vsel %vm851, %v842, %v844
      %v853 = vsel %vm851, %v844, %v846
      %v854 = vsel %vm851, %v846, %v848
      %v855 = vsel %vm851, %v848, %v850
      %v857 = vsel %vm250, %v825, 0
      %v860 = vsel %vm254, %v852, 0
      %v863 = vsel %vm254, %v853, 0
      %v866 = vsel %vm254, %v854, 0
      %v869 = vsel %vm254, %v855, 0
      %v872 = vsel %vm254, %v850, 0
      %874 = vmatpush.bf16.msra.mxu0 0
      %875 = vmatpush.bf16.msra.mxu0 0
      %876 = vmatpush.bf16.msra.mxu0 0
      %877 = vmatpush.bf16.msra.mxu0 0
      %878 = vmatpush.bf16.msra.mxu0 0
      %879 = vmatpush.bf16.msra.mxu0 0
      %880 = vmatpush.bf16.msra.mxu0 0
      %881 = vmatpush.bf16.msra.mxu0 %v860
      %882 = vmatmul.bf16.gmra.mxu0 %v857
      %v883 = vpop.f32.mrf.mxu0
      %v884 = vadd.f32 0.0, %v883
      %v885 = vpop.f32.mrf.mxu0
      %886 = vdwg.mxu0
      %887 = vmatpush.bf16.msra.mxu0 0
      %888 = vmatpush.bf16.msra.mxu0 0
      %889 = vmatpush.bf16.msra.mxu0 0
      %890 = vmatpush.bf16.msra.mxu0 0
      %891 = vmatpush.bf16.msra.mxu0 0
      %892 = vmatpush.bf16.msra.mxu0 0
      %893 = vmatpush.bf16.msra.mxu0 0
      %894 = vmatpush.bf16.msra.mxu0 %v863
      %895 = vmatmul.bf16.gmra.mxu0 %v857
      %v896 = vpop.f32.mrf.mxu0
      %v897 = vadd.f32 0.0, %v896
      %v898 = vpop.f32.mrf.mxu0
      %899 = vdwg.mxu0
      %900 = vmatpush.bf16.msra.mxu0 0
      %901 = vmatpush.bf16.msra.mxu0 0
      %902 = vmatpush.bf16.msra.mxu0 0
      %903 = vmatpush.bf16.msra.mxu0 0
      %904 = vmatpush.bf16.msra.mxu0 0
      %905 = vmatpush.bf16.msra.mxu0 0
      %906 = vmatpush.bf16.msra.mxu0 0
      %907 = vmatpush.bf16.msra.mxu0 %v866
      %908 = vmatmul.bf16.gmra.mxu0 %v857
      %v909 = vpop.f32.mrf.mxu0
      %v910 = vadd.f32 0.0, %v909
      %v911 = vpop.f32.mrf.mxu0
      %912 = vdwg.mxu0
      %913 = vmatpush.bf16.msra.mxu0 0
      %914 = vmatpush.bf16.msra.mxu0 0
      %915 = vmatpush.bf16.msra.mxu0 0
      %916 = vmatpush.bf16.msra.mxu0 0
      %917 = vmatpush.bf16.msra.mxu0 0
      %918 = vmatpush.bf16.msra.mxu0 0
      %919 = vmatpush.bf16.msra.mxu0 0
      %920 = vmatpush.bf16.msra.mxu0 %v869
      %921 = vmatmul.bf16.gmra.mxu0 %v857
      %v922 = vpop.f32.mrf.mxu0
      %v923 = vadd.f32 0.0, %v922
      %v924 = vpop.f32.mrf.mxu0
      %925 = vdwg.mxu0
      %926 = vmatpush.bf16.msra.mxu0 0
      %927 = vmatpush.bf16.msra.mxu0 0
      %928 = vmatpush.bf16.msra.mxu0 0
      %929 = vmatpush.bf16.msra.mxu0 0
      %930 = vmatpush.bf16.msra.mxu0 0
      %931 = vmatpush.bf16.msra.mxu0 0
      %932 = vmatpush.bf16.msra.mxu0 0
      %933 = vmatpush.bf16.msra.mxu0 %v872
      %934 = vmatmul.bf16.gmra.mxu0 %v857
      %v935 = vpop.f32.mrf.mxu0
      %v936 = vadd.f32 0.0, %v935
      %v937 = vpop.f32.mrf.mxu0
      %938 = vdwg.mxu0
      %v939 = vadd.f32 %v817, %v884
      %v940 = vadd.f32 %v818, %v897
      %v941 = vadd.f32 %v819, %v910
      %v942 = vadd.f32 %v820, %v923
      %v943 = vadd.f32 %v821, %v936
      %v944 = vld [vmem:[%s199 + $0x4] sm:$0xff]
      %v945 = vld [vmem:[%s199 + $0xc] sm:$0xf]
      %s946 = scalar_lea.vmem %s1, 24
      %v947 = vld [vmem:[%s946] sm:$0xf]
      %949 = vst [vmem:[#allocation1] ss:$4 sm:$0xff] %v944
      %s951 = scalar_lea.vmem [#allocation1], 32
      %952 = vst [vmem:[%s951] ss:$4 sm:$0xff] %v945
      %v953 = vld.sshfl [vmem:[#allocation1] sm:$0xff pattern:$0x73625140]
      %v955 = vld.sshfl [vmem:[#allocation1 + $0x8] sm:$0xff pattern:$0x73625140]
      %v957 = vld.sshfl [vmem:[#allocation1 + $0x10] sm:$0xff pattern:$0x73625140]
      %v959 = vld.sshfl [vmem:[#allocation1 + $0x18] sm:$0xff pattern:$0x73625140]
      %v961 = vld.sshfl [vmem:[#allocation1 + $0x20] sm:$0xff pattern:$0x73625140]
      %v963 = vld.sshfl [vmem:[#allocation1 + $0x28] sm:$0xff pattern:$0x73625140]
      %965 = vrot.lane.b32.xlu0 %v953, 3
      %v966 = vpop.permute.xlu0 %965
      %967 = vrot.lane.b32.xlu0 %v955, 3
      %v968 = vpop.permute.xlu0 %967
      %969 = vrot.lane.b32.xlu0 %v957, 3
      %v970 = vpop.permute.xlu0 %969
      %971 = vrot.lane.b32.xlu0 %v959, 3
      %v972 = vpop.permute.xlu0 %971
      %973 = vrot.lane.b32.xlu0 %v961, 3
      %v974 = vpop.permute.xlu0 %973
      %975 = vrot.lane.b32.xlu0 %v963, 3
      %v976 = vpop.permute.xlu0 %975
      %vm977 = vcmask 23552
      %v978 = vsel %vm977, %v966, %v968
      %v979 = vsel %vm977, %v968, %v970
      %v980 = vsel %vm977, %v970, %v972
      %v981 = vsel %vm977, %v972, %v974
      %v982 = vsel %vm977, %v974, %v976
      %v984 = vsel %vm250, %v947, 0
      %v987 = vsel %vm254, %v978, 0
      %v990 = vsel %vm254, %v979, 0
      %v993 = vsel %vm254, %v980, 0
      %v996 = vsel %vm254, %v981, 0
      %v999 = vsel %vm254, %v982, 0
      %1001 = vmatpush.bf16.msra.mxu0 0
      %1002 = vmatpush.bf16.msra.mxu0 0
      %1003 = vmatpush.bf16.msra.mxu0 0
      %1004 = vmatpush.bf16.msra.mxu0 0
      %1005 = vmatpush.bf16.msra.mxu0 0
      %1006 = vmatpush.bf16.msra.mxu0 0
      %1007 = vmatpush.bf16.msra.mxu0 0
      %1008 = vmatpush.bf16.msra.mxu0 %v987
      %1009 = vmatmul.bf16.gmra.mxu0 %v984
      %v1010 = vpop.f32.mrf.mxu0
      %v1011 = vadd.f32 0.0, %v1010
      %v1012 = vpop.f32.mrf.mxu0
      %1013 = vdwg.mxu0
      %1014 = vmatpush.bf16.msra.mxu0 0
      %1015 = vmatpush.bf16.msra.mxu0 0
      %1016 = vmatpush.bf16.msra.mxu0 0
      %1017 = vmatpush.bf16.msra.mxu0 0
      %1018 = vmatpush.bf16.msra.mxu0 0
      %1019 = vmatpush.bf16.msra.mxu0 0
      %1020 = vmatpush.bf16.msra.mxu0 0
      %1021 = vmatpush.bf16.msra.mxu0 %v990
      %1022 = vmatmul.bf16.gmra.mxu0 %v984
      %v1023 = vpop.f32.mrf.mxu0
      %v1024 = vadd.f32 0.0, %v1023
      %v1025 = vpop.f32.mrf.mxu0
      %1026 = vdwg.mxu0
      %1027 = vmatpush.bf16.msra.mxu0 0
      %1028 = vmatpush.bf16.msra.mxu0 0
      %1029 = vmatpush.bf16.msra.mxu0 0
      %1030 = vmatpush.bf16.msra.mxu0 0
      %1031 = vmatpush.bf16.msra.mxu0 0
      %1032 = vmatpush.bf16.msra.mxu0 0
      %1033 = vmatpush.bf16.msra.mxu0 0
      %1034 = vmatpush.bf16.msra.mxu0 %v993
      %1035 = vmatmul.bf16.gmra.mxu0 %v984
      %v1036 = vpop.f32.mrf.mxu0
      %v1037 = vadd.f32 0.0, %v1036
      %v1038 = vpop.f32.mrf.mxu0
      %1039 = vdwg.mxu0
      %1040 = vmatpush.bf16.msra.mxu0 0
      %1041 = vmatpush.bf16.msra.mxu0 0
      %1042 = vmatpush.bf16.msra.mxu0 0
      %1043 = vmatpush.bf16.msra.mxu0 0
      %1044 = vmatpush.bf16.msra.mxu0 0
      %1045 = vmatpush.bf16.msra.mxu0 0
      %1046 = vmatpush.bf16.msra.mxu0 0
      %1047 = vmatpush.bf16.msra.mxu0 %v996
      %1048 = vmatmul.bf16.gmra.mxu0 %v984
      %v1049 = vpop.f32.mrf.mxu0
      %v1050 = vadd.f32 0.0, %v1049
      %v1051 = vpop.f32.mrf.mxu0
      %1052 = vdwg.mxu0
      %1053 = vmatpush.bf16.msra.mxu0 0
      %1054 = vmatpush.bf16.msra.mxu0 0
      %1055 = vmatpush.bf16.msra.mxu0 0
      %1056 = vmatpush.bf16.msra.mxu0 0
      %1057 = vmatpush.bf16.msra.mxu0 0
      %1058 = vmatpush.bf16.msra.mxu0 0
      %1059 = vmatpush.bf16.msra.mxu0 0
      %1060 = vmatpush.bf16.msra.mxu0 %v999
      %1061 = vmatmul.bf16.gmra.mxu0 %v984
      %v1062 = vpop.f32.mrf.mxu0
      %v1063 = vadd.f32 0.0, %v1062
      %v1064 = vpop.f32.mrf.mxu0
      %1065 = vdwg.mxu0
      %v1066 = vadd.f32 %v939, %v1011
      %v1067 = vadd.f32 %v940, %v1024
      %v1068 = vadd.f32 %v941, %v1037
      %v1069 = vadd.f32 %v942, %v1050
      %v1070 = vadd.f32 %v943, %v1063
      %v1071 = vld [vmem:[%s199 + $0x4] sm:$0xff]
      %v1072 = vld [vmem:[%s199 + $0xc] sm:$0xf]
      %s1073 = scalar_lea.vmem %s1, 28
      %v1074 = vld [vmem:[%s1073] sm:$0xf]
      %1076 = vst [vmem:[#allocation1] ss:$4 sm:$0xff] %v1071
      %s1078 = scalar_lea.vmem [#allocation1], 32
      %1079 = vst [vmem:[%s1078] ss:$4 sm:$0xff] %v1072
      %v1080 = vld.sshfl [vmem:[#allocation1] sm:$0xff pattern:$0x73625140]
      %v1082 = vld.sshfl [vmem:[#allocation1 + $0x8] sm:$0xff pattern:$0x73625140]
      %v1084 = vld.sshfl [vmem:[#allocation1 + $0x10] sm:$0xff pattern:$0x73625140]
      %v1086 = vld.sshfl [vmem:[#allocation1 + $0x18] sm:$0xff pattern:$0x73625140]
      %v1088 = vld.sshfl [vmem:[#allocation1 + $0x20] sm:$0xff pattern:$0x73625140]
      %v1090 = vld.sshfl [vmem:[#allocation1 + $0x28] sm:$0xff pattern:$0x73625140]
      %1092 = vrot.lane.b32.xlu0 %v1080, 1
      %v1093 = vpop.permute.xlu0 %1092
      %1094 = vrot.lane.b32.xlu0 %v1082, 1
      %v1095 = vpop.permute.xlu0 %1094
      %1096 = vrot.lane.b32.xlu0 %v1084, 1
      %v1097 = vpop.permute.xlu0 %1096
      %1098 = vrot.lane.b32.xlu0 %v1086, 1
      %v1099 = vpop.permute.xlu0 %1098
      %1100 = vrot.lane.b32.xlu0 %v1088, 1
      %v1101 = vpop.permute.xlu0 %1100
      %1102 = vrot.lane.b32.xlu0 %v1090, 1
      %v1103 = vpop.permute.xlu0 %1102
      %vm1104 = vcmask 7168
      %v1105 = vsel %vm1104, %v1093, %v1095
      %v1106 = vsel %vm1104, %v1095, %v1097
      %v1107 = vsel %vm1104, %v1097, %v1099
      %v1108 = vsel %vm1104, %v1099, %v1101
      %v1109 = vsel %vm1104, %v1101, %v1103
      %v1111 = vsel %vm250, %v1074, 0
      %v1114 = vsel %vm254, %v1105, 0
      %v1117 = vsel %vm254, %v1106, 0
      %v1120 = vsel %vm254, %v1107, 0
      %v1123 = vsel %vm254, %v1108, 0
      %v1126 = vsel %vm254, %v1109, 0
      %1128 = vmatpush.bf16.msra.mxu0 0
      %1129 = vmatpush.bf16.msra.mxu0 0
      %1130 = vmatpush.bf16.msra.mxu0 0
      %1131 = vmatpush.bf16.msra.mxu0 0
      %1132 = vmatpush.bf16.msra.mxu0 0
      %1133 = vmatpush.bf16.msra.mxu0 0
      %1134 = vmatpush.bf16.msra.mxu0 0
      %1135 = vmatpush.bf16.msra.mxu0 %v1114
      %1136 = vmatmul.bf16.gmra.mxu0 %v1111
      %v1137 = vpop.f32.mrf.mxu0
      %v1138 = vadd.f32 0.0, %v1137
      %v1139 = vpop.f32.mrf.mxu0
      %1140 = vdwg.mxu0
      %1141 = vmatpush.bf16.msra.mxu0 0
      %1142 = vmatpush.bf16.msra.mxu0 0
      %1143 = vmatpush.bf16.msra.mxu0 0
      %1144 = vmatpush.bf16.msra.mxu0 0
      %1145 = vmatpush.bf16.msra.mxu0 0
      %1146 = vmatpush.bf16.msra.mxu0 0
      %1147 = vmatpush.bf16.msra.mxu0 0
      %1148 = vmatpush.bf16.msra.mxu0 %v1117
      %1149 = vmatmul.bf16.gmra.mxu0 %v1111
      %v1150 = vpop.f32.mrf.mxu0
      %v1151 = vadd.f32 0.0, %v1150
      %v1152 = vpop.f32.mrf.mxu0
      %1153 = vdwg.mxu0
      %1154 = vmatpush.bf16.msra.mxu0 0
      %1155 = vmatpush.bf16.msra.mxu0 0
      %1156 = vmatpush.bf16.msra.mxu0 0
      %1157 = vmatpush.bf16.msra.mxu0 0
      %1158 = vmatpush.bf16.msra.mxu0 0
      %1159 = vmatpush.bf16.msra.mxu0 0
      %1160 = vmatpush.bf16.msra.mxu0 0
      %1161 = vmatpush.bf16.msra.mxu0 %v1120
      %1162 = vmatmul.bf16.gmra.mxu0 %v1111
      %v1163 = vpop.f32.mrf.mxu0
      %v1164 = vadd.f32 0.0, %v1163
      %v1165 = vpop.f32.mrf.mxu0
      %1166 = vdwg.mxu0
      %1167 = vmatpush.bf16.msra.mxu0 0
      %1168 = vmatpush.bf16.msra.mxu0 0
      %1169 = vmatpush.bf16.msra.mxu0 0
      %1170 = vmatpush.bf16.msra.mxu0 0
      %1171 = vmatpush.bf16.msra.mxu0 0
      %1172 = vmatpush.bf16.msra.mxu0 0
      %1173 = vmatpush.bf16.msra.mxu0 0
      %1174 = vmatpush.bf16.msra.mxu0 %v1123
      %1175 = vmatmul.bf16.gmra.mxu0 %v1111
      %v1176 = vpop.f32.mrf.mxu0
      %v1177 = vadd.f32 0.0, %v1176
      %v1178 = vpop.f32.mrf.mxu0
      %1179 = vdwg.mxu0
      %1180 = vmatpush.bf16.msra.mxu0 0
      %1181 = vmatpush.bf16.msra.mxu0 0
      %1182 = vmatpush.bf16.msra.mxu0 0
      %1183 = vmatpush.bf16.msra.mxu0 0
      %1184 = vmatpush.bf16.msra.mxu0 0
      %1185 = vmatpush.bf16.msra.mxu0 0
      %1186 = vmatpush.bf16.msra.mxu0 0
      %1187 = vmatpush.bf16.msra.mxu0 %v1126
      %1188 = vmatmul.bf16.gmra.mxu0 %v1111
      %v1189 = vpop.f32.mrf.mxu0
      %v1190 = vadd.f32 0.0, %v1189
      %v1191 = vpop.f32.mrf.mxu0
      %1192 = vdwg.mxu0
      %v1193 = vadd.f32 %v1066, %v1138
      %v1194 = vadd.f32 %v1067, %v1151
      %v1195 = vadd.f32 %v1068, %v1164
      %v1196 = vadd.f32 %v1069, %v1177
      %v1197 = vadd.f32 %v1070, %v1190
      %v1198 = vld [vmem:[%s199 + $0x6] sm:$0xff]
      %v1199 = vld [vmem:[%s199 + $0xe] sm:$0x3]
      %s1200 = scalar_lea.vmem %s1, 32
      %v1201 = vld [vmem:[%s1200] sm:$0xf]
      %1203 = vst [vmem:[#allocation1] ss:$4 sm:$0xff] %v1198
      %s1205 = scalar_lea.vmem [#allocation1], 32
      %1206 = vst [vmem:[%s1205] ss:$4 sm:$0xff] %v1199
      %v1207 = vld.sshfl [vmem:[#allocation1] sm:$0xff pattern:$0x73625140]
      %v1209 = vld.sshfl [vmem:[#allocation1 + $0x8] sm:$0xff pattern:$0x73625140]
      %v1211 = vld.sshfl [vmem:[#allocation1 + $0x10] sm:$0xff pattern:$0x73625140]
      %v1213 = vld.sshfl [vmem:[#allocation1 + $0x18] sm:$0xff pattern:$0x73625140]
      %v1215 = vld.sshfl [vmem:[#allocation1 + $0x20] sm:$0xff pattern:$0x73625140]
      %1217 = vrot.lane.b32.xlu0 %v1207, 127
      %v1218 = vpop.permute.xlu0 %1217
      %1219 = vrot.lane.b32.xlu0 %v1209, 127
      %v1220 = vpop.permute.xlu0 %1219
      %1221 = vrot.lane.b32.xlu0 %v1211, 127
      %v1222 = vpop.permute.xlu0 %1221
      %1223 = vrot.lane.b32.xlu0 %v1213, 127
      %v1224 = vpop.permute.xlu0 %1223
      %1225 = vrot.lane.b32.xlu0 %v1215, 127
      %v1226 = vpop.permute.xlu0 %1225
      %vm1227 = vcmask 1039360
      %v1228 = vsel %vm1227, %v1218, %v1220
      %v1229 = vsel %vm1227, %v1220, %v1222
      %v1230 = vsel %vm1227, %v1222, %v1224
      %v1231 = vsel %vm1227, %v1224, %v1226
      %v1233 = vsel %vm250, %v1201, 0
      %v1236 = vsel %vm254, %v1228, 0
      %v1239 = vsel %vm254, %v1229, 0
      %v1242 = vsel %vm254, %v1230, 0
      %v1245 = vsel %vm254, %v1231, 0
      %v1248 = vsel %vm254, %v1226, 0
      %1250 = vmatpush.bf16.msra.mxu0 0
      %1251 = vmatpush.bf16.msra.mxu0 0
      %1252 = vmatpush.bf16.msra.mxu0 0
      %1253 = vmatpush.bf16.msra.mxu0 0
      %1254 = vmatpush.bf16.msra.mxu0 0
      %1255 = vmatpush.bf16.msra.mxu0 0
      %1256 = vmatpush.bf16.msra.mxu0 0
      %1257 = vmatpush.bf16.msra.mxu0 %v1236
      %1258 = vmatmul.bf16.gmra.mxu0 %v1233
      %v1259 = vpop.f32.mrf.mxu0
      %v1260 = vadd.f32 0.0, %v1259
      %v1261 = vpop.f32.mrf.mxu0
      %1262 = vdwg.mxu0
      %1263 = vmatpush.bf16.msra.mxu0 0
      %1264 = vmatpush.bf16.msra.mxu0 0
      %1265 = vmatpush.bf16.msra.mxu0 0
      %1266 = vmatpush.bf16.msra.mxu0 0
      %1267 = vmatpush.bf16.msra.mxu0 0
      %1268 = vmatpush.bf16.msra.mxu0 0
      %1269 = vmatpush.bf16.msra.mxu0 0
      %1270 = vmatpush.bf16.msra.mxu0 %v1239
      %1271 = vmatmul.bf16.gmra.mxu0 %v1233
      %v1272 = vpop.f32.mrf.mxu0
      %v1273 = vadd.f32 0.0, %v1272
      %v1274 = vpop.f32.mrf.mxu0
      %1275 = vdwg.mxu0
      %1276 = vmatpush.bf16.msra.mxu0 0
      %1277 = vmatpush.bf16.msra.mxu0 0
      %1278 = vmatpush.bf16.msra.mxu0 0
      %1279 = vmatpush.bf16.msra.mxu0 0
      %1280 = vmatpush.bf16.msra.mxu0 0
      %1281 = vmatpush.bf16.msra.mxu0 0
      %1282 = vmatpush.bf16.msra.mxu0 0
      %1283 = vmatpush.bf16.msra.mxu0 %v1242
      %1284 = vmatmul.bf16.gmra.mxu0 %v1233
      %v1285 = vpop.f32.mrf.mxu0
      %v1286 = vadd.f32 0.0, %v1285
      %v1287 = vpop.f32.mrf.mxu0
      %1288 = vdwg.mxu0
      %1289 = vmatpush.bf16.msra.mxu0 0
      %1290 = vmatpush.bf16.msra.mxu0 0
      %1291 = vmatpush.bf16.msra.mxu0 0
      %1292 = vmatpush.bf16.msra.mxu0 0
      %1293 = vmatpush.bf16.msra.mxu0 0
      %1294 = vmatpush.bf16.msra.mxu0 0
      %1295 = vmatpush.bf16.msra.mxu0 0
      %1296 = vmatpush.bf16.msra.mxu0 %v1245
      %1297 = vmatmul.bf16.gmra.mxu0 %v1233
      %v1298 = vpop.f32.mrf.mxu0
      %v1299 = vadd.f32 0.0, %v1298
      %v1300 = vpop.f32.mrf.mxu0
      %1301 = vdwg.mxu0
      %1302 = vmatpush.bf16.msra.mxu0 0
      %1303 = vmatpush.bf16.msra.mxu0 0
      %1304 = vmatpush.bf16.msra.mxu0 0
      %1305 = vmatpush.bf16.msra.mxu0 0
      %1306 = vmatpush.bf16.msra.mxu0 0
      %1307 = vmatpush.bf16.msra.mxu0 0
      %1308 = vmatpush.bf16.msra.mxu0 0
      %1309 = vmatpush.bf16.msra.mxu0 %v1248
      %1310 = vmatmul.bf16.gmra.mxu0 %v1233
      %v1311 = vpop.f32.mrf.mxu0
      %v1312 = vadd.f32 0.0, %v1311
      %v1313 = vpop.f32.mrf.mxu0
      %1314 = vdwg.mxu0
      %v1315 = vadd.f32 %v1193, %v1260
      %v1316 = vadd.f32 %v1194, %v1273
      %v1317 = vadd.f32 %v1195, %v1286
      %v1318 = vadd.f32 %v1196, %v1299
      %v1319 = vadd.f32 %v1197, %v1312
      %v1320 = vld [vmem:[%s199] sm:$0xff]
      %v1321 = vld [vmem:[%s199 + $0x8] sm:$0x3]
      %s1322 = scalar_lea.vmem %s1, 36
      %v1323 = vld [vmem:[%s1322] sm:$0xf]
      %1325 = vst [vmem:[#allocation1] ss:$4 sm:$0xff] %v1320
      %s1327 = scalar_lea.vmem [#allocation1], 32
      %1328 = vst [vmem:[%s1327] ss:$4 sm:$0xff] %v1321
      %v1329 = vld.sshfl [vmem:[#allocation1] sm:$0xff pattern:$0x73625140]
      %v1330 = vld.sshfl [vmem:[#allocation1 + $0x8] sm:$0xff pattern:$0x73625140]
      %v1331 = vld.sshfl [vmem:[#allocation1 + $0x10] sm:$0xff pattern:$0x73625140]
      %v1332 = vld.sshfl [vmem:[#allocation1 + $0x18] sm:$0xff pattern:$0x73625140]
      %v1333 = vld.sshfl [vmem:[#allocation1 + $0x20] sm:$0xff pattern:$0x73625140]
      %v1335 = vsel %vm250, %v1323, 0
      %v1337 = vsel %vm254, %v1329, 0
      %v1339 = vsel %vm254, %v1330, 0
      %v1341 = vsel %vm254, %v1331, 0
      %v1343 = vsel %vm254, %v1332, 0
      %v1345 = vsel %vm254, %v1333, 0
      %1347 = vmatpush.bf16.msra.mxu0 0
      %1348 = vmatpush.bf16.msra.mxu0 0
      %1349 = vmatpush.bf16.msra.mxu0 0
      %1350 = vmatpush.bf16.msra.mxu0 0
      %1351 = vmatpush.bf16.msra.mxu0 0
      %1352 = vmatpush.bf16.msra.mxu0 0
      %1353 = vmatpush.bf16.msra.mxu0 0
      %1354 = vmatpush.bf16.msra.mxu0 %v1337
      %1355 = vmatmul.bf16.gmra.mxu0 %v1335
      %v1356 = vpop.f32.mrf.mxu0
      %v1357 = vadd.f32 0.0, %v1356
      %v1358 = vpop.f32.mrf.mxu0
      %1359 = vdwg.mxu0
      %1360 = vmatpush.bf16.msra.mxu0 0
      %1361 = vmatpush.bf16.msra.mxu0 0
      %1362 = vmatpush.bf16.msra.mxu0 0
      %1363 = vmatpush.bf16.msra.mxu0 0
      %1364 = vmatpush.bf16.msra.mxu0 0
      %1365 = vmatpush.bf16.msra.mxu0 0
      %1366 = vmatpush.bf16.msra.mxu0 0
      %1367 = vmatpush.bf16.msra.mxu0 %v1339
      %1368 = vmatmul.bf16.gmra.mxu0 %v1335
      %v1369 = vpop.f32.mrf.mxu0
      %v1370 = vadd.f32 0.0, %v1369
      %v1371 = vpop.f32.mrf.mxu0
      %1372 = vdwg.mxu0
      %1373 = vmatpush.bf16.msra.mxu0 0
      %1374 = vmatpush.bf16.msra.mxu0 0
      %1375 = vmatpush.bf16.msra.mxu0 0
      %1376 = vmatpush.bf16.msra.mxu0 0
      %1377 = vmatpush.bf16.msra.mxu0 0
      %1378 = vmatpush.bf16.msra.mxu0 0
      %1379 = vmatpush.bf16.msra.mxu0 0
      %1380 = vmatpush.bf16.msra.mxu0 %v1341
      %1381 = vmatmul.bf16.gmra.mxu0 %v1335
      %v1382 = vpop.f32.mrf.mxu0
      %v1383 = vadd.f32 0.0, %v1382
      %v1384 = vpop.f32.mrf.mxu0
      %1385 = vdwg.mxu0
      %1386 = vmatpush.bf16.msra.mxu0 0
      %1387 = vmatpush.bf16.msra.mxu0 0
      %1388 = vmatpush.bf16.msra.mxu0 0
      %1389 = vmatpush.bf16.msra.mxu0 0
      %1390 = vmatpush.bf16.msra.mxu0 0
      %1391 = vmatpush.bf16.msra.mxu0 0
      %1392 = vmatpush.bf16.msra.mxu0 0
      %1393 = vmatpush.bf16.msra.mxu0 %v1343
      %1394 = vmatmul.bf16.gmra.mxu0 %v1335
      %v1395 = vpop.f32.mrf.mxu0
      %v1396 = vadd.f32 0.0, %v1395
      %v1397 = vpop.f32.mrf.mxu0
      %1398 = vdwg.mxu0
      %1399 = vmatpush.bf16.msra.mxu0 0
      %1400 = vmatpush.bf16.msra.mxu0 0
      %1401 = vmatpush.bf16.msra.mxu0 0
      %1402 = vmatpush.bf16.msra.mxu0 0
      %1403 = vmatpush.bf16.msra.mxu0 0
      %1404 = vmatpush.bf16.msra.mxu0 0
      %1405 = vmatpush.bf16.msra.mxu0 0
      %1406 = vmatpush.bf16.msra.mxu0 %v1345
      %1407 = vmatmul.bf16.gmra.mxu0 %v1335
      %v1408 = vpop.f32.mrf.mxu0
      %v1409 = vadd.f32 0.0, %v1408
      %v1410 = vpop.f32.mrf.mxu0
      %1411 = vdwg.mxu0
      %v1412 = vadd.f32 %v1315, %v1357
      %v1413 = vadd.f32 %v1316, %v1370
      %v1414 = vadd.f32 %v1317, %v1383
      %v1415 = vadd.f32 %v1318, %v1396
      %v1416 = vadd.f32 %v1319, %v1409
      %v1417 = vld [vmem:[%s199] sm:$0xff]
      %v1418 = vld [vmem:[%s199 + $0x8] sm:$0x3]
      %s1419 = scalar_lea.vmem %s1, 40
      %v1420 = vld [vmem:[%s1419] sm:$0xf]
      %1422 = vst [vmem:[#allocation1] ss:$4 sm:$0xff] %v1417
      %s1424 = scalar_lea.vmem [#allocation1], 32
      %1425 = vst [vmem:[%s1424] ss:$4 sm:$0xff] %v1418
      %v1426 = vld.sshfl [vmem:[#allocation1] sm:$0xff pattern:$0x73625140]
      %v1428 = vld.sshfl [vmem:[#allocation1 + $0x8] sm:$0xff pattern:$0x73625140]
      %v1430 = vld.sshfl [vmem:[#allocation1 + $0x10] sm:$0xff pattern:$0x73625140]
      %v1432 = vld.sshfl [vmem:[#allocation1 + $0x18] sm:$0xff pattern:$0x73625140]
      %v1434 = vld.sshfl [vmem:[#allocation1 + $0x20] sm:$0xff pattern:$0x73625140]
      %1436 = vrot.lane.b32.xlu0 %v1426, 125
      %v1437 = vpop.permute.xlu0 %1436
      %1438 = vrot.lane.b32.xlu0 %v1428, 125
      %v1439 = vpop.permute.xlu0 %1438
      %1440 = vrot.lane.b32.xlu0 %v1430, 125
      %v1441 = vpop.permute.xlu0 %1440
      %1442 = vrot.lane.b32.xlu0 %v1432, 125
      %v1443 = vpop.permute.xlu0 %1442
      %1444 = vrot.lane.b32.xlu0 %v1434, 125
      %v1445 = vpop.permute.xlu0 %1444
      %vm1446 = vcmask 1022976
      %v1447 = vsel %vm1446, %v1437, %v1439
      %v1448 = vsel %vm1446, %v1439, %v1441
      %v1449 = vsel %vm1446, %v1441, %v1443
      %v1450 = vsel %vm1446, %v1443, %v1445
      %v1452 = vsel %vm250, %v1420, 0
      %v1455 = vsel %vm254, %v1447, 0
      %v1458 = vsel %vm254, %v1448, 0
      %v1461 = vsel %vm254, %v1449, 0
      %v1464 = vsel %vm254, %v1450, 0
      %v1467 = vsel %vm254, %v1445, 0
      %1469 = vmatpush.bf16.msra.mxu0 0
      %1470 = vmatpush.bf16.msra.mxu0 0
      %1471 = vmatpush.bf16.msra.mxu0 0
      %1472 = vmatpush.bf16.msra.mxu0 0
      %1473 = vmatpush.bf16.msra.mxu0 0
      %1474 = vmatpush.bf16.msra.mxu0 0
      %1475 = vmatpush.bf16.msra.mxu0 0
      %1476 = vmatpush.bf16.msra.mxu0 %v1455
      %1477 = vmatmul.bf16.gmra.mxu0 %v1452
      %v1478 = vpop.f32.mrf.mxu0
      %v1479 = vadd.f32 0.0, %v1478
      %v1480 = vpop.f32.mrf.mxu0
      %1481 = vdwg.mxu0
      %1482 = vmatpush.bf16.msra.mxu0 0
      %1483 = vmatpush.bf16.msra.mxu0 0
      %1484 = vmatpush.bf16.msra.mxu0 0
      %1485 = vmatpush.bf16.msra.mxu0 0
      %1486 = vmatpush.bf16.msra.mxu0 0
      %1487 = vmatpush.bf16.msra.mxu0 0
      %1488 = vmatpush.bf16.msra.mxu0 0
      %1489 = vmatpush.bf16.msra.mxu0 %v1458
      %1490 = vmatmul.bf16.gmra.mxu0 %v1452
      %v1491 = vpop.f32.mrf.mxu0
      %v1492 = vadd.f32 0.0, %v1491
      %v1493 = vpop.f32.mrf.mxu0
      %1494 = vdwg.mxu0
      %1495 = vmatpush.bf16.msra.mxu0 0
      %1496 = vmatpush.bf16.msra.mxu0 0
      %1497 = vmatpush.bf16.msra.mxu0 0
      %1498 = vmatpush.bf16.msra.mxu0 0
      %1499 = vmatpush.bf16.msra.mxu0 0
      %1500 = vmatpush.bf16.msra.mxu0 0
      %1501 = vmatpush.bf16.msra.mxu0 0
      %1502 = vmatpush.bf16.msra.mxu0 %v1461
      %1503 = vmatmul.bf16.gmra.mxu0 %v1452
      %v1504 = vpop.f32.mrf.mxu0
      %v1505 = vadd.f32 0.0, %v1504
      %v1506 = vpop.f32.mrf.mxu0
      %1507 = vdwg.mxu0
      %1508 = vmatpush.bf16.msra.mxu0 0
      %1509 = vmatpush.bf16.msra.mxu0 0
      %1510 = vmatpush.bf16.msra.mxu0 0
      %1511 = vmatpush.bf16.msra.mxu0 0
      %1512 = vmatpush.bf16.msra.mxu0 0
      %1513 = vmatpush.bf16.msra.mxu0 0
      %1514 = vmatpush.bf16.msra.mxu0 0
      %1515 = vmatpush.bf16.msra.mxu0 %v1464
      %1516 = vmatmul.bf16.gmra.mxu0 %v1452
      %v1517 = vpop.f32.mrf.mxu0
      %v1518 = vadd.f32 0.0, %v1517
      %v1519 = vpop.f32.mrf.mxu0
      %1520 = vdwg.mxu0
      %1521 = vmatpush.bf16.msra.mxu0 0
      %1522 = vmatpush.bf16.msra.mxu0 0
      %1523 = vmatpush.bf16.msra.mxu0 0
      %1524 = vmatpush.bf16.msra.mxu0 0
      %1525 = vmatpush.bf16.msra.mxu0 0
      %1526 = vmatpush.bf16.msra.mxu0 0
      %1527 = vmatpush.bf16.msra.mxu0 0
      %1528 = vmatpush.bf16.msra.mxu0 %v1467
      %1529 = vmatmul.bf16.gmra.mxu0 %v1452
      %v1530 = vpop.f32.mrf.mxu0
      %v1531 = vadd.f32 0.0, %v1530
      %v1532 = vpop.f32.mrf.mxu0
      %1533 = vdwg.mxu0
      %v1534 = vadd.f32 %v1412, %v1479
      %v1535 = vadd.f32 %v1413, %v1492
      %v1536 = vadd.f32 %v1414, %v1505
      %v1537 = vadd.f32 %v1415, %v1518
      %v1538 = vadd.f32 %v1416, %v1531
      %v1539 = vld [vmem:[%s199] sm:$0xff]
      %v1540 = vld [vmem:[%s199 + $0x8] sm:$0x3]
      %s1541 = scalar_lea.vmem %s1, 44
      %v1542 = vld [vmem:[%s1541] sm:$0xf]
      %1544 = vst [vmem:[#allocation1] ss:$4 sm:$0xff] %v1539
      %s1546 = scalar_lea.vmem [#allocation1], 32
      %1547 = vst [vmem:[%s1546] ss:$4 sm:$0xff] %v1540
      %v1548 = vld.sshfl [vmem:[#allocation1] sm:$0xff pattern:$0x73625140]
      %v1550 = vld.sshfl [vmem:[#allocation1 + $0x8] sm:$0xff pattern:$0x73625140]
      %v1552 = vld.sshfl [vmem:[#allocation1 + $0x10] sm:$0xff pattern:$0x73625140]
      %v1554 = vld.sshfl [vmem:[#allocation1 + $0x18] sm:$0xff pattern:$0x73625140]
      %v1556 = vld.sshfl [vmem:[#allocation1 + $0x20] sm:$0xff pattern:$0x73625140]
      %1558 = vrot.lane.b32.xlu0 %v1548, 122
      %v1559 = vpop.permute.xlu0 %1558
      %1560 = vrot.lane.b32.xlu0 %v1550, 122
      %v1561 = vpop.permute.xlu0 %1560
      %1562 = vrot.lane.b32.xlu0 %v1552, 122
      %v1563 = vpop.permute.xlu0 %1562
      %1564 = vrot.lane.b32.xlu0 %v1554, 122
      %v1565 = vpop.permute.xlu0 %1564
      %1566 = vrot.lane.b32.xlu0 %v1556, 122
      %v1567 = vpop.permute.xlu0 %1566
      %vm1568 = vcmask 998400
      %v1569 = vsel %vm1568, %v1559, %v1561
      %v1570 = vsel %vm1568, %v1561, %v1563
      %v1571 = vsel %vm1568, %v1563, %v1565
      %v1572 = vsel %vm1568, %v1565, %v1567
      %v1574 = vsel %vm250, %v1542, 0
      %v1577 = vsel %vm254, %v1569, 0
      %v1580 = vsel %vm254, %v1570, 0
      %v1583 = vsel %vm254, %v1571, 0
      %v1586 = vsel %vm254, %v1572, 0
      %v1589 = vsel %vm254, %v1567, 0
      %1591 = vmatpush.bf16.msra.mxu0 0
      %1592 = vmatpush.bf16.msra.mxu0 0
      %1593 = vmatpush.bf16.msra.mxu0 0
      %1594 = vmatpush.bf16.msra.mxu0 0
      %1595 = vmatpush.bf16.msra.mxu0 0
      %1596 = vmatpush.bf16.msra.mxu0 0
      %1597 = vmatpush.bf16.msra.mxu0 0
      %1598 = vmatpush.bf16.msra.mxu0 %v1577
      %1599 = vmatmul.bf16.gmra.mxu0 %v1574
      %v1600 = vpop.f32.mrf.mxu0
      %v1601 = vadd.f32 0.0, %v1600
      %v1602 = vpop.f32.mrf.mxu0
      %1603 = vdwg.mxu0
      %1604 = vmatpush.bf16.msra.mxu0 0
      %1605 = vmatpush.bf16.msra.mxu0 0
      %1606 = vmatpush.bf16.msra.mxu0 0
      %1607 = vmatpush.bf16.msra.mxu0 0
      %1608 = vmatpush.bf16.msra.mxu0 0
      %1609 = vmatpush.bf16.msra.mxu0 0
      %1610 = vmatpush.bf16.msra.mxu0 0
      %1611 = vmatpush.bf16.msra.mxu0 %v1580
      %1612 = vmatmul.bf16.gmra.mxu0 %v1574
      %v1613 = vpop.f32.mrf.mxu0
      %v1614 = vadd.f32 0.0, %v1613
      %v1615 = vpop.f32.mrf.mxu0
      %1616 = vdwg.mxu0
      %1617 = vmatpush.bf16.msra.mxu0 0
      %1618 = vmatpush.bf16.msra.mxu0 0
      %1619 = vmatpush.bf16.msra.mxu0 0
      %1620 = vmatpush.bf16.msra.mxu0 0
      %1621 = vmatpush.bf16.msra.mxu0 0
      %1622 = vmatpush.bf16.msra.mxu0 0
      %1623 = vmatpush.bf16.msra.mxu0 0
      %1624 = vmatpush.bf16.msra.mxu0 %v1583
      %1625 = vmatmul.bf16.gmra.mxu0 %v1574
      %v1626 = vpop.f32.mrf.mxu0
      %v1627 = vadd.f32 0.0, %v1626
      %v1628 = vpop.f32.mrf.mxu0
      %1629 = vdwg.mxu0
      %1630 = vmatpush.bf16.msra.mxu0 0
      %1631 = vmatpush.bf16.msra.mxu0 0
      %1632 = vmatpush.bf16.msra.mxu0 0
      %1633 = vmatpush.bf16.msra.mxu0 0
      %1634 = vmatpush.bf16.msra.mxu0 0
      %1635 = vmatpush.bf16.msra.mxu0 0
      %1636 = vmatpush.bf16.msra.mxu0 0
      %1637 = vmatpush.bf16.msra.mxu0 %v1586
      %1638 = vmatmul.bf16.gmra.mxu0 %v1574
      %v1639 = vpop.f32.mrf.mxu0
      %v1640 = vadd.f32 0.0, %v1639
      %v1641 = vpop.f32.mrf.mxu0
      %1642 = vdwg.mxu0
      %1643 = vmatpush.bf16.msra.mxu0 0
      %1644 = vmatpush.bf16.msra.mxu0 0
      %1645 = vmatpush.bf16.msra.mxu0 0
      %1646 = vmatpush.bf16.msra.mxu0 0
      %1647 = vmatpush.bf16.msra.mxu0 0
      %1648 = vmatpush.bf16.msra.mxu0 0
      %1649 = vmatpush.bf16.msra.mxu0 0
      %1650 = vmatpush.bf16.msra.mxu0 %v1589
      %1651 = vmatmul.bf16.gmra.mxu0 %v1574
      %v1652 = vpop.f32.mrf.mxu0
      %v1653 = vadd.f32 0.0, %v1652
      %v1654 = vpop.f32.mrf.mxu0
      %1655 = vdwg.mxu0
      %v1656 = vadd.f32 %v1534, %v1601
      %v1657 = vadd.f32 %v1535, %v1614
      %v1658 = vadd.f32 %v1536, %v1627
      %v1659 = vadd.f32 %v1537, %v1640
      %v1660 = vadd.f32 %v1538, %v1653
      %v1661 = vld [vmem:[%s199] sm:$0xff]
      %v1662 = vld [vmem:[%s199 + $0x8] sm:$0x3]
      %s1663 = scalar_lea.vmem %s1, 48
      %v1664 = vld [vmem:[%s1663] sm:$0xf]
      %1666 = vst [vmem:[#allocation1] ss:$4 sm:$0xff] %v1661
      %s1668 = scalar_lea.vmem [#allocation1], 32
      %1669 = vst [vmem:[%s1668] ss:$4 sm:$0xff] %v1662
      %v1670 = vld.sshfl [vmem:[#allocation1] sm:$0xff pattern:$0x73625140]
      %v1672 = vld.sshfl [vmem:[#allocation1 + $0x8] sm:$0xff pattern:$0x73625140]
      %v1674 = vld.sshfl [vmem:[#allocation1 + $0x10] sm:$0xff pattern:$0x73625140]
      %v1676 = vld.sshfl [vmem:[#allocation1 + $0x18] sm:$0xff pattern:$0x73625140]
      %v1678 = vld.sshfl [vmem:[#allocation1 + $0x20] sm:$0xff pattern:$0x73625140]
      %1680 = vrot.lane.b32.xlu0 %v1670, 119
      %v1681 = vpop.permute.xlu0 %1680
      %1682 = vrot.lane.b32.xlu0 %v1672, 119
      %v1683 = vpop.permute.xlu0 %1682
      %1684 = vrot.lane.b32.xlu0 %v1674, 119
      %v1685 = vpop.permute.xlu0 %1684
      %1686 = vrot.lane.b32.xlu0 %v1676, 119
      %v1687 = vpop.permute.xlu0 %1686
      %1688 = vrot.lane.b32.xlu0 %v1678, 119
      %v1689 = vpop.permute.xlu0 %1688
      %vm1690 = vcmask 973824
      %v1691 = vsel %vm1690, %v1681, %v1683
      %v1692 = vsel %vm1690, %v1683, %v1685
      %v1693 = vsel %vm1690, %v1685, %v1687
      %v1694 = vsel %vm1690, %v1687, %v1689
      %v1696 = vsel %vm250, %v1664, 0
      %v1699 = vsel %vm254, %v1691, 0
      %v1702 = vsel %vm254, %v1692, 0
      %v1705 = vsel %vm254, %v1693, 0
      %v1708 = vsel %vm254, %v1694, 0
      %v1711 = vsel %vm254, %v1689, 0
      %1713 = vmatpush.bf16.msra.mxu0 0
      %1714 = vmatpush.bf16.msra.mxu0 0
      %1715 = vmatpush.bf16.msra.mxu0 0
      %1716 = vmatpush.bf16.msra.mxu0 0
      %1717 = vmatpush.bf16.msra.mxu0 0
      %1718 = vmatpush.bf16.msra.mxu0 0
      %1719 = vmatpush.bf16.msra.mxu0 0
      %1720 = vmatpush.bf16.msra.mxu0 %v1699
      %1721 = vmatmul.bf16.gmra.mxu0 %v1696
      %v1722 = vpop.f32.mrf.mxu0
      %v1723 = vadd.f32 0.0, %v1722
      %v1724 = vpop.f32.mrf.mxu0
      %1725 = vdwg.mxu0
      %1726 = vmatpush.bf16.msra.mxu0 0
      %1727 = vmatpush.bf16.msra.mxu0 0
      %1728 = vmatpush.bf16.msra.mxu0 0
      %1729 = vmatpush.bf16.msra.mxu0 0
      %1730 = vmatpush.bf16.msra.mxu0 0
      %1731 = vmatpush.bf16.msra.mxu0 0
      %1732 = vmatpush.bf16.msra.mxu0 0
      %1733 = vmatpush.bf16.msra.mxu0 %v1702
      %1734 = vmatmul.bf16.gmra.mxu0 %v1696
      %v1735 = vpop.f32.mrf.mxu0
      %v1736 = vadd.f32 0.0, %v1735
      %v1737 = vpop.f32.mrf.mxu0
      %1738 = vdwg.mxu0
      %1739 = vmatpush.bf16.msra.mxu0 0
      %1740 = vmatpush.bf16.msra.mxu0 0
      %1741 = vmatpush.bf16.msra.mxu0 0
      %1742 = vmatpush.bf16.msra.mxu0 0
      %1743 = vmatpush.bf16.msra.mxu0 0
      %1744 = vmatpush.bf16.msra.mxu0 0
      %1745 = vmatpush.bf16.msra.mxu0 0
      %1746 = vmatpush.bf16.msra.mxu0 %v1705
      %1747 = vmatmul.bf16.gmra.mxu0 %v1696
      %v1748 = vpop.f32.mrf.mxu0
      %v1749 = vadd.f32 0.0, %v1748
      %v1750 = vpop.f32.mrf.mxu0
      %1751 = vdwg.mxu0
      %1752 = vmatpush.bf16.msra.mxu0 0
      %1753 = vmatpush.bf16.msra.mxu0 0
      %1754 = vmatpush.bf16.msra.mxu0 0
      %1755 = vmatpush.bf16.msra.mxu0 0
      %1756 = vmatpush.bf16.msra.mxu0 0
      %1757 = vmatpush.bf16.msra.mxu0 0
      %1758 = vmatpush.bf16.msra.mxu0 0
      %1759 = vmatpush.bf16.msra.mxu0 %v1708
      %1760 = vmatmul.bf16.gmra.mxu0 %v1696
      %v1761 = vpop.f32.mrf.mxu0
      %v1762 = vadd.f32 0.0, %v1761
      %v1763 = vpop.f32.mrf.mxu0
      %1764 = vdwg.mxu0
      %1765 = vmatpush.bf16.msra.mxu0 0
      %1766 = vmatpush.bf16.msra.mxu0 0
      %1767 = vmatpush.bf16.msra.mxu0 0
      %1768 = vmatpush.bf16.msra.mxu0 0
      %1769 = vmatpush.bf16.msra.mxu0 0
      %1770 = vmatpush.bf16.msra.mxu0 0
      %1771 = vmatpush.bf16.msra.mxu0 0
      %1772 = vmatpush.bf16.msra.mxu0 %v1711
      %1773 = vmatmul.bf16.gmra.mxu0 %v1696
      %v1774 = vpop.f32.mrf.mxu0
      %v1775 = vadd.f32 0.0, %v1774
      %v1776 = vpop.f32.mrf.mxu0
      %1777 = vdwg.mxu0
      %v1778 = vadd.f32 %v1656, %v1723
      %v1779 = vadd.f32 %v1657, %v1736
      %v1780 = vadd.f32 %v1658, %v1749
      %v1781 = vadd.f32 %v1659, %v1762
      %v1782 = vadd.f32 %v1660, %v1775
      %v1783 = vld [vmem:[%s199] sm:$0xff]
      %v1784 = vld [vmem:[%s199 + $0x8] sm:$0x3]
      %s1785 = scalar_lea.vmem %s1, 52
      %v1786 = vld [vmem:[%s1785] sm:$0xf]
      %1788 = vst [vmem:[#allocation1] ss:$4 sm:$0xff] %v1783
      %s1790 = scalar_lea.vmem [#allocation1], 32
      %1791 = vst [vmem:[%s1790] ss:$4 sm:$0xff] %v1784
      %v1792 = vld.sshfl [vmem:[#allocation1] sm:$0xff pattern:$0x73625140]
      %v1794 = vld.sshfl [vmem:[#allocation1 + $0x8] sm:$0xff pattern:$0x73625140]
      %v1796 = vld.sshfl [vmem:[#allocation1 + $0x10] sm:$0xff pattern:$0x73625140]
      %v1798 = vld.sshfl [vmem:[#allocation1 + $0x18] sm:$0xff pattern:$0x73625140]
      %v1800 = vld.sshfl [vmem:[#allocation1 + $0x20] sm:$0xff pattern:$0x73625140]
      %1802 = vrot.lane.b32.xlu0 %v1792, 116
      %v1803 = vpop.permute.xlu0 %1802
      %1804 = vrot.lane.b32.xlu0 %v1794, 116
      %v1805 = vpop.permute.xlu0 %1804
      %1806 = vrot.lane.b32.xlu0 %v1796, 116
      %v1807 = vpop.permute.xlu0 %1806
      %1808 = vrot.lane.b32.xlu0 %v1798, 116
      %v1809 = vpop.permute.xlu0 %1808
      %1810 = vrot.lane.b32.xlu0 %v1800, 116
      %v1811 = vpop.permute.xlu0 %1810
      %vm1812 = vcmask 949248
      %v1813 = vsel %vm1812, %v1803, %v1805
      %v1814 = vsel %vm1812, %v1805, %v1807
      %v1815 = vsel %vm1812, %v1807, %v1809
      %v1816 = vsel %vm1812, %v1809, %v1811
      %v1818 = vsel %vm250, %v1786, 0
      %v1821 = vsel %vm254, %v1813, 0
      %v1824 = vsel %vm254, %v1814, 0
      %v1827 = vsel %vm254, %v1815, 0
      %v1830 = vsel %vm254, %v1816, 0
      %v1833 = vsel %vm254, %v1811, 0
      %1835 = vmatpush.bf16.msra.mxu0 0
      %1836 = vmatpush.bf16.msra.mxu0 0
      %1837 = vmatpush.bf16.msra.mxu0 0
      %1838 = vmatpush.bf16.msra.mxu0 0
      %1839 = vmatpush.bf16.msra.mxu0 0
      %1840 = vmatpush.bf16.msra.mxu0 0
      %1841 = vmatpush.bf16.msra.mxu0 0
      %1842 = vmatpush.bf16.msra.mxu0 %v1821
      %1843 = vmatmul.bf16.gmra.mxu0 %v1818
      %v1844 = vpop.f32.mrf.mxu0
      %v1845 = vadd.f32 0.0, %v1844
      %v1846 = vpop.f32.mrf.mxu0
      %1847 = vdwg.mxu0
      %1848 = vmatpush.bf16.msra.mxu0 0
      %1849 = vmatpush.bf16.msra.mxu0 0
      %1850 = vmatpush.bf16.msra.mxu0 0
      %1851 = vmatpush.bf16.msra.mxu0 0
      %1852 = vmatpush.bf16.msra.mxu0 0
      %1853 = vmatpush.bf16.msra.mxu0 0
      %1854 = vmatpush.bf16.msra.mxu0 0
      %1855 = vmatpush.bf16.msra.mxu0 %v1824
      %1856 = vmatmul.bf16.gmra.mxu0 %v1818
      %v1857 = vpop.f32.mrf.mxu0
      %v1858 = vadd.f32 0.0, %v1857
      %v1859 = vpop.f32.mrf.mxu0
      %1860 = vdwg.mxu0
      %1861 = vmatpush.bf16.msra.mxu0 0
      %1862 = vmatpush.bf16.msra.mxu0 0
      %1863 = vmatpush.bf16.msra.mxu0 0
      %1864 = vmatpush.bf16.msra.mxu0 0
      %1865 = vmatpush.bf16.msra.mxu0 0
      %1866 = vmatpush.bf16.msra.mxu0 0
      %1867 = vmatpush.bf16.msra.mxu0 0
      %1868 = vmatpush.bf16.msra.mxu0 %v1827
      %1869 = vmatmul.bf16.gmra.mxu0 %v1818
      %v1870 = vpop.f32.mrf.mxu0
      %v1871 = vadd.f32 0.0, %v1870
      %v1872 = vpop.f32.mrf.mxu0
      %1873 = vdwg.mxu0
      %1874 = vmatpush.bf16.msra.mxu0 0
      %1875 = vmatpush.bf16.msra.mxu0 0
      %1876 = vmatpush.bf16.msra.mxu0 0
      %1877 = vmatpush.bf16.msra.mxu0 0
      %1878 = vmatpush.bf16.msra.mxu0 0
      %1879 = vmatpush.bf16.msra.mxu0 0
      %1880 = vmatpush.bf16.msra.mxu0 0
      %1881 = vmatpush.bf16.msra.mxu0 %v1830
      %1882 = vmatmul.bf16.gmra.mxu0 %v1818
      %v1883 = vpop.f32.mrf.mxu0
      %v1884 = vadd.f32 0.0, %v1883
      %v1885 = vpop.f32.mrf.mxu0
      %1886 = vdwg.mxu0
      %1887 = vmatpush.bf16.msra.mxu0 0
      %1888 = vmatpush.bf16.msra.mxu0 0
      %1889 = vmatpush.bf16.msra.mxu0 0
      %1890 = vmatpush.bf16.msra.mxu0 0
      %1891 = vmatpush.bf16.msra.mxu0 0
      %1892 = vmatpush.bf16.msra.mxu0 0
      %1893 = vmatpush.bf16.msra.mxu0 0
      %1894 = vmatpush.bf16.msra.mxu0 %v1833
      %1895 = vmatmul.bf16.gmra.mxu0 %v1818
      %v1896 = vpop.f32.mrf.mxu0
      %v1897 = vadd.f32 0.0, %v1896
      %v1898 = vpop.f32.mrf.mxu0
      %1899 = vdwg.mxu0
      %v1900 = vadd.f32 %v1778, %v1845
      %v1901 = vadd.f32 %v1779, %v1858
      %v1902 = vadd.f32 %v1780, %v1871
      %v1903 = vadd.f32 %v1781, %v1884
      %v1904 = vadd.f32 %v1782, %v1897
      %v1905 = vld [vmem:[%s199] sm:$0xff]
      %v1906 = vld [vmem:[%s199 + $0x8] sm:$0x3]
      %s1907 = scalar_lea.vmem %s1, 56
      %v1908 = vld [vmem:[%s1907] sm:$0xf]
      %1910 = vst [vmem:[#allocation1] ss:$4 sm:$0xff] %v1905
      %s1912 = scalar_lea.vmem [#allocation1], 32
      %1913 = vst [vmem:[%s1912] ss:$4 sm:$0xff] %v1906
      %v1914 = vld.sshfl [vmem:[#allocation1] sm:$0xff pattern:$0x73625140]
      %v1916 = vld.sshfl [vmem:[#allocation1 + $0x8] sm:$0xff pattern:$0x73625140]
      %v1918 = vld.sshfl [vmem:[#allocation1 + $0x10] sm:$0xff pattern:$0x73625140]
      %v1920 = vld.sshfl [vmem:[#allocation1 + $0x18] sm:$0xff pattern:$0x73625140]
      %v1922 = vld.sshfl [vmem:[#allocation1 + $0x20] sm:$0xff pattern:$0x73625140]
      %1924 = vrot.lane.b32.xlu0 %v1914, 113
      %v1925 = vpop.permute.xlu0 %1924
      %1926 = vrot.lane.b32.xlu0 %v1916, 113
      %v1927 = vpop.permute.xlu0 %1926
      %1928 = vrot.lane.b32.xlu0 %v1918, 113
      %v1929 = vpop.permute.xlu0 %1928
      %1930 = vrot.lane.b32.xlu0 %v1920, 113
      %v1931 = vpop.permute.xlu0 %1930
      %1932 = vrot.lane.b32.xlu0 %v1922, 113
      %v1933 = vpop.permute.xlu0 %1932
      %vm1934 = vcmask 924672
      %v1935 = vsel %vm1934, %v1925, %v1927
      %v1936 = vsel %vm1934, %v1927, %v1929
      %v1937 = vsel %vm1934, %v1929, %v1931
      %v1938 = vsel %vm1934, %v1931, %v1933
      %v1940 = vsel %vm250, %v1908, 0
      %v1943 = vsel %vm254, %v1935, 0
      %v1946 = vsel %vm254, %v1936, 0
      %v1949 = vsel %vm254, %v1937, 0
      %v1952 = vsel %vm254, %v1938, 0
      %v1955 = vsel %vm254, %v1933, 0
      %1957 = vmatpush.bf16.msra.mxu0 0
      %1958 = vmatpush.bf16.msra.mxu0 0
      %1959 = vmatpush.bf16.msra.mxu0 0
      %1960 = vmatpush.bf16.msra.mxu0 0
      %1961 = vmatpush.bf16.msra.mxu0 0
      %1962 = vmatpush.bf16.msra.mxu0 0
      %1963 = vmatpush.bf16.msra.mxu0 0
      %1964 = vmatpush.bf16.msra.mxu0 %v1943
      %1965 = vmatmul.bf16.gmra.mxu0 %v1940
      %v1966 = vpop.f32.mrf.mxu0
      %v1967 = vadd.f32 0.0, %v1966
      %v1968 = vpop.f32.mrf.mxu0
      %1969 = vdwg.mxu0
      %1970 = vmatpush.bf16.msra.mxu0 0
      %1971 = vmatpush.bf16.msra.mxu0 0
      %1972 = vmatpush.bf16.msra.mxu0 0
      %1973 = vmatpush.bf16.msra.mxu0 0
      %1974 = vmatpush.bf16.msra.mxu0 0
      %1975 = vmatpush.bf16.msra.mxu0 0
      %1976 = vmatpush.bf16.msra.mxu0 0
      %1977 = vmatpush.bf16.msra.mxu0 %v1946
      %1978 = vmatmul.bf16.gmra.mxu0 %v1940
      %v1979 = vpop.f32.mrf.mxu0
      %v1980 = vadd.f32 0.0, %v1979
      %v1981 = vpop.f32.mrf.mxu0
      %1982 = vdwg.mxu0
      %1983 = vmatpush.bf16.msra.mxu0 0
      %1984 = vmatpush.bf16.msra.mxu0 0
      %1985 = vmatpush.bf16.msra.mxu0 0
      %1986 = vmatpush.bf16.msra.mxu0 0
      %1987 = vmatpush.bf16.msra.mxu0 0
      %1988 = vmatpush.bf16.msra.mxu0 0
      %1989 = vmatpush.bf16.msra.mxu0 0
      %1990 = vmatpush.bf16.msra.mxu0 %v1949
      %1991 = vmatmul.bf16.gmra.mxu0 %v1940
      %v1992 = vpop.f32.mrf.mxu0
      %v1993 = vadd.f32 0.0, %v1992
      %v1994 = vpop.f32.mrf.mxu0
      %1995 = vdwg.mxu0
      %1996 = vmatpush.bf16.msra.mxu0 0
      %1997 = vmatpush.bf16.msra.mxu0 0
      %1998 = vmatpush.bf16.msra.mxu0 0
      %1999 = vmatpush.bf16.msra.mxu0 0
      %2000 = vmatpush.bf16.msra.mxu0 0
      %2001 = vmatpush.bf16.msra.mxu0 0
      %2002 = vmatpush.bf16.msra.mxu0 0
      %2003 = vmatpush.bf16.msra.mxu0 %v1952
      %2004 = vmatmul.bf16.gmra.mxu0 %v1940
      %v2005 = vpop.f32.mrf.mxu0
      %v2006 = vadd.f32 0.0, %v2005
      %v2007 = vpop.f32.mrf.mxu0
      %2008 = vdwg.mxu0
      %2009 = vmatpush.bf16.msra.mxu0 0
      %2010 = vmatpush.bf16.msra.mxu0 0
      %2011 = vmatpush.bf16.msra.mxu0 0
      %2012 = vmatpush.bf16.msra.mxu0 0
      %2013 = vmatpush.bf16.msra.mxu0 0
      %2014 = vmatpush.bf16.msra.mxu0 0
      %2015 = vmatpush.bf16.msra.mxu0 0
      %2016 = vmatpush.bf16.msra.mxu0 %v1955
      %2017 = vmatmul.bf16.gmra.mxu0 %v1940
      %v2018 = vpop.f32.mrf.mxu0
      %v2019 = vadd.f32 0.0, %v2018
      %v2020 = vpop.f32.mrf.mxu0
      %2021 = vdwg.mxu0
      %v2022 = vadd.f32 %v1900, %v1967
      %v2023 = vadd.f32 %v1901, %v1980
      %v2024 = vadd.f32 %v1902, %v1993
      %v2025 = vadd.f32 %v1903, %v2006
      %v2026 = vadd.f32 %v1904, %v2019
      %v2027 = vld [vmem:[%s199] sm:$0xff]
      %v2028 = vld [vmem:[%s199 + $0x8] sm:$0x3]
      %s2029 = scalar_lea.vmem %s1, 60
      %v2030 = vld [vmem:[%s2029] sm:$0xf]
      %2032 = vst [vmem:[#allocation1] ss:$4 sm:$0xff] %v2027
      %s2034 = scalar_lea.vmem [#allocation1], 32
      %2035 = vst [vmem:[%s2034] ss:$4 sm:$0xff] %v2028
      %v2036 = vld.sshfl [vmem:[#allocation1] sm:$0xff pattern:$0x73625140]
      %v2038 = vld.sshfl [vmem:[#allocation1 + $0x8] sm:$0xff pattern:$0x73625140]
      %v2040 = vld.sshfl [vmem:[#allocation1 + $0x10] sm:$0xff pattern:$0x73625140]
      %v2042 = vld.sshfl [vmem:[#allocation1 + $0x18] sm:$0xff pattern:$0x73625140]
      %v2044 = vld.sshfl [vmem:[#allocation1 + $0x20] sm:$0xff pattern:$0x73625140]
      %2046 = vrot.lane.b32.xlu0 %v2036, 110
      %v2047 = vpop.permute.xlu0 %2046
      %2048 = vrot.lane.b32.xlu0 %v2038, 110
      %v2049 = vpop.permute.xlu0 %2048
      %2050 = vrot.lane.b32.xlu0 %v2040, 110
      %v2051 = vpop.permute.xlu0 %2050
      %2052 = vrot.lane.b32.xlu0 %v2042, 110
      %v2053 = vpop.permute.xlu0 %2052
      %2054 = vrot.lane.b32.xlu0 %v2044, 110
      %v2055 = vpop.permute.xlu0 %2054
      %vm2056 = vcmask 900096
      %v2057 = vsel %vm2056, %v2047, %v2049
      %v2058 = vsel %vm2056, %v2049, %v2051
      %v2059 = vsel %vm2056, %v2051, %v2053
      %v2060 = vsel %vm2056, %v2053, %v2055
      %v2062 = vsel %vm250, %v2030, 0
      %v2065 = vsel %vm254, %v2057, 0
      %v2068 = vsel %vm254, %v2058, 0
      %v2071 = vsel %vm254, %v2059, 0
      %v2074 = vsel %vm254, %v2060, 0
      %v2077 = vsel %vm254, %v2055, 0
      %2079 = vmatpush.bf16.msra.mxu0 0
      %2080 = vmatpush.bf16.msra.mxu0 0
      %2081 = vmatpush.bf16.msra.mxu0 0
      %2082 = vmatpush.bf16.msra.mxu0 0
      %2083 = vmatpush.bf16.msra.mxu0 0
      %2084 = vmatpush.bf16.msra.mxu0 0
      %2085 = vmatpush.bf16.msra.mxu0 0
      %2086 = vmatpush.bf16.msra.mxu0 %v2065
      %2087 = vmatmul.bf16.gmra.mxu0 %v2062
      %v2088 = vpop.f32.mrf.mxu0
      %v2089 = vadd.f32 0.0, %v2088
      %v2090 = vpop.f32.mrf.mxu0
      %2091 = vdwg.mxu0
      %2092 = vmatpush.bf16.msra.mxu0 0
      %2093 = vmatpush.bf16.msra.mxu0 0
      %2094 = vmatpush.bf16.msra.mxu0 0
      %2095 = vmatpush.bf16.msra.mxu0 0
      %2096 = vmatpush.bf16.msra.mxu0 0
      %2097 = vmatpush.bf16.msra.mxu0 0
      %2098 = vmatpush.bf16.msra.mxu0 0
      %2099 = vmatpush.bf16.msra.mxu0 %v2068
      %2100 = vmatmul.bf16.gmra.mxu0 %v2062
      %v2101 = vpop.f32.mrf.mxu0
      %v2102 = vadd.f32 0.0, %v2101
      %v2103 = vpop.f32.mrf.mxu0
      %2104 = vdwg.mxu0
      %2105 = vmatpush.bf16.msra.mxu0 0
      %2106 = vmatpush.bf16.msra.mxu0 0
      %2107 = vmatpush.bf16.msra.mxu0 0
      %2108 = vmatpush.bf16.msra.mxu0 0
      %2109 = vmatpush.bf16.msra.mxu0 0
      %2110 = vmatpush.bf16.msra.mxu0 0
      %2111 = vmatpush.bf16.msra.mxu0 0
      %2112 = vmatpush.bf16.msra.mxu0 %v2071
      %2113 = vmatmul.bf16.gmra.mxu0 %v2062
      %v2114 = vpop.f32.mrf.mxu0
      %v2115 = vadd.f32 0.0, %v2114
      %v2116 = vpop.f32.mrf.mxu0
      %2117 = vdwg.mxu0
      %2118 = vmatpush.bf16.msra.mxu0 0
      %2119 = vmatpush.bf16.msra.mxu0 0
      %2120 = vmatpush.bf16.msra.mxu0 0
      %2121 = vmatpush.bf16.msra.mxu0 0
      %2122 = vmatpush.bf16.msra.mxu0 0
      %2123 = vmatpush.bf16.msra.mxu0 0
      %2124 = vmatpush.bf16.msra.mxu0 0
      %2125 = vmatpush.bf16.msra.mxu0 %v2074
      %2126 = vmatmul.bf16.gmra.mxu0 %v2062
      %v2127 = vpop.f32.mrf.mxu0
      %v2128 = vadd.f32 0.0, %v2127
      %v2129 = vpop.f32.mrf.mxu0
      %2130 = vdwg.mxu0
      %2131 = vmatpush.bf16.msra.mxu0 0
      %2132 = vmatpush.bf16.msra.mxu0 0
      %2133 = vmatpush.bf16.msra.mxu0 0
      %2134 = vmatpush.bf16.msra.mxu0 0
      %2135 = vmatpush.bf16.msra.mxu0 0
      %2136 = vmatpush.bf16.msra.mxu0 0
      %2137 = vmatpush.bf16.msra.mxu0 0
      %2138 = vmatpush.bf16.msra.mxu0 %v2077
      %2139 = vmatmul.bf16.gmra.mxu0 %v2062
      %v2140 = vpop.f32.mrf.mxu0
      %v2141 = vadd.f32 0.0, %v2140
      %v2142 = vpop.f32.mrf.mxu0
      %2143 = vdwg.mxu0
      %v2144 = vadd.f32 %v2022, %v2089
      %v2145 = vadd.f32 %v2023, %v2102
      %v2146 = vadd.f32 %v2024, %v2115
      %v2147 = vadd.f32 %v2025, %v2128
      %v2148 = vadd.f32 %v2026, %v2141
      %v2149 = vld [vmem:[%s199] sm:$0xff]
      %v2150 = vld [vmem:[%s199 + $0x8] sm:$0xf]
      %s2151 = scalar_lea.vmem %s1, 64
      %v2152 = vld [vmem:[%s2151] sm:$0xf]
      %2154 = vst [vmem:[#allocation1] ss:$4 sm:$0xff] %v2149
      %s2156 = scalar_lea.vmem [#allocation1], 32
      %2157 = vst [vmem:[%s2156] ss:$4 sm:$0xff] %v2150
      %v2158 = vld.sshfl [vmem:[#allocation1] sm:$0xff pattern:$0x73625140]
      %v2160 = vld.sshfl [vmem:[#allocation1 + $0x8] sm:$0xff pattern:$0x73625140]
      %v2162 = vld.sshfl [vmem:[#allocation1 + $0x10] sm:$0xff pattern:$0x73625140]
      %v2164 = vld.sshfl [vmem:[#allocation1 + $0x18] sm:$0xff pattern:$0x73625140]
      %v2166 = vld.sshfl [vmem:[#allocation1 + $0x20] sm:$0xff pattern:$0x73625140]
      %v2168 = vld.sshfl [vmem:[#allocation1 + $0x28] sm:$0xff pattern:$0x73625140]
      %2170 = vrot.lane.b32.xlu0 %v2158, 26
      %v2171 = vpop.permute.xlu0 %2170
      %2172 = vrot.lane.b32.xlu0 %v2160, 26
      %v2173 = vpop.permute.xlu0 %2172
      %2174 = vrot.lane.b32.xlu0 %v2162, 26
      %v2175 = vpop.permute.xlu0 %2174
      %2176 = vrot.lane.b32.xlu0 %v2164, 26
      %v2177 = vpop.permute.xlu0 %2176
      %2178 = vrot.lane.b32.xlu0 %v2166, 26
      %v2179 = vpop.permute.xlu0 %2178
      %2180 = vrot.lane.b32.xlu0 %v2168, 26
      %v2181 = vpop.permute.xlu0 %2180
      %vm2182 = vcmask 211968
      %v2183 = vsel %vm2182, %v2171, %v2173
      %v2184 = vsel %vm2182, %v2173, %v2175
      %v2185 = vsel %vm2182, %v2175, %v2177
      %v2186 = vsel %vm2182, %v2177, %v2179
      %v2187 = vsel %vm2182, %v2179, %v2181
      %v2189 = vsel %vm250, %v2152, 0
      %v2192 = vsel %vm254, %v2183, 0
      %v2195 = vsel %vm254, %v2184, 0
      %v2198 = vsel %vm254, %v2185, 0
      %v2201 = vsel %vm254, %v2186, 0
      %v2204 = vsel %vm254, %v2187, 0
      %2206 = vmatpush.bf16.msra.mxu0 0
      %2207 = vmatpush.bf16.msra.mxu0 0
      %2208 = vmatpush.bf16.msra.mxu0 0
      %2209 = vmatpush.bf16.msra.mxu0 0
      %2210 = vmatpush.bf16.msra.mxu0 0
      %2211 = vmatpush.bf16.msra.mxu0 0
      %2212 = vmatpush.bf16.msra.mxu0 0
      %2213 = vmatpush.bf16.msra.mxu0 %v2192
      %2214 = vmatmul.bf16.gmra.mxu0 %v2189
      %v2215 = vpop.f32.mrf.mxu0
      %v2216 = vadd.f32 0.0, %v2215
      %v2217 = vpop.f32.mrf.mxu0
      %2218 = vdwg.mxu0
      %2219 = vmatpush.bf16.msra.mxu0 0
      %2220 = vmatpush.bf16.msra.mxu0 0
      %2221 = vmatpush.bf16.msra.mxu0 0
      %2222 = vmatpush.bf16.msra.mxu0 0
      %2223 = vmatpush.bf16.msra.mxu0 0
      %2224 = vmatpush.bf16.msra.mxu0 0
      %2225 = vmatpush.bf16.msra.mxu0 0
      %2226 = vmatpush.bf16.msra.mxu0 %v2195
      %2227 = vmatmul.bf16.gmra.mxu0 %v2189
      %v2228 = vpop.f32.mrf.mxu0
      %v2229 = vadd.f32 0.0, %v2228
      %v2230 = vpop.f32.mrf.mxu0
      %2231 = vdwg.mxu0
      %2232 = vmatpush.bf16.msra.mxu0 0
      %2233 = vmatpush.bf16.msra.mxu0 0
      %2234 = vmatpush.bf16.msra.mxu0 0
      %2235 = vmatpush.bf16.msra.mxu0 0
      %2236 = vmatpush.bf16.msra.mxu0 0
      %2237 = vmatpush.bf16.msra.mxu0 0
      %2238 = vmatpush.bf16.msra.mxu0 0
      %2239 = vmatpush.bf16.msra.mxu0 %v2198
      %2240 = vmatmul.bf16.gmra.mxu0 %v2189
      %v2241 = vpop.f32.mrf.mxu0
      %v2242 = vadd.f32 0.0, %v2241
      %v2243 = vpop.f32.mrf.mxu0
      %2244 = vdwg.mxu0
      %2245 = vmatpush.bf16.msra.mxu0 0
      %2246 = vmatpush.bf16.msra.mxu0 0
      %2247 = vmatpush.bf16.msra.mxu0 0
      %2248 = vmatpush.bf16.msra.mxu0 0
      %2249 = vmatpush.bf16.msra.mxu0 0
      %2250 = vmatpush.bf16.msra.mxu0 0
      %2251 = vmatpush.bf16.msra.mxu0 0
      %2252 = vmatpush.bf16.msra.mxu0 %v2201
      %2253 = vmatmul.bf16.gmra.mxu0 %v2189
      %v2254 = vpop.f32.mrf.mxu0
      %v2255 = vadd.f32 0.0, %v2254
      %v2256 = vpop.f32.mrf.mxu0
      %2257 = vdwg.mxu0
      %2258 = vmatpush.bf16.msra.mxu0 0
      %2259 = vmatpush.bf16.msra.mxu0 0
      %2260 = vmatpush.bf16.msra.mxu0 0
      %2261 = vmatpush.bf16.msra.mxu0 0
      %2262 = vmatpush.bf16.msra.mxu0 0
      %2263 = vmatpush.bf16.msra.mxu0 0
      %2264 = vmatpush.bf16.msra.mxu0 0
      %2265 = vmatpush.bf16.msra.mxu0 %v2204
      %2266 = vmatmul.bf16.gmra.mxu0 %v2189
      %v2267 = vpop.f32.mrf.mxu0
      %v2268 = vadd.f32 0.0, %v2267
      %v2269 = vpop.f32.mrf.mxu0
      %2270 = vdwg.mxu0
      %v2271 = vadd.f32 %v2144, %v2216
      %v2272 = vadd.f32 %v2145, %v2229
      %v2273 = vadd.f32 %v2146, %v2242
      %v2274 = vadd.f32 %v2147, %v2255
      %v2275 = vadd.f32 %v2148, %v2268
      %v2276 = vld [vmem:[%s199] sm:$0xff]
      %v2277 = vld [vmem:[%s199 + $0x8] sm:$0xf]
      %s2278 = scalar_lea.vmem %s1, 68
      %v2279 = vld [vmem:[%s2278] sm:$0xf]
      %2281 = vst [vmem:[#allocation1] ss:$4 sm:$0xff] %v2276
      %s2283 = scalar_lea.vmem [#allocation1], 32
      %2284 = vst [vmem:[%s2283] ss:$4 sm:$0xff] %v2277
      %v2285 = vld.sshfl [vmem:[#allocation1] sm:$0xff pattern:$0x73625140]
      %v2287 = vld.sshfl [vmem:[#allocation1 + $0x8] sm:$0xff pattern:$0x73625140]
      %v2289 = vld.sshfl [vmem:[#allocation1 + $0x10] sm:$0xff pattern:$0x73625140]
      %v2291 = vld.sshfl [vmem:[#allocation1 + $0x18] sm:$0xff pattern:$0x73625140]
      %v2293 = vld.sshfl [vmem:[#allocation1 + $0x20] sm:$0xff pattern:$0x73625140]
      %v2295 = vld.sshfl [vmem:[#allocation1 + $0x28] sm:$0xff pattern:$0x73625140]
      %2297 = vrot.lane.b32.xlu0 %v2285, 23
      %v2298 = vpop.permute.xlu0 %2297
      %2299 = vrot.lane.b32.xlu0 %v2287, 23
      %v2300 = vpop.permute.xlu0 %2299
      %2301 = vrot.lane.b32.xlu0 %v2289, 23
      %v2302 = vpop.permute.xlu0 %2301
      %2303 = vrot.lane.b32.xlu0 %v2291, 23
      %v2304 = vpop.permute.xlu0 %2303
      %2305 = vrot.lane.b32.xlu0 %v2293, 23
      %v2306 = vpop.permute.xlu0 %2305
      %2307 = vrot.lane.b32.xlu0 %v2295, 23
      %v2308 = vpop.permute.xlu0 %2307
      %vm2309 = vcmask 187392
      %v2310 = vsel %vm2309, %v2298, %v2300
      %v2311 = vsel %vm2309, %v2300, %v2302
      %v2312 = vsel %vm2309, %v2302, %v2304
      %v2313 = vsel %vm2309, %v2304, %v2306
      %v2314 = vsel %vm2309, %v2306, %v2308
      %v2316 = vsel %vm250, %v2279, 0
      %v2319 = vsel %vm254, %v2310, 0
      %v2322 = vsel %vm254, %v2311, 0
      %v2325 = vsel %vm254, %v2312, 0
      %v2328 = vsel %vm254, %v2313, 0
      %v2331 = vsel %vm254, %v2314, 0
      %2333 = vmatpush.bf16.msra.mxu0 0
      %2334 = vmatpush.bf16.msra.mxu0 0
      %2335 = vmatpush.bf16.msra.mxu0 0
      %2336 = vmatpush.bf16.msra.mxu0 0
      %2337 = vmatpush.bf16.msra.mxu0 0
      %2338 = vmatpush.bf16.msra.mxu0 0
      %2339 = vmatpush.bf16.msra.mxu0 0
      %2340 = vmatpush.bf16.msra.mxu0 %v2319
      %2341 = vmatmul.bf16.gmra.mxu0 %v2316
      %v2342 = vpop.f32.mrf.mxu0
      %v2343 = vadd.f32 0.0, %v2342
      %v2344 = vpop.f32.mrf.mxu0
      %2345 = vdwg.mxu0
      %2346 = vmatpush.bf16.msra.mxu0 0
      %2347 = vmatpush.bf16.msra.mxu0 0
      %2348 = vmatpush.bf16.msra.mxu0 0
      %2349 = vmatpush.bf16.msra.mxu0 0
      %2350 = vmatpush.bf16.msra.mxu0 0
      %2351 = vmatpush.bf16.msra.mxu0 0
      %2352 = vmatpush.bf16.msra.mxu0 0
      %2353 = vmatpush.bf16.msra.mxu0 %v2322
      %2354 = vmatmul.bf16.gmra.mxu0 %v2316
      %v2355 = vpop.f32.mrf.mxu0
      %v2356 = vadd.f32 0.0, %v2355
      %v2357 = vpop.f32.mrf.mxu0
      %2358 = vdwg.mxu0
      %2359 = vmatpush.bf16.msra.mxu0 0
      %2360 = vmatpush.bf16.msra.mxu0 0
      %2361 = vmatpush.bf16.msra.mxu0 0
      %2362 = vmatpush.bf16.msra.mxu0 0
      %2363 = vmatpush.bf16.msra.mxu0 0
      %2364 = vmatpush.bf16.msra.mxu0 0
      %2365 = vmatpush.bf16.msra.mxu0 0
      %2366 = vmatpush.bf16.msra.mxu0 %v2325
      %2367 = vmatmul.bf16.gmra.mxu0 %v2316
      %v2368 = vpop.f32.mrf.mxu0
      %v2369 = vadd.f32 0.0, %v2368
      %v2370 = vpop.f32.mrf.mxu0
      %2371 = vdwg.mxu0
      %2372 = vmatpush.bf16.msra.mxu0 0
      %2373 = vmatpush.bf16.msra.mxu0 0
      %2374 = vmatpush.bf16.msra.mxu0 0
      %2375 = vmatpush.bf16.msra.mxu0 0
      %2376 = vmatpush.bf16.msra.mxu0 0
      %2377 = vmatpush.bf16.msra.mxu0 0
      %2378 = vmatpush.bf16.msra.mxu0 0
      %2379 = vmatpush.bf16.msra.mxu0 %v2328
      %2380 = vmatmul.bf16.gmra.mxu0 %v2316
      %v2381 = vpop.f32.mrf.mxu0
      %v2382 = vadd.f32 0.0, %v2381
      %v2383 = vpop.f32.mrf.mxu0
      %2384 = vdwg.mxu0
      %2385 = vmatpush.bf16.msra.mxu0 0
      %2386 = vmatpush.bf16.msra.mxu0 0
      %2387 = vmatpush.bf16.msra.mxu0 0
      %2388 = vmatpush.bf16.msra.mxu0 0
      %2389 = vmatpush.bf16.msra.mxu0 0
      %2390 = vmatpush.bf16.msra.mxu0 0
      %2391 = vmatpush.bf16.msra.mxu0 0
      %2392 = vmatpush.bf16.msra.mxu0 %v2331
      %2393 = vmatmul.bf16.gmra.mxu0 %v2316
      %v2394 = vpop.f32.mrf.mxu0
      %v2395 = vadd.f32 0.0, %v2394
      %v2396 = vpop.f32.mrf.mxu0
      %2397 = vdwg.mxu0
      %v2398 = vadd.f32 %v2271, %v2343
      %v2399 = vadd.f32 %v2272, %v2356
      %v2400 = vadd.f32 %v2273, %v2369
      %v2401 = vadd.f32 %v2274, %v2382
      %v2402 = vadd.f32 %v2275, %v2395
      %v2403 = vld [vmem:[%s199] sm:$0xff]
      %v2404 = vld [vmem:[%s199 + $0x8] sm:$0xf]
      %s2405 = scalar_lea.vmem %s1, 72
      %v2406 = vld [vmem:[%s2405] sm:$0xf]
      %2408 = vst [vmem:[#allocation1] ss:$4 sm:$0xff] %v2403
      %s2410 = scalar_lea.vmem [#allocation1], 32
      %2411 = vst [vmem:[%s2410] ss:$4 sm:$0xff] %v2404
      %v2412 = vld.sshfl [vmem:[#allocation1] sm:$0xff pattern:$0x73625140]
      %v2414 = vld.sshfl [vmem:[#allocation1 + $0x8] sm:$0xff pattern:$0x73625140]
      %v2416 = vld.sshfl [vmem:[#allocation1 + $0x10] sm:$0xff pattern:$0x73625140]
      %v2418 = vld.sshfl [vmem:[#allocation1 + $0x18] sm:$0xff pattern:$0x73625140]
      %v2420 = vld.sshfl [vmem:[#allocation1 + $0x20] sm:$0xff pattern:$0x73625140]
      %v2422 = vld.sshfl [vmem:[#allocation1 + $0x28] sm:$0xff pattern:$0x73625140]
      %2424 = vrot.lane.b32.xlu0 %v2412, 20
      %v2425 = vpop.permute.xlu0 %2424
      %2426 = vrot.lane.b32.xlu0 %v2414, 20
      %v2427 = vpop.permute.xlu0 %2426
      %2428 = vrot.lane.b32.xlu0 %v2416, 20
      %v2429 = vpop.permute.xlu0 %2428
      %2430 = vrot.lane.b32.xlu0 %v2418, 20
      %v2431 = vpop.permute.xlu0 %2430
      %2432 = vrot.lane.b32.xlu0 %v2420, 20
      %v2433 = vpop.permute.xlu0 %2432
      %2434 = vrot.lane.b32.xlu0 %v2422, 20
      %v2435 = vpop.permute.xlu0 %2434
      %vm2436 = vcmask 162816
      %v2437 = vsel %vm2436, %v2425, %v2427
      %v2438 = vsel %vm2436, %v2427, %v2429
      %v2439 = vsel %vm2436, %v2429, %v2431
      %v2440 = vsel %vm2436, %v2431, %v2433
      %v2441 = vsel %vm2436, %v2433, %v2435
      %v2443 = vsel %vm250, %v2406, 0
      %v2446 = vsel %vm254, %v2437, 0
      %v2449 = vsel %vm254, %v2438, 0
      %v2452 = vsel %vm254, %v2439, 0
      %v2455 = vsel %vm254, %v2440, 0
      %v2458 = vsel %vm254, %v2441, 0
      %2460 = vmatpush.bf16.msra.mxu0 0
      %2461 = vmatpush.bf16.msra.mxu0 0
      %2462 = vmatpush.bf16.msra.mxu0 0
      %2463 = vmatpush.bf16.msra.mxu0 0
      %2464 = vmatpush.bf16.msra.mxu0 0
      %2465 = vmatpush.bf16.msra.mxu0 0
      %2466 = vmatpush.bf16.msra.mxu0 0
      %2467 = vmatpush.bf16.msra.mxu0 %v2446
      %2468 = vmatmul.bf16.gmra.mxu0 %v2443
      %v2469 = vpop.f32.mrf.mxu0
      %v2470 = vadd.f32 0.0, %v2469
      %v2471 = vpop.f32.mrf.mxu0
      %2472 = vdwg.mxu0
      %2473 = vmatpush.bf16.msra.mxu0 0
      %2474 = vmatpush.bf16.msra.mxu0 0
      %2475 = vmatpush.bf16.msra.mxu0 0
      %2476 = vmatpush.bf16.msra.mxu0 0
      %2477 = vmatpush.bf16.msra.mxu0 0
      %2478 = vmatpush.bf16.msra.mxu0 0
      %2479 = vmatpush.bf16.msra.mxu0 0
      %2480 = vmatpush.bf16.msra.mxu0 %v2449
      %2481 = vmatmul.bf16.gmra.mxu0 %v2443
      %v2482 = vpop.f32.mrf.mxu0
      %v2483 = vadd.f32 0.0, %v2482
      %v2484 = vpop.f32.mrf.mxu0
      %2485 = vdwg.mxu0
      %2486 = vmatpush.bf16.msra.mxu0 0
      %2487 = vmatpush.bf16.msra.mxu0 0
      %2488 = vmatpush.bf16.msra.mxu0 0
      %2489 = vmatpush.bf16.msra.mxu0 0
      %2490 = vmatpush.bf16.msra.mxu0 0
      %2491 = vmatpush.bf16.msra.mxu0 0
      %2492 = vmatpush.bf16.msra.mxu0 0
      %2493 = vmatpush.bf16.msra.mxu0 %v2452
      %2494 = vmatmul.bf16.gmra.mxu0 %v2443
      %v2495 = vpop.f32.mrf.mxu0
      %v2496 = vadd.f32 0.0, %v2495
      %v2497 = vpop.f32.mrf.mxu0
      %2498 = vdwg.mxu0
      %2499 = vmatpush.bf16.msra.mxu0 0
      %2500 = vmatpush.bf16.msra.mxu0 0
      %2501 = vmatpush.bf16.msra.mxu0 0
      %2502 = vmatpush.bf16.msra.mxu0 0
      %2503 = vmatpush.bf16.msra.mxu0 0
      %2504 = vmatpush.bf16.msra.mxu0 0
      %2505 = vmatpush.bf16.msra.mxu0 0
      %2506 = vmatpush.bf16.msra.mxu0 %v2455
      %2507 = vmatmul.bf16.gmra.mxu0 %v2443
      %v2508 = vpop.f32.mrf.mxu0
      %v2509 = vadd.f32 0.0, %v2508
      %v2510 = vpop.f32.mrf.mxu0
      %2511 = vdwg.mxu0
      %2512 = vmatpush.bf16.msra.mxu0 0
      %2513 = vmatpush.bf16.msra.mxu0 0
      %2514 = vmatpush.bf16.msra.mxu0 0
      %2515 = vmatpush.bf16.msra.mxu0 0
      %2516 = vmatpush.bf16.msra.mxu0 0
      %2517 = vmatpush.bf16.msra.mxu0 0
      %2518 = vmatpush.bf16.msra.mxu0 0
      %2519 = vmatpush.bf16.msra.mxu0 %v2458
      %2520 = vmatmul.bf16.gmra.mxu0 %v2443
      %v2521 = vpop.f32.mrf.mxu0
      %v2522 = vadd.f32 0.0, %v2521
      %v2523 = vpop.f32.mrf.mxu0
      %2524 = vdwg.mxu0
      %v2525 = vadd.f32 %v2398, %v2470
      %v2526 = vadd.f32 %v2399, %v2483
      %v2527 = vadd.f32 %v2400, %v2496
      %v2528 = vadd.f32 %v2401, %v2509
      %v2529 = vadd.f32 %v2402, %v2522
      %v2530 = vld [vmem:[%s199] sm:$0xff]
      %v2531 = vld [vmem:[%s199 + $0x8] sm:$0xf]
      %s2532 = scalar_lea.vmem %s1, 76
      %v2533 = vld [vmem:[%s2532] sm:$0xf]
      %2535 = vst [vmem:[#allocation1] ss:$4 sm:$0xff] %v2530
      %s2537 = scalar_lea.vmem [#allocation1], 32
      %2538 = vst [vmem:[%s2537] ss:$4 sm:$0xff] %v2531
      %v2539 = vld.sshfl [vmem:[#allocation1] sm:$0xff pattern:$0x73625140]
      %v2541 = vld.sshfl [vmem:[#allocation1 + $0x8] sm:$0xff pattern:$0x73625140]
      %v2543 = vld.sshfl [vmem:[#allocation1 + $0x10] sm:$0xff pattern:$0x73625140]
      %v2545 = vld.sshfl [vmem:[#allocation1 + $0x18] sm:$0xff pattern:$0x73625140]
      %v2547 = vld.sshfl [vmem:[#allocation1 + $0x20] sm:$0xff pattern:$0x73625140]
      %v2549 = vld.sshfl [vmem:[#allocation1 + $0x28] sm:$0xff pattern:$0x73625140]
      %2551 = vrot.lane.b32.xlu0 %v2539, 17
      %v2552 = vpop.permute.xlu0 %2551
      %2553 = vrot.lane.b32.xlu0 %v2541, 17
      %v2554 = vpop.permute.xlu0 %2553
      %2555 = vrot.lane.b32.xlu0 %v2543, 17
      %v2556 = vpop.permute.xlu0 %2555
      %2557 = vrot.lane.b32.xlu0 %v2545, 17
      %v2558 = vpop.permute.xlu0 %2557
      %2559 = vrot.lane.b32.xlu0 %v2547, 17
      %v2560 = vpop.permute.xlu0 %2559
      %2561 = vrot.lane.b32.xlu0 %v2549, 17
      %v2562 = vpop.permute.xlu0 %2561
      %vm2563 = vcmask 138240
      %v2564 = vsel %vm2563, %v2552, %v2554
      %v2565 = vsel %vm2563, %v2554, %v2556
      %v2566 = vsel %vm2563, %v2556, %v2558
      %v2567 = vsel %vm2563, %v2558, %v2560
      %v2568 = vsel %vm2563, %v2560, %v2562
      %v2570 = vsel %vm250, %v2533, 0
      %v2573 = vsel %vm254, %v2564, 0
      %v2576 = vsel %vm254, %v2565, 0
      %v2579 = vsel %vm254, %v2566, 0
      %v2582 = vsel %vm254, %v2567, 0
      %v2585 = vsel %vm254, %v2568, 0
      %2587 = vmatpush.bf16.msra.mxu0 0
      %2588 = vmatpush.bf16.msra.mxu0 0
      %2589 = vmatpush.bf16.msra.mxu0 0
      %2590 = vmatpush.bf16.msra.mxu0 0
      %2591 = vmatpush.bf16.msra.mxu0 0
      %2592 = vmatpush.bf16.msra.mxu0 0
      %2593 = vmatpush.bf16.msra.mxu0 0
      %2594 = vmatpush.bf16.msra.mxu0 %v2573
      %2595 = vmatmul.bf16.gmra.mxu0 %v2570
      %v2596 = vpop.f32.mrf.mxu0
      %v2597 = vadd.f32 0.0, %v2596
      %v2598 = vpop.f32.mrf.mxu0
      %2599 = vdwg.mxu0
      %2600 = vmatpush.bf16.msra.mxu0 0
      %2601 = vmatpush.bf16.msra.mxu0 0
      %2602 = vmatpush.bf16.msra.mxu0 0
      %2603 = vmatpush.bf16.msra.mxu0 0
      %2604 = vmatpush.bf16.msra.mxu0 0
      %2605 = vmatpush.bf16.msra.mxu0 0
      %2606 = vmatpush.bf16.msra.mxu0 0
      %2607 = vmatpush.bf16.msra.mxu0 %v2576
      %2608 = vmatmul.bf16.gmra.mxu0 %v2570
      %v2609 = vpop.f32.mrf.mxu0
      %v2610 = vadd.f32 0.0, %v2609
      %v2611 = vpop.f32.mrf.mxu0
      %2612 = vdwg.mxu0
      %2613 = vmatpush.bf16.msra.mxu0 0
      %2614 = vmatpush.bf16.msra.mxu0 0
      %2615 = vmatpush.bf16.msra.mxu0 0
      %2616 = vmatpush.bf16.msra.mxu0 0
      %2617 = vmatpush.bf16.msra.mxu0 0
      %2618 = vmatpush.bf16.msra.mxu0 0
      %2619 = vmatpush.bf16.msra.mxu0 0
      %2620 = vmatpush.bf16.msra.mxu0 %v2579
      %2621 = vmatmul.bf16.gmra.mxu0 %v2570
      %v2622 = vpop.f32.mrf.mxu0
      %v2623 = vadd.f32 0.0, %v2622
      %v2624 = vpop.f32.mrf.mxu0
      %2625 = vdwg.mxu0
      %2626 = vmatpush.bf16.msra.mxu0 0
      %2627 = vmatpush.bf16.msra.mxu0 0
      %2628 = vmatpush.bf16.msra.mxu0 0
      %2629 = vmatpush.bf16.msra.mxu0 0
      %2630 = vmatpush.bf16.msra.mxu0 0
      %2631 = vmatpush.bf16.msra.mxu0 0
      %2632 = vmatpush.bf16.msra.mxu0 0
      %2633 = vmatpush.bf16.msra.mxu0 %v2582
      %2634 = vmatmul.bf16.gmra.mxu0 %v2570
      %v2635 = vpop.f32.mrf.mxu0
      %v2636 = vadd.f32 0.0, %v2635
      %v2637 = vpop.f32.mrf.mxu0
      %2638 = vdwg.mxu0
      %2639 = vmatpush.bf16.msra.mxu0 0
      %2640 = vmatpush.bf16.msra.mxu0 0
      %2641 = vmatpush.bf16.msra.mxu0 0
      %2642 = vmatpush.bf16.msra.mxu0 0
      %2643 = vmatpush.bf16.msra.mxu0 0
      %2644 = vmatpush.bf16.msra.mxu0 0
      %2645 = vmatpush.bf16.msra.mxu0 0
      %2646 = vmatpush.bf16.msra.mxu0 %v2585
      %2647 = vmatmul.bf16.gmra.mxu0 %v2570
      %v2648 = vpop.f32.mrf.mxu0
      %v2649 = vadd.f32 0.0, %v2648
      %v2650 = vpop.f32.mrf.mxu0
      %2651 = vdwg.mxu0
      %v2652 = vadd.f32 %v2525, %v2597
      %v2653 = vadd.f32 %v2526, %v2610
      %v2654 = vadd.f32 %v2527, %v2623
      %v2655 = vadd.f32 %v2528, %v2636
      %v2656 = vadd.f32 %v2529, %v2649
      %v2657 = vld [vmem:[%s199] sm:$0xff]
      %v2658 = vld [vmem:[%s199 + $0x8] sm:$0xf]
      %s2659 = scalar_lea.vmem %s1, 80
      %v2660 = vld [vmem:[%s2659] sm:$0xf]
      %2662 = vst [vmem:[#allocation1] ss:$4 sm:$0xff] %v2657
      %s2664 = scalar_lea.vmem [#allocation1], 32
      %2665 = vst [vmem:[%s2664] ss:$4 sm:$0xff] %v2658
      %v2666 = vld.sshfl [vmem:[#allocation1] sm:$0xff pattern:$0x73625140]
      %v2668 = vld.sshfl [vmem:[#allocation1 + $0x8] sm:$0xff pattern:$0x73625140]
      %v2670 = vld.sshfl [vmem:[#allocation1 + $0x10] sm:$0xff pattern:$0x73625140]
      %v2672 = vld.sshfl [vmem:[#allocation1 + $0x18] sm:$0xff pattern:$0x73625140]
      %v2674 = vld.sshfl [vmem:[#allocation1 + $0x20] sm:$0xff pattern:$0x73625140]
      %v2676 = vld.sshfl [vmem:[#allocation1 + $0x28] sm:$0xff pattern:$0x73625140]
      %2678 = vrot.lane.b32.xlu0 %v2666, 14
      %v2679 = vpop.permute.xlu0 %2678
      %2680 = vrot.lane.b32.xlu0 %v2668, 14
      %v2681 = vpop.permute.xlu0 %2680
      %2682 = vrot.lane.b32.xlu0 %v2670, 14
      %v2683 = vpop.permute.xlu0 %2682
      %2684 = vrot.lane.b32.xlu0 %v2672, 14
      %v2685 = vpop.permute.xlu0 %2684
      %2686 = vrot.lane.b32.xlu0 %v2674, 14
      %v2687 = vpop.permute.xlu0 %2686
      %2688 = vrot.lane.b32.xlu0 %v2676, 14
      %v2689 = vpop.permute.xlu0 %2688
      %vm2690 = vcmask 113664
      %v2691 = vsel %vm2690, %v2679, %v2681
      %v2692 = vsel %vm2690, %v2681, %v2683
      %v2693 = vsel %vm2690, %v2683, %v2685
      %v2694 = vsel %vm2690, %v2685, %v2687
      %v2695 = vsel %vm2690, %v2687, %v2689
      %v2697 = vsel %vm250, %v2660, 0
      %v2700 = vsel %vm254, %v2691, 0
      %v2703 = vsel %vm254, %v2692, 0
      %v2706 = vsel %vm254, %v2693, 0
      %v2709 = vsel %vm254, %v2694, 0
      %v2712 = vsel %vm254, %v2695, 0
      %2714 = vmatpush.bf16.msra.mxu0 0
      %2715 = vmatpush.bf16.msra.mxu0 0
      %2716 = vmatpush.bf16.msra.mxu0 0
      %2717 = vmatpush.bf16.msra.mxu0 0
      %2718 = vmatpush.bf16.msra.mxu0 0
      %2719 = vmatpush.bf16.msra.mxu0 0
      %2720 = vmatpush.bf16.msra.mxu0 0
      %2721 = vmatpush.bf16.msra.mxu0 %v2700
      %2722 = vmatmul.bf16.gmra.mxu0 %v2697
      %v2723 = vpop.f32.mrf.mxu0
      %v2724 = vadd.f32 0.0, %v2723
      %v2725 = vpop.f32.mrf.mxu0
      %2726 = vdwg.mxu0
      %2727 = vmatpush.bf16.msra.mxu0 0
      %2728 = vmatpush.bf16.msra.mxu0 0
      %2729 = vmatpush.bf16.msra.mxu0 0
      %2730 = vmatpush.bf16.msra.mxu0 0
      %2731 = vmatpush.bf16.msra.mxu0 0
      %2732 = vmatpush.bf16.msra.mxu0 0
      %2733 = vmatpush.bf16.msra.mxu0 0
      %2734 = vmatpush.bf16.msra.mxu0 %v2703
      %2735 = vmatmul.bf16.gmra.mxu0 %v2697
      %v2736 = vpop.f32.mrf.mxu0
      %v2737 = vadd.f32 0.0, %v2736
      %v2738 = vpop.f32.mrf.mxu0
      %2739 = vdwg.mxu0
      %2740 = vmatpush.bf16.msra.mxu0 0
      %2741 = vmatpush.bf16.msra.mxu0 0
      %2742 = vmatpush.bf16.msra.mxu0 0
      %2743 = vmatpush.bf16.msra.mxu0 0
      %2744 = vmatpush.bf16.msra.mxu0 0
      %2745 = vmatpush.bf16.msra.mxu0 0
      %2746 = vmatpush.bf16.msra.mxu0 0
      %2747 = vmatpush.bf16.msra.mxu0 %v2706
      %2748 = vmatmul.bf16.gmra.mxu0 %v2697
      %v2749 = vpop.f32.mrf.mxu0
      %v2750 = vadd.f32 0.0, %v2749
      %v2751 = vpop.f32.mrf.mxu0
      %2752 = vdwg.mxu0
      %2753 = vmatpush.bf16.msra.mxu0 0
      %2754 = vmatpush.bf16.msra.mxu0 0
      %2755 = vmatpush.bf16.msra.mxu0 0
      %2756 = vmatpush.bf16.msra.mxu0 0
      %2757 = vmatpush.bf16.msra.mxu0 0
      %2758 = vmatpush.bf16.msra.mxu0 0
      %2759 = vmatpush.bf16.msra.mxu0 0
      %2760 = vmatpush.bf16.msra.mxu0 %v2709
      %2761 = vmatmul.bf16.gmra.mxu0 %v2697
      %v2762 = vpop.f32.mrf.mxu0
      %v2763 = vadd.f32 0.0, %v2762
      %v2764 = vpop.f32.mrf.mxu0
      %2765 = vdwg.mxu0
      %2766 = vmatpush.bf16.msra.mxu0 0
      %2767 = vmatpush.bf16.msra.mxu0 0
      %2768 = vmatpush.bf16.msra.mxu0 0
      %2769 = vmatpush.bf16.msra.mxu0 0
      %2770 = vmatpush.bf16.msra.mxu0 0
      %2771 = vmatpush.bf16.msra.mxu0 0
      %2772 = vmatpush.bf16.msra.mxu0 0
      %2773 = vmatpush.bf16.msra.mxu0 %v2712
      %2774 = vmatmul.bf16.gmra.mxu0 %v2697
      %v2775 = vpop.f32.mrf.mxu0
      %v2776 = vadd.f32 0.0, %v2775
      %v2777 = vpop.f32.mrf.mxu0
      %2778 = vdwg.mxu0
      %v2779 = vadd.f32 %v2652, %v2724
      %v2780 = vadd.f32 %v2653, %v2737
      %v2781 = vadd.f32 %v2654, %v2750
      %v2782 = vadd.f32 %v2655, %v2763
      %v2783 = vadd.f32 %v2656, %v2776
      %v2784 = vld [vmem:[%s199] sm:$0xff]
      %v2785 = vld [vmem:[%s199 + $0x8] sm:$0xf]
      %s2786 = scalar_lea.vmem %s1, 84
      %v2787 = vld [vmem:[%s2786] sm:$0xf]
      %2789 = vst [vmem:[#allocation1] ss:$4 sm:$0xff] %v2784
      %s2791 = scalar_lea.vmem [#allocation1], 32
      %2792 = vst [vmem:[%s2791] ss:$4 sm:$0xff] %v2785
      %v2793 = vld.sshfl [vmem:[#allocation1] sm:$0xff pattern:$0x73625140]
      %v2795 = vld.sshfl [vmem:[#allocation1 + $0x8] sm:$0xff pattern:$0x73625140]
      %v2797 = vld.sshfl [vmem:[#allocation1 + $0x10] sm:$0xff pattern:$0x73625140]
      %v2799 = vld.sshfl [vmem:[#allocation1 + $0x18] sm:$0xff pattern:$0x73625140]
      %v2801 = vld.sshfl [vmem:[#allocation1 + $0x20] sm:$0xff pattern:$0x73625140]
      %v2803 = vld.sshfl [vmem:[#allocation1 + $0x28] sm:$0xff pattern:$0x73625140]
      %2805 = vrot.lane.b32.xlu0 %v2793, 11
      %v2806 = vpop.permute.xlu0 %2805
      %2807 = vrot.lane.b32.xlu0 %v2795, 11
      %v2808 = vpop.permute.xlu0 %2807
      %2809 = vrot.lane.b32.xlu0 %v2797, 11
      %v2810 = vpop.permute.xlu0 %2809
      %2811 = vrot.lane.b32.xlu0 %v2799, 11
      %v2812 = vpop.permute.xlu0 %2811
      %2813 = vrot.lane.b32.xlu0 %v2801, 11
      %v2814 = vpop.permute.xlu0 %2813
      %2815 = vrot.lane.b32.xlu0 %v2803, 11
      %v2816 = vpop.permute.xlu0 %2815
      %v2817 = vsel %vm362, %v2806, %v2808
      %v2818 = vsel %vm362, %v2808, %v2810
      %v2819 = vsel %vm362, %v2810, %v2812
      %v2820 = vsel %vm362, %v2812, %v2814
      %v2821 = vsel %vm362, %v2814, %v2816
      %v2823 = vsel %vm250, %v2787, 0
      %v2826 = vsel %vm254, %v2817, 0
      %v2829 = vsel %vm254, %v2818, 0
      %v2832 = vsel %vm254, %v2819, 0
      %v2835 = vsel %vm254, %v2820, 0
      %v2838 = vsel %vm254, %v2821, 0
      %2840 = vmatpush.bf16.msra.mxu0 0
      %2841 = vmatpush.bf16.msra.mxu0 0
      %2842 = vmatpush.bf16.msra.mxu0 0
      %2843 = vmatpush.bf16.msra.mxu0 0
      %2844 = vmatpush.bf16.msra.mxu0 0
      %2845 = vmatpush.bf16.msra.mxu0 0
      %2846 = vmatpush.bf16.msra.mxu0 0
      %2847 = vmatpush.bf16.msra.mxu0 %v2826
      %2848 = vmatmul.bf16.gmra.mxu0 %v2823
      %v2849 = vpop.f32.mrf.mxu0
      %v2850 = vadd.f32 0.0, %v2849
      %v2851 = vpop.f32.mrf.mxu0
      %2852 = vdwg.mxu0
      %2853 = vmatpush.bf16.msra.mxu0 0
      %2854 = vmatpush.bf16.msra.mxu0 0
      %2855 = vmatpush.bf16.msra.mxu0 0
      %2856 = vmatpush.bf16.msra.mxu0 0
      %2857 = vmatpush.bf16.msra.mxu0 0
      %2858 = vmatpush.bf16.msra.mxu0 0
      %2859 = vmatpush.bf16.msra.mxu0 0
      %2860 = vmatpush.bf16.msra.mxu0 %v2829
      %2861 = vmatmul.bf16.gmra.mxu0 %v2823
      %v2862 = vpop.f32.mrf.mxu0
      %v2863 = vadd.f32 0.0, %v2862
      %v2864 = vpop.f32.mrf.mxu0
      %2865 = vdwg.mxu0
      %2866 = vmatpush.bf16.msra.mxu0 0
      %2867 = vmatpush.bf16.msra.mxu0 0
      %2868 = vmatpush.bf16.msra.mxu0 0
      %2869 = vmatpush.bf16.msra.mxu0 0
      %2870 = vmatpush.bf16.msra.mxu0 0
      %2871 = vmatpush.bf16.msra.mxu0 0
      %2872 = vmatpush.bf16.msra.mxu0 0
      %2873 = vmatpush.bf16.msra.mxu0 %v2832
      %2874 = vmatmul.bf16.gmra.mxu0 %v2823
      %v2875 = vpop.f32.mrf.mxu0
      %v2876 = vadd.f32 0.0, %v2875
      %v2877 = vpop.f32.mrf.mxu0
      %2878 = vdwg.mxu0
      %2879 = vmatpush.bf16.msra.mxu0 0
      %2880 = vmatpush.bf16.msra.mxu0 0
      %2881 = vmatpush.bf16.msra.mxu0 0
      %2882 = vmatpush.bf16.msra.mxu0 0
      %2883 = vmatpush.bf16.msra.mxu0 0
      %2884 = vmatpush.bf16.msra.mxu0 0
      %2885 = vmatpush.bf16.msra.mxu0 0
      %2886 = vmatpush.bf16.msra.mxu0 %v2835
      %2887 = vmatmul.bf16.gmra.mxu0 %v2823
      %v2888 = vpop.f32.mrf.mxu0
      %v2889 = vadd.f32 0.0, %v2888
      %v2890 = vpop.f32.mrf.mxu0
      %2891 = vdwg.mxu0
      %2892 = vmatpush.bf16.msra.mxu0 0
      %2893 = vmatpush.bf16.msra.mxu0 0
      %2894 = vmatpush.bf16.msra.mxu0 0
      %2895 = vmatpush.bf16.msra.mxu0 0
      %2896 = vmatpush.bf16.msra.mxu0 0
      %2897 = vmatpush.bf16.msra.mxu0 0
      %2898 = vmatpush.bf16.msra.mxu0 0
      %2899 = vmatpush.bf16.msra.mxu0 %v2838
      %2900 = vmatmul.bf16.gmra.mxu0 %v2823
      %v2901 = vpop.f32.mrf.mxu0
      %v2902 = vadd.f32 0.0, %v2901
      %v2903 = vpop.f32.mrf.mxu0
      %2904 = vdwg.mxu0
      %v2905 = vadd.f32 %v2779, %v2850
      %v2906 = vadd.f32 %v2780, %v2863
      %v2907 = vadd.f32 %v2781, %v2876
      %v2908 = vadd.f32 %v2782, %v2889
      %v2909 = vadd.f32 %v2783, %v2902
      %v2910 = vld [vmem:[%s199] sm:$0xff]
      %v2911 = vld [vmem:[%s199 + $0x8] sm:$0xf]
      %s2912 = scalar_lea.vmem %s1, 88
      %v2913 = vld [vmem:[%s2912] sm:$0xf]
      %2915 = vst [vmem:[#allocation1] ss:$4 sm:$0xff] %v2910
      %s2917 = scalar_lea.vmem [#allocation1], 32
      %2918 = vst [vmem:[%s2917] ss:$4 sm:$0xff] %v2911
      %v2919 = vld.sshfl [vmem:[#allocation1] sm:$0xff pattern:$0x73625140]
      %v2921 = vld.sshfl [vmem:[#allocation1 + $0x8] sm:$0xff pattern:$0x73625140]
      %v2923 = vld.sshfl [vmem:[#allocation1 + $0x10] sm:$0xff pattern:$0x73625140]
      %v2925 = vld.sshfl [vmem:[#allocation1 + $0x18] sm:$0xff pattern:$0x73625140]
      %v2927 = vld.sshfl [vmem:[#allocation1 + $0x20] sm:$0xff pattern:$0x73625140]
      %v2929 = vld.sshfl [vmem:[#allocation1 + $0x28] sm:$0xff pattern:$0x73625140]
      %2931 = vrot.lane.b32.xlu0 %v2919, 8
      %v2932 = vpop.permute.xlu0 %2931
      %2933 = vrot.lane.b32.xlu0 %v2921, 8
      %v2934 = vpop.permute.xlu0 %2933
      %2935 = vrot.lane.b32.xlu0 %v2923, 8
      %v2936 = vpop.permute.xlu0 %2935
      %2937 = vrot.lane.b32.xlu0 %v2925, 8
      %v2938 = vpop.permute.xlu0 %2937
      %2939 = vrot.lane.b32.xlu0 %v2927, 8
      %v2940 = vpop.permute.xlu0 %2939
      %2941 = vrot.lane.b32.xlu0 %v2929, 8
      %v2942 = vpop.permute.xlu0 %2941
      %vm2943 = vcmask 64512
      %v2944 = vsel %vm2943, %v2932, %v2934
      %v2945 = vsel %vm2943, %v2934, %v2936
      %v2946 = vsel %vm2943, %v2936, %v2938
      %v2947 = vsel %vm2943, %v2938, %v2940
      %v2948 = vsel %vm2943, %v2940, %v2942
      %v2950 = vsel %vm250, %v2913, 0
      %v2953 = vsel %vm254, %v2944, 0
      %v2956 = vsel %vm254, %v2945, 0
      %v2959 = vsel %vm254, %v2946, 0
      %v2962 = vsel %vm254, %v2947, 0
      %v2965 = vsel %vm254, %v2948, 0
      %2967 = vmatpush.bf16.msra.mxu0 0
      %2968 = vmatpush.bf16.msra.mxu0 0
      %2969 = vmatpush.bf16.msra.mxu0 0
      %2970 = vmatpush.bf16.msra.mxu0 0
      %2971 = vmatpush.bf16.msra.mxu0 0
      %2972 = vmatpush.bf16.msra.mxu0 0
      %2973 = vmatpush.bf16.msra.mxu0 0
      %2974 = vmatpush.bf16.msra.mxu0 %v2953
      %2975 = vmatmul.bf16.gmra.mxu0 %v2950
      %v2976 = vpop.f32.mrf.mxu0
      %v2977 = vadd.f32 0.0, %v2976
      %v2978 = vpop.f32.mrf.mxu0
      %2979 = vdwg.mxu0
      %2980 = vmatpush.bf16.msra.mxu0 0
      %2981 = vmatpush.bf16.msra.mxu0 0
      %2982 = vmatpush.bf16.msra.mxu0 0
      %2983 = vmatpush.bf16.msra.mxu0 0
      %2984 = vmatpush.bf16.msra.mxu0 0
      %2985 = vmatpush.bf16.msra.mxu0 0
      %2986 = vmatpush.bf16.msra.mxu0 0
      %2987 = vmatpush.bf16.msra.mxu0 %v2956
      %2988 = vmatmul.bf16.gmra.mxu0 %v2950
      %v2989 = vpop.f32.mrf.mxu0
      %v2990 = vadd.f32 0.0, %v2989
      %v2991 = vpop.f32.mrf.mxu0
      %2992 = vdwg.mxu0
      %2993 = vmatpush.bf16.msra.mxu0 0
      %2994 = vmatpush.bf16.msra.mxu0 0
      %2995 = vmatpush.bf16.msra.mxu0 0
      %2996 = vmatpush.bf16.msra.mxu0 0
      %2997 = vmatpush.bf16.msra.mxu0 0
      %2998 = vmatpush.bf16.msra.mxu0 0
      %2999 = vmatpush.bf16.msra.mxu0 0
      %3000 = vmatpush.bf16.msra.mxu0 %v2959
      %3001 = vmatmul.bf16.gmra.mxu0 %v2950
      %v3002 = vpop.f32.mrf.mxu0
      %v3003 = vadd.f32 0.0, %v3002
      %v3004 = vpop.f32.mrf.mxu0
      %3005 = vdwg.mxu0
      %3006 = vmatpush.bf16.msra.mxu0 0
      %3007 = vmatpush.bf16.msra.mxu0 0
      %3008 = vmatpush.bf16.msra.mxu0 0
      %3009 = vmatpush.bf16.msra.mxu0 0
      %3010 = vmatpush.bf16.msra.mxu0 0
      %3011 = vmatpush.bf16.msra.mxu0 0
      %3012 = vmatpush.bf16.msra.mxu0 0
      %3013 = vmatpush.bf16.msra.mxu0 %v2962
      %3014 = vmatmul.bf16.gmra.mxu0 %v2950
      %v3015 = vpop.f32.mrf.mxu0
      %v3016 = vadd.f32 0.0, %v3015
      %v3017 = vpop.f32.mrf.mxu0
      %3018 = vdwg.mxu0
      %3019 = vmatpush.bf16.msra.mxu0 0
      %3020 = vmatpush.bf16.msra.mxu0 0
      %3021 = vmatpush.bf16.msra.mxu0 0
      %3022 = vmatpush.bf16.msra.mxu0 0
      %3023 = vmatpush.bf16.msra.mxu0 0
      %3024 = vmatpush.bf16.msra.mxu0 0
      %3025 = vmatpush.bf16.msra.mxu0 0
      %3026 = vmatpush.bf16.msra.mxu0 %v2965
      %3027 = vmatmul.bf16.gmra.mxu0 %v2950
      %v3028 = vpop.f32.mrf.mxu0
      %v3029 = vadd.f32 0.0, %v3028
      %v3030 = vpop.f32.mrf.mxu0
      %3031 = vdwg.mxu0
      %v3032 = vadd.f32 %v2905, %v2977
      %v3033 = vadd.f32 %v2906, %v2990
      %v3034 = vadd.f32 %v2907, %v3003
      %v3035 = vadd.f32 %v2908, %v3016
      %v3036 = vadd.f32 %v2909, %v3029
      %v3037 = vld [vmem:[%s199 + $0x2] sm:$0xff]
      %v3038 = vld [vmem:[%s199 + $0xa] sm:$0x3]
      %s3039 = scalar_lea.vmem %s1, 92
      %v3040 = vld [vmem:[%s3039] sm:$0xf]
      %3042 = vst [vmem:[#allocation1] ss:$4 sm:$0xff] %v3037
      %s3044 = scalar_lea.vmem [#allocation1], 32
      %3045 = vst [vmem:[%s3044] ss:$4 sm:$0xff] %v3038
      %v3046 = vld.sshfl [vmem:[#allocation1] sm:$0xff pattern:$0x73625140]
      %v3048 = vld.sshfl [vmem:[#allocation1 + $0x8] sm:$0xff pattern:$0x73625140]
      %v3050 = vld.sshfl [vmem:[#allocation1 + $0x10] sm:$0xff pattern:$0x73625140]
      %v3052 = vld.sshfl [vmem:[#allocation1 + $0x18] sm:$0xff pattern:$0x73625140]
      %v3054 = vld.sshfl [vmem:[#allocation1 + $0x20] sm:$0xff pattern:$0x73625140]
      %3056 = vrot.lane.b32.xlu0 %v3046, 52
      %v3057 = vpop.permute.xlu0 %3056
      %3058 = vrot.lane.b32.xlu0 %v3048, 52
      %v3059 = vpop.permute.xlu0 %3058
      %3060 = vrot.lane.b32.xlu0 %v3050, 52
      %v3061 = vpop.permute.xlu0 %3060
      %3062 = vrot.lane.b32.xlu0 %v3052, 52
      %v3063 = vpop.permute.xlu0 %3062
      %3064 = vrot.lane.b32.xlu0 %v3054, 52
      %v3065 = vpop.permute.xlu0 %3064
      %vm3066 = vcmask 424960
      %v3067 = vsel %vm3066, %v3057, %v3059
      %v3068 = vsel %vm3066, %v3059, %v3061
      %v3069 = vsel %vm3066, %v3061, %v3063
      %v3070 = vsel %vm3066, %v3063, %v3065
      %v3072 = vsel %vm250, %v3040, 0
      %v3075 = vsel %vm254, %v3067, 0
      %v3078 = vsel %vm254, %v3068, 0
      %v3081 = vsel %vm254, %v3069, 0
      %v3084 = vsel %vm254, %v3070, 0
      %v3087 = vsel %vm254, %v3065, 0
      %3089 = vmatpush.bf16.msra.mxu0 0
      %3090 = vmatpush.bf16.msra.mxu0 0
      %3091 = vmatpush.bf16.msra.mxu0 0
      %3092 = vmatpush.bf16.msra.mxu0 0
      %3093 = vmatpush.bf16.msra.mxu0 0
      %3094 = vmatpush.bf16.msra.mxu0 0
      %3095 = vmatpush.bf16.msra.mxu0 0
      %3096 = vmatpush.bf16.msra.mxu0 %v3075
      %3097 = vmatmul.bf16.gmra.mxu0 %v3072
      %v3098 = vpop.f32.mrf.mxu0
      %v3099 = vadd.f32 0.0, %v3098
      %v3100 = vpop.f32.mrf.mxu0
      %3101 = vdwg.mxu0
      %3102 = vmatpush.bf16.msra.mxu0 0
      %3103 = vmatpush.bf16.msra.mxu0 0
      %3104 = vmatpush.bf16.msra.mxu0 0
      %3105 = vmatpush.bf16.msra.mxu0 0
      %3106 = vmatpush.bf16.msra.mxu0 0
      %3107 = vmatpush.bf16.msra.mxu0 0
      %3108 = vmatpush.bf16.msra.mxu0 0
      %3109 = vmatpush.bf16.msra.mxu0 %v3078
      %3110 = vmatmul.bf16.gmra.mxu0 %v3072
      %v3111 = vpop.f32.mrf.mxu0
      %v3112 = vadd.f32 0.0, %v3111
      %v3113 = vpop.f32.mrf.mxu0
      %3114 = vdwg.mxu0
      %3115 = vmatpush.bf16.msra.mxu0 0
      %3116 = vmatpush.bf16.msra.mxu0 0
      %3117 = vmatpush.bf16.msra.mxu0 0
      %3118 = vmatpush.bf16.msra.mxu0 0
      %3119 = vmatpush.bf16.msra.mxu0 0
      %3120 = vmatpush.bf16.msra.mxu0 0
      %3121 = vmatpush.bf16.msra.mxu0 0
      %3122 = vmatpush.bf16.msra.mxu0 %v3081
      %3123 = vmatmul.bf16.gmra.mxu0 %v3072
      %v3124 = vpop.f32.mrf.mxu0
      %v3125 = vadd.f32 0.0, %v3124
      %v3126 = vpop.f32.mrf.mxu0
      %3127 = vdwg.mxu0
      %3128 = vmatpush.bf16.msra.mxu0 0
      %3129 = vmatpush.bf16.msra.mxu0 0
      %3130 = vmatpush.bf16.msra.mxu0 0
      %3131 = vmatpush.bf16.msra.mxu0 0
      %3132 = vmatpush.bf16.msra.mxu0 0
      %3133 = vmatpush.bf16.msra.mxu0 0
      %3134 = vmatpush.bf16.msra.mxu0 0
      %3135 = vmatpush.bf16.msra.mxu0 %v3084
      %3136 = vmatmul.bf16.gmra.mxu0 %v3072
      %v3137 = vpop.f32.mrf.mxu0
      %v3138 = vadd.f32 0.0, %v3137
      %v3139 = vpop.f32.mrf.mxu0
      %3140 = vdwg.mxu0
      %3141 = vmatpush.bf16.msra.mxu0 0
      %3142 = vmatpush.bf16.msra.mxu0 0
      %3143 = vmatpush.bf16.msra.mxu0 0
      %3144 = vmatpush.bf16.msra.mxu0 0
      %3145 = vmatpush.bf16.msra.mxu0 0
      %3146 = vmatpush.bf16.msra.mxu0 0
      %3147 = vmatpush.bf16.msra.mxu0 0
      %3148 = vmatpush.bf16.msra.mxu0 %v3087
      %3149 = vmatmul.bf16.gmra.mxu0 %v3072
      %v3150 = vpop.f32.mrf.mxu0
      %v3151 = vadd.f32 0.0, %v3150
      %v3152 = vpop.f32.mrf.mxu0
      %3153 = vdwg.mxu0
      %v3154 = vadd.f32 %v3032, %v3099
      %v3155 = vadd.f32 %v3033, %v3112
      %v3156 = vadd.f32 %v3034, %v3125
      %v3157 = vadd.f32 %v3035, %v3138
      %v3158 = vadd.f32 %v3036, %v3151
      %v3159 = vld [vmem:[%s199 + $0x2] sm:$0xff]
      %v3160 = vld [vmem:[%s199 + $0xa] sm:$0x3]
      %s3161 = scalar_lea.vmem %s1, 96
      %v3162 = vld [vmem:[%s3161] sm:$0xf]
      %3164 = vst [vmem:[#allocation1] ss:$4 sm:$0xff] %v3159
      %s3166 = scalar_lea.vmem [#allocation1], 32
      %3167 = vst [vmem:[%s3166] ss:$4 sm:$0xff] %v3160
      %v3168 = vld.sshfl [vmem:[#allocation1] sm:$0xff pattern:$0x73625140]
      %v3170 = vld.sshfl [vmem:[#allocation1 + $0x8] sm:$0xff pattern:$0x73625140]
      %v3172 = vld.sshfl [vmem:[#allocation1 + $0x10] sm:$0xff pattern:$0x73625140]
      %v3174 = vld.sshfl [vmem:[#allocation1 + $0x18] sm:$0xff pattern:$0x73625140]
      %v3176 = vld.sshfl [vmem:[#allocation1 + $0x20] sm:$0xff pattern:$0x73625140]
      %3178 = vrot.lane.b32.xlu0 %v3168, 49
      %v3179 = vpop.permute.xlu0 %3178
      %3180 = vrot.lane.b32.xlu0 %v3170, 49
      %v3181 = vpop.permute.xlu0 %3180
      %3182 = vrot.lane.b32.xlu0 %v3172, 49
      %v3183 = vpop.permute.xlu0 %3182
      %3184 = vrot.lane.b32.xlu0 %v3174, 49
      %v3185 = vpop.permute.xlu0 %3184
      %3186 = vrot.lane.b32.xlu0 %v3176, 49
      %v3187 = vpop.permute.xlu0 %3186
      %vm3188 = vcmask 400384
      %v3189 = vsel %vm3188, %v3179, %v3181
      %v3190 = vsel %vm3188, %v3181, %v3183
      %v3191 = vsel %vm3188, %v3183, %v3185
      %v3192 = vsel %vm3188, %v3185, %v3187
      %v3194 = vsel %vm250, %v3162, 0
      %v3197 = vsel %vm254, %v3189, 0
      %v3200 = vsel %vm254, %v3190, 0
      %v3203 = vsel %vm254, %v3191, 0
      %v3206 = vsel %vm254, %v3192, 0
      %v3209 = vsel %vm254, %v3187, 0
      %3211 = vmatpush.bf16.msra.mxu0 0
      %3212 = vmatpush.bf16.msra.mxu0 0
      %3213 = vmatpush.bf16.msra.mxu0 0
      %3214 = vmatpush.bf16.msra.mxu0 0
      %3215 = vmatpush.bf16.msra.mxu0 0
      %3216 = vmatpush.bf16.msra.mxu0 0
      %3217 = vmatpush.bf16.msra.mxu0 0
      %3218 = vmatpush.bf16.msra.mxu0 %v3197
      %3219 = vmatmul.bf16.gmra.mxu0 %v3194
      %v3220 = vpop.f32.mrf.mxu0
      %v3221 = vadd.f32 0.0, %v3220
      %v3222 = vpop.f32.mrf.mxu0
      %3223 = vdwg.mxu0
      %3224 = vmatpush.bf16.msra.mxu0 0
      %3225 = vmatpush.bf16.msra.mxu0 0
      %3226 = vmatpush.bf16.msra.mxu0 0
      %3227 = vmatpush.bf16.msra.mxu0 0
      %3228 = vmatpush.bf16.msra.mxu0 0
      %3229 = vmatpush.bf16.msra.mxu0 0
      %3230 = vmatpush.bf16.msra.mxu0 0
      %3231 = vmatpush.bf16.msra.mxu0 %v3200
      %3232 = vmatmul.bf16.gmra.mxu0 %v3194
      %v3233 = vpop.f32.mrf.mxu0
      %v3234 = vadd.f32 0.0, %v3233
      %v3235 = vpop.f32.mrf.mxu0
      %3236 = vdwg.mxu0
      %3237 = vmatpush.bf16.msra.mxu0 0
      %3238 = vmatpush.bf16.msra.mxu0 0
      %3239 = vmatpush.bf16.msra.mxu0 0
      %3240 = vmatpush.bf16.msra.mxu0 0
      %3241 = vmatpush.bf16.msra.mxu0 0
      %3242 = vmatpush.bf16.msra.mxu0 0
      %3243 = vmatpush.bf16.msra.mxu0 0
      %3244 = vmatpush.bf16.msra.mxu0 %v3203
      %3245 = vmatmul.bf16.gmra.mxu0 %v3194
      %v3246 = vpop.f32.mrf.mxu0
      %v3247 = vadd.f32 0.0, %v3246
      %v3248 = vpop.f32.mrf.mxu0
      %3249 = vdwg.mxu0
      %3250 = vmatpush.bf16.msra.mxu0 0
      %3251 = vmatpush.bf16.msra.mxu0 0
      %3252 = vmatpush.bf16.msra.mxu0 0
      %3253 = vmatpush.bf16.msra.mxu0 0
      %3254 = vmatpush.bf16.msra.mxu0 0
      %3255 = vmatpush.bf16.msra.mxu0 0
      %3256 = vmatpush.bf16.msra.mxu0 0
      %3257 = vmatpush.bf16.msra.mxu0 %v3206
      %3258 = vmatmul.bf16.gmra.mxu0 %v3194
      %v3259 = vpop.f32.mrf.mxu0
      %v3260 = vadd.f32 0.0, %v3259
      %v3261 = vpop.f32.mrf.mxu0
      %3262 = vdwg.mxu0
      %3263 = vmatpush.bf16.msra.mxu0 0
      %3264 = vmatpush.bf16.msra.mxu0 0
      %3265 = vmatpush.bf16.msra.mxu0 0
      %3266 = vmatpush.bf16.msra.mxu0 0
      %3267 = vmatpush.bf16.msra.mxu0 0
      %3268 = vmatpush.bf16.msra.mxu0 0
      %3269 = vmatpush.bf16.msra.mxu0 0
      %3270 = vmatpush.bf16.msra.mxu0 %v3209
      %3271 = vmatmul.bf16.gmra.mxu0 %v3194
      %v3272 = vpop.f32.mrf.mxu0
      %v3273 = vadd.f32 0.0, %v3272
      %v3274 = vpop.f32.mrf.mxu0
      %3275 = vdwg.mxu0
      %v3276 = vadd.f32 %v3154, %v3221
      %v3277 = vadd.f32 %v3155, %v3234
      %v3278 = vadd.f32 %v3156, %v3247
      %v3279 = vadd.f32 %v3157, %v3260
      %v3280 = vadd.f32 %v3158, %v3273
      %v3281 = vld [vmem:[%s199 + $0x2] sm:$0xff]
      %v3282 = vld [vmem:[%s199 + $0xa] sm:$0x3]
      %s3283 = scalar_lea.vmem %s1, 100
      %v3284 = vld [vmem:[%s3283] sm:$0xf]
      %3286 = vst [vmem:[#allocation1] ss:$4 sm:$0xff] %v3281
      %s3288 = scalar_lea.vmem [#allocation1], 32
      %3289 = vst [vmem:[%s3288] ss:$4 sm:$0xff] %v3282
      %v3290 = vld.sshfl [vmem:[#allocation1] sm:$0xff pattern:$0x73625140]
      %v3292 = vld.sshfl [vmem:[#allocation1 + $0x8] sm:$0xff pattern:$0x73625140]
      %v3294 = vld.sshfl [vmem:[#allocation1 + $0x10] sm:$0xff pattern:$0x73625140]
      %v3296 = vld.sshfl [vmem:[#allocation1 + $0x18] sm:$0xff pattern:$0x73625140]
      %v3298 = vld.sshfl [vmem:[#allocation1 + $0x20] sm:$0xff pattern:$0x73625140]
      %3300 = vrot.lane.b32.xlu0 %v3290, 46
      %v3301 = vpop.permute.xlu0 %3300
      %3302 = vrot.lane.b32.xlu0 %v3292, 46
      %v3303 = vpop.permute.xlu0 %3302
      %3304 = vrot.lane.b32.xlu0 %v3294, 46
      %v3305 = vpop.permute.xlu0 %3304
      %3306 = vrot.lane.b32.xlu0 %v3296, 46
      %v3307 = vpop.permute.xlu0 %3306
      %3308 = vrot.lane.b32.xlu0 %v3298, 46
      %v3309 = vpop.permute.xlu0 %3308
      %vm3310 = vcmask 375808
      %v3311 = vsel %vm3310, %v3301, %v3303
      %v3312 = vsel %vm3310, %v3303, %v3305
      %v3313 = vsel %vm3310, %v3305, %v3307
      %v3314 = vsel %vm3310, %v3307, %v3309
      %v3316 = vsel %vm250, %v3284, 0
      %v3319 = vsel %vm254, %v3311, 0
      %v3322 = vsel %vm254, %v3312, 0
      %v3325 = vsel %vm254, %v3313, 0
      %v3328 = vsel %vm254, %v3314, 0
      %v3331 = vsel %vm254, %v3309, 0
      %3333 = vmatpush.bf16.msra.mxu0 0
      %3334 = vmatpush.bf16.msra.mxu0 0
      %3335 = vmatpush.bf16.msra.mxu0 0
      %3336 = vmatpush.bf16.msra.mxu0 0
      %3337 = vmatpush.bf16.msra.mxu0 0
      %3338 = vmatpush.bf16.msra.mxu0 0
      %3339 = vmatpush.bf16.msra.mxu0 0
      %3340 = vmatpush.bf16.msra.mxu0 %v3319
      %3341 = vmatmul.bf16.gmra.mxu0 %v3316
      %v3342 = vpop.f32.mrf.mxu0
      %v3343 = vadd.f32 0.0, %v3342
      %v3344 = vpop.f32.mrf.mxu0
      %3345 = vdwg.mxu0
      %3346 = vmatpush.bf16.msra.mxu0 0
      %3347 = vmatpush.bf16.msra.mxu0 0
      %3348 = vmatpush.bf16.msra.mxu0 0
      %3349 = vmatpush.bf16.msra.mxu0 0
      %3350 = vmatpush.bf16.msra.mxu0 0
      %3351 = vmatpush.bf16.msra.mxu0 0
      %3352 = vmatpush.bf16.msra.mxu0 0
      %3353 = vmatpush.bf16.msra.mxu0 %v3322
      %3354 = vmatmul.bf16.gmra.mxu0 %v3316
      %v3355 = vpop.f32.mrf.mxu0
      %v3356 = vadd.f32 0.0, %v3355
      %v3357 = vpop.f32.mrf.mxu0
      %3358 = vdwg.mxu0
      %3359 = vmatpush.bf16.msra.mxu0 0
      %3360 = vmatpush.bf16.msra.mxu0 0
      %3361 = vmatpush.bf16.msra.mxu0 0
      %3362 = vmatpush.bf16.msra.mxu0 0
      %3363 = vmatpush.bf16.msra.mxu0 0
      %3364 = vmatpush.bf16.msra.mxu0 0
      %3365 = vmatpush.bf16.msra.mxu0 0
      %3366 = vmatpush.bf16.msra.mxu0 %v3325
      %3367 = vmatmul.bf16.gmra.mxu0 %v3316
      %v3368 = vpop.f32.mrf.mxu0
      %v3369 = vadd.f32 0.0, %v3368
      %v3370 = vpop.f32.mrf.mxu0
      %3371 = vdwg.mxu0
      %3372 = vmatpush.bf16.msra.mxu0 0
      %3373 = vmatpush.bf16.msra.mxu0 0
      %3374 = vmatpush.bf16.msra.mxu0 0
      %3375 = vmatpush.bf16.msra.mxu0 0
      %3376 = vmatpush.bf16.msra.mxu0 0
      %3377 = vmatpush.bf16.msra.mxu0 0
      %3378 = vmatpush.bf16.msra.mxu0 0
      %3379 = vmatpush.bf16.msra.mxu0 %v3328
      %3380 = vmatmul.bf16.gmra.mxu0 %v3316
      %v3381 = vpop.f32.mrf.mxu0
      %v3382 = vadd.f32 0.0, %v3381
      %v3383 = vpop.f32.mrf.mxu0
      %3384 = vdwg.mxu0
      %3385 = vmatpush.bf16.msra.mxu0 0
      %3386 = vmatpush.bf16.msra.mxu0 0
      %3387 = vmatpush.bf16.msra.mxu0 0
      %3388 = vmatpush.bf16.msra.mxu0 0
      %3389 = vmatpush.bf16.msra.mxu0 0
      %3390 = vmatpush.bf16.msra.mxu0 0
      %3391 = vmatpush.bf16.msra.mxu0 0
      %3392 = vmatpush.bf16.msra.mxu0 %v3331
      %3393 = vmatmul.bf16.gmra.mxu0 %v3316
      %v3394 = vpop.f32.mrf.mxu0
      %v3395 = vadd.f32 0.0, %v3394
      %v3396 = vpop.f32.mrf.mxu0
      %3397 = vdwg.mxu0
      %v3398 = vadd.f32 %v3276, %v3343
      %v3399 = vadd.f32 %v3277, %v3356
      %v3400 = vadd.f32 %v3278, %v3369
      %v3401 = vadd.f32 %v3279, %v3382
      %v3402 = vadd.f32 %v3280, %v3395
      %v3403 = vld [vmem:[%s199 + $0x2] sm:$0xff]
      %v3404 = vld [vmem:[%s199 + $0xa] sm:$0x3]
      %s3405 = scalar_lea.vmem %s1, 104
      %v3406 = vld [vmem:[%s3405] sm:$0xf]
      %3408 = vst [vmem:[#allocation1] ss:$4 sm:$0xff] %v3403
      %s3410 = scalar_lea.vmem [#allocation1], 32
      %3411 = vst [vmem:[%s3410] ss:$4 sm:$0xff] %v3404
      %v3412 = vld.sshfl [vmem:[#allocation1] sm:$0xff pattern:$0x73625140]
      %v3414 = vld.sshfl [vmem:[#allocation1 + $0x8] sm:$0xff pattern:$0x73625140]
      %v3416 = vld.sshfl [vmem:[#allocation1 + $0x10] sm:$0xff pattern:$0x73625140]
      %v3418 = vld.sshfl [vmem:[#allocation1 + $0x18] sm:$0xff pattern:$0x73625140]
      %v3420 = vld.sshfl [vmem:[#allocation1 + $0x20] sm:$0xff pattern:$0x73625140]
      %3422 = vrot.lane.b32.xlu0 %v3412, 43
      %v3423 = vpop.permute.xlu0 %3422
      %3424 = vrot.lane.b32.xlu0 %v3414, 43
      %v3425 = vpop.permute.xlu0 %3424
      %3426 = vrot.lane.b32.xlu0 %v3416, 43
      %v3427 = vpop.permute.xlu0 %3426
      %3428 = vrot.lane.b32.xlu0 %v3418, 43
      %v3429 = vpop.permute.xlu0 %3428
      %3430 = vrot.lane.b32.xlu0 %v3420, 43
      %v3431 = vpop.permute.xlu0 %3430
      %vm3432 = vcmask 351232
      %v3433 = vsel %vm3432, %v3423, %v3425
      %v3434 = vsel %vm3432, %v3425, %v3427
      %v3435 = vsel %vm3432, %v3427, %v3429
      %v3436 = vsel %vm3432, %v3429, %v3431
      %v3438 = vsel %vm250, %v3406, 0
      %v3441 = vsel %vm254, %v3433, 0
      %v3444 = vsel %vm254, %v3434, 0
      %v3447 = vsel %vm254, %v3435, 0
      %v3450 = vsel %vm254, %v3436, 0
      %v3453 = vsel %vm254, %v3431, 0
      %3455 = vmatpush.bf16.msra.mxu0 0
      %3456 = vmatpush.bf16.msra.mxu0 0
      %3457 = vmatpush.bf16.msra.mxu0 0
      %3458 = vmatpush.bf16.msra.mxu0 0
      %3459 = vmatpush.bf16.msra.mxu0 0
      %3460 = vmatpush.bf16.msra.mxu0 0
      %3461 = vmatpush.bf16.msra.mxu0 0
      %3462 = vmatpush.bf16.msra.mxu0 %v3441
      %3463 = vmatmul.bf16.gmra.mxu0 %v3438
      %v3464 = vpop.f32.mrf.mxu0
      %v3465 = vadd.f32 0.0, %v3464
      %v3466 = vpop.f32.mrf.mxu0
      %3467 = vdwg.mxu0
      %3468 = vmatpush.bf16.msra.mxu0 0
      %3469 = vmatpush.bf16.msra.mxu0 0
      %3470 = vmatpush.bf16.msra.mxu0 0
      %3471 = vmatpush.bf16.msra.mxu0 0
      %3472 = vmatpush.bf16.msra.mxu0 0
      %3473 = vmatpush.bf16.msra.mxu0 0
      %3474 = vmatpush.bf16.msra.mxu0 0
      %3475 = vmatpush.bf16.msra.mxu0 %v3444
      %3476 = vmatmul.bf16.gmra.mxu0 %v3438
      %v3477 = vpop.f32.mrf.mxu0
      %v3478 = vadd.f32 0.0, %v3477
      %v3479 = vpop.f32.mrf.mxu0
      %3480 = vdwg.mxu0
      %3481 = vmatpush.bf16.msra.mxu0 0
      %3482 = vmatpush.bf16.msra.mxu0 0
      %3483 = vmatpush.bf16.msra.mxu0 0
      %3484 = vmatpush.bf16.msra.mxu0 0
      %3485 = vmatpush.bf16.msra.mxu0 0
      %3486 = vmatpush.bf16.msra.mxu0 0
      %3487 = vmatpush.bf16.msra.mxu0 0
      %3488 = vmatpush.bf16.msra.mxu0 %v3447
      %3489 = vmatmul.bf16.gmra.mxu0 %v3438
      %v3490 = vpop.f32.mrf.mxu0
      %v3491 = vadd.f32 0.0, %v3490
      %v3492 = vpop.f32.mrf.mxu0
      %3493 = vdwg.mxu0
      %3494 = vmatpush.bf16.msra.mxu0 0
      %3495 = vmatpush.bf16.msra.mxu0 0
      %3496 = vmatpush.bf16.msra.mxu0 0
      %3497 = vmatpush.bf16.msra.mxu0 0
      %3498 = vmatpush.bf16.msra.mxu0 0
      %3499 = vmatpush.bf16.msra.mxu0 0
      %3500 = vmatpush.bf16.msra.mxu0 0
      %3501 = vmatpush.bf16.msra.mxu0 %v3450
      %3502 = vmatmul.bf16.gmra.mxu0 %v3438
      %v3503 = vpop.f32.mrf.mxu0
      %v3504 = vadd.f32 0.0, %v3503
      %v3505 = vpop.f32.mrf.mxu0
      %3506 = vdwg.mxu0
      %3507 = vmatpush.bf16.msra.mxu0 0
      %3508 = vmatpush.bf16.msra.mxu0 0
      %3509 = vmatpush.bf16.msra.mxu0 0
      %3510 = vmatpush.bf16.msra.mxu0 0
      %3511 = vmatpush.bf16.msra.mxu0 0
      %3512 = vmatpush.bf16.msra.mxu0 0
      %3513 = vmatpush.bf16.msra.mxu0 0
      %3514 = vmatpush.bf16.msra.mxu0 %v3453
      %3515 = vmatmul.bf16.gmra.mxu0 %v3438
      %v3516 = vpop.f32.mrf.mxu0
      %v3517 = vadd.f32 0.0, %v3516
      %v3518 = vpop.f32.mrf.mxu0
      %3519 = vdwg.mxu0
      %v3520 = vadd.f32 %v3398, %v3465
      %v3521 = vadd.f32 %v3399, %v3478
      %v3522 = vadd.f32 %v3400, %v3491
      %v3523 = vadd.f32 %v3401, %v3504
      %v3524 = vadd.f32 %v3402, %v3517
      %v3525 = vld [vmem:[%s199 + $0x2] sm:$0xff]
      %v3526 = vld [vmem:[%s199 + $0xa] sm:$0x3]
      %s3527 = scalar_lea.vmem %s1, 108
      %v3528 = vld [vmem:[%s3527] sm:$0xf]
      %3530 = vst [vmem:[#allocation1] ss:$4 sm:$0xff] %v3525
      %s3532 = scalar_lea.vmem [#allocation1], 32
      %3533 = vst [vmem:[%s3532] ss:$4 sm:$0xff] %v3526
      %v3534 = vld.sshfl [vmem:[#allocation1] sm:$0xff pattern:$0x73625140]
      %v3536 = vld.sshfl [vmem:[#allocation1 + $0x8] sm:$0xff pattern:$0x73625140]
      %v3538 = vld.sshfl [vmem:[#allocation1 + $0x10] sm:$0xff pattern:$0x73625140]
      %v3540 = vld.sshfl [vmem:[#allocation1 + $0x18] sm:$0xff pattern:$0x73625140]
      %v3542 = vld.sshfl [vmem:[#allocation1 + $0x20] sm:$0xff pattern:$0x73625140]
      %3544 = vrot.lane.b32.xlu0 %v3534, 40
      %v3545 = vpop.permute.xlu0 %3544
      %3546 = vrot.lane.b32.xlu0 %v3536, 40
      %v3547 = vpop.permute.xlu0 %3546
      %3548 = vrot.lane.b32.xlu0 %v3538, 40
      %v3549 = vpop.permute.xlu0 %3548
      %3550 = vrot.lane.b32.xlu0 %v3540, 40
      %v3551 = vpop.permute.xlu0 %3550
      %3552 = vrot.lane.b32.xlu0 %v3542, 40
      %v3553 = vpop.permute.xlu0 %3552
      %vm3554 = vcmask 326656
      %v3555 = vsel %vm3554, %v3545, %v3547
      %v3556 = vsel %vm3554, %v3547, %v3549
      %v3557 = vsel %vm3554, %v3549, %v3551
      %v3558 = vsel %vm3554, %v3551, %v3553
      %v3560 = vsel %vm250, %v3528, 0
      %v3563 = vsel %vm254, %v3555, 0
      %v3566 = vsel %vm254, %v3556, 0
      %v3569 = vsel %vm254, %v3557, 0
      %v3572 = vsel %vm254, %v3558, 0
      %v3575 = vsel %vm254, %v3553, 0
      %3577 = vmatpush.bf16.msra.mxu0 0
      %3578 = vmatpush.bf16.msra.mxu0 0
      %3579 = vmatpush.bf16.msra.mxu0 0
      %3580 = vmatpush.bf16.msra.mxu0 0
      %3581 = vmatpush.bf16.msra.mxu0 0
      %3582 = vmatpush.bf16.msra.mxu0 0
      %3583 = vmatpush.bf16.msra.mxu0 0
      %3584 = vmatpush.bf16.msra.mxu0 %v3563
      %3585 = vmatmul.bf16.gmra.mxu0 %v3560
      %v3586 = vpop.f32.mrf.mxu0
      %v3587 = vadd.f32 0.0, %v3586
      %v3588 = vpop.f32.mrf.mxu0
      %3589 = vdwg.mxu0
      %3590 = vmatpush.bf16.msra.mxu0 0
      %3591 = vmatpush.bf16.msra.mxu0 0
      %3592 = vmatpush.bf16.msra.mxu0 0
      %3593 = vmatpush.bf16.msra.mxu0 0
      %3594 = vmatpush.bf16.msra.mxu0 0
      %3595 = vmatpush.bf16.msra.mxu0 0
      %3596 = vmatpush.bf16.msra.mxu0 0
      %3597 = vmatpush.bf16.msra.mxu0 %v3566
      %3598 = vmatmul.bf16.gmra.mxu0 %v3560
      %v3599 = vpop.f32.mrf.mxu0
      %v3600 = vadd.f32 0.0, %v3599
      %v3601 = vpop.f32.mrf.mxu0
      %3602 = vdwg.mxu0
      %3603 = vmatpush.bf16.msra.mxu0 0
      %3604 = vmatpush.bf16.msra.mxu0 0
      %3605 = vmatpush.bf16.msra.mxu0 0
      %3606 = vmatpush.bf16.msra.mxu0 0
      %3607 = vmatpush.bf16.msra.mxu0 0
      %3608 = vmatpush.bf16.msra.mxu0 0
      %3609 = vmatpush.bf16.msra.mxu0 0
      %3610 = vmatpush.bf16.msra.mxu0 %v3569
      %3611 = vmatmul.bf16.gmra.mxu0 %v3560
      %v3612 = vpop.f32.mrf.mxu0
      %v3613 = vadd.f32 0.0, %v3612
      %v3614 = vpop.f32.mrf.mxu0
      %3615 = vdwg.mxu0
      %3616 = vmatpush.bf16.msra.mxu0 0
      %3617 = vmatpush.bf16.msra.mxu0 0
      %3618 = vmatpush.bf16.msra.mxu0 0
      %3619 = vmatpush.bf16.msra.mxu0 0
      %3620 = vmatpush.bf16.msra.mxu0 0
      %3621 = vmatpush.bf16.msra.mxu0 0
      %3622 = vmatpush.bf16.msra.mxu0 0
      %3623 = vmatpush.bf16.msra.mxu0 %v3572
      %3624 = vmatmul.bf16.gmra.mxu0 %v3560
      %v3625 = vpop.f32.mrf.mxu0
      %v3626 = vadd.f32 0.0, %v3625
      %v3627 = vpop.f32.mrf.mxu0
      %3628 = vdwg.mxu0
      %3629 = vmatpush.bf16.msra.mxu0 0
      %3630 = vmatpush.bf16.msra.mxu0 0
      %3631 = vmatpush.bf16.msra.mxu0 0
      %3632 = vmatpush.bf16.msra.mxu0 0
      %3633 = vmatpush.bf16.msra.mxu0 0
      %3634 = vmatpush.bf16.msra.mxu0 0
      %3635 = vmatpush.bf16.msra.mxu0 0
      %3636 = vmatpush.bf16.msra.mxu0 %v3575
      %3637 = vmatmul.bf16.gmra.mxu0 %v3560
      %v3638 = vpop.f32.mrf.mxu0
      %v3639 = vadd.f32 0.0, %v3638
      %v3640 = vpop.f32.mrf.mxu0
      %3641 = vdwg.mxu0
      %v3642 = vadd.f32 %v3520, %v3587
      %v3643 = vadd.f32 %v3521, %v3600
      %v3644 = vadd.f32 %v3522, %v3613
      %v3645 = vadd.f32 %v3523, %v3626
      %v3646 = vadd.f32 %v3524, %v3639
      %v3647 = vld [vmem:[%s199 + $0x2] sm:$0xff]
      %v3648 = vld [vmem:[%s199 + $0xa] sm:$0x3]
      %s3649 = scalar_lea.vmem %s1, 112
      %v3650 = vld [vmem:[%s3649] sm:$0xf]
      %3652 = vst [vmem:[#allocation1] ss:$4 sm:$0xff] %v3647
      %s3654 = scalar_lea.vmem [#allocation1], 32
      %3655 = vst [vmem:[%s3654] ss:$4 sm:$0xff] %v3648
      %v3656 = vld.sshfl [vmem:[#allocation1] sm:$0xff pattern:$0x73625140]
      %v3658 = vld.sshfl [vmem:[#allocation1 + $0x8] sm:$0xff pattern:$0x73625140]
      %v3660 = vld.sshfl [vmem:[#allocation1 + $0x10] sm:$0xff pattern:$0x73625140]
      %v3662 = vld.sshfl [vmem:[#allocation1 + $0x18] sm:$0xff pattern:$0x73625140]
      %v3664 = vld.sshfl [vmem:[#allocation1 + $0x20] sm:$0xff pattern:$0x73625140]
      %3666 = vrot.lane.b32.xlu0 %v3656, 37
      %v3667 = vpop.permute.xlu0 %3666
      %3668 = vrot.lane.b32.xlu0 %v3658, 37
      %v3669 = vpop.permute.xlu0 %3668
      %3670 = vrot.lane.b32.xlu0 %v3660, 37
      %v3671 = vpop.permute.xlu0 %3670
      %3672 = vrot.lane.b32.xlu0 %v3662, 37
      %v3673 = vpop.permute.xlu0 %3672
      %3674 = vrot.lane.b32.xlu0 %v3664, 37
      %v3675 = vpop.permute.xlu0 %3674
      %vm3676 = vcmask 302080
      %v3677 = vsel %vm3676, %v3667, %v3669
      %v3678 = vsel %vm3676, %v3669, %v3671
      %v3679 = vsel %vm3676, %v3671, %v3673
      %v3680 = vsel %vm3676, %v3673, %v3675
      %v3682 = vsel %vm250, %v3650, 0
      %v3685 = vsel %vm254, %v3677, 0
      %v3688 = vsel %vm254, %v3678, 0
      %v3691 = vsel %vm254, %v3679, 0
      %v3694 = vsel %vm254, %v3680, 0
      %v3697 = vsel %vm254, %v3675, 0
      %3699 = vmatpush.bf16.msra.mxu0 0
      %3700 = vmatpush.bf16.msra.mxu0 0
      %3701 = vmatpush.bf16.msra.mxu0 0
      %3702 = vmatpush.bf16.msra.mxu0 0
      %3703 = vmatpush.bf16.msra.mxu0 0
      %3704 = vmatpush.bf16.msra.mxu0 0
      %3705 = vmatpush.bf16.msra.mxu0 0
      %3706 = vmatpush.bf16.msra.mxu0 %v3685
      %3707 = vmatmul.bf16.gmra.mxu0 %v3682
      %v3708 = vpop.f32.mrf.mxu0
      %v3709 = vadd.f32 0.0, %v3708
      %v3710 = vpop.f32.mrf.mxu0
      %3711 = vdwg.mxu0
      %3712 = vmatpush.bf16.msra.mxu0 0
      %3713 = vmatpush.bf16.msra.mxu0 0
      %3714 = vmatpush.bf16.msra.mxu0 0
      %3715 = vmatpush.bf16.msra.mxu0 0
      %3716 = vmatpush.bf16.msra.mxu0 0
      %3717 = vmatpush.bf16.msra.mxu0 0
      %3718 = vmatpush.bf16.msra.mxu0 0
      %3719 = vmatpush.bf16.msra.mxu0 %v3688
      %3720 = vmatmul.bf16.gmra.mxu0 %v3682
      %v3721 = vpop.f32.mrf.mxu0
      %v3722 = vadd.f32 0.0, %v3721
      %v3723 = vpop.f32.mrf.mxu0
      %3724 = vdwg.mxu0
      %3725 = vmatpush.bf16.msra.mxu0 0
      %3726 = vmatpush.bf16.msra.mxu0 0
      %3727 = vmatpush.bf16.msra.mxu0 0
      %3728 = vmatpush.bf16.msra.mxu0 0
      %3729 = vmatpush.bf16.msra.mxu0 0
      %3730 = vmatpush.bf16.msra.mxu0 0
      %3731 = vmatpush.bf16.msra.mxu0 0
      %3732 = vmatpush.bf16.msra.mxu0 %v3691
      %3733 = vmatmul.bf16.gmra.mxu0 %v3682
      %v3734 = vpop.f32.mrf.mxu0
      %v3735 = vadd.f32 0.0, %v3734
      %v3736 = vpop.f32.mrf.mxu0
      %3737 = vdwg.mxu0
      %3738 = vmatpush.bf16.msra.mxu0 0
      %3739 = vmatpush.bf16.msra.mxu0 0
      %3740 = vmatpush.bf16.msra.mxu0 0
      %3741 = vmatpush.bf16.msra.mxu0 0
      %3742 = vmatpush.bf16.msra.mxu0 0
      %3743 = vmatpush.bf16.msra.mxu0 0
      %3744 = vmatpush.bf16.msra.mxu0 0
      %3745 = vmatpush.bf16.msra.mxu0 %v3694
      %3746 = vmatmul.bf16.gmra.mxu0 %v3682
      %v3747 = vpop.f32.mrf.mxu0
      %v3748 = vadd.f32 0.0, %v3747
      %v3749 = vpop.f32.mrf.mxu0
      %3750 = vdwg.mxu0
      %3751 = vmatpush.bf16.msra.mxu0 0
      %3752 = vmatpush.bf16.msra.mxu0 0
      %3753 = vmatpush.bf16.msra.mxu0 0
      %3754 = vmatpush.bf16.msra.mxu0 0
      %3755 = vmatpush.bf16.msra.mxu0 0
      %3756 = vmatpush.bf16.msra.mxu0 0
      %3757 = vmatpush.bf16.msra.mxu0 0
      %3758 = vmatpush.bf16.msra.mxu0 %v3697
      %3759 = vmatmul.bf16.gmra.mxu0 %v3682
      %v3760 = vpop.f32.mrf.mxu0
      %v3761 = vadd.f32 0.0, %v3760
      %v3762 = vpop.f32.mrf.mxu0
      %3763 = vdwg.mxu0
      %v3764 = vadd.f32 %v3642, %v3709
      %v3765 = vadd.f32 %v3643, %v3722
      %v3766 = vadd.f32 %v3644, %v3735
      %v3767 = vadd.f32 %v3645, %v3748
      %v3768 = vadd.f32 %v3646, %v3761
      %v3769 = vld [vmem:[%s199 + $0x2] sm:$0xff]
      %v3770 = vld [vmem:[%s199 + $0xa] sm:$0x3]
      %s3771 = scalar_lea.vmem %s1, 116
      %v3772 = vld [vmem:[%s3771] sm:$0xf]
      %3774 = vst [vmem:[#allocation1] ss:$4 sm:$0xff] %v3769
      %s3776 = scalar_lea.vmem [#allocation1], 32
      %3777 = vst [vmem:[%s3776] ss:$4 sm:$0xff] %v3770
      %v3778 = vld.sshfl [vmem:[#allocation1] sm:$0xff pattern:$0x73625140]
      %v3780 = vld.sshfl [vmem:[#allocation1 + $0x8] sm:$0xff pattern:$0x73625140]
      %v3782 = vld.sshfl [vmem:[#allocation1 + $0x10] sm:$0xff pattern:$0x73625140]
      %v3784 = vld.sshfl [vmem:[#allocation1 + $0x18] sm:$0xff pattern:$0x73625140]
      %v3786 = vld.sshfl [vmem:[#allocation1 + $0x20] sm:$0xff pattern:$0x73625140]
      %3788 = vrot.lane.b32.xlu0 %v3778, 34
      %v3789 = vpop.permute.xlu0 %3788
      %3790 = vrot.lane.b32.xlu0 %v3780, 34
      %v3791 = vpop.permute.xlu0 %3790
      %3792 = vrot.lane.b32.xlu0 %v3782, 34
      %v3793 = vpop.permute.xlu0 %3792
      %3794 = vrot.lane.b32.xlu0 %v3784, 34
      %v3795 = vpop.permute.xlu0 %3794
      %3796 = vrot.lane.b32.xlu0 %v3786, 34
      %v3797 = vpop.permute.xlu0 %3796
      %vm3798 = vcmask 277504
      %v3799 = vsel %vm3798, %v3789, %v3791
      %v3800 = vsel %vm3798, %v3791, %v3793
      %v3801 = vsel %vm3798, %v3793, %v3795
      %v3802 = vsel %vm3798, %v3795, %v3797
      %v3804 = vsel %vm250, %v3772, 0
      %v3807 = vsel %vm254, %v3799, 0
      %v3810 = vsel %vm254, %v3800, 0
      %v3813 = vsel %vm254, %v3801, 0
      %v3816 = vsel %vm254, %v3802, 0
      %v3819 = vsel %vm254, %v3797, 0
      %3821 = vmatpush.bf16.msra.mxu0 0
      %3822 = vmatpush.bf16.msra.mxu0 0
      %3823 = vmatpush.bf16.msra.mxu0 0
      %3824 = vmatpush.bf16.msra.mxu0 0
      %3825 = vmatpush.bf16.msra.mxu0 0
      %3826 = vmatpush.bf16.msra.mxu0 0
      %3827 = vmatpush.bf16.msra.mxu0 0
      %3828 = vmatpush.bf16.msra.mxu0 %v3807
      %3829 = vmatmul.bf16.gmra.mxu0 %v3804
      %v3830 = vpop.f32.mrf.mxu0
      %v3831 = vadd.f32 0.0, %v3830
      %v3832 = vpop.f32.mrf.mxu0
      %3833 = vdwg.mxu0
      %3834 = vmatpush.bf16.msra.mxu0 0
      %3835 = vmatpush.bf16.msra.mxu0 0
      %3836 = vmatpush.bf16.msra.mxu0 0
      %3837 = vmatpush.bf16.msra.mxu0 0
      %3838 = vmatpush.bf16.msra.mxu0 0
      %3839 = vmatpush.bf16.msra.mxu0 0
      %3840 = vmatpush.bf16.msra.mxu0 0
      %3841 = vmatpush.bf16.msra.mxu0 %v3810
      %3842 = vmatmul.bf16.gmra.mxu0 %v3804
      %v3843 = vpop.f32.mrf.mxu0
      %v3844 = vadd.f32 0.0, %v3843
      %v3845 = vpop.f32.mrf.mxu0
      %3846 = vdwg.mxu0
      %3847 = vmatpush.bf16.msra.mxu0 0
      %3848 = vmatpush.bf16.msra.mxu0 0
      %3849 = vmatpush.bf16.msra.mxu0 0
      %3850 = vmatpush.bf16.msra.mxu0 0
      %3851 = vmatpush.bf16.msra.mxu0 0
      %3852 = vmatpush.bf16.msra.mxu0 0
      %3853 = vmatpush.bf16.msra.mxu0 0
      %3854 = vmatpush.bf16.msra.mxu0 %v3813
      %3855 = vmatmul.bf16.gmra.mxu0 %v3804
      %v3856 = vpop.f32.mrf.mxu0
      %v3857 = vadd.f32 0.0, %v3856
      %v3858 = vpop.f32.mrf.mxu0
      %3859 = vdwg.mxu0
      %3860 = vmatpush.bf16.msra.mxu0 0
      %3861 = vmatpush.bf16.msra.mxu0 0
      %3862 = vmatpush.bf16.msra.mxu0 0
      %3863 = vmatpush.bf16.msra.mxu0 0
      %3864 = vmatpush.bf16.msra.mxu0 0
      %3865 = vmatpush.bf16.msra.mxu0 0
      %3866 = vmatpush.bf16.msra.mxu0 0
      %3867 = vmatpush.bf16.msra.mxu0 %v3816
      %3868 = vmatmul.bf16.gmra.mxu0 %v3804
      %v3869 = vpop.f32.mrf.mxu0
      %v3870 = vadd.f32 0.0, %v3869
      %v3871 = vpop.f32.mrf.mxu0
      %3872 = vdwg.mxu0
      %3873 = vmatpush.bf16.msra.mxu0 0
      %3874 = vmatpush.bf16.msra.mxu0 0
      %3875 = vmatpush.bf16.msra.mxu0 0
      %3876 = vmatpush.bf16.msra.mxu0 0
      %3877 = vmatpush.bf16.msra.mxu0 0
      %3878 = vmatpush.bf16.msra.mxu0 0
      %3879 = vmatpush.bf16.msra.mxu0 0
      %3880 = vmatpush.bf16.msra.mxu0 %v3819
      %3881 = vmatmul.bf16.gmra.mxu0 %v3804
      %v3882 = vpop.f32.mrf.mxu0
      %v3883 = vadd.f32 0.0, %v3882
      %v3884 = vpop.f32.mrf.mxu0
      %3885 = vdwg.mxu0
      %v3886 = vadd.f32 %v3764, %v3831
      %v3887 = vadd.f32 %v3765, %v3844
      %v3888 = vadd.f32 %v3766, %v3857
      %v3889 = vadd.f32 %v3767, %v3870
      %v3890 = vadd.f32 %v3768, %v3883
      %v3891 = vld [vmem:[%s199 + $0x4] sm:$0xff]
      %v3892 = vld [vmem:[%s199 + $0xc] sm:$0x3]
      %s3893 = scalar_lea.vmem %s1, 120
      %v3894 = vld [vmem:[%s3893] sm:$0xf]
      %3896 = vst [vmem:[#allocation1] ss:$4 sm:$0xff] %v3891
      %s3898 = scalar_lea.vmem [#allocation1], 32
      %3899 = vst [vmem:[%s3898] ss:$4 sm:$0xff] %v3892
      %v3900 = vld.sshfl [vmem:[#allocation1] sm:$0xff pattern:$0x73625140]
      %v3902 = vld.sshfl [vmem:[#allocation1 + $0x8] sm:$0xff pattern:$0x73625140]
      %v3904 = vld.sshfl [vmem:[#allocation1 + $0x10] sm:$0xff pattern:$0x73625140]
      %v3906 = vld.sshfl [vmem:[#allocation1 + $0x18] sm:$0xff pattern:$0x73625140]
      %v3908 = vld.sshfl [vmem:[#allocation1 + $0x20] sm:$0xff pattern:$0x73625140]
      %3910 = vrot.lane.b32.xlu0 %v3900, 78
      %v3911 = vpop.permute.xlu0 %3910
      %3912 = vrot.lane.b32.xlu0 %v3902, 78
      %v3913 = vpop.permute.xlu0 %3912
      %3914 = vrot.lane.b32.xlu0 %v3904, 78
      %v3915 = vpop.permute.xlu0 %3914
      %3916 = vrot.lane.b32.xlu0 %v3906, 78
      %v3917 = vpop.permute.xlu0 %3916
      %3918 = vrot.lane.b32.xlu0 %v3908, 78
      %v3919 = vpop.permute.xlu0 %3918
      %vm3920 = vcmask 637952
      %v3921 = vsel %vm3920, %v3911, %v3913
      %v3922 = vsel %vm3920, %v3913, %v3915
      %v3923 = vsel %vm3920, %v3915, %v3917
      %v3924 = vsel %vm3920, %v3917, %v3919
      %v3926 = vsel %vm250, %v3894, 0
      %v3929 = vsel %vm254, %v3921, 0
      %v3932 = vsel %vm254, %v3922, 0
      %v3935 = vsel %vm254, %v3923, 0
      %v3938 = vsel %vm254, %v3924, 0
      %v3941 = vsel %vm254, %v3919, 0
      %3943 = vmatpush.bf16.msra.mxu0 0
      %3944 = vmatpush.bf16.msra.mxu0 0
      %3945 = vmatpush.bf16.msra.mxu0 0
      %3946 = vmatpush.bf16.msra.mxu0 0
      %3947 = vmatpush.bf16.msra.mxu0 0
      %3948 = vmatpush.bf16.msra.mxu0 0
      %3949 = vmatpush.bf16.msra.mxu0 0
      %3950 = vmatpush.bf16.msra.mxu0 %v3929
      %3951 = vmatmul.bf16.gmra.mxu0 %v3926
      %v3952 = vpop.f32.mrf.mxu0
      %v3953 = vadd.f32 0.0, %v3952
      %v3954 = vpop.f32.mrf.mxu0
      %3955 = vdwg.mxu0
      %3956 = vmatpush.bf16.msra.mxu0 0
      %3957 = vmatpush.bf16.msra.mxu0 0
      %3958 = vmatpush.bf16.msra.mxu0 0
      %3959 = vmatpush.bf16.msra.mxu0 0
      %3960 = vmatpush.bf16.msra.mxu0 0
      %3961 = vmatpush.bf16.msra.mxu0 0
      %3962 = vmatpush.bf16.msra.mxu0 0
      %3963 = vmatpush.bf16.msra.mxu0 %v3932
      %3964 = vmatmul.bf16.gmra.mxu0 %v3926
      %v3965 = vpop.f32.mrf.mxu0
      %v3966 = vadd.f32 0.0, %v3965
      %v3967 = vpop.f32.mrf.mxu0
      %3968 = vdwg.mxu0
      %3969 = vmatpush.bf16.msra.mxu0 0
      %3970 = vmatpush.bf16.msra.mxu0 0
      %3971 = vmatpush.bf16.msra.mxu0 0
      %3972 = vmatpush.bf16.msra.mxu0 0
      %3973 = vmatpush.bf16.msra.mxu0 0
      %3974 = vmatpush.bf16.msra.mxu0 0
      %3975 = vmatpush.bf16.msra.mxu0 0
      %3976 = vmatpush.bf16.msra.mxu0 %v3935
      %3977 = vmatmul.bf16.gmra.mxu0 %v3926
      %v3978 = vpop.f32.mrf.mxu0
      %v3979 = vadd.f32 0.0, %v3978
      %v3980 = vpop.f32.mrf.mxu0
      %3981 = vdwg.mxu0
      %3982 = vmatpush.bf16.msra.mxu0 0
      %3983 = vmatpush.bf16.msra.mxu0 0
      %3984 = vmatpush.bf16.msra.mxu0 0
      %3985 = vmatpush.bf16.msra.mxu0 0
      %3986 = vmatpush.bf16.msra.mxu0 0
      %3987 = vmatpush.bf16.msra.mxu0 0
      %3988 = vmatpush.bf16.msra.mxu0 0
      %3989 = vmatpush.bf16.msra.mxu0 %v3938
      %3990 = vmatmul.bf16.gmra.mxu0 %v3926
      %v3991 = vpop.f32.mrf.mxu0
      %v3992 = vadd.f32 0.0, %v3991
      %v3993 = vpop.f32.mrf.mxu0
      %3994 = vdwg.mxu0
      %3995 = vmatpush.bf16.msra.mxu0 0
      %3996 = vmatpush.bf16.msra.mxu0 0
      %3997 = vmatpush.bf16.msra.mxu0 0
      %3998 = vmatpush.bf16.msra.mxu0 0
      %3999 = vmatpush.bf16.msra.mxu0 0
      %4000 = vmatpush.bf16.msra.mxu0 0
      %4001 = vmatpush.bf16.msra.mxu0 0
      %4002 = vmatpush.bf16.msra.mxu0 %v3941
      %4003 = vmatmul.bf16.gmra.mxu0 %v3926
      %v4004 = vpop.f32.mrf.mxu0
      %v4005 = vadd.f32 0.0, %v4004
      %v4006 = vpop.f32.mrf.mxu0
      %4007 = vdwg.mxu0
      %v4008 = vadd.f32 %v3886, %v3953
      %v4009 = vadd.f32 %v3887, %v3966
      %v4010 = vadd.f32 %v3888, %v3979
      %v4011 = vadd.f32 %v3889, %v3992
      %v4012 = vadd.f32 %v3890, %v4005
      %v4013 = vld [vmem:[%s199 + $0x4] sm:$0xff]
      %v4014 = vld [vmem:[%s199 + $0xc] sm:$0x3]
      %s4015 = scalar_lea.vmem %s1, 124
      %v4016 = vld [vmem:[%s4015] sm:$0xf]
      %4018 = vst [vmem:[#allocation1] ss:$4 sm:$0xff] %v4013
      %s4020 = scalar_lea.vmem [#allocation1], 32
      %4021 = vst [vmem:[%s4020] ss:$4 sm:$0xff] %v4014
      %v4022 = vld.sshfl [vmem:[#allocation1] sm:$0xff pattern:$0x73625140]
      %v4024 = vld.sshfl [vmem:[#allocation1 + $0x8] sm:$0xff pattern:$0x73625140]
      %v4026 = vld.sshfl [vmem:[#allocation1 + $0x10] sm:$0xff pattern:$0x73625140]
      %v4028 = vld.sshfl [vmem:[#allocation1 + $0x18] sm:$0xff pattern:$0x73625140]
      %v4030 = vld.sshfl [vmem:[#allocation1 + $0x20] sm:$0xff pattern:$0x73625140]
      %4032 = vrot.lane.b32.xlu0 %v4022, 75
      %v4033 = vpop.permute.xlu0 %4032
      %4034 = vrot.lane.b32.xlu0 %v4024, 75
      %v4035 = vpop.permute.xlu0 %4034
      %4036 = vrot.lane.b32.xlu0 %v4026, 75
      %v4037 = vpop.permute.xlu0 %4036
      %4038 = vrot.lane.b32.xlu0 %v4028, 75
      %v4039 = vpop.permute.xlu0 %4038
      %4040 = vrot.lane.b32.xlu0 %v4030, 75
      %v4041 = vpop.permute.xlu0 %4040
      %vm4042 = vcmask 613376
      %v4043 = vsel %vm4042, %v4033, %v4035
      %v4044 = vsel %vm4042, %v4035, %v4037
      %v4045 = vsel %vm4042, %v4037, %v4039
      %v4046 = vsel %vm4042, %v4039, %v4041
      %v4048 = vsel %vm250, %v4016, 0
      %v4051 = vsel %vm254, %v4043, 0
      %v4054 = vsel %vm254, %v4044, 0
      %v4057 = vsel %vm254, %v4045, 0
      %v4060 = vsel %vm254, %v4046, 0
      %v4063 = vsel %vm254, %v4041, 0
      %4065 = vmatpush.bf16.msra.mxu0 0
      %4066 = vmatpush.bf16.msra.mxu0 0
      %4067 = vmatpush.bf16.msra.mxu0 0
      %4068 = vmatpush.bf16.msra.mxu0 0
      %4069 = vmatpush.bf16.msra.mxu0 0
      %4070 = vmatpush.bf16.msra.mxu0 0
      %4071 = vmatpush.bf16.msra.mxu0 0
      %4072 = vmatpush.bf16.msra.mxu0 %v4051
      %4073 = vmatmul.bf16.gmra.mxu0 %v4048
      %v4074 = vpop.f32.mrf.mxu0
      %v4075 = vadd.f32 0.0, %v4074
      %v4076 = vpop.f32.mrf.mxu0
      %4077 = vdwg.mxu0
      %4078 = vmatpush.bf16.msra.mxu0 0
      %4079 = vmatpush.bf16.msra.mxu0 0
      %4080 = vmatpush.bf16.msra.mxu0 0
      %4081 = vmatpush.bf16.msra.mxu0 0
      %4082 = vmatpush.bf16.msra.mxu0 0
      %4083 = vmatpush.bf16.msra.mxu0 0
      %4084 = vmatpush.bf16.msra.mxu0 0
      %4085 = vmatpush.bf16.msra.mxu0 %v4054
      %4086 = vmatmul.bf16.gmra.mxu0 %v4048
      %v4087 = vpop.f32.mrf.mxu0
      %v4088 = vadd.f32 0.0, %v4087
      %v4089 = vpop.f32.mrf.mxu0
      %4090 = vdwg.mxu0
      %4091 = vmatpush.bf16.msra.mxu0 0
      %4092 = vmatpush.bf16.msra.mxu0 0
      %4093 = vmatpush.bf16.msra.mxu0 0
      %4094 = vmatpush.bf16.msra.mxu0 0
      %4095 = vmatpush.bf16.msra.mxu0 0
      %4096 = vmatpush.bf16.msra.mxu0 0
      %4097 = vmatpush.bf16.msra.mxu0 0
      %4098 = vmatpush.bf16.msra.mxu0 %v4057
      %4099 = vmatmul.bf16.gmra.mxu0 %v4048
      %v4100 = vpop.f32.mrf.mxu0
      %v4101 = vadd.f32 0.0, %v4100
      %v4102 = vpop.f32.mrf.mxu0
      %4103 = vdwg.mxu0
      %4104 = vmatpush.bf16.msra.mxu0 0
      %4105 = vmatpush.bf16.msra.mxu0 0
      %4106 = vmatpush.bf16.msra.mxu0 0
      %4107 = vmatpush.bf16.msra.mxu0 0
      %4108 = vmatpush.bf16.msra.mxu0 0
      %4109 = vmatpush.bf16.msra.mxu0 0
      %4110 = vmatpush.bf16.msra.mxu0 0
      %4111 = vmatpush.bf16.msra.mxu0 %v4060
      %4112 = vmatmul.bf16.gmra.mxu0 %v4048
      %v4113 = vpop.f32.mrf.mxu0
      %v4114 = vadd.f32 0.0, %v4113
      %v4115 = vpop.f32.mrf.mxu0
      %4116 = vdwg.mxu0
      %4117 = vmatpush.bf16.msra.mxu0 0
      %4118 = vmatpush.bf16.msra.mxu0 0
      %4119 = vmatpush.bf16.msra.mxu0 0
      %4120 = vmatpush.bf16.msra.mxu0 0
      %4121 = vmatpush.bf16.msra.mxu0 0
      %4122 = vmatpush.bf16.msra.mxu0 0
      %4123 = vmatpush.bf16.msra.mxu0 0
      %4124 = vmatpush.bf16.msra.mxu0 %v4063
      %4125 = vmatmul.bf16.gmra.mxu0 %v4048
      %v4126 = vpop.f32.mrf.mxu0
      %v4127 = vadd.f32 0.0, %v4126
      %v4128 = vpop.f32.mrf.mxu0
      %4129 = vdwg.mxu0
      %v4130 = vadd.f32 %v4008, %v4075
      %v4131 = vadd.f32 %v4009, %v4088
      %v4132 = vadd.f32 %v4010, %v4101
      %v4133 = vadd.f32 %v4011, %v4114
      %v4134 = vadd.f32 %v4012, %v4127
      %v4135 = vld [vmem:[%s199 + $0x4] sm:$0xff]
      %v4136 = vld [vmem:[%s199 + $0xc] sm:$0x3]
      %s4137 = scalar_lea.vmem %s1, 128
      %v4138 = vld [vmem:[%s4137] sm:$0xf]
      %4140 = vst [vmem:[#allocation1] ss:$4 sm:$0xff] %v4135
      %s4142 = scalar_lea.vmem [#allocation1], 32
      %4143 = vst [vmem:[%s4142] ss:$4 sm:$0xff] %v4136
      %v4144 = vld.sshfl [vmem:[#allocation1] sm:$0xff pattern:$0x73625140]
      %v4146 = vld.sshfl [vmem:[#allocation1 + $0x8] sm:$0xff pattern:$0x73625140]
      %v4148 = vld.sshfl [vmem:[#allocation1 + $0x10] sm:$0xff pattern:$0x73625140]
      %v4150 = vld.sshfl [vmem:[#allocation1 + $0x18] sm:$0xff pattern:$0x73625140]
      %v4152 = vld.sshfl [vmem:[#allocation1 + $0x20] sm:$0xff pattern:$0x73625140]
      %4154 = vrot.lane.b32.xlu0 %v4144, 72
      %v4155 = vpop.permute.xlu0 %4154
      %4156 = vrot.lane.b32.xlu0 %v4146, 72
      %v4157 = vpop.permute.xlu0 %4156
      %4158 = vrot.lane.b32.xlu0 %v4148, 72
      %v4159 = vpop.permute.xlu0 %4158
      %4160 = vrot.lane.b32.xlu0 %v4150, 72
      %v4161 = vpop.permute.xlu0 %4160
      %4162 = vrot.lane.b32.xlu0 %v4152, 72
      %v4163 = vpop.permute.xlu0 %4162
      %vm4164 = vcmask 588800
      %v4165 = vsel %vm4164, %v4155, %v4157
      %v4166 = vsel %vm4164, %v4157, %v4159
      %v4167 = vsel %vm4164, %v4159, %v4161
      %v4168 = vsel %vm4164, %v4161, %v4163
      %v4170 = vsel %vm250, %v4138, 0
      %v4173 = vsel %vm254, %v4165, 0
      %v4176 = vsel %vm254, %v4166, 0
      %v4179 = vsel %vm254, %v4167, 0
      %v4182 = vsel %vm254, %v4168, 0
      %v4185 = vsel %vm254, %v4163, 0
      %4187 = vmatpush.bf16.msra.mxu0 0
      %4188 = vmatpush.bf16.msra.mxu0 0
      %4189 = vmatpush.bf16.msra.mxu0 0
      %4190 = vmatpush.bf16.msra.mxu0 0
      %4191 = vmatpush.bf16.msra.mxu0 0
      %4192 = vmatpush.bf16.msra.mxu0 0
      %4193 = vmatpush.bf16.msra.mxu0 0
      %4194 = vmatpush.bf16.msra.mxu0 %v4173
      %4195 = vmatmul.bf16.gmra.mxu0 %v4170
      %v4196 = vpop.f32.mrf.mxu0
      %v4197 = vadd.f32 0.0, %v4196
      %v4198 = vpop.f32.mrf.mxu0
      %4199 = vdwg.mxu0
      %4200 = vmatpush.bf16.msra.mxu0 0
      %4201 = vmatpush.bf16.msra.mxu0 0
      %4202 = vmatpush.bf16.msra.mxu0 0
      %4203 = vmatpush.bf16.msra.mxu0 0
      %4204 = vmatpush.bf16.msra.mxu0 0
      %4205 = vmatpush.bf16.msra.mxu0 0
      %4206 = vmatpush.bf16.msra.mxu0 0
      %4207 = vmatpush.bf16.msra.mxu0 %v4176
      %4208 = vmatmul.bf16.gmra.mxu0 %v4170
      %v4209 = vpop.f32.mrf.mxu0
      %v4210 = vadd.f32 0.0, %v4209
      %v4211 = vpop.f32.mrf.mxu0
      %4212 = vdwg.mxu0
      %4213 = vmatpush.bf16.msra.mxu0 0
      %4214 = vmatpush.bf16.msra.mxu0 0
      %4215 = vmatpush.bf16.msra.mxu0 0
      %4216 = vmatpush.bf16.msra.mxu0 0
      %4217 = vmatpush.bf16.msra.mxu0 0
      %4218 = vmatpush.bf16.msra.mxu0 0
      %4219 = vmatpush.bf16.msra.mxu0 0
      %4220 = vmatpush.bf16.msra.mxu0 %v4179
      %4221 = vmatmul.bf16.gmra.mxu0 %v4170
      %v4222 = vpop.f32.mrf.mxu0
      %v4223 = vadd.f32 0.0, %v4222
      %v4224 = vpop.f32.mrf.mxu0
      %4225 = vdwg.mxu0
      %4226 = vmatpush.bf16.msra.mxu0 0
      %4227 = vmatpush.bf16.msra.mxu0 0
      %4228 = vmatpush.bf16.msra.mxu0 0
      %4229 = vmatpush.bf16.msra.mxu0 0
      %4230 = vmatpush.bf16.msra.mxu0 0
      %4231 = vmatpush.bf16.msra.mxu0 0
      %4232 = vmatpush.bf16.msra.mxu0 0
      %4233 = vmatpush.bf16.msra.mxu0 %v4182
      %4234 = vmatmul.bf16.gmra.mxu0 %v4170
      %v4235 = vpop.f32.mrf.mxu0
      %v4236 = vadd.f32 0.0, %v4235
      %v4237 = vpop.f32.mrf.mxu0
      %4238 = vdwg.mxu0
      %4239 = vmatpush.bf16.msra.mxu0 0
      %4240 = vmatpush.bf16.msra.mxu0 0
      %4241 = vmatpush.bf16.msra.mxu0 0
      %4242 = vmatpush.bf16.msra.mxu0 0
      %4243 = vmatpush.bf16.msra.mxu0 0
      %4244 = vmatpush.bf16.msra.mxu0 0
      %4245 = vmatpush.bf16.msra.mxu0 0
      %4246 = vmatpush.bf16.msra.mxu0 %v4185
      %4247 = vmatmul.bf16.gmra.mxu0 %v4170
      %v4248 = vpop.f32.mrf.mxu0
      %v4249 = vadd.f32 0.0, %v4248
      %v4250 = vpop.f32.mrf.mxu0
      %4251 = vdwg.mxu0
      %v4252 = vadd.f32 %v4130, %v4197
      %v4253 = vadd.f32 %v4131, %v4210
      %v4254 = vadd.f32 %v4132, %v4223
      %v4255 = vadd.f32 %v4133, %v4236
      %v4256 = vadd.f32 %v4134, %v4249
      %s4257 = scalar_lea.vmem %s1, 132
      %v4258 = vld [vmem:[%s4257] sm:$0xf]
      %4259 = vst [vmem:[#allocation1] ss:$4 sm:$0xff] %v700
      %s4260 = scalar_lea.vmem [#allocation1], 32
      %4261 = vst [vmem:[%s4260] ss:$4 sm:$0xff] %v701
      %v4262 = vld.sshfl [vmem:[#allocation1] sm:$0xff pattern:$0x73625140]
      %v4264 = vld.sshfl [vmem:[#allocation1 + $0x8] sm:$0xff pattern:$0x73625140]
      %v4266 = vld.sshfl [vmem:[#allocation1 + $0x10] sm:$0xff pattern:$0x73625140]
      %v4268 = vld.sshfl [vmem:[#allocation1 + $0x18] sm:$0xff pattern:$0x73625140]
      %v4270 = vld.sshfl [vmem:[#allocation1 + $0x20] sm:$0xff pattern:$0x73625140]
      %4272 = vrot.lane.b32.xlu0 %v4262, 69
      %v4273 = vpop.permute.xlu0 %4272
      %4274 = vrot.lane.b32.xlu0 %v4264, 69
      %v4275 = vpop.permute.xlu0 %4274
      %4276 = vrot.lane.b32.xlu0 %v4266, 69
      %v4277 = vpop.permute.xlu0 %4276
      %4278 = vrot.lane.b32.xlu0 %v4268, 69
      %v4279 = vpop.permute.xlu0 %4278
      %4280 = vrot.lane.b32.xlu0 %v4270, 69
      %v4281 = vpop.permute.xlu0 %4280
      %v4282 = vsel %vm729, %v4273, %v4275
      %v4283 = vsel %vm729, %v4275, %v4277
      %v4284 = vsel %vm729, %v4277, %v4279
      %v4285 = vsel %vm729, %v4279, %v4281
      %v4287 = vsel %vm250, %v4258, 0
      %v4290 = vsel %vm254, %v4282, 0
      %v4293 = vsel %vm254, %v4283, 0
      %v4296 = vsel %vm254, %v4284, 0
      %v4299 = vsel %vm254, %v4285, 0
      %v4302 = vsel %vm254, %v4281, 0
      %4304 = vmatpush.bf16.msra.mxu0 0
      %4305 = vmatpush.bf16.msra.mxu0 0
      %4306 = vmatpush.bf16.msra.mxu0 0
      %4307 = vmatpush.bf16.msra.mxu0 0
      %4308 = vmatpush.bf16.msra.mxu0 0
      %4309 = vmatpush.bf16.msra.mxu0 0
      %4310 = vmatpush.bf16.msra.mxu0 0
      %4311 = vmatpush.bf16.msra.mxu0 %v4290
      %4312 = vmatmul.bf16.gmra.mxu0 %v4287
      %v4313 = vpop.f32.mrf.mxu0
      %v4314 = vadd.f32 0.0, %v4313
      %v4315 = vpop.f32.mrf.mxu0
      %4316 = vdwg.mxu0
      %4317 = vmatpush.bf16.msra.mxu0 0
      %4318 = vmatpush.bf16.msra.mxu0 0
      %4319 = vmatpush.bf16.msra.mxu0 0
      %4320 = vmatpush.bf16.msra.mxu0 0
      %4321 = vmatpush.bf16.msra.mxu0 0
      %4322 = vmatpush.bf16.msra.mxu0 0
      %4323 = vmatpush.bf16.msra.mxu0 0
      %4324 = vmatpush.bf16.msra.mxu0 %v4293
      %4325 = vmatmul.bf16.gmra.mxu0 %v4287
      %v4326 = vpop.f32.mrf.mxu0
      %v4327 = vadd.f32 0.0, %v4326
      %v4328 = vpop.f32.mrf.mxu0
      %4329 = vdwg.mxu0
      %4330 = vmatpush.bf16.msra.mxu0 0
      %4331 = vmatpush.bf16.msra.mxu0 0
      %4332 = vmatpush.bf16.msra.mxu0 0
      %4333 = vmatpush.bf16.msra.mxu0 0
      %4334 = vmatpush.bf16.msra.mxu0 0
      %4335 = vmatpush.bf16.msra.mxu0 0
      %4336 = vmatpush.bf16.msra.mxu0 0
      %4337 = vmatpush.bf16.msra.mxu0 %v4296
      %4338 = vmatmul.bf16.gmra.mxu0 %v4287
      %v4339 = vpop.f32.mrf.mxu0
      %v4340 = vadd.f32 0.0, %v4339
      %v4341 = vpop.f32.mrf.mxu0
      %4342 = vdwg.mxu0
      %4343 = vmatpush.bf16.msra.mxu0 0
      %4344 = vmatpush.bf16.msra.mxu0 0
      %4345 = vmatpush.bf16.msra.mxu0 0
      %4346 = vmatpush.bf16.msra.mxu0 0
      %4347 = vmatpush.bf16.msra.mxu0 0
      %4348 = vmatpush.bf16.msra.mxu0 0
      %4349 = vmatpush.bf16.msra.mxu0 0
      %4350 = vmatpush.bf16.msra.mxu0 %v4299
      %4351 = vmatmul.bf16.gmra.mxu0 %v4287
      %v4352 = vpop.f32.mrf.mxu0
      %v4353 = vadd.f32 0.0, %v4352
      %v4354 = vpop.f32.mrf.mxu0
      %4355 = vdwg.mxu0
      %4356 = vmatpush.bf16.msra.mxu0 0
      %4357 = vmatpush.bf16.msra.mxu0 0
      %4358 = vmatpush.bf16.msra.mxu0 0
      %4359 = vmatpush.bf16.msra.mxu0 0
      %4360 = vmatpush.bf16.msra.mxu0 0
      %4361 = vmatpush.bf16.msra.mxu0 0
      %4362 = vmatpush.bf16.msra.mxu0 0
      %4363 = vmatpush.bf16.msra.mxu0 %v4302
      %4364 = vmatmul.bf16.gmra.mxu0 %v4287
      %v4365 = vpop.f32.mrf.mxu0
      %v4366 = vadd.f32 0.0, %v4365
      %v4367 = vpop.f32.mrf.mxu0
      %4368 = vdwg.mxu0
      %v4369 = vadd.f32 %v4252, %v4314
      %v4370 = vadd.f32 %v4253, %v4327
      %v4371 = vadd.f32 %v4254, %v4340
      %v4372 = vadd.f32 %v4255, %v4353
      %v4373 = vadd.f32 %v4256, %v4366
      %v4374 = vld [vmem:[%s199 + $0x4] sm:$0xff]
      %v4375 = vld [vmem:[%s199 + $0xc] sm:$0x3]
      %s4376 = scalar_lea.vmem %s1, 136
      %v4377 = vld [vmem:[%s4376] sm:$0xf]
      %4379 = vst [vmem:[#allocation1] ss:$4 sm:$0xff] %v4374
      %s4381 = scalar_lea.vmem [#allocation1], 32
      %4382 = vst [vmem:[%s4381] ss:$4 sm:$0xff] %v4375
      %v4383 = vld.sshfl [vmem:[#allocation1] sm:$0xff pattern:$0x73625140]
      %v4385 = vld.sshfl [vmem:[#allocation1 + $0x8] sm:$0xff pattern:$0x73625140]
      %v4387 = vld.sshfl [vmem:[#allocation1 + $0x10] sm:$0xff pattern:$0x73625140]
      %v4389 = vld.sshfl [vmem:[#allocation1 + $0x18] sm:$0xff pattern:$0x73625140]
      %v4391 = vld.sshfl [vmem:[#allocation1 + $0x20] sm:$0xff pattern:$0x73625140]
      %4393 = vrot.lane.b32.xlu0 %v4383, 66
      %v4394 = vpop.permute.xlu0 %4393
      %4395 = vrot.lane.b32.xlu0 %v4385, 66
      %v4396 = vpop.permute.xlu0 %4395
      %4397 = vrot.lane.b32.xlu0 %v4387, 66
      %v4398 = vpop.permute.xlu0 %4397
      %4399 = vrot.lane.b32.xlu0 %v4389, 66
      %v4400 = vpop.permute.xlu0 %4399
      %4401 = vrot.lane.b32.xlu0 %v4391, 66
      %v4402 = vpop.permute.xlu0 %4401
      %vm4403 = vcmask 539648
      %v4404 = vsel %vm4403, %v4394, %v4396
      %v4405 = vsel %vm4403, %v4396, %v4398
      %v4406 = vsel %vm4403, %v4398, %v4400
      %v4407 = vsel %vm4403, %v4400, %v4402
      %v4409 = vsel %vm250, %v4377, 0
      %v4412 = vsel %vm254, %v4404, 0
      %v4415 = vsel %vm254, %v4405, 0
      %v4418 = vsel %vm254, %v4406, 0
      %v4421 = vsel %vm254, %v4407, 0
      %v4424 = vsel %vm254, %v4402, 0
      %4426 = vmatpush.bf16.msra.mxu0 0
      %4427 = vmatpush.bf16.msra.mxu0 0
      %4428 = vmatpush.bf16.msra.mxu0 0
      %4429 = vmatpush.bf16.msra.mxu0 0
      %4430 = vmatpush.bf16.msra.mxu0 0
      %4431 = vmatpush.bf16.msra.mxu0 0
      %4432 = vmatpush.bf16.msra.mxu0 0
      %4433 = vmatpush.bf16.msra.mxu0 %v4412
      %4434 = vmatmul.bf16.gmra.mxu0 %v4409
      %v4435 = vpop.f32.mrf.mxu0
      %v4436 = vadd.f32 0.0, %v4435
      %v4437 = vpop.f32.mrf.mxu0
      %4438 = vdwg.mxu0
      %4439 = vmatpush.bf16.msra.mxu0 0
      %4440 = vmatpush.bf16.msra.mxu0 0
      %4441 = vmatpush.bf16.msra.mxu0 0
      %4442 = vmatpush.bf16.msra.mxu0 0
      %4443 = vmatpush.bf16.msra.mxu0 0
      %4444 = vmatpush.bf16.msra.mxu0 0
      %4445 = vmatpush.bf16.msra.mxu0 0
      %4446 = vmatpush.bf16.msra.mxu0 %v4415
      %4447 = vmatmul.bf16.gmra.mxu0 %v4409
      %v4448 = vpop.f32.mrf.mxu0
      %v4449 = vadd.f32 0.0, %v4448
      %v4450 = vpop.f32.mrf.mxu0
      %4451 = vdwg.mxu0
      %4452 = vmatpush.bf16.msra.mxu0 0
      %4453 = vmatpush.bf16.msra.mxu0 0
      %4454 = vmatpush.bf16.msra.mxu0 0
      %4455 = vmatpush.bf16.msra.mxu0 0
      %4456 = vmatpush.bf16.msra.mxu0 0
      %4457 = vmatpush.bf16.msra.mxu0 0
      %4458 = vmatpush.bf16.msra.mxu0 0
      %4459 = vmatpush.bf16.msra.mxu0 %v4418
      %4460 = vmatmul.bf16.gmra.mxu0 %v4409
      %v4461 = vpop.f32.mrf.mxu0
      %v4462 = vadd.f32 0.0, %v4461
      %v4463 = vpop.f32.mrf.mxu0
      %4464 = vdwg.mxu0
      %4465 = vmatpush.bf16.msra.mxu0 0
      %4466 = vmatpush.bf16.msra.mxu0 0
      %4467 = vmatpush.bf16.msra.mxu0 0
      %4468 = vmatpush.bf16.msra.mxu0 0
      %4469 = vmatpush.bf16.msra.mxu0 0
      %4470 = vmatpush.bf16.msra.mxu0 0
      %4471 = vmatpush.bf16.msra.mxu0 0
      %4472 = vmatpush.bf16.msra.mxu0 %v4421
      %4473 = vmatmul.bf16.gmra.mxu0 %v4409
      %v4474 = vpop.f32.mrf.mxu0
      %v4475 = vadd.f32 0.0, %v4474
      %v4476 = vpop.f32.mrf.mxu0
      %4477 = vdwg.mxu0
      %4478 = vmatpush.bf16.msra.mxu0 0
      %4479 = vmatpush.bf16.msra.mxu0 0
      %4480 = vmatpush.bf16.msra.mxu0 0
      %4481 = vmatpush.bf16.msra.mxu0 0
      %4482 = vmatpush.bf16.msra.mxu0 0
      %4483 = vmatpush.bf16.msra.mxu0 0
      %4484 = vmatpush.bf16.msra.mxu0 0
      %4485 = vmatpush.bf16.msra.mxu0 %v4424
      %4486 = vmatmul.bf16.gmra.mxu0 %v4409
      %v4487 = vpop.f32.mrf.mxu0
      %v4488 = vadd.f32 0.0, %v4487
      %v4489 = vpop.f32.mrf.mxu0
      %4490 = vdwg.mxu0
      %v4491 = vadd.f32 %v4369, %v4436
      %v4492 = vadd.f32 %v4370, %v4449
      %v4493 = vadd.f32 %v4371, %v4462
      %v4494 = vadd.f32 %v4372, %v4475
      %v4495 = vadd.f32 %v4373, %v4488
      %v4496 = vld [vmem:[%s199 + $0x4] sm:$0xff]
      %v4497 = vld [vmem:[%s199 + $0xc] sm:$0x3]
      %s4498 = scalar_lea.vmem %s1, 140
      %v4499 = vld [vmem:[%s4498] sm:$0xf]
      %4501 = vst [vmem:[#allocation1] ss:$4 sm:$0xff] %v4496
      %s4503 = scalar_lea.vmem [#allocation1], 32
      %4504 = vst [vmem:[%s4503] ss:$4 sm:$0xff] %v4497
      %v4505 = vld.sshfl [vmem:[#allocation1] sm:$0xff pattern:$0x73625140]
      %v4507 = vld.sshfl [vmem:[#allocation1 + $0x8] sm:$0xff pattern:$0x73625140]
      %v4509 = vld.sshfl [vmem:[#allocation1 + $0x10] sm:$0xff pattern:$0x73625140]
      %v4511 = vld.sshfl [vmem:[#allocation1 + $0x18] sm:$0xff pattern:$0x73625140]
      %v4513 = vld.sshfl [vmem:[#allocation1 + $0x20] sm:$0xff pattern:$0x73625140]
      %4515 = vrot.lane.b32.xlu0 %v4505, 63
      %v4516 = vpop.permute.xlu0 %4515
      %4517 = vrot.lane.b32.xlu0 %v4507, 63
      %v4518 = vpop.permute.xlu0 %4517
      %4519 = vrot.lane.b32.xlu0 %v4509, 63
      %v4520 = vpop.permute.xlu0 %4519
      %4521 = vrot.lane.b32.xlu0 %v4511, 63
      %v4522 = vpop.permute.xlu0 %4521
      %4523 = vrot.lane.b32.xlu0 %v4513, 63
      %v4524 = vpop.permute.xlu0 %4523
      %vm4525 = vcmask 515072
      %v4526 = vsel %vm4525, %v4516, %v4518
      %v4527 = vsel %vm4525, %v4518, %v4520
      %v4528 = vsel %vm4525, %v4520, %v4522
      %v4529 = vsel %vm4525, %v4522, %v4524
      %v4531 = vsel %vm250, %v4499, 0
      %v4534 = vsel %vm254, %v4526, 0
      %v4537 = vsel %vm254, %v4527, 0
      %v4540 = vsel %vm254, %v4528, 0
      %v4543 = vsel %vm254, %v4529, 0
      %v4546 = vsel %vm254, %v4524, 0
      %4548 = vmatpush.bf16.msra.mxu0 0
      %4549 = vmatpush.bf16.msra.mxu0 0
      %4550 = vmatpush.bf16.msra.mxu0 0
      %4551 = vmatpush.bf16.msra.mxu0 0
      %4552 = vmatpush.bf16.msra.mxu0 0
      %4553 = vmatpush.bf16.msra.mxu0 0
      %4554 = vmatpush.bf16.msra.mxu0 0
      %4555 = vmatpush.bf16.msra.mxu0 %v4534
      %4556 = vmatmul.bf16.gmra.mxu0 %v4531
      %v4557 = vpop.f32.mrf.mxu0
      %v4558 = vadd.f32 0.0, %v4557
      %v4559 = vpop.f32.mrf.mxu0
      %4560 = vdwg.mxu0
      %4561 = vmatpush.bf16.msra.mxu0 0
      %4562 = vmatpush.bf16.msra.mxu0 0
      %4563 = vmatpush.bf16.msra.mxu0 0
      %4564 = vmatpush.bf16.msra.mxu0 0
      %4565 = vmatpush.bf16.msra.mxu0 0
      %4566 = vmatpush.bf16.msra.mxu0 0
      %4567 = vmatpush.bf16.msra.mxu0 0
      %4568 = vmatpush.bf16.msra.mxu0 %v4537
      %4569 = vmatmul.bf16.gmra.mxu0 %v4531
      %v4570 = vpop.f32.mrf.mxu0
      %v4571 = vadd.f32 0.0, %v4570
      %v4572 = vpop.f32.mrf.mxu0
      %4573 = vdwg.mxu0
      %4574 = vmatpush.bf16.msra.mxu0 0
      %4575 = vmatpush.bf16.msra.mxu0 0
      %4576 = vmatpush.bf16.msra.mxu0 0
      %4577 = vmatpush.bf16.msra.mxu0 0
      %4578 = vmatpush.bf16.msra.mxu0 0
      %4579 = vmatpush.bf16.msra.mxu0 0
      %4580 = vmatpush.bf16.msra.mxu0 0
      %4581 = vmatpush.bf16.msra.mxu0 %v4540
      %4582 = vmatmul.bf16.gmra.mxu0 %v4531
      %v4583 = vpop.f32.mrf.mxu0
      %v4584 = vadd.f32 0.0, %v4583
      %v4585 = vpop.f32.mrf.mxu0
      %4586 = vdwg.mxu0
      %4587 = vmatpush.bf16.msra.mxu0 0
      %4588 = vmatpush.bf16.msra.mxu0 0
      %4589 = vmatpush.bf16.msra.mxu0 0
      %4590 = vmatpush.bf16.msra.mxu0 0
      %4591 = vmatpush.bf16.msra.mxu0 0
      %4592 = vmatpush.bf16.msra.mxu0 0
      %4593 = vmatpush.bf16.msra.mxu0 0
      %4594 = vmatpush.bf16.msra.mxu0 %v4543
      %4595 = vmatmul.bf16.gmra.mxu0 %v4531
      %v4596 = vpop.f32.mrf.mxu0
      %v4597 = vadd.f32 0.0, %v4596
      %v4598 = vpop.f32.mrf.mxu0
      %4599 = vdwg.mxu0
      %4600 = vmatpush.bf16.msra.mxu0 0
      %4601 = vmatpush.bf16.msra.mxu0 0
      %4602 = vmatpush.bf16.msra.mxu0 0
      %4603 = vmatpush.bf16.msra.mxu0 0
      %4604 = vmatpush.bf16.msra.mxu0 0
      %4605 = vmatpush.bf16.msra.mxu0 0
      %4606 = vmatpush.bf16.msra.mxu0 0
      %4607 = vmatpush.bf16.msra.mxu0 %v4546
      %4608 = vmatmul.bf16.gmra.mxu0 %v4531
      %v4609 = vpop.f32.mrf.mxu0
      %v4610 = vadd.f32 0.0, %v4609
      %v4611 = vpop.f32.mrf.mxu0
      %4612 = vdwg.mxu0
      %v4613 = vadd.f32 %v4491, %v4558
      %v4614 = vadd.f32 %v4492, %v4571
      %v4615 = vadd.f32 %v4493, %v4584
      %v4616 = vadd.f32 %v4494, %v4597
      %v4617 = vadd.f32 %v4495, %v4610
      %v4618 = vld [vmem:[%s199 + $0x4] sm:$0xff]
      %v4619 = vld [vmem:[%s199 + $0xc] sm:$0x3]
      %s4620 = scalar_lea.vmem %s1, 144
      %v4621 = vld [vmem:[%s4620] sm:$0xf]
      %4623 = vst [vmem:[#allocation1] ss:$4 sm:$0xff] %v4618
      %s4625 = scalar_lea.vmem [#allocation1], 32
      %4626 = vst [vmem:[%s4625] ss:$4 sm:$0xff] %v4619
      %v4627 = vld.sshfl [vmem:[#allocation1] sm:$0xff pattern:$0x73625140]
      %v4629 = vld.sshfl [vmem:[#allocation1 + $0x8] sm:$0xff pattern:$0x73625140]
      %v4631 = vld.sshfl [vmem:[#allocation1 + $0x10] sm:$0xff pattern:$0x73625140]
      %v4633 = vld.sshfl [vmem:[#allocation1 + $0x18] sm:$0xff pattern:$0x73625140]
      %v4635 = vld.sshfl [vmem:[#allocation1 + $0x20] sm:$0xff pattern:$0x73625140]
      %4637 = vrot.lane.b32.xlu0 %v4627, 60
      %v4638 = vpop.permute.xlu0 %4637
      %4639 = vrot.lane.b32.xlu0 %v4629, 60
      %v4640 = vpop.permute.xlu0 %4639
      %4641 = vrot.lane.b32.xlu0 %v4631, 60
      %v4642 = vpop.permute.xlu0 %4641
      %4643 = vrot.lane.b32.xlu0 %v4633, 60
      %v4644 = vpop.permute.xlu0 %4643
      %4645 = vrot.lane.b32.xlu0 %v4635, 60
      %v4646 = vpop.permute.xlu0 %4645
      %vm4647 = vcmask 490496
      %v4648 = vsel %vm4647, %v4638, %v4640
      %v4649 = vsel %vm4647, %v4640, %v4642
      %v4650 = vsel %vm4647, %v4642, %v4644
      %v4651 = vsel %vm4647, %v4644, %v4646
      %v4653 = vsel %vm250, %v4621, 0
      %v4656 = vsel %vm254, %v4648, 0
      %v4659 = vsel %vm254, %v4649, 0
      %v4662 = vsel %vm254, %v4650, 0
      %v4665 = vsel %vm254, %v4651, 0
      %v4668 = vsel %vm254, %v4646, 0
      %4670 = vmatpush.bf16.msra.mxu0 0
      %4671 = vmatpush.bf16.msra.mxu0 0
      %4672 = vmatpush.bf16.msra.mxu0 0
      %4673 = vmatpush.bf16.msra.mxu0 0
      %4674 = vmatpush.bf16.msra.mxu0 0
      %4675 = vmatpush.bf16.msra.mxu0 0
      %4676 = vmatpush.bf16.msra.mxu0 0
      %4677 = vmatpush.bf16.msra.mxu0 %v4656
      %4678 = vmatmul.bf16.gmra.mxu0 %v4653
      %v4679 = vpop.f32.mrf.mxu0
      %v4680 = vadd.f32 0.0, %v4679
      %v4681 = vpop.f32.mrf.mxu0
      %4682 = vdwg.mxu0
      %4683 = vmatpush.bf16.msra.mxu0 0
      %4684 = vmatpush.bf16.msra.mxu0 0
      %4685 = vmatpush.bf16.msra.mxu0 0
      %4686 = vmatpush.bf16.msra.mxu0 0
      %4687 = vmatpush.bf16.msra.mxu0 0
      %4688 = vmatpush.bf16.msra.mxu0 0
      %4689 = vmatpush.bf16.msra.mxu0 0
      %4690 = vmatpush.bf16.msra.mxu0 %v4659
      %4691 = vmatmul.bf16.gmra.mxu0 %v4653
      %v4692 = vpop.f32.mrf.mxu0
      %v4693 = vadd.f32 0.0, %v4692
      %v4694 = vpop.f32.mrf.mxu0
      %4695 = vdwg.mxu0
      %4696 = vmatpush.bf16.msra.mxu0 0
      %4697 = vmatpush.bf16.msra.mxu0 0
      %4698 = vmatpush.bf16.msra.mxu0 0
      %4699 = vmatpush.bf16.msra.mxu0 0
      %4700 = vmatpush.bf16.msra.mxu0 0
      %4701 = vmatpush.bf16.msra.mxu0 0
      %4702 = vmatpush.bf16.msra.mxu0 0
      %4703 = vmatpush.bf16.msra.mxu0 %v4662
      %4704 = vmatmul.bf16.gmra.mxu0 %v4653
      %v4705 = vpop.f32.mrf.mxu0
      %v4706 = vadd.f32 0.0, %v4705
      %v4707 = vpop.f32.mrf.mxu0
      %4708 = vdwg.mxu0
      %4709 = vmatpush.bf16.msra.mxu0 0
      %4710 = vmatpush.bf16.msra.mxu0 0
      %4711 = vmatpush.bf16.msra.mxu0 0
      %4712 = vmatpush.bf16.msra.mxu0 0
      %4713 = vmatpush.bf16.msra.mxu0 0
      %4714 = vmatpush.bf16.msra.mxu0 0
      %4715 = vmatpush.bf16.msra.mxu0 0
      %4716 = vmatpush.bf16.msra.mxu0 %v4665
      %4717 = vmatmul.bf16.gmra.mxu0 %v4653
      %v4718 = vpop.f32.mrf.mxu0
      %v4719 = vadd.f32 0.0, %v4718
      %v4720 = vpop.f32.mrf.mxu0
      %4721 = vdwg.mxu0
      %4722 = vmatpush.bf16.msra.mxu0 0
      %4723 = vmatpush.bf16.msra.mxu0 0
      %4724 = vmatpush.bf16.msra.mxu0 0
      %4725 = vmatpush.bf16.msra.mxu0 0
      %4726 = vmatpush.bf16.msra.mxu0 0
      %4727 = vmatpush.bf16.msra.mxu0 0
      %4728 = vmatpush.bf16.msra.mxu0 0
      %4729 = vmatpush.bf16.msra.mxu0 %v4668
      %4730 = vmatmul.bf16.gmra.mxu0 %v4653
      %v4731 = vpop.f32.mrf.mxu0
      %v4732 = vadd.f32 0.0, %v4731
      %v4733 = vpop.f32.mrf.mxu0
      %4734 = vdwg.mxu0
      %v4735 = vadd.f32 %v4613, %v4680
      %v4736 = vadd.f32 %v4614, %v4693
      %v4737 = vadd.f32 %v4615, %v4706
      %v4738 = vadd.f32 %v4616, %v4719
      %v4739 = vadd.f32 %v4617, %v4732
      %v4740 = vld [vmem:[%s199 + $0x6] sm:$0xff]
      %v4741 = vld [vmem:[%s199 + $0xe] sm:$0x3]
      %s4742 = scalar_lea.vmem %s1, 148
      %v4743 = vld [vmem:[%s4742] sm:$0xf]
      %4745 = vst [vmem:[#allocation1] ss:$4 sm:$0xff] %v4740
      %s4747 = scalar_lea.vmem [#allocation1], 32
      %4748 = vst [vmem:[%s4747] ss:$4 sm:$0xff] %v4741
      %v4749 = vld.sshfl [vmem:[#allocation1] sm:$0xff pattern:$0x73625140]
      %v4751 = vld.sshfl [vmem:[#allocation1 + $0x8] sm:$0xff pattern:$0x73625140]
      %v4753 = vld.sshfl [vmem:[#allocation1 + $0x10] sm:$0xff pattern:$0x73625140]
      %v4755 = vld.sshfl [vmem:[#allocation1 + $0x18] sm:$0xff pattern:$0x73625140]
      %v4757 = vld.sshfl [vmem:[#allocation1 + $0x20] sm:$0xff pattern:$0x73625140]
      %4759 = vrot.lane.b32.xlu0 %v4749, 104
      %v4760 = vpop.permute.xlu0 %4759
      %4761 = vrot.lane.b32.xlu0 %v4751, 104
      %v4762 = vpop.permute.xlu0 %4761
      %4763 = vrot.lane.b32.xlu0 %v4753, 104
      %v4764 = vpop.permute.xlu0 %4763
      %4765 = vrot.lane.b32.xlu0 %v4755, 104
      %v4766 = vpop.permute.xlu0 %4765
      %4767 = vrot.lane.b32.xlu0 %v4757, 104
      %v4768 = vpop.permute.xlu0 %4767
      %vm4769 = vcmask 850944
      %v4770 = vsel %vm4769, %v4760, %v4762
      %v4771 = vsel %vm4769, %v4762, %v4764
      %v4772 = vsel %vm4769, %v4764, %v4766
      %v4773 = vsel %vm4769, %v4766, %v4768
      %v4775 = vsel %vm250, %v4743, 0
      %v4778 = vsel %vm254, %v4770, 0
      %v4781 = vsel %vm254, %v4771, 0
      %v4784 = vsel %vm254, %v4772, 0
      %v4787 = vsel %vm254, %v4773, 0
      %v4790 = vsel %vm254, %v4768, 0
      %4792 = vmatpush.bf16.msra.mxu0 0
      %4793 = vmatpush.bf16.msra.mxu0 0
      %4794 = vmatpush.bf16.msra.mxu0 0
      %4795 = vmatpush.bf16.msra.mxu0 0
      %4796 = vmatpush.bf16.msra.mxu0 0
      %4797 = vmatpush.bf16.msra.mxu0 0
      %4798 = vmatpush.bf16.msra.mxu0 0
      %4799 = vmatpush.bf16.msra.mxu0 %v4778
      %4800 = vmatmul.bf16.gmra.mxu0 %v4775
      %v4801 = vpop.f32.mrf.mxu0
      %v4802 = vadd.f32 0.0, %v4801
      %v4803 = vpop.f32.mrf.mxu0
      %4804 = vdwg.mxu0
      %4805 = vmatpush.bf16.msra.mxu0 0
      %4806 = vmatpush.bf16.msra.mxu0 0
      %4807 = vmatpush.bf16.msra.mxu0 0
      %4808 = vmatpush.bf16.msra.mxu0 0
      %4809 = vmatpush.bf16.msra.mxu0 0
      %4810 = vmatpush.bf16.msra.mxu0 0
      %4811 = vmatpush.bf16.msra.mxu0 0
      %4812 = vmatpush.bf16.msra.mxu0 %v4781
      %4813 = vmatmul.bf16.gmra.mxu0 %v4775
      %v4814 = vpop.f32.mrf.mxu0
      %v4815 = vadd.f32 0.0, %v4814
      %v4816 = vpop.f32.mrf.mxu0
      %4817 = vdwg.mxu0
      %4818 = vmatpush.bf16.msra.mxu0 0
      %4819 = vmatpush.bf16.msra.mxu0 0
      %4820 = vmatpush.bf16.msra.mxu0 0
      %4821 = vmatpush.bf16.msra.mxu0 0
      %4822 = vmatpush.bf16.msra.mxu0 0
      %4823 = vmatpush.bf16.msra.mxu0 0
      %4824 = vmatpush.bf16.msra.mxu0 0
      %4825 = vmatpush.bf16.msra.mxu0 %v4784
      %4826 = vmatmul.bf16.gmra.mxu0 %v4775
      %v4827 = vpop.f32.mrf.mxu0
      %v4828 = vadd.f32 0.0, %v4827
      %v4829 = vpop.f32.mrf.mxu0
      %4830 = vdwg.mxu0
      %4831 = vmatpush.bf16.msra.mxu0 0
      %4832 = vmatpush.bf16.msra.mxu0 0
      %4833 = vmatpush.bf16.msra.mxu0 0
      %4834 = vmatpush.bf16.msra.mxu0 0
      %4835 = vmatpush.bf16.msra.mxu0 0
      %4836 = vmatpush.bf16.msra.mxu0 0
      %4837 = vmatpush.bf16.msra.mxu0 0
      %4838 = vmatpush.bf16.msra.mxu0 %v4787
      %4839 = vmatmul.bf16.gmra.mxu0 %v4775
      %v4840 = vpop.f32.mrf.mxu0
      %v4841 = vadd.f32 0.0, %v4840
      %v4842 = vpop.f32.mrf.mxu0
      %4843 = vdwg.mxu0
      %4844 = vmatpush.bf16.msra.mxu0 0
      %4845 = vmatpush.bf16.msra.mxu0 0
      %4846 = vmatpush.bf16.msra.mxu0 0
      %4847 = vmatpush.bf16.msra.mxu0 0
      %4848 = vmatpush.bf16.msra.mxu0 0
      %4849 = vmatpush.bf16.msra.mxu0 0
      %4850 = vmatpush.bf16.msra.mxu0 0
      %4851 = vmatpush.bf16.msra.mxu0 %v4790
      %4852 = vmatmul.bf16.gmra.mxu0 %v4775
      %v4853 = vpop.f32.mrf.mxu0
      %v4854 = vadd.f32 0.0, %v4853
      %v4855 = vpop.f32.mrf.mxu0
      %4856 = vdwg.mxu0
      %v4857 = vadd.f32 %v4735, %v4802
      %v4858 = vadd.f32 %v4736, %v4815
      %v4859 = vadd.f32 %v4737, %v4828
      %v4860 = vadd.f32 %v4738, %v4841
      %v4861 = vadd.f32 %v4739, %v4854
      %v4862 = vld [vmem:[%s199 + $0x6] sm:$0xff]
      %v4863 = vld [vmem:[%s199 + $0xe] sm:$0x3]
      %s4864 = scalar_lea.vmem %s1, 152
      %v4865 = vld [vmem:[%s4864] sm:$0xf]
      %4867 = vst [vmem:[#allocation1] ss:$4 sm:$0xff] %v4862
      %s4869 = scalar_lea.vmem [#allocation1], 32
      %4870 = vst [vmem:[%s4869] ss:$4 sm:$0xff] %v4863
      %v4871 = vld.sshfl [vmem:[#allocation1] sm:$0xff pattern:$0x73625140]
      %v4873 = vld.sshfl [vmem:[#allocation1 + $0x8] sm:$0xff pattern:$0x73625140]
      %v4875 = vld.sshfl [vmem:[#allocation1 + $0x10] sm:$0xff pattern:$0x73625140]
      %v4877 = vld.sshfl [vmem:[#allocation1 + $0x18] sm:$0xff pattern:$0x73625140]
      %v4879 = vld.sshfl [vmem:[#allocation1 + $0x20] sm:$0xff pattern:$0x73625140]
      %4881 = vrot.lane.b32.xlu0 %v4871, 101
      %v4882 = vpop.permute.xlu0 %4881
      %4883 = vrot.lane.b32.xlu0 %v4873, 101
      %v4884 = vpop.permute.xlu0 %4883
      %4885 = vrot.lane.b32.xlu0 %v4875, 101
      %v4886 = vpop.permute.xlu0 %4885
      %4887 = vrot.lane.b32.xlu0 %v4877, 101
      %v4888 = vpop.permute.xlu0 %4887
      %4889 = vrot.lane.b32.xlu0 %v4879, 101
      %v4890 = vpop.permute.xlu0 %4889
      %vm4891 = vcmask 826368
      %v4892 = vsel %vm4891, %v4882, %v4884
      %v4893 = vsel %vm4891, %v4884, %v4886
      %v4894 = vsel %vm4891, %v4886, %v4888
      %v4895 = vsel %vm4891, %v4888, %v4890
      %v4897 = vsel %vm250, %v4865, 0
      %v4900 = vsel %vm254, %v4892, 0
      %v4903 = vsel %vm254, %v4893, 0
      %v4906 = vsel %vm254, %v4894, 0
      %v4909 = vsel %vm254, %v4895, 0
      %v4912 = vsel %vm254, %v4890, 0
      %4914 = vmatpush.bf16.msra.mxu0 0
      %4915 = vmatpush.bf16.msra.mxu0 0
      %4916 = vmatpush.bf16.msra.mxu0 0
      %4917 = vmatpush.bf16.msra.mxu0 0
      %4918 = vmatpush.bf16.msra.mxu0 0
      %4919 = vmatpush.bf16.msra.mxu0 0
      %4920 = vmatpush.bf16.msra.mxu0 0
      %4921 = vmatpush.bf16.msra.mxu0 %v4900
      %4922 = vmatmul.bf16.gmra.mxu0 %v4897
      %v4923 = vpop.f32.mrf.mxu0
      %v4924 = vadd.f32 0.0, %v4923
      %v4925 = vpop.f32.mrf.mxu0
      %4926 = vdwg.mxu0
      %4927 = vmatpush.bf16.msra.mxu0 0
      %4928 = vmatpush.bf16.msra.mxu0 0
      %4929 = vmatpush.bf16.msra.mxu0 0
      %4930 = vmatpush.bf16.msra.mxu0 0
      %4931 = vmatpush.bf16.msra.mxu0 0
      %4932 = vmatpush.bf16.msra.mxu0 0
      %4933 = vmatpush.bf16.msra.mxu0 0
      %4934 = vmatpush.bf16.msra.mxu0 %v4903
      %4935 = vmatmul.bf16.gmra.mxu0 %v4897
      %v4936 = vpop.f32.mrf.mxu0
      %v4937 = vadd.f32 0.0, %v4936
      %v4938 = vpop.f32.mrf.mxu0
      %4939 = vdwg.mxu0
      %4940 = vmatpush.bf16.msra.mxu0 0
      %4941 = vmatpush.bf16.msra.mxu0 0
      %4942 = vmatpush.bf16.msra.mxu0 0
      %4943 = vmatpush.bf16.msra.mxu0 0
      %4944 = vmatpush.bf16.msra.mxu0 0
      %4945 = vmatpush.bf16.msra.mxu0 0
      %4946 = vmatpush.bf16.msra.mxu0 0
      %4947 = vmatpush.bf16.msra.mxu0 %v4906
      %4948 = vmatmul.bf16.gmra.mxu0 %v4897
      %v4949 = vpop.f32.mrf.mxu0
      %v4950 = vadd.f32 0.0, %v4949
      %v4951 = vpop.f32.mrf.mxu0
      %4952 = vdwg.mxu0
      %4953 = vmatpush.bf16.msra.mxu0 0
      %4954 = vmatpush.bf16.msra.mxu0 0
      %4955 = vmatpush.bf16.msra.mxu0 0
      %4956 = vmatpush.bf16.msra.mxu0 0
      %4957 = vmatpush.bf16.msra.mxu0 0
      %4958 = vmatpush.bf16.msra.mxu0 0
      %4959 = vmatpush.bf16.msra.mxu0 0
      %4960 = vmatpush.bf16.msra.mxu0 %v4909
      %4961 = vmatmul.bf16.gmra.mxu0 %v4897
      %v4962 = vpop.f32.mrf.mxu0
      %v4963 = vadd.f32 0.0, %v4962
      %v4964 = vpop.f32.mrf.mxu0
      %4965 = vdwg.mxu0
      %4966 = vmatpush.bf16.msra.mxu0 0
      %4967 = vmatpush.bf16.msra.mxu0 0
      %4968 = vmatpush.bf16.msra.mxu0 0
      %4969 = vmatpush.bf16.msra.mxu0 0
      %4970 = vmatpush.bf16.msra.mxu0 0
      %4971 = vmatpush.bf16.msra.mxu0 0
      %4972 = vmatpush.bf16.msra.mxu0 0
      %4973 = vmatpush.bf16.msra.mxu0 %v4912
      %4974 = vmatmul.bf16.gmra.mxu0 %v4897
      %v4975 = vpop.f32.mrf.mxu0
      %v4976 = vadd.f32 0.0, %v4975
      %v4977 = vpop.f32.mrf.mxu0
      %4978 = vdwg.mxu0
      %v4979 = vadd.f32 %v4857, %v4924
      %v4980 = vadd.f32 %v4858, %v4937
      %v4981 = vadd.f32 %v4859, %v4950
      %v4982 = vadd.f32 %v4860, %v4963
      %v4983 = vadd.f32 %v4861, %v4976
      %v4984 = vld [vmem:[%s199 + $0x6] sm:$0xff]
      %v4985 = vld [vmem:[%s199 + $0xe] sm:$0x3]
      %s4986 = scalar_lea.vmem %s1, 156
      %v4987 = vld [vmem:[%s4986] sm:$0xf]
      %4989 = vst [vmem:[#allocation1] ss:$4 sm:$0xff] %v4984
      %s4991 = scalar_lea.vmem [#allocation1], 32
      %4992 = vst [vmem:[%s4991] ss:$4 sm:$0xff] %v4985
      %v4993 = vld.sshfl [vmem:[#allocation1] sm:$0xff pattern:$0x73625140]
      %v4995 = vld.sshfl [vmem:[#allocation1 + $0x8] sm:$0xff pattern:$0x73625140]
      %v4997 = vld.sshfl [vmem:[#allocation1 + $0x10] sm:$0xff pattern:$0x73625140]
      %v4999 = vld.sshfl [vmem:[#allocation1 + $0x18] sm:$0xff pattern:$0x73625140]
      %v5001 = vld.sshfl [vmem:[#allocation1 + $0x20] sm:$0xff pattern:$0x73625140]
      %5003 = vrot.lane.b32.xlu0 %v4993, 98
      %v5004 = vpop.permute.xlu0 %5003
      %5005 = vrot.lane.b32.xlu0 %v4995, 98
      %v5006 = vpop.permute.xlu0 %5005
      %5007 = vrot.lane.b32.xlu0 %v4997, 98
      %v5008 = vpop.permute.xlu0 %5007
      %5009 = vrot.lane.b32.xlu0 %v4999, 98
      %v5010 = vpop.permute.xlu0 %5009
      %5011 = vrot.lane.b32.xlu0 %v5001, 98
      %v5012 = vpop.permute.xlu0 %5011
      %vm5013 = vcmask 801792
      %v5014 = vsel %vm5013, %v5004, %v5006
      %v5015 = vsel %vm5013, %v5006, %v5008
      %v5016 = vsel %vm5013, %v5008, %v5010
      %v5017 = vsel %vm5013, %v5010, %v5012
      %v5019 = vsel %vm250, %v4987, 0
      %v5022 = vsel %vm254, %v5014, 0
      %v5025 = vsel %vm254, %v5015, 0
      %v5028 = vsel %vm254, %v5016, 0
      %v5031 = vsel %vm254, %v5017, 0
      %v5034 = vsel %vm254, %v5012, 0
      %5036 = vmatpush.bf16.msra.mxu0 0
      %5037 = vmatpush.bf16.msra.mxu0 0
      %5038 = vmatpush.bf16.msra.mxu0 0
      %5039 = vmatpush.bf16.msra.mxu0 0
      %5040 = vmatpush.bf16.msra.mxu0 0
      %5041 = vmatpush.bf16.msra.mxu0 0
      %5042 = vmatpush.bf16.msra.mxu0 0
      %5043 = vmatpush.bf16.msra.mxu0 %v5022
      %5044 = vmatmul.bf16.gmra.mxu0 %v5019
      %v5045 = vpop.f32.mrf.mxu0
      %v5046 = vadd.f32 0.0, %v5045
      %v5047 = vpop.f32.mrf.mxu0
      %5048 = vdwg.mxu0
      %5049 = vmatpush.bf16.msra.mxu0 0
      %5050 = vmatpush.bf16.msra.mxu0 0
      %5051 = vmatpush.bf16.msra.mxu0 0
      %5052 = vmatpush.bf16.msra.mxu0 0
      %5053 = vmatpush.bf16.msra.mxu0 0
      %5054 = vmatpush.bf16.msra.mxu0 0
      %5055 = vmatpush.bf16.msra.mxu0 0
      %5056 = vmatpush.bf16.msra.mxu0 %v5025
      %5057 = vmatmul.bf16.gmra.mxu0 %v5019
      %v5058 = vpop.f32.mrf.mxu0
      %v5059 = vadd.f32 0.0, %v5058
      %v5060 = vpop.f32.mrf.mxu0
      %5061 = vdwg.mxu0
      %5062 = vmatpush.bf16.msra.mxu0 0
      %5063 = vmatpush.bf16.msra.mxu0 0
      %5064 = vmatpush.bf16.msra.mxu0 0
      %5065 = vmatpush.bf16.msra.mxu0 0
      %5066 = vmatpush.bf16.msra.mxu0 0
      %5067 = vmatpush.bf16.msra.mxu0 0
      %5068 = vmatpush.bf16.msra.mxu0 0
      %5069 = vmatpush.bf16.msra.mxu0 %v5028
      %5070 = vmatmul.bf16.gmra.mxu0 %v5019
      %v5071 = vpop.f32.mrf.mxu0
      %v5072 = vadd.f32 0.0, %v5071
      %v5073 = vpop.f32.mrf.mxu0
      %5074 = vdwg.mxu0
      %5075 = vmatpush.bf16.msra.mxu0 0
      %5076 = vmatpush.bf16.msra.mxu0 0
      %5077 = vmatpush.bf16.msra.mxu0 0
      %5078 = vmatpush.bf16.msra.mxu0 0
      %5079 = vmatpush.bf16.msra.mxu0 0
      %5080 = vmatpush.bf16.msra.mxu0 0
      %5081 = vmatpush.bf16.msra.mxu0 0
      %5082 = vmatpush.bf16.msra.mxu0 %v5031
      %5083 = vmatmul.bf16.gmra.mxu0 %v5019
      %v5084 = vpop.f32.mrf.mxu0
      %v5085 = vadd.f32 0.0, %v5084
      %v5086 = vpop.f32.mrf.mxu0
      %5087 = vdwg.mxu0
      %5088 = vmatpush.bf16.msra.mxu0 0
      %5089 = vmatpush.bf16.msra.mxu0 0
      %5090 = vmatpush.bf16.msra.mxu0 0
      %5091 = vmatpush.bf16.msra.mxu0 0
      %5092 = vmatpush.bf16.msra.mxu0 0
      %5093 = vmatpush.bf16.msra.mxu0 0
      %5094 = vmatpush.bf16.msra.mxu0 0
      %5095 = vmatpush.bf16.msra.mxu0 %v5034
      %5096 = vmatmul.bf16.gmra.mxu0 %v5019
      %v5097 = vpop.f32.mrf.mxu0
      %v5098 = vadd.f32 0.0, %v5097
      %v5099 = vpop.f32.mrf.mxu0
      %5100 = vdwg.mxu0
      %v5101 = vadd.f32 %v4979, %v5046
      %v5102 = vadd.f32 %v4980, %v5059
      %v5103 = vadd.f32 %v4981, %v5072
      %v5104 = vadd.f32 %v4982, %v5085
      %v5105 = vadd.f32 %v4983, %v5098
      %v5106 = vld [vmem:[%s199 + $0x6] sm:$0xff]
      %v5107 = vld [vmem:[%s199 + $0xe] sm:$0x3]
      %s5108 = scalar_lea.vmem %s1, 160
      %v5109 = vld [vmem:[%s5108] sm:$0xf]
      %5111 = vst [vmem:[#allocation1] ss:$4 sm:$0xff] %v5106
      %s5113 = scalar_lea.vmem [#allocation1], 32
      %5114 = vst [vmem:[%s5113] ss:$4 sm:$0xff] %v5107
      %v5115 = vld.sshfl [vmem:[#allocation1] sm:$0xff pattern:$0x73625140]
      %v5117 = vld.sshfl [vmem:[#allocation1 + $0x8] sm:$0xff pattern:$0x73625140]
      %v5119 = vld.sshfl [vmem:[#allocation1 + $0x10] sm:$0xff pattern:$0x73625140]
      %v5121 = vld.sshfl [vmem:[#allocation1 + $0x18] sm:$0xff pattern:$0x73625140]
      %v5123 = vld.sshfl [vmem:[#allocation1 + $0x20] sm:$0xff pattern:$0x73625140]
      %5125 = vrot.lane.b32.xlu0 %v5115, 95
      %v5126 = vpop.permute.xlu0 %5125
      %5127 = vrot.lane.b32.xlu0 %v5117, 95
      %v5128 = vpop.permute.xlu0 %5127
      %5129 = vrot.lane.b32.xlu0 %v5119, 95
      %v5130 = vpop.permute.xlu0 %5129
      %5131 = vrot.lane.b32.xlu0 %v5121, 95
      %v5132 = vpop.permute.xlu0 %5131
      %5133 = vrot.lane.b32.xlu0 %v5123, 95
      %v5134 = vpop.permute.xlu0 %5133
      %vm5135 = vcmask 777216
      %v5136 = vsel %vm5135, %v5126, %v5128
      %v5137 = vsel %vm5135, %v5128, %v5130
      %v5138 = vsel %vm5135, %v5130, %v5132
      %v5139 = vsel %vm5135, %v5132, %v5134
      %v5141 = vsel %vm250, %v5109, 0
      %v5144 = vsel %vm254, %v5136, 0
      %v5147 = vsel %vm254, %v5137, 0
      %v5150 = vsel %vm254, %v5138, 0
      %v5153 = vsel %vm254, %v5139, 0
      %v5156 = vsel %vm254, %v5134, 0
      %5158 = vmatpush.bf16.msra.mxu0 0
      %5159 = vmatpush.bf16.msra.mxu0 0
      %5160 = vmatpush.bf16.msra.mxu0 0
      %5161 = vmatpush.bf16.msra.mxu0 0
      %5162 = vmatpush.bf16.msra.mxu0 0
      %5163 = vmatpush.bf16.msra.mxu0 0
      %5164 = vmatpush.bf16.msra.mxu0 0
      %5165 = vmatpush.bf16.msra.mxu0 %v5144
      %5166 = vmatmul.bf16.gmra.mxu0 %v5141
      %v5167 = vpop.f32.mrf.mxu0
      %v5168 = vadd.f32 0.0, %v5167
      %v5169 = vpop.f32.mrf.mxu0
      %5170 = vdwg.mxu0
      %5171 = vmatpush.bf16.msra.mxu0 0
      %5172 = vmatpush.bf16.msra.mxu0 0
      %5173 = vmatpush.bf16.msra.mxu0 0
      %5174 = vmatpush.bf16.msra.mxu0 0
      %5175 = vmatpush.bf16.msra.mxu0 0
      %5176 = vmatpush.bf16.msra.mxu0 0
      %5177 = vmatpush.bf16.msra.mxu0 0
      %5178 = vmatpush.bf16.msra.mxu0 %v5147
      %5179 = vmatmul.bf16.gmra.mxu0 %v5141
      %v5180 = vpop.f32.mrf.mxu0
      %v5181 = vadd.f32 0.0, %v5180
      %v5182 = vpop.f32.mrf.mxu0
      %5183 = vdwg.mxu0
      %5184 = vmatpush.bf16.msra.mxu0 0
      %5185 = vmatpush.bf16.msra.mxu0 0
      %5186 = vmatpush.bf16.msra.mxu0 0
      %5187 = vmatpush.bf16.msra.mxu0 0
      %5188 = vmatpush.bf16.msra.mxu0 0
      %5189 = vmatpush.bf16.msra.mxu0 0
      %5190 = vmatpush.bf16.msra.mxu0 0
      %5191 = vmatpush.bf16.msra.mxu0 %v5150
      %5192 = vmatmul.bf16.gmra.mxu0 %v5141
      %v5193 = vpop.f32.mrf.mxu0
      %v5194 = vadd.f32 0.0, %v5193
      %v5195 = vpop.f32.mrf.mxu0
      %5196 = vdwg.mxu0
      %5197 = vmatpush.bf16.msra.mxu0 0
      %5198 = vmatpush.bf16.msra.mxu0 0
      %5199 = vmatpush.bf16.msra.mxu0 0
      %5200 = vmatpush.bf16.msra.mxu0 0
      %5201 = vmatpush.bf16.msra.mxu0 0
      %5202 = vmatpush.bf16.msra.mxu0 0
      %5203 = vmatpush.bf16.msra.mxu0 0
      %5204 = vmatpush.bf16.msra.mxu0 %v5153
      %5205 = vmatmul.bf16.gmra.mxu0 %v5141
      %v5206 = vpop.f32.mrf.mxu0
      %v5207 = vadd.f32 0.0, %v5206
      %v5208 = vpop.f32.mrf.mxu0
      %5209 = vdwg.mxu0
      %5210 = vmatpush.bf16.msra.mxu0 0
      %5211 = vmatpush.bf16.msra.mxu0 0
      %5212 = vmatpush.bf16.msra.mxu0 0
      %5213 = vmatpush.bf16.msra.mxu0 0
      %5214 = vmatpush.bf16.msra.mxu0 0
      %5215 = vmatpush.bf16.msra.mxu0 0
      %5216 = vmatpush.bf16.msra.mxu0 0
      %5217 = vmatpush.bf16.msra.mxu0 %v5156
      %5218 = vmatmul.bf16.gmra.mxu0 %v5141
      %v5219 = vpop.f32.mrf.mxu0
      %v5220 = vadd.f32 0.0, %v5219
      %v5221 = vpop.f32.mrf.mxu0
      %5222 = vdwg.mxu0
      %v5223 = vadd.f32 %v5101, %v5168
      %v5224 = vadd.f32 %v5102, %v5181
      %v5225 = vadd.f32 %v5103, %v5194
      %v5226 = vadd.f32 %v5104, %v5207
      %v5227 = vadd.f32 %v5105, %v5220
      %v5228 = vld [vmem:[%s199 + $0x6] sm:$0xff]
      %v5229 = vld [vmem:[%s199 + $0xe] sm:$0x3]
      %s5230 = scalar_lea.vmem %s1, 164
      %v5231 = vld [vmem:[%s5230] sm:$0xf]
      %5233 = vst [vmem:[#allocation1] ss:$4 sm:$0xff] %v5228
      %s5235 = scalar_lea.vmem [#allocation1], 32
      %5236 = vst [vmem:[%s5235] ss:$4 sm:$0xff] %v5229
      %v5237 = vld.sshfl [vmem:[#allocation1] sm:$0xff pattern:$0x73625140]
      %v5239 = vld.sshfl [vmem:[#allocation1 + $0x8] sm:$0xff pattern:$0x73625140]
      %v5241 = vld.sshfl [vmem:[#allocation1 + $0x10] sm:$0xff pattern:$0x73625140]
      %v5243 = vld.sshfl [vmem:[#allocation1 + $0x18] sm:$0xff pattern:$0x73625140]
      %v5245 = vld.sshfl [vmem:[#allocation1 + $0x20] sm:$0xff pattern:$0x73625140]
      %5247 = vrot.lane.b32.xlu0 %v5237, 92
      %v5248 = vpop.permute.xlu0 %5247
      %5249 = vrot.lane.b32.xlu0 %v5239, 92
      %v5250 = vpop.permute.xlu0 %5249
      %5251 = vrot.lane.b32.xlu0 %v5241, 92
      %v5252 = vpop.permute.xlu0 %5251
      %5253 = vrot.lane.b32.xlu0 %v5243, 92
      %v5254 = vpop.permute.xlu0 %5253
      %5255 = vrot.lane.b32.xlu0 %v5245, 92
      %v5256 = vpop.permute.xlu0 %5255
      %vm5257 = vcmask 752640
      %v5258 = vsel %vm5257, %v5248, %v5250
      %v5259 = vsel %vm5257, %v5250, %v5252
      %v5260 = vsel %vm5257, %v5252, %v5254
      %v5261 = vsel %vm5257, %v5254, %v5256
      %v5263 = vsel %vm250, %v5231, 0
      %v5266 = vsel %vm254, %v5258, 0
      %v5269 = vsel %vm254, %v5259, 0
      %v5272 = vsel %vm254, %v5260, 0
      %v5275 = vsel %vm254, %v5261, 0
      %v5278 = vsel %vm254, %v5256, 0
      %5280 = vmatpush.bf16.msra.mxu0 0
      %5281 = vmatpush.bf16.msra.mxu0 0
      %5282 = vmatpush.bf16.msra.mxu0 0
      %5283 = vmatpush.bf16.msra.mxu0 0
      %5284 = vmatpush.bf16.msra.mxu0 0
      %5285 = vmatpush.bf16.msra.mxu0 0
      %5286 = vmatpush.bf16.msra.mxu0 0
      %5287 = vmatpush.bf16.msra.mxu0 %v5266
      %5288 = vmatmul.bf16.gmra.mxu0 %v5263
      %v5289 = vpop.f32.mrf.mxu0
      %v5290 = vadd.f32 0.0, %v5289
      %v5291 = vpop.f32.mrf.mxu0
      %5292 = vdwg.mxu0
      %5293 = vmatpush.bf16.msra.mxu0 0
      %5294 = vmatpush.bf16.msra.mxu0 0
      %5295 = vmatpush.bf16.msra.mxu0 0
      %5296 = vmatpush.bf16.msra.mxu0 0
      %5297 = vmatpush.bf16.msra.mxu0 0
      %5298 = vmatpush.bf16.msra.mxu0 0
      %5299 = vmatpush.bf16.msra.mxu0 0
      %5300 = vmatpush.bf16.msra.mxu0 %v5269
      %5301 = vmatmul.bf16.gmra.mxu0 %v5263
      %v5302 = vpop.f32.mrf.mxu0
      %v5303 = vadd.f32 0.0, %v5302
      %v5304 = vpop.f32.mrf.mxu0
      %5305 = vdwg.mxu0
      %5306 = vmatpush.bf16.msra.mxu0 0
      %5307 = vmatpush.bf16.msra.mxu0 0
      %5308 = vmatpush.bf16.msra.mxu0 0
      %5309 = vmatpush.bf16.msra.mxu0 0
      %5310 = vmatpush.bf16.msra.mxu0 0
      %5311 = vmatpush.bf16.msra.mxu0 0
      %5312 = vmatpush.bf16.msra.mxu0 0
      %5313 = vmatpush.bf16.msra.mxu0 %v5272
      %5314 = vmatmul.bf16.gmra.mxu0 %v5263
      %v5315 = vpop.f32.mrf.mxu0
      %v5316 = vadd.f32 0.0, %v5315
      %v5317 = vpop.f32.mrf.mxu0
      %5318 = vdwg.mxu0
      %5319 = vmatpush.bf16.msra.mxu0 0
      %5320 = vmatpush.bf16.msra.mxu0 0
      %5321 = vmatpush.bf16.msra.mxu0 0
      %5322 = vmatpush.bf16.msra.mxu0 0
      %5323 = vmatpush.bf16.msra.mxu0 0
      %5324 = vmatpush.bf16.msra.mxu0 0
      %5325 = vmatpush.bf16.msra.mxu0 0
      %5326 = vmatpush.bf16.msra.mxu0 %v5275
      %5327 = vmatmul.bf16.gmra.mxu0 %v5263
      %v5328 = vpop.f32.mrf.mxu0
      %v5329 = vadd.f32 0.0, %v5328
      %v5330 = vpop.f32.mrf.mxu0
      %5331 = vdwg.mxu0
      %5332 = vmatpush.bf16.msra.mxu0 0
      %5333 = vmatpush.bf16.msra.mxu0 0
      %5334 = vmatpush.bf16.msra.mxu0 0
      %5335 = vmatpush.bf16.msra.mxu0 0
      %5336 = vmatpush.bf16.msra.mxu0 0
      %5337 = vmatpush.bf16.msra.mxu0 0
      %5338 = vmatpush.bf16.msra.mxu0 0
      %5339 = vmatpush.bf16.msra.mxu0 %v5278
      %5340 = vmatmul.bf16.gmra.mxu0 %v5263
      %v5341 = vpop.f32.mrf.mxu0
      %v5342 = vadd.f32 0.0, %v5341
      %v5343 = vpop.f32.mrf.mxu0
      %5344 = vdwg.mxu0
      %v5345 = vadd.f32 %v5223, %v5290
      %v5346 = vadd.f32 %v5224, %v5303
      %v5347 = vadd.f32 %v5225, %v5316
      %v5348 = vadd.f32 %v5226, %v5329
      %v5349 = vadd.f32 %v5227, %v5342
      %v5350 = vld [vmem:[%s199 + $0x6] sm:$0xff]
      %v5351 = vld [vmem:[%s199 + $0xe] sm:$0x3]
      %s5352 = scalar_lea.vmem %s1, 168
      %v5353 = vld [vmem:[%s5352] sm:$0xf]
      %5355 = vst [vmem:[#allocation1] ss:$4 sm:$0xff] %v5350
      %s5357 = scalar_lea.vmem [#allocation1], 32
      %5358 = vst [vmem:[%s5357] ss:$4 sm:$0xff] %v5351
      %v5359 = vld.sshfl [vmem:[#allocation1] sm:$0xff pattern:$0x73625140]
      %v5361 = vld.sshfl [vmem:[#allocation1 + $0x8] sm:$0xff pattern:$0x73625140]
      %v5363 = vld.sshfl [vmem:[#allocation1 + $0x10] sm:$0xff pattern:$0x73625140]
      %v5365 = vld.sshfl [vmem:[#allocation1 + $0x18] sm:$0xff pattern:$0x73625140]
      %v5367 = vld.sshfl [vmem:[#allocation1 + $0x20] sm:$0xff pattern:$0x73625140]
      %5369 = vrot.lane.b32.xlu0 %v5359, 89
      %v5370 = vpop.permute.xlu0 %5369
      %5371 = vrot.lane.b32.xlu0 %v5361, 89
      %v5372 = vpop.permute.xlu0 %5371
      %5373 = vrot.lane.b32.xlu0 %v5363, 89
      %v5374 = vpop.permute.xlu0 %5373
      %5375 = vrot.lane.b32.xlu0 %v5365, 89
      %v5376 = vpop.permute.xlu0 %5375
      %5377 = vrot.lane.b32.xlu0 %v5367, 89
      %v5378 = vpop.permute.xlu0 %5377
      %vm5379 = vcmask 728064
      %v5380 = vsel %vm5379, %v5370, %v5372
      %v5381 = vsel %vm5379, %v5372, %v5374
      %v5382 = vsel %vm5379, %v5374, %v5376
      %v5383 = vsel %vm5379, %v5376, %v5378
      %v5385 = vsel %vm250, %v5353, 0
      %v5388 = vsel %vm254, %v5380, 0
      %v5391 = vsel %vm254, %v5381, 0
      %v5394 = vsel %vm254, %v5382, 0
      %v5397 = vsel %vm254, %v5383, 0
      %v5400 = vsel %vm254, %v5378, 0
      %5402 = vmatpush.bf16.msra.mxu0 0
      %5403 = vmatpush.bf16.msra.mxu0 0
      %5404 = vmatpush.bf16.msra.mxu0 0
      %5405 = vmatpush.bf16.msra.mxu0 0
      %5406 = vmatpush.bf16.msra.mxu0 0
      %5407 = vmatpush.bf16.msra.mxu0 0
      %5408 = vmatpush.bf16.msra.mxu0 0
      %5409 = vmatpush.bf16.msra.mxu0 %v5388
      %5410 = vmatmul.bf16.gmra.mxu0 %v5385
      %v5411 = vpop.f32.mrf.mxu0
      %v5412 = vadd.f32 0.0, %v5411
      %v5413 = vpop.f32.mrf.mxu0
      %5414 = vdwg.mxu0
      %5415 = vmatpush.bf16.msra.mxu0 0
      %5416 = vmatpush.bf16.msra.mxu0 0
      %5417 = vmatpush.bf16.msra.mxu0 0
      %5418 = vmatpush.bf16.msra.mxu0 0
      %5419 = vmatpush.bf16.msra.mxu0 0
      %5420 = vmatpush.bf16.msra.mxu0 0
      %5421 = vmatpush.bf16.msra.mxu0 0
      %5422 = vmatpush.bf16.msra.mxu0 %v5391
      %5423 = vmatmul.bf16.gmra.mxu0 %v5385
      %v5424 = vpop.f32.mrf.mxu0
      %v5425 = vadd.f32 0.0, %v5424
      %v5426 = vpop.f32.mrf.mxu0
      %5427 = vdwg.mxu0
      %5428 = vmatpush.bf16.msra.mxu0 0
      %5429 = vmatpush.bf16.msra.mxu0 0
      %5430 = vmatpush.bf16.msra.mxu0 0
      %5431 = vmatpush.bf16.msra.mxu0 0
      %5432 = vmatpush.bf16.msra.mxu0 0
      %5433 = vmatpush.bf16.msra.mxu0 0
      %5434 = vmatpush.bf16.msra.mxu0 0
      %5435 = vmatpush.bf16.msra.mxu0 %v5394
      %5436 = vmatmul.bf16.gmra.mxu0 %v5385
      %v5437 = vpop.f32.mrf.mxu0
      %v5438 = vadd.f32 0.0, %v5437
      %v5439 = vpop.f32.mrf.mxu0
      %5440 = vdwg.mxu0
      %5441 = vmatpush.bf16.msra.mxu0 0
      %5442 = vmatpush.bf16.msra.mxu0 0
      %5443 = vmatpush.bf16.msra.mxu0 0
      %5444 = vmatpush.bf16.msra.mxu0 0
      %5445 = vmatpush.bf16.msra.mxu0 0
      %5446 = vmatpush.bf16.msra.mxu0 0
      %5447 = vmatpush.bf16.msra.mxu0 0
      %5448 = vmatpush.bf16.msra.mxu0 %v5397
      %5449 = vmatmul.bf16.gmra.mxu0 %v5385
      %v5450 = vpop.f32.mrf.mxu0
      %v5451 = vadd.f32 0.0, %v5450
      %v5452 = vpop.f32.mrf.mxu0
      %5453 = vdwg.mxu0
      %5454 = vmatpush.bf16.msra.mxu0 0
      %5455 = vmatpush.bf16.msra.mxu0 0
      %5456 = vmatpush.bf16.msra.mxu0 0
      %5457 = vmatpush.bf16.msra.mxu0 0
      %5458 = vmatpush.bf16.msra.mxu0 0
      %5459 = vmatpush.bf16.msra.mxu0 0
      %5460 = vmatpush.bf16.msra.mxu0 0
      %5461 = vmatpush.bf16.msra.mxu0 %v5400
      %5462 = vmatmul.bf16.gmra.mxu0 %v5385
      %v5463 = vpop.f32.mrf.mxu0
      %v5464 = vadd.f32 0.0, %v5463
      %v5465 = vpop.f32.mrf.mxu0
      %5466 = vdwg.mxu0
      %v5467 = vadd.f32 %v5345, %v5412
      %v5468 = vadd.f32 %v5346, %v5425
      %v5469 = vadd.f32 %v5347, %v5438
      %v5470 = vadd.f32 %v5348, %v5451
      %v5471 = vadd.f32 %v5349, %v5464
      %v5472 = vld [vmem:[%s199 + $0x6] sm:$0xff]
      %v5473 = vld [vmem:[%s199 + $0xe] sm:$0x3]
      %s5474 = scalar_lea.vmem %s1, 172
      %v5475 = vld [vmem:[%s5474] sm:$0xf]
      %5477 = vst [vmem:[#allocation1] ss:$4 sm:$0xff] %v5472
      %s5479 = scalar_lea.vmem [#allocation1], 32
      %5480 = vst [vmem:[%s5479] ss:$4 sm:$0xff] %v5473
      %v5481 = vld.sshfl [vmem:[#allocation1] sm:$0xff pattern:$0x73625140]
      %v5483 = vld.sshfl [vmem:[#allocation1 + $0x8] sm:$0xff pattern:$0x73625140]
      %v5485 = vld.sshfl [vmem:[#allocation1 + $0x10] sm:$0xff pattern:$0x73625140]
      %v5487 = vld.sshfl [vmem:[#allocation1 + $0x18] sm:$0xff pattern:$0x73625140]
      %v5489 = vld.sshfl [vmem:[#allocation1 + $0x20] sm:$0xff pattern:$0x73625140]
      %5491 = vrot.lane.b32.xlu0 %v5481, 86
      %v5492 = vpop.permute.xlu0 %5491
      %5493 = vrot.lane.b32.xlu0 %v5483, 86
      %v5494 = vpop.permute.xlu0 %5493
      %5495 = vrot.lane.b32.xlu0 %v5485, 86
      %v5496 = vpop.permute.xlu0 %5495
      %5497 = vrot.lane.b32.xlu0 %v5487, 86
      %v5498 = vpop.permute.xlu0 %5497
      %5499 = vrot.lane.b32.xlu0 %v5489, 86
      %v5500 = vpop.permute.xlu0 %5499
      %vm5501 = vcmask 703488
      %v5502 = vsel %vm5501, %v5492, %v5494
      %v5503 = vsel %vm5501, %v5494, %v5496
      %v5504 = vsel %vm5501, %v5496, %v5498
      %v5505 = vsel %vm5501, %v5498, %v5500
      %v5507 = vsel %vm250, %v5475, 0
      %v5510 = vsel %vm254, %v5502, 0
      %v5513 = vsel %vm254, %v5503, 0
      %v5516 = vsel %vm254, %v5504, 0
      %v5519 = vsel %vm254, %v5505, 0
      %v5522 = vsel %vm254, %v5500, 0
      %5524 = vmatpush.bf16.msra.mxu0 0
      %5525 = vmatpush.bf16.msra.mxu0 0
      %5526 = vmatpush.bf16.msra.mxu0 0
      %5527 = vmatpush.bf16.msra.mxu0 0
      %5528 = vmatpush.bf16.msra.mxu0 0
      %5529 = vmatpush.bf16.msra.mxu0 0
      %5530 = vmatpush.bf16.msra.mxu0 0
      %5531 = vmatpush.bf16.msra.mxu0 %v5510
      %5532 = vmatmul.bf16.gmra.mxu0 %v5507
      %v5533 = vpop.f32.mrf.mxu0
      %v5534 = vadd.f32 0.0, %v5533
      %v5535 = vpop.f32.mrf.mxu0
      %5536 = vdwg.mxu0
      %5537 = vmatpush.bf16.msra.mxu0 0
      %5538 = vmatpush.bf16.msra.mxu0 0
      %5539 = vmatpush.bf16.msra.mxu0 0
      %5540 = vmatpush.bf16.msra.mxu0 0
      %5541 = vmatpush.bf16.msra.mxu0 0
      %5542 = vmatpush.bf16.msra.mxu0 0
      %5543 = vmatpush.bf16.msra.mxu0 0
      %5544 = vmatpush.bf16.msra.mxu0 %v5513
      %5545 = vmatmul.bf16.gmra.mxu0 %v5507
      %v5546 = vpop.f32.mrf.mxu0
      %v5547 = vadd.f32 0.0, %v5546
      %v5548 = vpop.f32.mrf.mxu0
      %5549 = vdwg.mxu0
      %5550 = vmatpush.bf16.msra.mxu0 0
      %5551 = vmatpush.bf16.msra.mxu0 0
      %5552 = vmatpush.bf16.msra.mxu0 0
      %5553 = vmatpush.bf16.msra.mxu0 0
      %5554 = vmatpush.bf16.msra.mxu0 0
      %5555 = vmatpush.bf16.msra.mxu0 0
      %5556 = vmatpush.bf16.msra.mxu0 0
      %5557 = vmatpush.bf16.msra.mxu0 %v5516
      %5558 = vmatmul.bf16.gmra.mxu0 %v5507
      %v5559 = vpop.f32.mrf.mxu0
      %v5560 = vadd.f32 0.0, %v5559
      %v5561 = vpop.f32.mrf.mxu0
      %5562 = vdwg.mxu0
      %5563 = vmatpush.bf16.msra.mxu0 0
      %5564 = vmatpush.bf16.msra.mxu0 0
      %5565 = vmatpush.bf16.msra.mxu0 0
      %5566 = vmatpush.bf16.msra.mxu0 0
      %5567 = vmatpush.bf16.msra.mxu0 0
      %5568 = vmatpush.bf16.msra.mxu0 0
      %5569 = vmatpush.bf16.msra.mxu0 0
      %5570 = vmatpush.bf16.msra.mxu0 %v5519
      %5571 = vmatmul.bf16.gmra.mxu0 %v5507
      %v5572 = vpop.f32.mrf.mxu0
      %v5573 = vadd.f32 0.0, %v5572
      %v5574 = vpop.f32.mrf.mxu0
      %5575 = vdwg.mxu0
      %5576 = vmatpush.bf16.msra.mxu0 0
      %5577 = vmatpush.bf16.msra.mxu0 0
      %5578 = vmatpush.bf16.msra.mxu0 0
      %5579 = vmatpush.bf16.msra.mxu0 0
      %5580 = vmatpush.bf16.msra.mxu0 0
      %5581 = vmatpush.bf16.msra.mxu0 0
      %5582 = vmatpush.bf16.msra.mxu0 0
      %5583 = vmatpush.bf16.msra.mxu0 %v5522
      %5584 = vmatmul.bf16.gmra.mxu0 %v5507
      %v5585 = vpop.f32.mrf.mxu0
      %v5586 = vadd.f32 0.0, %v5585
      %v5587 = vpop.f32.mrf.mxu0
      %5588 = vdwg.mxu0
      %v5589 = vadd.f32 %v5467, %v5534
      %v5590 = vadd.f32 %v5468, %v5547
      %v5591 = vadd.f32 %v5469, %v5560
      %v5592 = vadd.f32 %v5470, %v5573
      %v5593 = vadd.f32 %v5471, %v5586
      %v5594 = vld [vmem:[%s199 + $0x6] sm:$0xff]
      %v5595 = vld [vmem:[%s199 + $0xe] sm:$0xf]
      %s5596 = scalar_lea.vmem %s1, 176
      %v5597 = vld [vmem:[%s5596] sm:$0xf]
      %5599 = vst [vmem:[#allocation1] ss:$4 sm:$0xff] %v5594
      %s5601 = scalar_lea.vmem [#allocation1], 32
      %5602 = vst [vmem:[%s5601] ss:$4 sm:$0xff] %v5595
      %v5603 = vld.sshfl [vmem:[#allocation1] sm:$0xff pattern:$0x73625140]
      %v5605 = vld.sshfl [vmem:[#allocation1 + $0x8] sm:$0xff pattern:$0x73625140]
      %v5607 = vld.sshfl [vmem:[#allocation1 + $0x10] sm:$0xff pattern:$0x73625140]
      %v5609 = vld.sshfl [vmem:[#allocation1 + $0x18] sm:$0xff pattern:$0x73625140]
      %v5611 = vld.sshfl [vmem:[#allocation1 + $0x20] sm:$0xff pattern:$0x73625140]
      %v5613 = vld.sshfl [vmem:[#allocation1 + $0x28] sm:$0xff pattern:$0x73625140]
      %5615 = vrot.lane.b32.xlu0 %v5603, 2
      %v5616 = vpop.permute.xlu0 %5615
      %5617 = vrot.lane.b32.xlu0 %v5605, 2
      %v5618 = vpop.permute.xlu0 %5617
      %5619 = vrot.lane.b32.xlu0 %v5607, 2
      %v5620 = vpop.permute.xlu0 %5619
      %5621 = vrot.lane.b32.xlu0 %v5609, 2
      %v5622 = vpop.permute.xlu0 %5621
      %5623 = vrot.lane.b32.xlu0 %v5611, 2
      %v5624 = vpop.permute.xlu0 %5623
      %5625 = vrot.lane.b32.xlu0 %v5613, 2
      %v5626 = vpop.permute.xlu0 %5625
      %vm5627 = vcmask 15360
      %v5628 = vsel %vm5627, %v5616, %v5618
      %v5629 = vsel %vm5627, %v5618, %v5620
      %v5630 = vsel %vm5627, %v5620, %v5622
      %v5631 = vsel %vm5627, %v5622, %v5624
      %v5632 = vsel %vm5627, %v5624, %v5626
      %v5634 = vsel %vm250, %v5597, 0
      %v5637 = vsel %vm254, %v5628, 0
      %v5640 = vsel %vm254, %v5629, 0
      %v5643 = vsel %vm254, %v5630, 0
      %v5646 = vsel %vm254, %v5631, 0
      %v5649 = vsel %vm254, %v5632, 0
      %5651 = vmatpush.bf16.msra.mxu0 0
      %5652 = vmatpush.bf16.msra.mxu0 0
      %5653 = vmatpush.bf16.msra.mxu0 0
      %5654 = vmatpush.bf16.msra.mxu0 0
      %5655 = vmatpush.bf16.msra.mxu0 0
      %5656 = vmatpush.bf16.msra.mxu0 0
      %5657 = vmatpush.bf16.msra.mxu0 0
      %5658 = vmatpush.bf16.msra.mxu0 %v5637
      %5659 = vmatmul.bf16.gmra.mxu0 %v5634
      %v5660 = vpop.f32.mrf.mxu0
      %v5661 = vadd.f32 0.0, %v5660
      %v5662 = vpop.f32.mrf.mxu0
      %5663 = vdwg.mxu0
      %5664 = vmatpush.bf16.msra.mxu0 0
      %5665 = vmatpush.bf16.msra.mxu0 0
      %5666 = vmatpush.bf16.msra.mxu0 0
      %5667 = vmatpush.bf16.msra.mxu0 0
      %5668 = vmatpush.bf16.msra.mxu0 0
      %5669 = vmatpush.bf16.msra.mxu0 0
      %5670 = vmatpush.bf16.msra.mxu0 0
      %5671 = vmatpush.bf16.msra.mxu0 %v5640
      %5672 = vmatmul.bf16.gmra.mxu0 %v5634
      %v5673 = vpop.f32.mrf.mxu0
      %v5674 = vadd.f32 0.0, %v5673
      %v5675 = vpop.f32.mrf.mxu0
      %5676 = vdwg.mxu0
      %5677 = vmatpush.bf16.msra.mxu0 0
      %5678 = vmatpush.bf16.msra.mxu0 0
      %5679 = vmatpush.bf16.msra.mxu0 0
      %5680 = vmatpush.bf16.msra.mxu0 0
      %5681 = vmatpush.bf16.msra.mxu0 0
      %5682 = vmatpush.bf16.msra.mxu0 0
      %5683 = vmatpush.bf16.msra.mxu0 0
      %5684 = vmatpush.bf16.msra.mxu0 %v5643
      %5685 = vmatmul.bf16.gmra.mxu0 %v5634
      %v5686 = vpop.f32.mrf.mxu0
      %v5687 = vadd.f32 0.0, %v5686
      %v5688 = vpop.f32.mrf.mxu0
      %5689 = vdwg.mxu0
      %5690 = vmatpush.bf16.msra.mxu0 0
      %5691 = vmatpush.bf16.msra.mxu0 0
      %5692 = vmatpush.bf16.msra.mxu0 0
      %5693 = vmatpush.bf16.msra.mxu0 0
      %5694 = vmatpush.bf16.msra.mxu0 0
      %5695 = vmatpush.bf16.msra.mxu0 0
      %5696 = vmatpush.bf16.msra.mxu0 0
      %5697 = vmatpush.bf16.msra.mxu0 %v5646
      %5698 = vmatmul.bf16.gmra.mxu0 %v5634
      %v5699 = vpop.f32.mrf.mxu0
      %v5700 = vadd.f32 0.0, %v5699
      %v5701 = vpop.f32.mrf.mxu0
      %5702 = vdwg.mxu0
      %5703 = vmatpush.bf16.msra.mxu0 0
      %5704 = vmatpush.bf16.msra.mxu0 0
      %5705 = vmatpush.bf16.msra.mxu0 0
      %5706 = vmatpush.bf16.msra.mxu0 0
      %5707 = vmatpush.bf16.msra.mxu0 0
      %5708 = vmatpush.bf16.msra.mxu0 0
      %5709 = vmatpush.bf16.msra.mxu0 0
      %5710 = vmatpush.bf16.msra.mxu0 %v5649
      %5711 = vmatmul.bf16.gmra.mxu0 %v5634
      %v5712 = vpop.f32.mrf.mxu0
      %v5713 = vadd.f32 0.0, %v5712
      %v5714 = vpop.f32.mrf.mxu0
      %5715 = vdwg.mxu0
      %v5716 = vadd.f32 %v5589, %v5661
      %v5717 = vadd.f32 %v5590, %v5674
      %v5718 = vadd.f32 %v5591, %v5687
      %v5719 = vadd.f32 %v5592, %v5700
      %v5720 = vadd.f32 %v5593, %v5713
      %v5721 = vld [vmem:[%s199 + $0x8] sm:$0xff]
      %v5722 = vld [vmem:[%s199 + $0x10] sm:$0x3]
      %s5723 = scalar_lea.vmem %s1, 180
      %v5724 = vld [vmem:[%s5723] sm:$0xf]
      %5726 = vst [vmem:[#allocation1] ss:$4 sm:$0xff] %v5721
      %s5728 = scalar_lea.vmem [#allocation1], 32
      %5729 = vst [vmem:[%s5728] ss:$4 sm:$0xff] %v5722
      %v5730 = vld.sshfl [vmem:[#allocation1] sm:$0xff pattern:$0x73625140]
      %v5732 = vld.sshfl [vmem:[#allocation1 + $0x8] sm:$0xff pattern:$0x73625140]
      %v5734 = vld.sshfl [vmem:[#allocation1 + $0x10] sm:$0xff pattern:$0x73625140]
      %v5736 = vld.sshfl [vmem:[#allocation1 + $0x18] sm:$0xff pattern:$0x73625140]
      %v5738 = vld.sshfl [vmem:[#allocation1 + $0x20] sm:$0xff pattern:$0x73625140]
      %5740 = vrot.lane.b32.xlu0 %v5730, 127
      %v5741 = vpop.permute.xlu0 %5740
      %5742 = vrot.lane.b32.xlu0 %v5732, 127
      %v5743 = vpop.permute.xlu0 %5742
      %5744 = vrot.lane.b32.xlu0 %v5734, 127
      %v5745 = vpop.permute.xlu0 %5744
      %5746 = vrot.lane.b32.xlu0 %v5736, 127
      %v5747 = vpop.permute.xlu0 %5746
      %5748 = vrot.lane.b32.xlu0 %v5738, 127
      %v5749 = vpop.permute.xlu0 %5748
      %v5750 = vsel %vm1227, %v5741, %v5743
      %v5751 = vsel %vm1227, %v5743, %v5745
      %v5752 = vsel %vm1227, %v5745, %v5747
      %v5753 = vsel %vm1227, %v5747, %v5749
      %v5755 = vsel %vm250, %v5724, 0
      %v5758 = vsel %vm254, %v5750, 0
      %v5761 = vsel %vm254, %v5751, 0
      %v5764 = vsel %vm254, %v5752, 0
      %v5767 = vsel %vm254, %v5753, 0
      %v5770 = vsel %vm254, %v5749, 0
      %5772 = vmatpush.bf16.msra.mxu0 0
      %5773 = vmatpush.bf16.msra.mxu0 0
      %5774 = vmatpush.bf16.msra.mxu0 0
      %5775 = vmatpush.bf16.msra.mxu0 0
      %5776 = vmatpush.bf16.msra.mxu0 0
      %5777 = vmatpush.bf16.msra.mxu0 0
      %5778 = vmatpush.bf16.msra.mxu0 0
      %5779 = vmatpush.bf16.msra.mxu0 %v5758
      %5780 = vmatmul.bf16.gmra.mxu0 %v5755
      %v5781 = vpop.f32.mrf.mxu0
      %v5782 = vadd.f32 0.0, %v5781
      %v5783 = vpop.f32.mrf.mxu0
      %5784 = vdwg.mxu0
      %5785 = vmatpush.bf16.msra.mxu0 0
      %5786 = vmatpush.bf16.msra.mxu0 0
      %5787 = vmatpush.bf16.msra.mxu0 0
      %5788 = vmatpush.bf16.msra.mxu0 0
      %5789 = vmatpush.bf16.msra.mxu0 0
      %5790 = vmatpush.bf16.msra.mxu0 0
      %5791 = vmatpush.bf16.msra.mxu0 0
      %5792 = vmatpush.bf16.msra.mxu0 %v5761
      %5793 = vmatmul.bf16.gmra.mxu0 %v5755
      %v5794 = vpop.f32.mrf.mxu0
      %v5795 = vadd.f32 0.0, %v5794
      %v5796 = vpop.f32.mrf.mxu0
      %5797 = vdwg.mxu0
      %5798 = vmatpush.bf16.msra.mxu0 0
      %5799 = vmatpush.bf16.msra.mxu0 0
      %5800 = vmatpush.bf16.msra.mxu0 0
      %5801 = vmatpush.bf16.msra.mxu0 0
      %5802 = vmatpush.bf16.msra.mxu0 0
      %5803 = vmatpush.bf16.msra.mxu0 0
      %5804 = vmatpush.bf16.msra.mxu0 0
      %5805 = vmatpush.bf16.msra.mxu0 %v5764
      %5806 = vmatmul.bf16.gmra.mxu0 %v5755
      %v5807 = vpop.f32.mrf.mxu0
      %v5808 = vadd.f32 0.0, %v5807
      %v5809 = vpop.f32.mrf.mxu0
      %5810 = vdwg.mxu0
      %5811 = vmatpush.bf16.msra.mxu0 0
      %5812 = vmatpush.bf16.msra.mxu0 0
      %5813 = vmatpush.bf16.msra.mxu0 0
      %5814 = vmatpush.bf16.msra.mxu0 0
      %5815 = vmatpush.bf16.msra.mxu0 0
      %5816 = vmatpush.bf16.msra.mxu0 0
      %5817 = vmatpush.bf16.msra.mxu0 0
      %5818 = vmatpush.bf16.msra.mxu0 %v5767
      %5819 = vmatmul.bf16.gmra.mxu0 %v5755
      %v5820 = vpop.f32.mrf.mxu0
      %v5821 = vadd.f32 0.0, %v5820
      %v5822 = vpop.f32.mrf.mxu0
      %5823 = vdwg.mxu0
      %5824 = vmatpush.bf16.msra.mxu0 0
      %5825 = vmatpush.bf16.msra.mxu0 0
      %5826 = vmatpush.bf16.msra.mxu0 0
      %5827 = vmatpush.bf16.msra.mxu0 0
      %5828 = vmatpush.bf16.msra.mxu0 0
      %5829 = vmatpush.bf16.msra.mxu0 0
      %5830 = vmatpush.bf16.msra.mxu0 0
      %5831 = vmatpush.bf16.msra.mxu0 %v5770
      %5832 = vmatmul.bf16.gmra.mxu0 %v5755
      %v5833 = vpop.f32.mrf.mxu0
      %v5834 = vadd.f32 0.0, %v5833
      %v5835 = vpop.f32.mrf.mxu0
      %5836 = vdwg.mxu0
      %v5837 = vadd.f32 %v5716, %v5782
      %v5838 = vadd.f32 %v5717, %v5795
      %v5839 = vadd.f32 %v5718, %v5808
      %v5840 = vadd.f32 %v5719, %v5821
      %v5841 = vadd.f32 %v5720, %v5834
      %v5842 = vld [vmem:[%s199 + $0x8] sm:$0xff]
      %v5843 = vld [vmem:[%s199 + $0x10] sm:$0x3]
      %s5844 = scalar_lea.vmem %s1, 184
      %v5845 = vld [vmem:[%s5844] sm:$0xf]
      %5847 = vst [vmem:[#allocation1] ss:$4 sm:$0xff] %v5842
      %s5849 = scalar_lea.vmem [#allocation1], 32
      %5850 = vst [vmem:[%s5849] ss:$4 sm:$0xff] %v5843
      %v5851 = vld.sshfl [vmem:[#allocation1] sm:$0xff pattern:$0x73625140]
      %v5853 = vld.sshfl [vmem:[#allocation1 + $0x8] sm:$0xff pattern:$0x73625140]
      %v5855 = vld.sshfl [vmem:[#allocation1 + $0x10] sm:$0xff pattern:$0x73625140]
      %v5857 = vld.sshfl [vmem:[#allocation1 + $0x18] sm:$0xff pattern:$0x73625140]
      %v5859 = vld.sshfl [vmem:[#allocation1 + $0x20] sm:$0xff pattern:$0x73625140]
      %5861 = vrot.lane.b32.xlu0 %v5851, 124
      %v5862 = vpop.permute.xlu0 %5861
      %5863 = vrot.lane.b32.xlu0 %v5853, 124
      %v5864 = vpop.permute.xlu0 %5863
      %5865 = vrot.lane.b32.xlu0 %v5855, 124
      %v5866 = vpop.permute.xlu0 %5865
      %5867 = vrot.lane.b32.xlu0 %v5857, 124
      %v5868 = vpop.permute.xlu0 %5867
      %5869 = vrot.lane.b32.xlu0 %v5859, 124
      %v5870 = vpop.permute.xlu0 %5869
      %vm5871 = vcmask 1014784
      %v5872 = vsel %vm5871, %v5862, %v5864
      %v5873 = vsel %vm5871, %v5864, %v5866
      %v5874 = vsel %vm5871, %v5866, %v5868
      %v5875 = vsel %vm5871, %v5868, %v5870
      %v5877 = vsel %vm250, %v5845, 0
      %v5880 = vsel %vm254, %v5872, 0
      %v5883 = vsel %vm254, %v5873, 0
      %v5886 = vsel %vm254, %v5874, 0
      %v5889 = vsel %vm254, %v5875, 0
      %v5892 = vsel %vm254, %v5870, 0
      %5894 = vmatpush.bf16.msra.mxu0 0
      %5895 = vmatpush.bf16.msra.mxu0 0
      %5896 = vmatpush.bf16.msra.mxu0 0
      %5897 = vmatpush.bf16.msra.mxu0 0
      %5898 = vmatpush.bf16.msra.mxu0 0
      %5899 = vmatpush.bf16.msra.mxu0 0
      %5900 = vmatpush.bf16.msra.mxu0 0
      %5901 = vmatpush.bf16.msra.mxu0 %v5880
      %5902 = vmatmul.bf16.gmra.mxu0 %v5877
      %v5903 = vpop.f32.mrf.mxu0
      %v5904 = vadd.f32 0.0, %v5903
      %v5905 = vpop.f32.mrf.mxu0
      %5906 = vdwg.mxu0
      %5907 = vmatpush.bf16.msra.mxu0 0
      %5908 = vmatpush.bf16.msra.mxu0 0
      %5909 = vmatpush.bf16.msra.mxu0 0
      %5910 = vmatpush.bf16.msra.mxu0 0
      %5911 = vmatpush.bf16.msra.mxu0 0
      %5912 = vmatpush.bf16.msra.mxu0 0
      %5913 = vmatpush.bf16.msra.mxu0 0
      %5914 = vmatpush.bf16.msra.mxu0 %v5883
      %5915 = vmatmul.bf16.gmra.mxu0 %v5877
      %v5916 = vpop.f32.mrf.mxu0
      %v5917 = vadd.f32 0.0, %v5916
      %v5918 = vpop.f32.mrf.mxu0
      %5919 = vdwg.mxu0
      %5920 = vmatpush.bf16.msra.mxu0 0
      %5921 = vmatpush.bf16.msra.mxu0 0
      %5922 = vmatpush.bf16.msra.mxu0 0
      %5923 = vmatpush.bf16.msra.mxu0 0
      %5924 = vmatpush.bf16.msra.mxu0 0
      %5925 = vmatpush.bf16.msra.mxu0 0
      %5926 = vmatpush.bf16.msra.mxu0 0
      %5927 = vmatpush.bf16.msra.mxu0 %v5886
      %5928 = vmatmul.bf16.gmra.mxu0 %v5877
      %v5929 = vpop.f32.mrf.mxu0
      %v5930 = vadd.f32 0.0, %v5929
      %v5931 = vpop.f32.mrf.mxu0
      %5932 = vdwg.mxu0
      %5933 = vmatpush.bf16.msra.mxu0 0
      %5934 = vmatpush.bf16.msra.mxu0 0
      %5935 = vmatpush.bf16.msra.mxu0 0
      %5936 = vmatpush.bf16.msra.mxu0 0
      %5937 = vmatpush.bf16.msra.mxu0 0
      %5938 = vmatpush.bf16.msra.mxu0 0
      %5939 = vmatpush.bf16.msra.mxu0 0
      %5940 = vmatpush.bf16.msra.mxu0 %v5889
      %5941 = vmatmul.bf16.gmra.mxu0 %v5877
      %v5942 = vpop.f32.mrf.mxu0
      %v5943 = vadd.f32 0.0, %v5942
      %v5944 = vpop.f32.mrf.mxu0
      %5945 = vdwg.mxu0
      %5946 = vmatpush.bf16.msra.mxu0 0
      %5947 = vmatpush.bf16.msra.mxu0 0
      %5948 = vmatpush.bf16.msra.mxu0 0
      %5949 = vmatpush.bf16.msra.mxu0 0
      %5950 = vmatpush.bf16.msra.mxu0 0
      %5951 = vmatpush.bf16.msra.mxu0 0
      %5952 = vmatpush.bf16.msra.mxu0 0
      %5953 = vmatpush.bf16.msra.mxu0 %v5892
      %5954 = vmatmul.bf16.gmra.mxu0 %v5877
      %v5955 = vpop.f32.mrf.mxu0
      %v5956 = vadd.f32 0.0, %v5955
      %v5957 = vpop.f32.mrf.mxu0
      %5958 = vdwg.mxu0
      %v5959 = vadd.f32 %v5837, %v5904
      %v5960 = vadd.f32 %v5838, %v5917
      %v5961 = vadd.f32 %v5839, %v5930
      %v5962 = vadd.f32 %v5840, %v5943
      %v5963 = vadd.f32 %v5841, %v5956
      %v5964 = vld [vmem:[%s199 + $0x8] sm:$0xff]
      %v5965 = vld [vmem:[%s199 + $0x10] sm:$0x3]
      %s5966 = scalar_lea.vmem %s1, 188
      %v5967 = vld [vmem:[%s5966] sm:$0xf]
      %5969 = vst [vmem:[#allocation1] ss:$4 sm:$0xff] %v5964
      %s5971 = scalar_lea.vmem [#allocation1], 32
      %5972 = vst [vmem:[%s5971] ss:$4 sm:$0xff] %v5965
      %v5973 = vld.sshfl [vmem:[#allocation1] sm:$0xff pattern:$0x73625140]
      %v5975 = vld.sshfl [vmem:[#allocation1 + $0x8] sm:$0xff pattern:$0x73625140]
      %v5977 = vld.sshfl [vmem:[#allocation1 + $0x10] sm:$0xff pattern:$0x73625140]
      %v5979 = vld.sshfl [vmem:[#allocation1 + $0x18] sm:$0xff pattern:$0x73625140]
      %v5981 = vld.sshfl [vmem:[#allocation1 + $0x20] sm:$0xff pattern:$0x73625140]
      %5983 = vrot.lane.b32.xlu0 %v5973, 121
      %v5984 = vpop.permute.xlu0 %5983
      %5985 = vrot.lane.b32.xlu0 %v5975, 121
      %v5986 = vpop.permute.xlu0 %5985
      %5987 = vrot.lane.b32.xlu0 %v5977, 121
      %v5988 = vpop.permute.xlu0 %5987
      %5989 = vrot.lane.b32.xlu0 %v5979, 121
      %v5990 = vpop.permute.xlu0 %5989
      %5991 = vrot.lane.b32.xlu0 %v5981, 121
      %v5992 = vpop.permute.xlu0 %5991
      %vm5993 = vcmask 990208
      %v5994 = vsel %vm5993, %v5984, %v5986
      %v5995 = vsel %vm5993, %v5986, %v5988
      %v5996 = vsel %vm5993, %v5988, %v5990
      %v5997 = vsel %vm5993, %v5990, %v5992
      %v5999 = vsel %vm250, %v5967, 0
      %v6002 = vsel %vm254, %v5994, 0
      %v6005 = vsel %vm254, %v5995, 0
      %v6008 = vsel %vm254, %v5996, 0
      %v6011 = vsel %vm254, %v5997, 0
      %v6014 = vsel %vm254, %v5992, 0
      %6016 = vmatpush.bf16.msra.mxu0 0
      %6017 = vmatpush.bf16.msra.mxu0 0
      %6018 = vmatpush.bf16.msra.mxu0 0
      %6019 = vmatpush.bf16.msra.mxu0 0
      %6020 = vmatpush.bf16.msra.mxu0 0
      %6021 = vmatpush.bf16.msra.mxu0 0
      %6022 = vmatpush.bf16.msra.mxu0 0
      %6023 = vmatpush.bf16.msra.mxu0 %v6002
      %6024 = vmatmul.bf16.gmra.mxu0 %v5999
      %v6025 = vpop.f32.mrf.mxu0
      %v6026 = vadd.f32 0.0, %v6025
      %v6027 = vpop.f32.mrf.mxu0
      %6028 = vdwg.mxu0
      %6029 = vmatpush.bf16.msra.mxu0 0
      %6030 = vmatpush.bf16.msra.mxu0 0
      %6031 = vmatpush.bf16.msra.mxu0 0
      %6032 = vmatpush.bf16.msra.mxu0 0
      %6033 = vmatpush.bf16.msra.mxu0 0
      %6034 = vmatpush.bf16.msra.mxu0 0
      %6035 = vmatpush.bf16.msra.mxu0 0
      %6036 = vmatpush.bf16.msra.mxu0 %v6005
      %6037 = vmatmul.bf16.gmra.mxu0 %v5999
      %v6038 = vpop.f32.mrf.mxu0
      %v6039 = vadd.f32 0.0, %v6038
      %v6040 = vpop.f32.mrf.mxu0
      %6041 = vdwg.mxu0
      %6042 = vmatpush.bf16.msra.mxu0 0
      %6043 = vmatpush.bf16.msra.mxu0 0
      %6044 = vmatpush.bf16.msra.mxu0 0
      %6045 = vmatpush.bf16.msra.mxu0 0
      %6046 = vmatpush.bf16.msra.mxu0 0
      %6047 = vmatpush.bf16.msra.mxu0 0
      %6048 = vmatpush.bf16.msra.mxu0 0
      %6049 = vmatpush.bf16.msra.mxu0 %v6008
      %6050 = vmatmul.bf16.gmra.mxu0 %v5999
      %v6051 = vpop.f32.mrf.mxu0
      %v6052 = vadd.f32 0.0, %v6051
      %v6053 = vpop.f32.mrf.mxu0
      %6054 = vdwg.mxu0
      %6055 = vmatpush.bf16.msra.mxu0 0
      %6056 = vmatpush.bf16.msra.mxu0 0
      %6057 = vmatpush.bf16.msra.mxu0 0
      %6058 = vmatpush.bf16.msra.mxu0 0
      %6059 = vmatpush.bf16.msra.mxu0 0
      %6060 = vmatpush.bf16.msra.mxu0 0
      %6061 = vmatpush.bf16.msra.mxu0 0
      %6062 = vmatpush.bf16.msra.mxu0 %v6011
      %6063 = vmatmul.bf16.gmra.mxu0 %v5999
      %v6064 = vpop.f32.mrf.mxu0
      %v6065 = vadd.f32 0.0, %v6064
      %v6066 = vpop.f32.mrf.mxu0
      %6067 = vdwg.mxu0
      %6068 = vmatpush.bf16.msra.mxu0 0
      %6069 = vmatpush.bf16.msra.mxu0 0
      %6070 = vmatpush.bf16.msra.mxu0 0
      %6071 = vmatpush.bf16.msra.mxu0 0
      %6072 = vmatpush.bf16.msra.mxu0 0
      %6073 = vmatpush.bf16.msra.mxu0 0
      %6074 = vmatpush.bf16.msra.mxu0 0
      %6075 = vmatpush.bf16.msra.mxu0 %v6014
      %6076 = vmatmul.bf16.gmra.mxu0 %v5999
      %v6077 = vpop.f32.mrf.mxu0
      %v6078 = vadd.f32 0.0, %v6077
      %v6079 = vpop.f32.mrf.mxu0
      %6080 = vdwg.mxu0
      %v6081 = vadd.f32 %v5959, %v6026
      %v6082 = vadd.f32 %v5960, %v6039
      %v6083 = vadd.f32 %v5961, %v6052
      %v6084 = vadd.f32 %v5962, %v6065
      %v6085 = vadd.f32 %v5963, %v6078
      %v6086 = vld [vmem:[%s199 + $0x8] sm:$0xff]
      %v6087 = vld [vmem:[%s199 + $0x10] sm:$0x3]
      %s6088 = scalar_lea.vmem %s1, 192
      %v6089 = vld [vmem:[%s6088] sm:$0xf]
      %6091 = vst [vmem:[#allocation1] ss:$4 sm:$0xff] %v6086
      %s6093 = scalar_lea.vmem [#allocation1], 32
      %6094 = vst [vmem:[%s6093] ss:$4 sm:$0xff] %v6087
      %v6095 = vld.sshfl [vmem:[#allocation1] sm:$0xff pattern:$0x73625140]
      %v6097 = vld.sshfl [vmem:[#allocation1 + $0x8] sm:$0xff pattern:$0x73625140]
      %v6099 = vld.sshfl [vmem:[#allocation1 + $0x10] sm:$0xff pattern:$0x73625140]
      %v6101 = vld.sshfl [vmem:[#allocation1 + $0x18] sm:$0xff pattern:$0x73625140]
      %v6103 = vld.sshfl [vmem:[#allocation1 + $0x20] sm:$0xff pattern:$0x73625140]
      %6105 = vrot.lane.b32.xlu0 %v6095, 118
      %v6106 = vpop.permute.xlu0 %6105
      %6107 = vrot.lane.b32.xlu0 %v6097, 118
      %v6108 = vpop.permute.xlu0 %6107
      %6109 = vrot.lane.b32.xlu0 %v6099, 118
      %v6110 = vpop.permute.xlu0 %6109
      %6111 = vrot.lane.b32.xlu0 %v6101, 118
      %v6112 = vpop.permute.xlu0 %6111
      %6113 = vrot.lane.b32.xlu0 %v6103, 118
      %v6114 = vpop.permute.xlu0 %6113
      %vm6115 = vcmask 965632
      %v6116 = vsel %vm6115, %v6106, %v6108
      %v6117 = vsel %vm6115, %v6108, %v6110
      %v6118 = vsel %vm6115, %v6110, %v6112
      %v6119 = vsel %vm6115, %v6112, %v6114
      %v6121 = vsel %vm250, %v6089, 0
      %v6124 = vsel %vm254, %v6116, 0
      %v6127 = vsel %vm254, %v6117, 0
      %v6130 = vsel %vm254, %v6118, 0
      %v6133 = vsel %vm254, %v6119, 0
      %v6136 = vsel %vm254, %v6114, 0
      %6138 = vmatpush.bf16.msra.mxu0 0
      %6139 = vmatpush.bf16.msra.mxu0 0
      %6140 = vmatpush.bf16.msra.mxu0 0
      %6141 = vmatpush.bf16.msra.mxu0 0
      %6142 = vmatpush.bf16.msra.mxu0 0
      %6143 = vmatpush.bf16.msra.mxu0 0
      %6144 = vmatpush.bf16.msra.mxu0 0
      %6145 = vmatpush.bf16.msra.mxu0 %v6124
      %6146 = vmatmul.bf16.gmra.mxu0 %v6121
      %v6147 = vpop.f32.mrf.mxu0
      %v6148 = vadd.f32 0.0, %v6147
      %v6149 = vpop.f32.mrf.mxu0
      %6150 = vdwg.mxu0
      %6151 = vmatpush.bf16.msra.mxu0 0
      %6152 = vmatpush.bf16.msra.mxu0 0
      %6153 = vmatpush.bf16.msra.mxu0 0
      %6154 = vmatpush.bf16.msra.mxu0 0
      %6155 = vmatpush.bf16.msra.mxu0 0
      %6156 = vmatpush.bf16.msra.mxu0 0
      %6157 = vmatpush.bf16.msra.mxu0 0
      %6158 = vmatpush.bf16.msra.mxu0 %v6127
      %6159 = vmatmul.bf16.gmra.mxu0 %v6121
      %v6160 = vpop.f32.mrf.mxu0
      %v6161 = vadd.f32 0.0, %v6160
      %v6162 = vpop.f32.mrf.mxu0
      %6163 = vdwg.mxu0
      %6164 = vmatpush.bf16.msra.mxu0 0
      %6165 = vmatpush.bf16.msra.mxu0 0
      %6166 = vmatpush.bf16.msra.mxu0 0
      %6167 = vmatpush.bf16.msra.mxu0 0
      %6168 = vmatpush.bf16.msra.mxu0 0
      %6169 = vmatpush.bf16.msra.mxu0 0
      %6170 = vmatpush.bf16.msra.mxu0 0
      %6171 = vmatpush.bf16.msra.mxu0 %v6130
      %6172 = vmatmul.bf16.gmra.mxu0 %v6121
      %v6173 = vpop.f32.mrf.mxu0
      %v6174 = vadd.f32 0.0, %v6173
      %v6175 = vpop.f32.mrf.mxu0
      %6176 = vdwg.mxu0
      %6177 = vmatpush.bf16.msra.mxu0 0
      %6178 = vmatpush.bf16.msra.mxu0 0
      %6179 = vmatpush.bf16.msra.mxu0 0
      %6180 = vmatpush.bf16.msra.mxu0 0
      %6181 = vmatpush.bf16.msra.mxu0 0
      %6182 = vmatpush.bf16.msra.mxu0 0
      %6183 = vmatpush.bf16.msra.mxu0 0
      %6184 = vmatpush.bf16.msra.mxu0 %v6133
      %6185 = vmatmul.bf16.gmra.mxu0 %v6121
      %v6186 = vpop.f32.mrf.mxu0
      %v6187 = vadd.f32 0.0, %v6186
      %v6188 = vpop.f32.mrf.mxu0
      %6189 = vdwg.mxu0
      %6190 = vmatpush.bf16.msra.mxu0 0
      %6191 = vmatpush.bf16.msra.mxu0 0
      %6192 = vmatpush.bf16.msra.mxu0 0
      %6193 = vmatpush.bf16.msra.mxu0 0
      %6194 = vmatpush.bf16.msra.mxu0 0
      %6195 = vmatpush.bf16.msra.mxu0 0
      %6196 = vmatpush.bf16.msra.mxu0 0
      %6197 = vmatpush.bf16.msra.mxu0 %v6136
      %6198 = vmatmul.bf16.gmra.mxu0 %v6121
      %v6199 = vpop.f32.mrf.mxu0
      %v6200 = vadd.f32 0.0, %v6199
      %v6201 = vpop.f32.mrf.mxu0
      %6202 = vdwg.mxu0
      %v6203 = vadd.f32 %v6081, %v6148
      %v6204 = vadd.f32 %v6082, %v6161
      %v6205 = vadd.f32 %v6083, %v6174
      %v6206 = vadd.f32 %v6084, %v6187
      %v6207 = vadd.f32 %v6085, %v6200
      %v6208 = vld [vmem:[%s199 + $0x8] sm:$0xff]
      %v6209 = vld [vmem:[%s199 + $0x10] sm:$0x3]
      %s6210 = scalar_lea.vmem %s1, 196
      %v6211 = vld [vmem:[%s6210] sm:$0xf]
      %6213 = vst [vmem:[#allocation1] ss:$4 sm:$0xff] %v6208
      %s6215 = scalar_lea.vmem [#allocation1], 32
      %6216 = vst [vmem:[%s6215] ss:$4 sm:$0xff] %v6209
      %v6217 = vld.sshfl [vmem:[#allocation1] sm:$0xff pattern:$0x73625140]
      %v6219 = vld.sshfl [vmem:[#allocation1 + $0x8] sm:$0xff pattern:$0x73625140]
      %v6221 = vld.sshfl [vmem:[#allocation1 + $0x10] sm:$0xff pattern:$0x73625140]
      %v6223 = vld.sshfl [vmem:[#allocation1 + $0x18] sm:$0xff pattern:$0x73625140]
      %v6225 = vld.sshfl [vmem:[#allocation1 + $0x20] sm:$0xff pattern:$0x73625140]
      %6227 = vrot.lane.b32.xlu0 %v6217, 115
      %v6228 = vpop.permute.xlu0 %6227
      %6229 = vrot.lane.b32.xlu0 %v6219, 115
      %v6230 = vpop.permute.xlu0 %6229
      %6231 = vrot.lane.b32.xlu0 %v6221, 115
      %v6232 = vpop.permute.xlu0 %6231
      %6233 = vrot.lane.b32.xlu0 %v6223, 115
      %v6234 = vpop.permute.xlu0 %6233
      %6235 = vrot.lane.b32.xlu0 %v6225, 115
      %v6236 = vpop.permute.xlu0 %6235
      %vm6237 = vcmask 941056
      %v6238 = vsel %vm6237, %v6228, %v6230
      %v6239 = vsel %vm6237, %v6230, %v6232
      %v6240 = vsel %vm6237, %v6232, %v6234
      %v6241 = vsel %vm6237, %v6234, %v6236
      %v6243 = vsel %vm250, %v6211, 0
      %v6246 = vsel %vm254, %v6238, 0
      %v6249 = vsel %vm254, %v6239, 0
      %v6252 = vsel %vm254, %v6240, 0
      %v6255 = vsel %vm254, %v6241, 0
      %v6258 = vsel %vm254, %v6236, 0
      %6260 = vmatpush.bf16.msra.mxu0 0
      %6261 = vmatpush.bf16.msra.mxu0 0
      %6262 = vmatpush.bf16.msra.mxu0 0
      %6263 = vmatpush.bf16.msra.mxu0 0
      %6264 = vmatpush.bf16.msra.mxu0 0
      %6265 = vmatpush.bf16.msra.mxu0 0
      %6266 = vmatpush.bf16.msra.mxu0 0
      %6267 = vmatpush.bf16.msra.mxu0 %v6246
      %6268 = vmatmul.bf16.gmra.mxu0 %v6243
      %v6269 = vpop.f32.mrf.mxu0
      %v6270 = vadd.f32 0.0, %v6269
      %v6271 = vpop.f32.mrf.mxu0
      %6272 = vdwg.mxu0
      %6273 = vmatpush.bf16.msra.mxu0 0
      %6274 = vmatpush.bf16.msra.mxu0 0
      %6275 = vmatpush.bf16.msra.mxu0 0
      %6276 = vmatpush.bf16.msra.mxu0 0
      %6277 = vmatpush.bf16.msra.mxu0 0
      %6278 = vmatpush.bf16.msra.mxu0 0
      %6279 = vmatpush.bf16.msra.mxu0 0
      %6280 = vmatpush.bf16.msra.mxu0 %v6249
      %6281 = vmatmul.bf16.gmra.mxu0 %v6243
      %v6282 = vpop.f32.mrf.mxu0
      %v6283 = vadd.f32 0.0, %v6282
      %v6284 = vpop.f32.mrf.mxu0
      %6285 = vdwg.mxu0
      %6286 = vmatpush.bf16.msra.mxu0 0
      %6287 = vmatpush.bf16.msra.mxu0 0
      %6288 = vmatpush.bf16.msra.mxu0 0
      %6289 = vmatpush.bf16.msra.mxu0 0
      %6290 = vmatpush.bf16.msra.mxu0 0
      %6291 = vmatpush.bf16.msra.mxu0 0
      %6292 = vmatpush.bf16.msra.mxu0 0
      %6293 = vmatpush.bf16.msra.mxu0 %v6252
      %6294 = vmatmul.bf16.gmra.mxu0 %v6243
      %v6295 = vpop.f32.mrf.mxu0
      %v6296 = vadd.f32 0.0, %v6295
      %v6297 = vpop.f32.mrf.mxu0
      %6298 = vdwg.mxu0
      %6299 = vmatpush.bf16.msra.mxu0 0
      %6300 = vmatpush.bf16.msra.mxu0 0
      %6301 = vmatpush.bf16.msra.mxu0 0
      %6302 = vmatpush.bf16.msra.mxu0 0
      %6303 = vmatpush.bf16.msra.mxu0 0
      %6304 = vmatpush.bf16.msra.mxu0 0
      %6305 = vmatpush.bf16.msra.mxu0 0
      %6306 = vmatpush.bf16.msra.mxu0 %v6255
      %6307 = vmatmul.bf16.gmra.mxu0 %v6243
      %v6308 = vpop.f32.mrf.mxu0
      %v6309 = vadd.f32 0.0, %v6308
      %v6310 = vpop.f32.mrf.mxu0
      %6311 = vdwg.mxu0
      %6312 = vmatpush.bf16.msra.mxu0 0
      %6313 = vmatpush.bf16.msra.mxu0 0
      %6314 = vmatpush.bf16.msra.mxu0 0
      %6315 = vmatpush.bf16.msra.mxu0 0
      %6316 = vmatpush.bf16.msra.mxu0 0
      %6317 = vmatpush.bf16.msra.mxu0 0
      %6318 = vmatpush.bf16.msra.mxu0 0
      %6319 = vmatpush.bf16.msra.mxu0 %v6258
      %6320 = vmatmul.bf16.gmra.mxu0 %v6243
      %v6321 = vpop.f32.mrf.mxu0
      %v6322 = vadd.f32 0.0, %v6321
      %v6323 = vpop.f32.mrf.mxu0
      %6324 = vdwg.mxu0
      %v6325 = vadd.f32 %v6203, %v6270
      %v6326 = vadd.f32 %v6204, %v6283
      %v6327 = vadd.f32 %v6205, %v6296
      %v6328 = vadd.f32 %v6206, %v6309
      %v6329 = vadd.f32 %v6207, %v6322
      %v6330 = vld [vmem:[%s199 + $0x8] sm:$0xff]
      %v6331 = vld [vmem:[%s199 + $0x10] sm:$0x3]
      %s6332 = scalar_lea.vmem %s1, 200
      %v6333 = vld [vmem:[%s6332] sm:$0xf]
      %6335 = vst [vmem:[#allocation1] ss:$4 sm:$0xff] %v6330
      %s6337 = scalar_lea.vmem [#allocation1], 32
      %6338 = vst [vmem:[%s6337] ss:$4 sm:$0xff] %v6331
      %v6339 = vld.sshfl [vmem:[#allocation1] sm:$0xff pattern:$0x73625140]
      %v6341 = vld.sshfl [vmem:[#allocation1 + $0x8] sm:$0xff pattern:$0x73625140]
      %v6343 = vld.sshfl [vmem:[#allocation1 + $0x10] sm:$0xff pattern:$0x73625140]
      %v6345 = vld.sshfl [vmem:[#allocation1 + $0x18] sm:$0xff pattern:$0x73625140]
      %v6347 = vld.sshfl [vmem:[#allocation1 + $0x20] sm:$0xff pattern:$0x73625140]
      %6349 = vrot.lane.b32.xlu0 %v6339, 112
      %v6350 = vpop.permute.xlu0 %6349
      %6351 = vrot.lane.b32.xlu0 %v6341, 112
      %v6352 = vpop.permute.xlu0 %6351
      %6353 = vrot.lane.b32.xlu0 %v6343, 112
      %v6354 = vpop.permute.xlu0 %6353
      %6355 = vrot.lane.b32.xlu0 %v6345, 112
      %v6356 = vpop.permute.xlu0 %6355
      %6357 = vrot.lane.b32.xlu0 %v6347, 112
      %v6358 = vpop.permute.xlu0 %6357
      %vm6359 = vcmask 916480
      %v6360 = vsel %vm6359, %v6350, %v6352
      %v6361 = vsel %vm6359, %v6352, %v6354
      %v6362 = vsel %vm6359, %v6354, %v6356
      %v6363 = vsel %vm6359, %v6356, %v6358
      %v6365 = vsel %vm250, %v6333, 0
      %v6368 = vsel %vm254, %v6360, 0
      %v6371 = vsel %vm254, %v6361, 0
      %v6374 = vsel %vm254, %v6362, 0
      %v6377 = vsel %vm254, %v6363, 0
      %v6380 = vsel %vm254, %v6358, 0
      %6382 = vmatpush.bf16.msra.mxu0 0
      %6383 = vmatpush.bf16.msra.mxu0 0
      %6384 = vmatpush.bf16.msra.mxu0 0
      %6385 = vmatpush.bf16.msra.mxu0 0
      %6386 = vmatpush.bf16.msra.mxu0 0
      %6387 = vmatpush.bf16.msra.mxu0 0
      %6388 = vmatpush.bf16.msra.mxu0 0
      %6389 = vmatpush.bf16.msra.mxu0 %v6368
      %6390 = vmatmul.bf16.gmra.mxu0 %v6365
      %v6391 = vpop.f32.mrf.mxu0
      %v6392 = vadd.f32 0.0, %v6391
      %v6393 = vpop.f32.mrf.mxu0
      %6394 = vdwg.mxu0
      %6395 = vmatpush.bf16.msra.mxu0 0
      %6396 = vmatpush.bf16.msra.mxu0 0
      %6397 = vmatpush.bf16.msra.mxu0 0
      %6398 = vmatpush.bf16.msra.mxu0 0
      %6399 = vmatpush.bf16.msra.mxu0 0
      %6400 = vmatpush.bf16.msra.mxu0 0
      %6401 = vmatpush.bf16.msra.mxu0 0
      %6402 = vmatpush.bf16.msra.mxu0 %v6371
      %6403 = vmatmul.bf16.gmra.mxu0 %v6365
      %v6404 = vpop.f32.mrf.mxu0
      %v6405 = vadd.f32 0.0, %v6404
      %v6406 = vpop.f32.mrf.mxu0
      %6407 = vdwg.mxu0
      %6408 = vmatpush.bf16.msra.mxu0 0
      %6409 = vmatpush.bf16.msra.mxu0 0
      %6410 = vmatpush.bf16.msra.mxu0 0
      %6411 = vmatpush.bf16.msra.mxu0 0
      %6412 = vmatpush.bf16.msra.mxu0 0
      %6413 = vmatpush.bf16.msra.mxu0 0
      %6414 = vmatpush.bf16.msra.mxu0 0
      %6415 = vmatpush.bf16.msra.mxu0 %v6374
      %6416 = vmatmul.bf16.gmra.mxu0 %v6365
      %v6417 = vpop.f32.mrf.mxu0
      %v6418 = vadd.f32 0.0, %v6417
      %v6419 = vpop.f32.mrf.mxu0
      %6420 = vdwg.mxu0
      %6421 = vmatpush.bf16.msra.mxu0 0
      %6422 = vmatpush.bf16.msra.mxu0 0
      %6423 = vmatpush.bf16.msra.mxu0 0
      %6424 = vmatpush.bf16.msra.mxu0 0
      %6425 = vmatpush.bf16.msra.mxu0 0
      %6426 = vmatpush.bf16.msra.mxu0 0
      %6427 = vmatpush.bf16.msra.mxu0 0
      %6428 = vmatpush.bf16.msra.mxu0 %v6377
      %6429 = vmatmul.bf16.gmra.mxu0 %v6365
      %v6430 = vpop.f32.mrf.mxu0
      %v6431 = vadd.f32 0.0, %v6430
      %v6432 = vpop.f32.mrf.mxu0
      %6433 = vdwg.mxu0
      %6434 = vmatpush.bf16.msra.mxu0 0
      %6435 = vmatpush.bf16.msra.mxu0 0
      %6436 = vmatpush.bf16.msra.mxu0 0
      %6437 = vmatpush.bf16.msra.mxu0 0
      %6438 = vmatpush.bf16.msra.mxu0 0
      %6439 = vmatpush.bf16.msra.mxu0 0
      %6440 = vmatpush.bf16.msra.mxu0 0
      %6441 = vmatpush.bf16.msra.mxu0 %v6380
      %6442 = vmatmul.bf16.gmra.mxu0 %v6365
      %v6443 = vpop.f32.mrf.mxu0
      %v6444 = vadd.f32 0.0, %v6443
      %v6445 = vpop.f32.mrf.mxu0
      %6446 = vdwg.mxu0
      %v6447 = vadd.f32 %v6325, %v6392
      %v6448 = vadd.f32 %v6326, %v6405
      %v6449 = vadd.f32 %v6327, %v6418
      %v6450 = vadd.f32 %v6328, %v6431
      %v6451 = vadd.f32 %v6329, %v6444
      %v6452 = vld [vmem:[%s199 + $0x8] sm:$0xff]
      %v6453 = vld [vmem:[%s199 + $0x10] sm:$0xf]
      %s6454 = scalar_lea.vmem %s1, 204
      %v6455 = vld [vmem:[%s6454] sm:$0xf]
      %6457 = vst [vmem:[#allocation1] ss:$4 sm:$0xff] %v6452
      %s6459 = scalar_lea.vmem [#allocation1], 32
      %6460 = vst [vmem:[%s6459] ss:$4 sm:$0xff] %v6453
      %v6461 = vld.sshfl [vmem:[#allocation1] sm:$0xff pattern:$0x73625140]
      %v6463 = vld.sshfl [vmem:[#allocation1 + $0x8] sm:$0xff pattern:$0x73625140]
      %v6465 = vld.sshfl [vmem:[#allocation1 + $0x10] sm:$0xff pattern:$0x73625140]
      %v6467 = vld.sshfl [vmem:[#allocation1 + $0x18] sm:$0xff pattern:$0x73625140]
      %v6469 = vld.sshfl [vmem:[#allocation1 + $0x20] sm:$0xff pattern:$0x73625140]
      %v6471 = vld.sshfl [vmem:[#allocation1 + $0x28] sm:$0xff pattern:$0x73625140]
      %6473 = vrot.lane.b32.xlu0 %v6461, 28
      %v6474 = vpop.permute.xlu0 %6473
      %6475 = vrot.lane.b32.xlu0 %v6463, 28
      %v6476 = vpop.permute.xlu0 %6475
      %6477 = vrot.lane.b32.xlu0 %v6465, 28
      %v6478 = vpop.permute.xlu0 %6477
      %6479 = vrot.lane.b32.xlu0 %v6467, 28
      %v6480 = vpop.permute.xlu0 %6479
      %6481 = vrot.lane.b32.xlu0 %v6469, 28
      %v6482 = vpop.permute.xlu0 %6481
      %6483 = vrot.lane.b32.xlu0 %v6471, 28
      %v6484 = vpop.permute.xlu0 %6483
      %vm6485 = vcmask 228352
      %v6486 = vsel %vm6485, %v6474, %v6476
      %v6487 = vsel %vm6485, %v6476, %v6478
      %v6488 = vsel %vm6485, %v6478, %v6480
      %v6489 = vsel %vm6485, %v6480, %v6482
      %v6490 = vsel %vm6485, %v6482, %v6484
      %v6492 = vsel %vm250, %v6455, 0
      %v6495 = vsel %vm254, %v6486, 0
      %v6498 = vsel %vm254, %v6487, 0
      %v6501 = vsel %vm254, %v6488, 0
      %v6504 = vsel %vm254, %v6489, 0
      %v6507 = vsel %vm254, %v6490, 0
      %6509 = vmatpush.bf16.msra.mxu0 0
      %6510 = vmatpush.bf16.msra.mxu0 0
      %6511 = vmatpush.bf16.msra.mxu0 0
      %6512 = vmatpush.bf16.msra.mxu0 0
      %6513 = vmatpush.bf16.msra.mxu0 0
      %6514 = vmatpush.bf16.msra.mxu0 0
      %6515 = vmatpush.bf16.msra.mxu0 0
      %6516 = vmatpush.bf16.msra.mxu0 %v6495
      %6517 = vmatmul.bf16.gmra.mxu0 %v6492
      %v6518 = vpop.f32.mrf.mxu0
      %v6519 = vadd.f32 0.0, %v6518
      %v6520 = vpop.f32.mrf.mxu0
      %6521 = vdwg.mxu0
      %6522 = vmatpush.bf16.msra.mxu0 0
      %6523 = vmatpush.bf16.msra.mxu0 0
      %6524 = vmatpush.bf16.msra.mxu0 0
      %6525 = vmatpush.bf16.msra.mxu0 0
      %6526 = vmatpush.bf16.msra.mxu0 0
      %6527 = vmatpush.bf16.msra.mxu0 0
      %6528 = vmatpush.bf16.msra.mxu0 0
      %6529 = vmatpush.bf16.msra.mxu0 %v6498
      %6530 = vmatmul.bf16.gmra.mxu0 %v6492
      %v6531 = vpop.f32.mrf.mxu0
      %v6532 = vadd.f32 0.0, %v6531
      %v6533 = vpop.f32.mrf.mxu0
      %6534 = vdwg.mxu0
      %6535 = vmatpush.bf16.msra.mxu0 0
      %6536 = vmatpush.bf16.msra.mxu0 0
      %6537 = vmatpush.bf16.msra.mxu0 0
      %6538 = vmatpush.bf16.msra.mxu0 0
      %6539 = vmatpush.bf16.msra.mxu0 0
      %6540 = vmatpush.bf16.msra.mxu0 0
      %6541 = vmatpush.bf16.msra.mxu0 0
      %6542 = vmatpush.bf16.msra.mxu0 %v6501
      %6543 = vmatmul.bf16.gmra.mxu0 %v6492
      %v6544 = vpop.f32.mrf.mxu0
      %v6545 = vadd.f32 0.0, %v6544
      %v6546 = vpop.f32.mrf.mxu0
      %6547 = vdwg.mxu0
      %6548 = vmatpush.bf16.msra.mxu0 0
      %6549 = vmatpush.bf16.msra.mxu0 0
      %6550 = vmatpush.bf16.msra.mxu0 0
      %6551 = vmatpush.bf16.msra.mxu0 0
      %6552 = vmatpush.bf16.msra.mxu0 0
      %6553 = vmatpush.bf16.msra.mxu0 0
      %6554 = vmatpush.bf16.msra.mxu0 0
      %6555 = vmatpush.bf16.msra.mxu0 %v6504
      %6556 = vmatmul.bf16.gmra.mxu0 %v6492
      %v6557 = vpop.f32.mrf.mxu0
      %v6558 = vadd.f32 0.0, %v6557
      %v6559 = vpop.f32.mrf.mxu0
      %6560 = vdwg.mxu0
      %6561 = vmatpush.bf16.msra.mxu0 0
      %6562 = vmatpush.bf16.msra.mxu0 0
      %6563 = vmatpush.bf16.msra.mxu0 0
      %6564 = vmatpush.bf16.msra.mxu0 0
      %6565 = vmatpush.bf16.msra.mxu0 0
      %6566 = vmatpush.bf16.msra.mxu0 0
      %6567 = vmatpush.bf16.msra.mxu0 0
      %6568 = vmatpush.bf16.msra.mxu0 %v6507
      %6569 = vmatmul.bf16.gmra.mxu0 %v6492
      %v6570 = vpop.f32.mrf.mxu0
      %v6571 = vadd.f32 0.0, %v6570
      %v6572 = vpop.f32.mrf.mxu0
      %6573 = vdwg.mxu0
      %v6574 = vadd.f32 %v6447, %v6519
      %v6575 = vadd.f32 %v6448, %v6532
      %v6576 = vadd.f32 %v6449, %v6545
      %v6577 = vadd.f32 %v6450, %v6558
      %v6578 = vadd.f32 %v6451, %v6571
      %v6579 = vld [vmem:[%s199 + $0x8] sm:$0xff]
      %v6580 = vld [vmem:[%s199 + $0x10] sm:$0xf]
      %s6581 = scalar_lea.vmem %s1, 208
      %v6582 = vld [vmem:[%s6581] sm:$0xf]
      %6584 = vst [vmem:[#allocation1] ss:$4 sm:$0xff] %v6579
      %s6586 = scalar_lea.vmem [#allocation1], 32
      %6587 = vst [vmem:[%s6586] ss:$4 sm:$0xff] %v6580
      %v6588 = vld.sshfl [vmem:[#allocation1] sm:$0xff pattern:$0x73625140]
      %v6590 = vld.sshfl [vmem:[#allocation1 + $0x8] sm:$0xff pattern:$0x73625140]
      %v6592 = vld.sshfl [vmem:[#allocation1 + $0x10] sm:$0xff pattern:$0x73625140]
      %v6594 = vld.sshfl [vmem:[#allocation1 + $0x18] sm:$0xff pattern:$0x73625140]
      %v6596 = vld.sshfl [vmem:[#allocation1 + $0x20] sm:$0xff pattern:$0x73625140]
      %v6598 = vld.sshfl [vmem:[#allocation1 + $0x28] sm:$0xff pattern:$0x73625140]
      %6600 = vrot.lane.b32.xlu0 %v6588, 25
      %v6601 = vpop.permute.xlu0 %6600
      %6602 = vrot.lane.b32.xlu0 %v6590, 25
      %v6603 = vpop.permute.xlu0 %6602
      %6604 = vrot.lane.b32.xlu0 %v6592, 25
      %v6605 = vpop.permute.xlu0 %6604
      %6606 = vrot.lane.b32.xlu0 %v6594, 25
      %v6607 = vpop.permute.xlu0 %6606
      %6608 = vrot.lane.b32.xlu0 %v6596, 25
      %v6609 = vpop.permute.xlu0 %6608
      %6610 = vrot.lane.b32.xlu0 %v6598, 25
      %v6611 = vpop.permute.xlu0 %6610
      %vm6612 = vcmask 203776
      %v6613 = vsel %vm6612, %v6601, %v6603
      %v6614 = vsel %vm6612, %v6603, %v6605
      %v6615 = vsel %vm6612, %v6605, %v6607
      %v6616 = vsel %vm6612, %v6607, %v6609
      %v6617 = vsel %vm6612, %v6609, %v6611
      %v6619 = vsel %vm250, %v6582, 0
      %v6622 = vsel %vm254, %v6613, 0
      %v6625 = vsel %vm254, %v6614, 0
      %v6628 = vsel %vm254, %v6615, 0
      %v6631 = vsel %vm254, %v6616, 0
      %v6634 = vsel %vm254, %v6617, 0
      %6636 = vmatpush.bf16.msra.mxu0 0
      %6637 = vmatpush.bf16.msra.mxu0 0
      %6638 = vmatpush.bf16.msra.mxu0 0
      %6639 = vmatpush.bf16.msra.mxu0 0
      %6640 = vmatpush.bf16.msra.mxu0 0
      %6641 = vmatpush.bf16.msra.mxu0 0
      %6642 = vmatpush.bf16.msra.mxu0 0
      %6643 = vmatpush.bf16.msra.mxu0 %v6622
      %6644 = vmatmul.bf16.gmra.mxu0 %v6619
      %v6645 = vpop.f32.mrf.mxu0
      %v6646 = vadd.f32 0.0, %v6645
      %v6647 = vpop.f32.mrf.mxu0
      %6648 = vdwg.mxu0
      %6649 = vmatpush.bf16.msra.mxu0 0
      %6650 = vmatpush.bf16.msra.mxu0 0
      %6651 = vmatpush.bf16.msra.mxu0 0
      %6652 = vmatpush.bf16.msra.mxu0 0
      %6653 = vmatpush.bf16.msra.mxu0 0
      %6654 = vmatpush.bf16.msra.mxu0 0
      %6655 = vmatpush.bf16.msra.mxu0 0
      %6656 = vmatpush.bf16.msra.mxu0 %v6625
      %6657 = vmatmul.bf16.gmra.mxu0 %v6619
      %v6658 = vpop.f32.mrf.mxu0
      %v6659 = vadd.f32 0.0, %v6658
      %v6660 = vpop.f32.mrf.mxu0
      %6661 = vdwg.mxu0
      %6662 = vmatpush.bf16.msra.mxu0 0
      %6663 = vmatpush.bf16.msra.mxu0 0
      %6664 = vmatpush.bf16.msra.mxu0 0
      %6665 = vmatpush.bf16.msra.mxu0 0
      %6666 = vmatpush.bf16.msra.mxu0 0
      %6667 = vmatpush.bf16.msra.mxu0 0
      %6668 = vmatpush.bf16.msra.mxu0 0
      %6669 = vmatpush.bf16.msra.mxu0 %v6628
      %6670 = vmatmul.bf16.gmra.mxu0 %v6619
      %v6671 = vpop.f32.mrf.mxu0
      %v6672 = vadd.f32 0.0, %v6671
      %v6673 = vpop.f32.mrf.mxu0
      %6674 = vdwg.mxu0
      %6675 = vmatpush.bf16.msra.mxu0 0
      %6676 = vmatpush.bf16.msra.mxu0 0
      %6677 = vmatpush.bf16.msra.mxu0 0
      %6678 = vmatpush.bf16.msra.mxu0 0
      %6679 = vmatpush.bf16.msra.mxu0 0
      %6680 = vmatpush.bf16.msra.mxu0 0
      %6681 = vmatpush.bf16.msra.mxu0 0
      %6682 = vmatpush.bf16.msra.mxu0 %v6631
      %6683 = vmatmul.bf16.gmra.mxu0 %v6619
      %v6684 = vpop.f32.mrf.mxu0
      %v6685 = vadd.f32 0.0, %v6684
      %v6686 = vpop.f32.mrf.mxu0
      %6687 = vdwg.mxu0
      %6688 = vmatpush.bf16.msra.mxu0 0
      %6689 = vmatpush.bf16.msra.mxu0 0
      %6690 = vmatpush.bf16.msra.mxu0 0
      %6691 = vmatpush.bf16.msra.mxu0 0
      %6692 = vmatpush.bf16.msra.mxu0 0
      %6693 = vmatpush.bf16.msra.mxu0 0
      %6694 = vmatpush.bf16.msra.mxu0 0
      %6695 = vmatpush.bf16.msra.mxu0 %v6634
      %6696 = vmatmul.bf16.gmra.mxu0 %v6619
      %v6697 = vpop.f32.mrf.mxu0
      %v6698 = vadd.f32 0.0, %v6697
      %v6699 = vpop.f32.mrf.mxu0
      %6700 = vdwg.mxu0
      %v6701 = vadd.f32 %v6574, %v6646
      %v6702 = vadd.f32 %v6575, %v6659
      %v6703 = vadd.f32 %v6576, %v6672
      %v6704 = vadd.f32 %v6577, %v6685
      %v6705 = vadd.f32 %v6578, %v6698
      %v6706 = vld [vmem:[%s199 + $0x8] sm:$0xff]
      %v6707 = vld [vmem:[%s199 + $0x10] sm:$0xf]
      %s6708 = scalar_lea.vmem %s1, 212
      %v6709 = vld [vmem:[%s6708] sm:$0xf]
      %6711 = vst [vmem:[#allocation1] ss:$4 sm:$0xff] %v6706
      %s6713 = scalar_lea.vmem [#allocation1], 32
      %6714 = vst [vmem:[%s6713] ss:$4 sm:$0xff] %v6707
      %v6715 = vld.sshfl [vmem:[#allocation1] sm:$0xff pattern:$0x73625140]
      %v6717 = vld.sshfl [vmem:[#allocation1 + $0x8] sm:$0xff pattern:$0x73625140]
      %v6719 = vld.sshfl [vmem:[#allocation1 + $0x10] sm:$0xff pattern:$0x73625140]
      %v6721 = vld.sshfl [vmem:[#allocation1 + $0x18] sm:$0xff pattern:$0x73625140]
      %v6723 = vld.sshfl [vmem:[#allocation1 + $0x20] sm:$0xff pattern:$0x73625140]
      %v6725 = vld.sshfl [vmem:[#allocation1 + $0x28] sm:$0xff pattern:$0x73625140]
      %6727 = vrot.lane.b32.xlu0 %v6715, 22
      %v6728 = vpop.permute.xlu0 %6727
      %6729 = vrot.lane.b32.xlu0 %v6717, 22
      %v6730 = vpop.permute.xlu0 %6729
      %6731 = vrot.lane.b32.xlu0 %v6719, 22
      %v6732 = vpop.permute.xlu0 %6731
      %6733 = vrot.lane.b32.xlu0 %v6721, 22
      %v6734 = vpop.permute.xlu0 %6733
      %6735 = vrot.lane.b32.xlu0 %v6723, 22
      %v6736 = vpop.permute.xlu0 %6735
      %6737 = vrot.lane.b32.xlu0 %v6725, 22
      %v6738 = vpop.permute.xlu0 %6737
      %vm6739 = vcmask 179200
      %v6740 = vsel %vm6739, %v6728, %v6730
      %v6741 = vsel %vm6739, %v6730, %v6732
      %v6742 = vsel %vm6739, %v6732, %v6734
      %v6743 = vsel %vm6739, %v6734, %v6736
      %v6744 = vsel %vm6739, %v6736, %v6738
      %v6746 = vsel %vm250, %v6709, 0
      %v6749 = vsel %vm254, %v6740, 0
      %v6752 = vsel %vm254, %v6741, 0
      %v6755 = vsel %vm254, %v6742, 0
      %v6758 = vsel %vm254, %v6743, 0
      %v6761 = vsel %vm254, %v6744, 0
      %6763 = vmatpush.bf16.msra.mxu0 0
      %6764 = vmatpush.bf16.msra.mxu0 0
      %6765 = vmatpush.bf16.msra.mxu0 0
      %6766 = vmatpush.bf16.msra.mxu0 0
      %6767 = vmatpush.bf16.msra.mxu0 0
      %6768 = vmatpush.bf16.msra.mxu0 0
      %6769 = vmatpush.bf16.msra.mxu0 0
      %6770 = vmatpush.bf16.msra.mxu0 %v6749
      %6771 = vmatmul.bf16.gmra.mxu0 %v6746
      %v6772 = vpop.f32.mrf.mxu0
      %v6773 = vadd.f32 0.0, %v6772
      %v6774 = vpop.f32.mrf.mxu0
      %6775 = vdwg.mxu0
      %6776 = vmatpush.bf16.msra.mxu0 0
      %6777 = vmatpush.bf16.msra.mxu0 0
      %6778 = vmatpush.bf16.msra.mxu0 0
      %6779 = vmatpush.bf16.msra.mxu0 0
      %6780 = vmatpush.bf16.msra.mxu0 0
      %6781 = vmatpush.bf16.msra.mxu0 0
      %6782 = vmatpush.bf16.msra.mxu0 0
      %6783 = vmatpush.bf16.msra.mxu0 %v6752
      %6784 = vmatmul.bf16.gmra.mxu0 %v6746
      %v6785 = vpop.f32.mrf.mxu0
      %v6786 = vadd.f32 0.0, %v6785
      %v6787 = vpop.f32.mrf.mxu0
      %6788 = vdwg.mxu0
      %6789 = vmatpush.bf16.msra.mxu0 0
      %6790 = vmatpush.bf16.msra.mxu0 0
      %6791 = vmatpush.bf16.msra.mxu0 0
      %6792 = vmatpush.bf16.msra.mxu0 0
      %6793 = vmatpush.bf16.msra.mxu0 0
      %6794 = vmatpush.bf16.msra.mxu0 0
      %6795 = vmatpush.bf16.msra.mxu0 0
      %6796 = vmatpush.bf16.msra.mxu0 %v6755
      %6797 = vmatmul.bf16.gmra.mxu0 %v6746
      %v6798 = vpop.f32.mrf.mxu0
      %v6799 = vadd.f32 0.0, %v6798
      %v6800 = vpop.f32.mrf.mxu0
      %6801 = vdwg.mxu0
      %6802 = vmatpush.bf16.msra.mxu0 0
      %6803 = vmatpush.bf16.msra.mxu0 0
      %6804 = vmatpush.bf16.msra.mxu0 0
      %6805 = vmatpush.bf16.msra.mxu0 0
      %6806 = vmatpush.bf16.msra.mxu0 0
      %6807 = vmatpush.bf16.msra.mxu0 0
      %6808 = vmatpush.bf16.msra.mxu0 0
      %6809 = vmatpush.bf16.msra.mxu0 %v6758
      %6810 = vmatmul.bf16.gmra.mxu0 %v6746
      %v6811 = vpop.f32.mrf.mxu0
      %v6812 = vadd.f32 0.0, %v6811
      %v6813 = vpop.f32.mrf.mxu0
      %6814 = vdwg.mxu0
      %6815 = vmatpush.bf16.msra.mxu0 0
      %6816 = vmatpush.bf16.msra.mxu0 0
      %6817 = vmatpush.bf16.msra.mxu0 0
      %6818 = vmatpush.bf16.msra.mxu0 0
      %6819 = vmatpush.bf16.msra.mxu0 0
      %6820 = vmatpush.bf16.msra.mxu0 0
      %6821 = vmatpush.bf16.msra.mxu0 0
      %6822 = vmatpush.bf16.msra.mxu0 %v6761
      %6823 = vmatmul.bf16.gmra.mxu0 %v6746
      %v6824 = vpop.f32.mrf.mxu0
      %v6825 = vadd.f32 0.0, %v6824
      %v6826 = vpop.f32.mrf.mxu0
      %6827 = vdwg.mxu0
      %v6828 = vadd.f32 %v6701, %v6773
      %v6829 = vadd.f32 %v6702, %v6786
      %v6830 = vadd.f32 %v6703, %v6799
      %v6831 = vadd.f32 %v6704, %v6812
      %v6832 = vadd.f32 %v6705, %v6825
      %v6833 = vld [vmem:[%s199 + $0x8] sm:$0xff]
      %v6834 = vld [vmem:[%s199 + $0x10] sm:$0xf]
      %s6835 = scalar_lea.vmem %s1, 216
      %v6836 = vld [vmem:[%s6835] sm:$0xf]
      %6838 = vst [vmem:[#allocation1] ss:$4 sm:$0xff] %v6833
      %s6840 = scalar_lea.vmem [#allocation1], 32
      %6841 = vst [vmem:[%s6840] ss:$4 sm:$0xff] %v6834
      %v6842 = vld.sshfl [vmem:[#allocation1] sm:$0xff pattern:$0x73625140]
      %v6844 = vld.sshfl [vmem:[#allocation1 + $0x8] sm:$0xff pattern:$0x73625140]
      %v6846 = vld.sshfl [vmem:[#allocation1 + $0x10] sm:$0xff pattern:$0x73625140]
      %v6848 = vld.sshfl [vmem:[#allocation1 + $0x18] sm:$0xff pattern:$0x73625140]
      %v6850 = vld.sshfl [vmem:[#allocation1 + $0x20] sm:$0xff pattern:$0x73625140]
      %v6852 = vld.sshfl [vmem:[#allocation1 + $0x28] sm:$0xff pattern:$0x73625140]
      %6854 = vrot.lane.b32.xlu0 %v6842, 19
      %v6855 = vpop.permute.xlu0 %6854
      %6856 = vrot.lane.b32.xlu0 %v6844, 19
      %v6857 = vpop.permute.xlu0 %6856
      %6858 = vrot.lane.b32.xlu0 %v6846, 19
      %v6859 = vpop.permute.xlu0 %6858
      %6860 = vrot.lane.b32.xlu0 %v6848, 19
      %v6861 = vpop.permute.xlu0 %6860
      %6862 = vrot.lane.b32.xlu0 %v6850, 19
      %v6863 = vpop.permute.xlu0 %6862
      %6864 = vrot.lane.b32.xlu0 %v6852, 19
      %v6865 = vpop.permute.xlu0 %6864
      %vm6866 = vcmask 154624
      %v6867 = vsel %vm6866, %v6855, %v6857
      %v6868 = vsel %vm6866, %v6857, %v6859
      %v6869 = vsel %vm6866, %v6859, %v6861
      %v6870 = vsel %vm6866, %v6861, %v6863
      %v6871 = vsel %vm6866, %v6863, %v6865
      %v6873 = vsel %vm250, %v6836, 0
      %v6876 = vsel %vm254, %v6867, 0
      %v6879 = vsel %vm254, %v6868, 0
      %v6882 = vsel %vm254, %v6869, 0
      %v6885 = vsel %vm254, %v6870, 0
      %v6888 = vsel %vm254, %v6871, 0
      %6890 = vmatpush.bf16.msra.mxu0 0
      %6891 = vmatpush.bf16.msra.mxu0 0
      %6892 = vmatpush.bf16.msra.mxu0 0
      %6893 = vmatpush.bf16.msra.mxu0 0
      %6894 = vmatpush.bf16.msra.mxu0 0
      %6895 = vmatpush.bf16.msra.mxu0 0
      %6896 = vmatpush.bf16.msra.mxu0 0
      %6897 = vmatpush.bf16.msra.mxu0 %v6876
      %6898 = vmatmul.bf16.gmra.mxu0 %v6873
      %v6899 = vpop.f32.mrf.mxu0
      %v6900 = vadd.f32 0.0, %v6899
      %v6901 = vpop.f32.mrf.mxu0
      %6902 = vdwg.mxu0
      %6903 = vmatpush.bf16.msra.mxu0 0
      %6904 = vmatpush.bf16.msra.mxu0 0
      %6905 = vmatpush.bf16.msra.mxu0 0
      %6906 = vmatpush.bf16.msra.mxu0 0
      %6907 = vmatpush.bf16.msra.mxu0 0
      %6908 = vmatpush.bf16.msra.mxu0 0
      %6909 = vmatpush.bf16.msra.mxu0 0
      %6910 = vmatpush.bf16.msra.mxu0 %v6879
      %6911 = vmatmul.bf16.gmra.mxu0 %v6873
      %v6912 = vpop.f32.mrf.mxu0
      %v6913 = vadd.f32 0.0, %v6912
      %v6914 = vpop.f32.mrf.mxu0
      %6915 = vdwg.mxu0
      %6916 = vmatpush.bf16.msra.mxu0 0
      %6917 = vmatpush.bf16.msra.mxu0 0
      %6918 = vmatpush.bf16.msra.mxu0 0
      %6919 = vmatpush.bf16.msra.mxu0 0
      %6920 = vmatpush.bf16.msra.mxu0 0
      %6921 = vmatpush.bf16.msra.mxu0 0
      %6922 = vmatpush.bf16.msra.mxu0 0
      %6923 = vmatpush.bf16.msra.mxu0 %v6882
      %6924 = vmatmul.bf16.gmra.mxu0 %v6873
      %v6925 = vpop.f32.mrf.mxu0
      %v6926 = vadd.f32 0.0, %v6925
      %v6927 = vpop.f32.mrf.mxu0
      %6928 = vdwg.mxu0
      %6929 = vmatpush.bf16.msra.mxu0 0
      %6930 = vmatpush.bf16.msra.mxu0 0
      %6931 = vmatpush.bf16.msra.mxu0 0
      %6932 = vmatpush.bf16.msra.mxu0 0
      %6933 = vmatpush.bf16.msra.mxu0 0
      %6934 = vmatpush.bf16.msra.mxu0 0
      %6935 = vmatpush.bf16.msra.mxu0 0
      %6936 = vmatpush.bf16.msra.mxu0 %v6885
      %6937 = vmatmul.bf16.gmra.mxu0 %v6873
      %v6938 = vpop.f32.mrf.mxu0
      %v6939 = vadd.f32 0.0, %v6938
      %v6940 = vpop.f32.mrf.mxu0
      %6941 = vdwg.mxu0
      %6942 = vmatpush.bf16.msra.mxu0 0
      %6943 = vmatpush.bf16.msra.mxu0 0
      %6944 = vmatpush.bf16.msra.mxu0 0
      %6945 = vmatpush.bf16.msra.mxu0 0
      %6946 = vmatpush.bf16.msra.mxu0 0
      %6947 = vmatpush.bf16.msra.mxu0 0
      %6948 = vmatpush.bf16.msra.mxu0 0
      %6949 = vmatpush.bf16.msra.mxu0 %v6888
      %6950 = vmatmul.bf16.gmra.mxu0 %v6873
      %v6951 = vpop.f32.mrf.mxu0
      %v6952 = vadd.f32 0.0, %v6951
      %v6953 = vpop.f32.mrf.mxu0
      %6954 = vdwg.mxu0
      %v6955 = vadd.f32 %v6828, %v6900
      %v6956 = vadd.f32 %v6829, %v6913
      %v6957 = vadd.f32 %v6830, %v6926
      %v6958 = vadd.f32 %v6831, %v6939
      %v6959 = vadd.f32 %v6832, %v6952
      %v6960 = vld [vmem:[%s199 + $0x8] sm:$0xff]
      %v6961 = vld [vmem:[%s199 + $0x10] sm:$0xf]
      %s6962 = scalar_lea.vmem %s1, 220
      %v6963 = vld [vmem:[%s6962] sm:$0xf]
      %6965 = vst [vmem:[#allocation1] ss:$4 sm:$0xff] %v6960
      %s6967 = scalar_lea.vmem [#allocation1], 32
      %6968 = vst [vmem:[%s6967] ss:$4 sm:$0xff] %v6961
      %v6969 = vld.sshfl [vmem:[#allocation1] sm:$0xff pattern:$0x73625140]
      %v6971 = vld.sshfl [vmem:[#allocation1 + $0x8] sm:$0xff pattern:$0x73625140]
      %v6973 = vld.sshfl [vmem:[#allocation1 + $0x10] sm:$0xff pattern:$0x73625140]
      %v6975 = vld.sshfl [vmem:[#allocation1 + $0x18] sm:$0xff pattern:$0x73625140]
      %v6977 = vld.sshfl [vmem:[#allocation1 + $0x20] sm:$0xff pattern:$0x73625140]
      %v6979 = vld.sshfl [vmem:[#allocation1 + $0x28] sm:$0xff pattern:$0x73625140]
      %6981 = vrot.lane.b32.xlu0 %v6969, 16
      %v6982 = vpop.permute.xlu0 %6981
      %6983 = vrot.lane.b32.xlu0 %v6971, 16
      %v6984 = vpop.permute.xlu0 %6983
      %6985 = vrot.lane.b32.xlu0 %v6973, 16
      %v6986 = vpop.permute.xlu0 %6985
      %6987 = vrot.lane.b32.xlu0 %v6975, 16
      %v6988 = vpop.permute.xlu0 %6987
      %6989 = vrot.lane.b32.xlu0 %v6977, 16
      %v6990 = vpop.permute.xlu0 %6989
      %6991 = vrot.lane.b32.xlu0 %v6979, 16
      %v6992 = vpop.permute.xlu0 %6991
      %vm6993 = vcmask 130048
      %v6994 = vsel %vm6993, %v6982, %v6984
      %v6995 = vsel %vm6993, %v6984, %v6986
      %v6996 = vsel %vm6993, %v6986, %v6988
      %v6997 = vsel %vm6993, %v6988, %v6990
      %v6998 = vsel %vm6993, %v6990, %v6992
      %v7000 = vsel %vm250, %v6963, 0
      %v7003 = vsel %vm254, %v6994, 0
      %v7006 = vsel %vm254, %v6995, 0
      %v7009 = vsel %vm254, %v6996, 0
      %v7012 = vsel %vm254, %v6997, 0
      %v7015 = vsel %vm254, %v6998, 0
      %7017 = vmatpush.bf16.msra.mxu0 0
      %7018 = vmatpush.bf16.msra.mxu0 0
      %7019 = vmatpush.bf16.msra.mxu0 0
      %7020 = vmatpush.bf16.msra.mxu0 0
      %7021 = vmatpush.bf16.msra.mxu0 0
      %7022 = vmatpush.bf16.msra.mxu0 0
      %7023 = vmatpush.bf16.msra.mxu0 0
      %7024 = vmatpush.bf16.msra.mxu0 %v7003
      %7025 = vmatmul.bf16.gmra.mxu0 %v7000
      %v7026 = vpop.f32.mrf.mxu0
      %v7027 = vadd.f32 0.0, %v7026
      %v7028 = vpop.f32.mrf.mxu0
      %7029 = vdwg.mxu0
      %7030 = vmatpush.bf16.msra.mxu0 0
      %7031 = vmatpush.bf16.msra.mxu0 0
      %7032 = vmatpush.bf16.msra.mxu0 0
      %7033 = vmatpush.bf16.msra.mxu0 0
      %7034 = vmatpush.bf16.msra.mxu0 0
      %7035 = vmatpush.bf16.msra.mxu0 0
      %7036 = vmatpush.bf16.msra.mxu0 0
      %7037 = vmatpush.bf16.msra.mxu0 %v7006
      %7038 = vmatmul.bf16.gmra.mxu0 %v7000
      %v7039 = vpop.f32.mrf.mxu0
      %v7040 = vadd.f32 0.0, %v7039
      %v7041 = vpop.f32.mrf.mxu0
      %7042 = vdwg.mxu0
      %7043 = vmatpush.bf16.msra.mxu0 0
      %7044 = vmatpush.bf16.msra.mxu0 0
      %7045 = vmatpush.bf16.msra.mxu0 0
      %7046 = vmatpush.bf16.msra.mxu0 0
      %7047 = vmatpush.bf16.msra.mxu0 0
      %7048 = vmatpush.bf16.msra.mxu0 0
      %7049 = vmatpush.bf16.msra.mxu0 0
      %7050 = vmatpush.bf16.msra.mxu0 %v7009
      %7051 = vmatmul.bf16.gmra.mxu0 %v7000
      %v7052 = vpop.f32.mrf.mxu0
      %v7053 = vadd.f32 0.0, %v7052
      %v7054 = vpop.f32.mrf.mxu0
      %7055 = vdwg.mxu0
      %7056 = vmatpush.bf16.msra.mxu0 0
      %7057 = vmatpush.bf16.msra.mxu0 0
      %7058 = vmatpush.bf16.msra.mxu0 0
      %7059 = vmatpush.bf16.msra.mxu0 0
      %7060 = vmatpush.bf16.msra.mxu0 0
      %7061 = vmatpush.bf16.msra.mxu0 0
      %7062 = vmatpush.bf16.msra.mxu0 0
      %7063 = vmatpush.bf16.msra.mxu0 %v7012
      %7064 = vmatmul.bf16.gmra.mxu0 %v7000
      %v7065 = vpop.f32.mrf.mxu0
      %v7066 = vadd.f32 0.0, %v7065
      %v7067 = vpop.f32.mrf.mxu0
      %7068 = vdwg.mxu0
      %7069 = vmatpush.bf16.msra.mxu0 0
      %7070 = vmatpush.bf16.msra.mxu0 0
      %7071 = vmatpush.bf16.msra.mxu0 0
      %7072 = vmatpush.bf16.msra.mxu0 0
      %7073 = vmatpush.bf16.msra.mxu0 0
      %7074 = vmatpush.bf16.msra.mxu0 0
      %7075 = vmatpush.bf16.msra.mxu0 0
      %7076 = vmatpush.bf16.msra.mxu0 %v7015
      %7077 = vmatmul.bf16.gmra.mxu0 %v7000
      %v7078 = vpop.f32.mrf.mxu0
      %v7079 = vadd.f32 0.0, %v7078
      %v7080 = vpop.f32.mrf.mxu0
      %7081 = vdwg.mxu0
      %v7082 = vadd.f32 %v6955, %v7027
      %v7083 = vadd.f32 %v6956, %v7040
      %v7084 = vadd.f32 %v6957, %v7053
      %v7085 = vadd.f32 %v6958, %v7066
      %v7086 = vadd.f32 %v6959, %v7079
      %v7087 = vld [vmem:[%s199 + $0x8] sm:$0xff]
      %v7088 = vld [vmem:[%s199 + $0x10] sm:$0xf]
      %s7089 = scalar_lea.vmem %s1, 224
      %v7090 = vld [vmem:[%s7089] sm:$0xf]
      %7092 = vst [vmem:[#allocation1] ss:$4 sm:$0xff] %v7087
      %s7094 = scalar_lea.vmem [#allocation1], 32
      %7095 = vst [vmem:[%s7094] ss:$4 sm:$0xff] %v7088
      %v7096 = vld.sshfl [vmem:[#allocation1] sm:$0xff pattern:$0x73625140]
      %v7098 = vld.sshfl [vmem:[#allocation1 + $0x8] sm:$0xff pattern:$0x73625140]
      %v7100 = vld.sshfl [vmem:[#allocation1 + $0x10] sm:$0xff pattern:$0x73625140]
      %v7102 = vld.sshfl [vmem:[#allocation1 + $0x18] sm:$0xff pattern:$0x73625140]
      %v7104 = vld.sshfl [vmem:[#allocation1 + $0x20] sm:$0xff pattern:$0x73625140]
      %v7106 = vld.sshfl [vmem:[#allocation1 + $0x28] sm:$0xff pattern:$0x73625140]
      %7108 = vrot.lane.b32.xlu0 %v7096, 13
      %v7109 = vpop.permute.xlu0 %7108
      %7110 = vrot.lane.b32.xlu0 %v7098, 13
      %v7111 = vpop.permute.xlu0 %7110
      %7112 = vrot.lane.b32.xlu0 %v7100, 13
      %v7113 = vpop.permute.xlu0 %7112
      %7114 = vrot.lane.b32.xlu0 %v7102, 13
      %v7115 = vpop.permute.xlu0 %7114
      %7116 = vrot.lane.b32.xlu0 %v7104, 13
      %v7117 = vpop.permute.xlu0 %7116
      %7118 = vrot.lane.b32.xlu0 %v7106, 13
      %v7119 = vpop.permute.xlu0 %7118
      %vm7120 = vcmask 105472
      %v7121 = vsel %vm7120, %v7109, %v7111
      %v7122 = vsel %vm7120, %v7111, %v7113
      %v7123 = vsel %vm7120, %v7113, %v7115
      %v7124 = vsel %vm7120, %v7115, %v7117
      %v7125 = vsel %vm7120, %v7117, %v7119
      %v7127 = vsel %vm250, %v7090, 0
      %v7130 = vsel %vm254, %v7121, 0
      %v7133 = vsel %vm254, %v7122, 0
      %v7136 = vsel %vm254, %v7123, 0
      %v7139 = vsel %vm254, %v7124, 0
      %v7142 = vsel %vm254, %v7125, 0
      %7144 = vmatpush.bf16.msra.mxu0 0
      %7145 = vmatpush.bf16.msra.mxu0 0
      %7146 = vmatpush.bf16.msra.mxu0 0
      %7147 = vmatpush.bf16.msra.mxu0 0
      %7148 = vmatpush.bf16.msra.mxu0 0
      %7149 = vmatpush.bf16.msra.mxu0 0
      %7150 = vmatpush.bf16.msra.mxu0 0
      %7151 = vmatpush.bf16.msra.mxu0 %v7130
      %7152 = vmatmul.bf16.gmra.mxu0 %v7127
      %v7153 = vpop.f32.mrf.mxu0
      %v7154 = vadd.f32 0.0, %v7153
      %v7155 = vpop.f32.mrf.mxu0
      %7156 = vdwg.mxu0
      %7157 = vmatpush.bf16.msra.mxu0 0
      %7158 = vmatpush.bf16.msra.mxu0 0
      %7159 = vmatpush.bf16.msra.mxu0 0
      %7160 = vmatpush.bf16.msra.mxu0 0
      %7161 = vmatpush.bf16.msra.mxu0 0
      %7162 = vmatpush.bf16.msra.mxu0 0
      %7163 = vmatpush.bf16.msra.mxu0 0
      %7164 = vmatpush.bf16.msra.mxu0 %v7133
      %7165 = vmatmul.bf16.gmra.mxu0 %v7127
      %v7166 = vpop.f32.mrf.mxu0
      %v7167 = vadd.f32 0.0, %v7166
      %v7168 = vpop.f32.mrf.mxu0
      %7169 = vdwg.mxu0
      %7170 = vmatpush.bf16.msra.mxu0 0
      %7171 = vmatpush.bf16.msra.mxu0 0
      %7172 = vmatpush.bf16.msra.mxu0 0
      %7173 = vmatpush.bf16.msra.mxu0 0
      %7174 = vmatpush.bf16.msra.mxu0 0
      %7175 = vmatpush.bf16.msra.mxu0 0
      %7176 = vmatpush.bf16.msra.mxu0 0
      %7177 = vmatpush.bf16.msra.mxu0 %v7136
      %7178 = vmatmul.bf16.gmra.mxu0 %v7127
      %v7179 = vpop.f32.mrf.mxu0
      %v7180 = vadd.f32 0.0, %v7179
      %v7181 = vpop.f32.mrf.mxu0
      %7182 = vdwg.mxu0
      %7183 = vmatpush.bf16.msra.mxu0 0
      %7184 = vmatpush.bf16.msra.mxu0 0
      %7185 = vmatpush.bf16.msra.mxu0 0
      %7186 = vmatpush.bf16.msra.mxu0 0
      %7187 = vmatpush.bf16.msra.mxu0 0
      %7188 = vmatpush.bf16.msra.mxu0 0
      %7189 = vmatpush.bf16.msra.mxu0 0
      %7190 = vmatpush.bf16.msra.mxu0 %v7139
      %7191 = vmatmul.bf16.gmra.mxu0 %v7127
      %v7192 = vpop.f32.mrf.mxu0
      %v7193 = vadd.f32 0.0, %v7192
      %v7194 = vpop.f32.mrf.mxu0
      %7195 = vdwg.mxu0
      %7196 = vmatpush.bf16.msra.mxu0 0
      %7197 = vmatpush.bf16.msra.mxu0 0
      %7198 = vmatpush.bf16.msra.mxu0 0
      %7199 = vmatpush.bf16.msra.mxu0 0
      %7200 = vmatpush.bf16.msra.mxu0 0
      %7201 = vmatpush.bf16.msra.mxu0 0
      %7202 = vmatpush.bf16.msra.mxu0 0
      %7203 = vmatpush.bf16.msra.mxu0 %v7142
      %7204 = vmatmul.bf16.gmra.mxu0 %v7127
      %v7205 = vpop.f32.mrf.mxu0
      %v7206 = vadd.f32 0.0, %v7205
      %v7207 = vpop.f32.mrf.mxu0
      %7208 = vdwg.mxu0
      %v7209 = vadd.f32 %v7082, %v7154
      %v7210 = vadd.f32 %v7083, %v7167
      %v7211 = vadd.f32 %v7084, %v7180
      %v7212 = vadd.f32 %v7085, %v7193
      %v7213 = vadd.f32 %v7086, %v7206
      %v7214 = vld [vmem:[%s199 + $0x8] sm:$0xff]
      %v7215 = vld [vmem:[%s199 + $0x10] sm:$0xf]
      %s7216 = scalar_lea.vmem %s1, 228
      %v7217 = vld [vmem:[%s7216] sm:$0xf]
      %7219 = vst [vmem:[#allocation1] ss:$4 sm:$0xff] %v7214
      %s7221 = scalar_lea.vmem [#allocation1], 32
      %7222 = vst [vmem:[%s7221] ss:$4 sm:$0xff] %v7215
      %v7223 = vld.sshfl [vmem:[#allocation1] sm:$0xff pattern:$0x73625140]
      %v7225 = vld.sshfl [vmem:[#allocation1 + $0x8] sm:$0xff pattern:$0x73625140]
      %v7227 = vld.sshfl [vmem:[#allocation1 + $0x10] sm:$0xff pattern:$0x73625140]
      %v7229 = vld.sshfl [vmem:[#allocation1 + $0x18] sm:$0xff pattern:$0x73625140]
      %v7231 = vld.sshfl [vmem:[#allocation1 + $0x20] sm:$0xff pattern:$0x73625140]
      %v7233 = vld.sshfl [vmem:[#allocation1 + $0x28] sm:$0xff pattern:$0x73625140]
      %7235 = vrot.lane.b32.xlu0 %v7223, 10
      %v7236 = vpop.permute.xlu0 %7235
      %7237 = vrot.lane.b32.xlu0 %v7225, 10
      %v7238 = vpop.permute.xlu0 %7237
      %7239 = vrot.lane.b32.xlu0 %v7227, 10
      %v7240 = vpop.permute.xlu0 %7239
      %7241 = vrot.lane.b32.xlu0 %v7229, 10
      %v7242 = vpop.permute.xlu0 %7241
      %7243 = vrot.lane.b32.xlu0 %v7231, 10
      %v7244 = vpop.permute.xlu0 %7243
      %7245 = vrot.lane.b32.xlu0 %v7233, 10
      %v7246 = vpop.permute.xlu0 %7245
      %vm7247 = vcmask 80896
      %v7248 = vsel %vm7247, %v7236, %v7238
      %v7249 = vsel %vm7247, %v7238, %v7240
      %v7250 = vsel %vm7247, %v7240, %v7242
      %v7251 = vsel %vm7247, %v7242, %v7244
      %v7252 = vsel %vm7247, %v7244, %v7246
      %v7254 = vsel %vm250, %v7217, 0
      %v7257 = vsel %vm254, %v7248, 0
      %v7260 = vsel %vm254, %v7249, 0
      %v7263 = vsel %vm254, %v7250, 0
      %v7266 = vsel %vm254, %v7251, 0
      %v7269 = vsel %vm254, %v7252, 0
      %7271 = vmatpush.bf16.msra.mxu0 0
      %7272 = vmatpush.bf16.msra.mxu0 0
      %7273 = vmatpush.bf16.msra.mxu0 0
      %7274 = vmatpush.bf16.msra.mxu0 0
      %7275 = vmatpush.bf16.msra.mxu0 0
      %7276 = vmatpush.bf16.msra.mxu0 0
      %7277 = vmatpush.bf16.msra.mxu0 0
      %7278 = vmatpush.bf16.msra.mxu0 %v7257
      %7279 = vmatmul.bf16.gmra.mxu0 %v7254
      %v7280 = vpop.f32.mrf.mxu0
      %v7281 = vadd.f32 0.0, %v7280
      %v7282 = vpop.f32.mrf.mxu0
      %7283 = vdwg.mxu0
      %7284 = vmatpush.bf16.msra.mxu0 0
      %7285 = vmatpush.bf16.msra.mxu0 0
      %7286 = vmatpush.bf16.msra.mxu0 0
      %7287 = vmatpush.bf16.msra.mxu0 0
      %7288 = vmatpush.bf16.msra.mxu0 0
      %7289 = vmatpush.bf16.msra.mxu0 0
      %7290 = vmatpush.bf16.msra.mxu0 0
      %7291 = vmatpush.bf16.msra.mxu0 %v7260
      %7292 = vmatmul.bf16.gmra.mxu0 %v7254
      %v7293 = vpop.f32.mrf.mxu0
      %v7294 = vadd.f32 0.0, %v7293
      %v7295 = vpop.f32.mrf.mxu0
      %7296 = vdwg.mxu0
      %7297 = vmatpush.bf16.msra.mxu0 0
      %7298 = vmatpush.bf16.msra.mxu0 0
      %7299 = vmatpush.bf16.msra.mxu0 0
      %7300 = vmatpush.bf16.msra.mxu0 0
      %7301 = vmatpush.bf16.msra.mxu0 0
      %7302 = vmatpush.bf16.msra.mxu0 0
      %7303 = vmatpush.bf16.msra.mxu0 0
      %7304 = vmatpush.bf16.msra.mxu0 %v7263
      %7305 = vmatmul.bf16.gmra.mxu0 %v7254
      %v7306 = vpop.f32.mrf.mxu0
      %v7307 = vadd.f32 0.0, %v7306
      %v7308 = vpop.f32.mrf.mxu0
      %7309 = vdwg.mxu0
      %7310 = vmatpush.bf16.msra.mxu0 0
      %7311 = vmatpush.bf16.msra.mxu0 0
      %7312 = vmatpush.bf16.msra.mxu0 0
      %7313 = vmatpush.bf16.msra.mxu0 0
      %7314 = vmatpush.bf16.msra.mxu0 0
      %7315 = vmatpush.bf16.msra.mxu0 0
      %7316 = vmatpush.bf16.msra.mxu0 0
      %7317 = vmatpush.bf16.msra.mxu0 %v7266
      %7318 = vmatmul.bf16.gmra.mxu0 %v7254
      %v7319 = vpop.f32.mrf.mxu0
      %v7320 = vadd.f32 0.0, %v7319
      %v7321 = vpop.f32.mrf.mxu0
      %7322 = vdwg.mxu0
      %7323 = vmatpush.bf16.msra.mxu0 0
      %7324 = vmatpush.bf16.msra.mxu0 0
      %7325 = vmatpush.bf16.msra.mxu0 0
      %7326 = vmatpush.bf16.msra.mxu0 0
      %7327 = vmatpush.bf16.msra.mxu0 0
      %7328 = vmatpush.bf16.msra.mxu0 0
      %7329 = vmatpush.bf16.msra.mxu0 0
      %7330 = vmatpush.bf16.msra.mxu0 %v7269
      %7331 = vmatmul.bf16.gmra.mxu0 %v7254
      %v7332 = vpop.f32.mrf.mxu0
      %v7333 = vadd.f32 0.0, %v7332
      %v7334 = vpop.f32.mrf.mxu0
      %7335 = vdwg.mxu0
      %v7336 = vadd.f32 %v7209, %v7281
      %v7337 = vadd.f32 %v7210, %v7294
      %v7338 = vadd.f32 %v7211, %v7307
      %v7339 = vadd.f32 %v7212, %v7320
      %v7340 = vadd.f32 %v7213, %v7333
      %7341 = vst [vmem:[%s204] sm:$0xff] %v7336
      %7342 = vst [vmem:[%s204 + $0x8] sm:$0xff] %v7337
      %7343 = vst [vmem:[%s204 + $0x10] sm:$0xff] %v7338
      %7344 = vst [vmem:[%s204 + $0x18] sm:$0xff] %v7339
      %vm7345 = vcmask 261120
      %7346 = vst.msk [vmem:[%s204 + $0x20] sm:$0xff] %vm7345, %v7340
      %v7347 = vld [vmem:[%s2] sm:$0x1f]
      %v7349 = vperm.slane %v7347, 0
      %v7350 = vperm.slane %v7347, 1
      %v7351 = vperm.slane %v7347, 2
      %v7352 = vperm.slane %v7347, 3
      %v7353 = vperm.slane %v7347, 4
      %v7359 = vmul.f32 %v7336, %v7349
      %v7360 = vmul.f32 %v7337, %v7350
      %v7361 = vmul.f32 %v7338, %v7351
      %v7362 = vmul.f32 %v7339, %v7352
      %v7363 = vmul.f32 %v7340, %v7353
      %v7364 = vadd.f32 %v7359, %v7360
      %v7365 = vadd.f32 %v7364, %v7361
      %v7366 = vadd.f32 %v7365, %v7362
      %v7367 = vsel %vm7345, %v7363, 0.0
      %v7368 = vadd.f32 %v7366, %v7367
      %7369 = vadd.xlane.f32.xlu0 %v7368
      %v7370 = vpop.xlane.xlu0 %7369
      %vm7371 = vcmask 7168
      %7372 = vst.msk [vmem:[%s208] sm:$0xff] %vm7371, %v7370
      %v7373 = vmul.f32 %v7336, %v7336
      %v7374 = vmul.f32 %v7337, %v7337
      %v7375 = vmul.f32 %v7338, %v7338
      %v7376 = vmul.f32 %v7339, %v7339
      %v7377 = vmul.f32 %v7340, %v7340
      %v7378 = vmul.f32 %v7373, %v7349
      %v7379 = vmul.f32 %v7374, %v7350
      %v7380 = vmul.f32 %v7375, %v7351
      %v7381 = vmul.f32 %v7376, %v7352
      %v7382 = vmul.f32 %v7377, %v7353
      %v7383 = vadd.f32 %v7378, %v7379
      %v7384 = vadd.f32 %v7383, %v7380
      %v7385 = vadd.f32 %v7384, %v7381
      %v7386 = vsel %vm7345, %v7382, 0.0
      %v7387 = vadd.f32 %v7385, %v7386
      %7388 = vadd.xlane.f32.xlu0 %v7387
      %v7389 = vpop.xlane.xlu0 %7388
      %vm7390 = vcmask 15368
      %7391 = vst.msk [vmem:[%s208] sm:$0xff] %vm7390, %v7389
      %p7392 = scmp.lt.s32.totalorder %s16, 1
      %s7393 = scalar_select %p7392, %s16, 1
      %s7394 = smul.addr %s7393, 5
      %s7395 = smul.addr %s7394, 8
      %s7396 = scalar_lea.vmem %s3, %s7395
      %p7397 = scmp.lt.s32.totalorder %s16, 1
      %s7398 = scalar_select %p7397, %s16, 1
      %s7399 = smul.addr %s7398, 8
      %s7400 = scalar_lea.vmem %s4, %s7399
      // Predicated region
      $region33: #{dilated_conv_block.2} parent=31 // pred_check
        %p7401 = pneg %p102
      $region34: #{dilated_conv_block.2} parent=31 // pred_check_branch
        %7403 = sbr.rel (%p7401) target = $region36
      $region35: #{dilated_conv_block.2} parent=31 // pred_region
        _
      $region36: #{dilated_conv_block.2} parent=31 // pred_fallthru
        _
      // Predicated region
      $region37: #{dilated_conv_block.2} parent=31 // pred_check
        %p7404 = pneg %p128
      $region38: #{dilated_conv_block.2} parent=31 // pred_check_branch
        %7406 = sbr.rel (%p7404) target = $region40
      $region39: #{dilated_conv_block.2} parent=31 // pred_region
        _
      $region40: #{dilated_conv_block.2} parent=31 // pred_fallthru
        _
    $region32: #{dilated_conv_block.2} parent=5 // pred_fallthru
      _
    %p7407 = scmp.le.s32.totalorder 2, %s11
    // Predicated region
    $region41: #{dilated_conv_block.2} parent=5 // pred_check
      %p7408 = pneg %p7407
    $region42: #{dilated_conv_block.2} parent=5 // pred_check_branch
      %7410 = sbr.rel (%p7408) target = $region44
    $region43: #{dilated_conv_block.2} parent=5 // pred_region
      %s7411 = ssub.s32 %s11, 2
      // Predicated region
      $region45: #{dilated_conv_block.2} parent=43 // pred_check
        %p7412 = pneg %p108
      $region46: #{dilated_conv_block.2} parent=43 // pred_check_branch
        %7414 = sbr.rel (%p7412) target = $region48
      $region47: #{dilated_conv_block.2} parent=43 // pred_region
        %p7415 = scmp.lt.s32.totalorder %s17, 1
        %s7416 = scalar_select %p7415, %s17, 1
        %s7417 = smul.addr %s7416, 5
        %s7418 = smul.addr %s7417, 8
        %s7419 = scalar_lea.vmem %s3, %s7418
      $region48: #{dilated_conv_block.2} parent=43 // pred_fallthru
        _
      // Predicated region
      $region49: #{dilated_conv_block.2} parent=43 // pred_check
        %p7420 = pneg %p134
      $region50: #{dilated_conv_block.2} parent=43 // pred_check_branch
        %7422 = sbr.rel (%p7420) target = $region52
      $region51: #{dilated_conv_block.2} parent=43 // pred_region
        %p7423 = scmp.lt.s32.totalorder %s17, 1
        %s7424 = scalar_select %p7423, %s17, 1
        %s7425 = smul.addr %s7424, 8
        %s7426 = scalar_lea.vmem %s4, %s7425
      $region52: #{dilated_conv_block.2} parent=43 // pred_fallthru
        _
    $region44: #{dilated_conv_block.2} parent=5 // pred_fallthru
      _
  $region6: #{dilated_conv_block.2} parent=0 // loop_footer
    %s15 = sadd.s32 1, %s11
  $region7: #{dilated_conv_block.2} parent=0 // loop_footer_branch
    %10 = sbr.rel target = $region3
  $region8: #{dilated_conv_block.2} parent=0 // loop_exit
    _

</llo_original>
